<compile_context>
chip_gen: v6e
topology: v6e:2x2x1
jax: 0.10.0
libtpu: 0.0.40
codegen_flags: <defaults>
</compile_context>

<pallas_src>
import jax
import jax.numpy as jnp
import numpy as np
from jax.experimental import pallas as pl
from jax.experimental.pallas import tpu as pltpu

EPS = 1e-5
_HIGHEST = jax.lax.Precision.HIGHEST


# --------------------------------------------------------------------------
# Kernel
# --------------------------------------------------------------------------
def _make_residual_block_kernel(count):
    """count = N*H*W (number of elements per channel for BN statistics)."""
    inv_count = 1.0 / float(count)

    def kernel(x_ref, gamma_ref, beta_ref,
               w1_ref, b1_ref, w2_ref, b2_ref,
               shift_ref, chan_ref, out_ref):
        x = x_ref[...]                      # (NH, WC) lane-dense f32
        gamma = gamma_ref[...]              # (1, WC): gamma[c] tiled over W
        beta = beta_ref[...]                # (1, WC)
        chan = chan_ref[...]                # (WC, WC) 0/1 same-channel matrix
        s_up = shift_ref[0]                 # (NH, NH): picks row (n, h-1)
        s_dn = shift_ref[1]                 # (NH, NH): picks row (n, h+1)

        def batchnorm(v):
            # Training-mode BN, batch statistics, biased variance.
            # One pass over the data: sum and sum-of-squares, then one tiny
            # matmul reduces over the W positions inside the lanes and
            # broadcasts the per-channel stats back to every lane.
            s1 = jnp.sum(v, axis=0, keepdims=True)        # (1, WC)
            s2 = jnp.sum(v * v, axis=0, keepdims=True)    # (1, WC)
            mean = jnp.dot(s1, chan, precision=_HIGHEST,
                           preferred_element_type=jnp.float32) * inv_count
            ex2 = jnp.dot(s2, chan, precision=_HIGHEST,
                          preferred_element_type=jnp.float32) * inv_count
            var = ex2 - mean * mean
            return (v - mean) * jax.lax.rsqrt(var + EPS) * gamma + beta

        def conv3x3(v, w_ref, b_ref):
            # kh = 0 / 2 rows via 0/1 shift matmuls (handles the H zero
            # padding and image boundaries); kw taps + W zero padding live
            # inside the block-banded weight matrices.
            v_up = jnp.dot(s_up, v, precision=_HIGHEST,
                           preferred_element_type=jnp.float32)
            v_dn = jnp.dot(s_dn, v, precision=_HIGHEST,
                           preferred_element_type=jnp.float32)
            acc = jnp.dot(v_up, w_ref[0], precision=_HIGHEST,
                          preferred_element_type=jnp.float32)
            acc = acc + jnp.dot(v, w_ref[1], precision=_HIGHEST,
                                preferred_element_type=jnp.float32)
            acc = acc + jnp.dot(v_dn, w_ref[2], precision=_HIGHEST,
                                preferred_element_type=jnp.float32)
            return acc + b_ref[...]

        y = batchnorm(x)
        y = jnp.maximum(y, 0.0)
        y = conv3x3(y, w1_ref, b1_ref)
        y = batchnorm(y)                    # same gamma/beta (same BN module)
        y = conv3x3(y, w2_ref, b2_ref)
        out_ref[...] = jnp.maximum(y + x, 0.0)

    return kernel


# --------------------------------------------------------------------------
# Wrapper-side (one-time) parameter preparation
# --------------------------------------------------------------------------
def _banded_conv_weights(w_oihw, W):
    """(Cout,Cin,3,3) -> (3, W*C, W*C).

    Wk[kh, win*C+cin, wout*C+cout] = w[cout, cin, kh, win-wout+1] when
    |win-wout| <= 1, else 0.  Folds the three kw taps (and the W-axis zero
    padding) into a block-banded matmul operand.
    """
    C = w_oihw.shape[1]
    w = jnp.transpose(w_oihw, (2, 3, 1, 0)).astype(jnp.float32)   # (kh,kw,cin,cout)
    shift = jnp.stack([jnp.eye(W, k=1 - kw, dtype=jnp.float32) for kw in range(3)])
    banded = jnp.einsum('kab,hkij->haibj', shift, w)  # (kh, win, cin, wout, cout)
    return banded.reshape(3, W * C, W * C)


def _row_shift_matrices(N, H):
    """(2, N*H, N*H) 0/1 matrices selecting the (n, h-1) / (n, h+1) rows
    (zero at image boundaries => H-axis zero padding, no cross-image leak)."""
    NH = N * H
    r = jnp.arange(NH)
    h = r % H
    s_up = ((r[:, None] - 1 == r[None, :]) & (h[:, None] > 0)).astype(jnp.float32)
    s_dn = ((r[:, None] + 1 == r[None, :]) & (h[:, None] < H - 1)).astype(jnp.float32)
    return jnp.stack([s_up, s_dn])


def _same_channel_matrix(W, C):
    """(W*C, W*C) 0/1 matrix: A[l, l'] = 1 iff l % C == l' % C."""
    l = jnp.arange(W * C)
    return (l[:, None] % C == l[None, :] % C).astype(jnp.float32)


def _lane_tile(v, W):
    """Per-channel vector (C,) -> (1, W*C) lane layout (lane = w*C + c)."""
    return jnp.tile(v.astype(jnp.float32), W).reshape(1, -1)


# --------------------------------------------------------------------------
# Public entry point (PyTorch NCHW / OIHW layouts at the boundary)
# --------------------------------------------------------------------------
def residual_block_pallas(x_nchw, gamma, beta, w1, b1, w2, b2):
    """x_nchw: (N,C,H,W); w1/w2: (Cout,Cin,3,3) PyTorch layout."""
    N, C, H, W = x_nchw.shape
    NH, WC = N * H, W * C

    # Single relayout in: NCHW -> lane-dense (N*H, W*C) slab.
    x2d = jnp.transpose(x_nchw, (0, 2, 3, 1)).reshape(NH, WC).astype(jnp.float32)

    kernel = _make_residual_block_kernel(N * H * W)
    vmem = pl.BlockSpec(memory_space=pltpu.MemorySpace.VMEM)
    out2d = pl.pallas_call(
        kernel,
        out_shape=jax.ShapeDtypeStruct((NH, WC), jnp.float32),
        in_specs=[vmem] * 9,
        out_specs=vmem,
    )(x2d,
      _lane_tile(gamma, W), _lane_tile(beta, W),
      _banded_conv_weights(w1, W), _lane_tile(b1, W),
      _banded_conv_weights(w2, W), _lane_tile(b2, W),
      _row_shift_matrices(N, H),
      _same_channel_matrix(W, C))

    # Single relayout out: lane-dense slab -> NCHW.
    return jnp.transpose(out2d.reshape(N, H, W, C), (0, 3, 1, 2))


# --------------------------------------------------------------------------
# Pure-JAX NCHW reference (mirrors the PyTorch forward)
# --------------------------------------------------------------------------
def residual_block_ref(x, gamma, beta, w1, b1, w2, b2):
    def bn(v):
        mean = v.mean(axis=(0, 2, 3), keepdims=True)
        var = ((v - mean) ** 2).mean(axis=(0, 2, 3), keepdims=True)
        return ((v - mean) / jnp.sqrt(var + EPS)
                * gamma[None, :, None, None] + beta[None, :, None, None])

    def conv(v, w, b):
        o = jax.lax.conv_general_dilated(
            v, w, window_strides=(1, 1), padding=((1, 1), (1, 1)),
            dimension_numbers=('NCHW', 'OIHW', 'NCHW'),
            precision=_HIGHEST)
        return o + b[None, :, None, None]

    y = bn(x)
    y = jnp.maximum(y, 0.0)
    y = conv(y, w1, b1)
    y = bn(y)
    y = conv(y, w2, b2)
    y = y + x
    return jnp.maximum(y, 0.0)


if __name__ == "__main__":
    # C=8, W=16 -> W*C = 128: exactly one lane-dense vreg row per (n, h).
    N, C, H, W = 2, 8, 16, 16
    key = jax.random.PRNGKey(0)
    kx, kg, kb, kw1, kb1, kw2, kb2 = jax.random.split(key, 7)

    x = jax.random.normal(kx, (N, C, H, W), jnp.float32)
    gamma = 1.0 + 0.1 * jax.random.normal(kg, (C,), jnp.float32)
    beta = 0.1 * jax.random.normal(kb, (C,), jnp.float32)
    w_scale = 1.0 / np.sqrt(9 * C)
    w1 = w_scale * jax.random.normal(kw1, (C, C, 3, 3), jnp.float32)
    b1 = 0.1 * jax.random.normal(kb1, (C,), jnp.float32)
    w2 = w_scale * jax.random.normal(kw2, (C, C, 3, 3), jnp.float32)
    b2 = 0.1 * jax.random.normal(kb2, (C,), jnp.float32)

    out = residual_block_pallas(x, gamma, beta, w1, b1, w2, b2)
    out = jax.block_until_ready(out)

    ref = residual_block_ref(x, gamma, beta, w1, b1, w2, b2)
    # 200x tighter than before; the all-f32 HIGHEST-precision path supports it.
    np.testing.assert_allclose(np.asarray(out), np.asarray(ref),
                               rtol=1e-4, atol=1e-4)
    print("KERNEL_OK")
</pallas_src>

<mosaic_0001>
module attributes {stable_mosaic.version = 11 : i64} {
  func.func @kernel(%arg0: memref<32x128xf32, #tpu.memory_space<vmem>>, %arg1: memref<1x128xf32, #tpu.memory_space<vmem>>, %arg2: memref<1x128xf32, #tpu.memory_space<vmem>>, %arg3: memref<3x128x128xf32, #tpu.memory_space<vmem>>, %arg4: memref<1x128xf32, #tpu.memory_space<vmem>>, %arg5: memref<3x128x128xf32, #tpu.memory_space<vmem>>, %arg6: memref<1x128xf32, #tpu.memory_space<vmem>>, %arg7: memref<2x32x32xf32, #tpu.memory_space<vmem>>, %arg8: memref<128x128xf32, #tpu.memory_space<vmem>>, %arg9: memref<32x128xf32, #tpu.memory_space<vmem>>) attributes {dimension_semantics = [], scalar_prefetch = 0 : i64, scratch_operands = 0 : i64, tpu.core_type = #tpu.core_type<tc>} {
    %c0 = arith.constant 0 : index
    %c0_0 = arith.constant 0 : index
    %0 = vector.load %arg0[%c0, %c0_0] : memref<32x128xf32, #tpu.memory_space<vmem>>, vector<32x128xf32>
    %c0_1 = arith.constant 0 : index
    %c0_2 = arith.constant 0 : index
    %1 = vector.load %arg1[%c0_1, %c0_2] : memref<1x128xf32, #tpu.memory_space<vmem>>, vector<1x128xf32>
    %c0_3 = arith.constant 0 : index
    %c0_4 = arith.constant 0 : index
    %2 = vector.load %arg2[%c0_3, %c0_4] : memref<1x128xf32, #tpu.memory_space<vmem>>, vector<1x128xf32>
    %c0_5 = arith.constant 0 : index
    %c0_6 = arith.constant 0 : index
    %3 = vector.load %arg8[%c0_5, %c0_6] : memref<128x128xf32, #tpu.memory_space<vmem>>, vector<128x128xf32>
    %c0_7 = arith.constant 0 : index
    %c0_8 = arith.constant 0 : index
    %c0_9 = arith.constant 0 : index
    %4 = vector.load %arg7[%c0_7, %c0_8, %c0_9] : memref<2x32x32xf32, #tpu.memory_space<vmem>>, vector<1x32x32xf32>
    %5 = vector.shape_cast %4 : vector<1x32x32xf32> to vector<32x32xf32>
    %c1 = arith.constant 1 : index
    %c0_10 = arith.constant 0 : index
    %c0_11 = arith.constant 0 : index
    %6 = vector.load %arg7[%c1, %c0_10, %c0_11] : memref<2x32x32xf32, #tpu.memory_space<vmem>>, vector<1x32x32xf32>
    %7 = vector.shape_cast %6 : vector<1x32x32xf32> to vector<32x32xf32>
    %cst = arith.constant dense<0.000000e+00> : vector<128xf32>
    %8 = vector.multi_reduction <add>, %0, %cst [0] : vector<32x128xf32> to vector<128xf32>
    %9 = vector.shape_cast %8 : vector<128xf32> to vector<1x128xf32>
    %10 = arith.mulf %0, %0 : vector<32x128xf32>
    %cst_12 = arith.constant dense<0.000000e+00> : vector<128xf32>
    %11 = vector.multi_reduction <add>, %10, %cst_12 [0] : vector<32x128xf32> to vector<128xf32>
    %12 = vector.shape_cast %11 : vector<128xf32> to vector<1x128xf32>
    %cst_13 = arith.constant dense<0.000000e+00> : vector<1x128xf32>
    %13 = tpu.matmul %9, %3, %cst_13 {dimension_numbers = #tpu.dot_dimension_numbers<[1], [0], [0], [1], [0, 0, 1, 1], [], []>, precision = #tpu.contract_precision<fp32>} : vector<1x128xf32>, vector<128x128xf32>, vector<1x128xf32> -> vector<1x128xf32>
    %cst_14 = arith.constant 0.001953125 : f32
    %14 = vector.broadcast %cst_14 : f32 to vector<1x128xf32>
    %15 = arith.mulf %13, %14 : vector<1x128xf32>
    %cst_15 = arith.constant dense<0.000000e+00> : vector<1x128xf32>
    %16 = tpu.matmul %12, %3, %cst_15 {dimension_numbers = #tpu.dot_dimension_numbers<[1], [0], [0], [1], [0, 0, 1, 1], [], []>, precision = #tpu.contract_precision<fp32>} : vector<1x128xf32>, vector<128x128xf32>, vector<1x128xf32> -> vector<1x128xf32>
    %cst_16 = arith.constant 0.001953125 : f32
    %17 = vector.broadcast %cst_16 : f32 to vector<1x128xf32>
    %18 = arith.mulf %16, %17 : vector<1x128xf32>
    %19 = arith.mulf %15, %15 : vector<1x128xf32>
    %20 = arith.subf %18, %19 : vector<1x128xf32>
    %21 = vector.broadcast %15 : vector<1x128xf32> to vector<32x128xf32>
    %22 = arith.subf %0, %21 : vector<32x128xf32>
    %cst_17 = arith.constant 9.99999974E-6 : f32
    %23 = vector.broadcast %cst_17 : f32 to vector<1x128xf32>
    %24 = arith.addf %20, %23 : vector<1x128xf32>
    %25 = math.rsqrt %24 : vector<1x128xf32>
    %26 = vector.broadcast %25 : vector<1x128xf32> to vector<32x128xf32>
    %27 = arith.mulf %22, %26 : vector<32x128xf32>
    %28 = vector.broadcast %1 : vector<1x128xf32> to vector<32x128xf32>
    %29 = arith.mulf %27, %28 : vector<32x128xf32>
    %30 = vector.broadcast %2 : vector<1x128xf32> to vector<32x128xf32>
    %31 = arith.addf %29, %30 : vector<32x128xf32>
    %cst_18 = arith.constant 0.000000e+00 : f32
    %32 = vector.broadcast %cst_18 : f32 to vector<32x128xf32>
    %33 = arith.maximumf %31, %32 : vector<32x128xf32>
    %cst_19 = arith.constant dense<0.000000e+00> : vector<32x128xf32>
    %34 = tpu.matmul %5, %33, %cst_19 {dimension_numbers = #tpu.dot_dimension_numbers<[1], [0], [0], [1], [0, 0, 1, 1], [], []>, precision = #tpu.contract_precision<fp32>} : vector<32x32xf32>, vector<32x128xf32>, vector<32x128xf32> -> vector<32x128xf32>
    %cst_20 = arith.constant dense<0.000000e+00> : vector<32x128xf32>
    %35 = tpu.matmul %7, %33, %cst_20 {dimension_numbers = #tpu.dot_dimension_numbers<[1], [0], [0], [1], [0, 0, 1, 1], [], []>, precision = #tpu.contract_precision<fp32>} : vector<32x32xf32>, vector<32x128xf32>, vector<32x128xf32> -> vector<32x128xf32>
    %c0_21 = arith.constant 0 : index
    %c0_22 = arith.constant 0 : index
    %c0_23 = arith.constant 0 : index
    %36 = vector.load %arg3[%c0_21, %c0_22, %c0_23] : memref<3x128x128xf32, #tpu.memory_space<vmem>>, vector<1x128x128xf32>
    %37 = vector.shape_cast %36 : vector<1x128x128xf32> to vector<128x128xf32>
    %cst_24 = arith.constant dense<0.000000e+00> : vector<32x128xf32>
    %38 = tpu.matmul %34, %37, %cst_24 {dimension_numbers = #tpu.dot_dimension_numbers<[1], [0], [0], [1], [0, 0, 1, 1], [], []>, precision = #tpu.contract_precision<fp32>} : vector<32x128xf32>, vector<128x128xf32>, vector<32x128xf32> -> vector<32x128xf32>
    %c1_25 = arith.constant 1 : index
    %c0_26 = arith.constant 0 : index
    %c0_27 = arith.constant 0 : index
    %39 = vector.load %arg3[%c1_25, %c0_26, %c0_27] : memref<3x128x128xf32, #tpu.memory_space<vmem>>, vector<1x128x128xf32>
    %40 = vector.shape_cast %39 : vector<1x128x128xf32> to vector<128x128xf32>
    %cst_28 = arith.constant dense<0.000000e+00> : vector<32x128xf32>
    %41 = tpu.matmul %33, %40, %cst_28 {dimension_numbers = #tpu.dot_dimension_numbers<[1], [0], [0], [1], [0, 0, 1, 1], [], []>, precision = #tpu.contract_precision<fp32>} : vector<32x128xf32>, vector<128x128xf32>, vector<32x128xf32> -> vector<32x128xf32>
    %42 = arith.addf %38, %41 : vector<32x128xf32>
    %c2 = arith.constant 2 : index
    %c0_29 = arith.constant 0 : index
    %c0_30 = arith.constant 0 : index
    %43 = vector.load %arg3[%c2, %c0_29, %c0_30] : memref<3x128x128xf32, #tpu.memory_space<vmem>>, vector<1x128x128xf32>
    %44 = vector.shape_cast %43 : vector<1x128x128xf32> to vector<128x128xf32>
    %cst_31 = arith.constant dense<0.000000e+00> : vector<32x128xf32>
    %45 = tpu.matmul %35, %44, %cst_31 {dimension_numbers = #tpu.dot_dimension_numbers<[1], [0], [0], [1], [0, 0, 1, 1], [], []>, precision = #tpu.contract_precision<fp32>} : vector<32x128xf32>, vector<128x128xf32>, vector<32x128xf32> -> vector<32x128xf32>
    %46 = arith.addf %42, %45 : vector<32x128xf32>
    %c0_32 = arith.constant 0 : index
    %c0_33 = arith.constant 0 : index
    %47 = vector.load %arg4[%c0_32, %c0_33] : memref<1x128xf32, #tpu.memory_space<vmem>>, vector<1x128xf32>
    %48 = vector.broadcast %47 : vector<1x128xf32> to vector<32x128xf32>
    %49 = arith.addf %46, %48 : vector<32x128xf32>
    %cst_34 = arith.constant dense<0.000000e+00> : vector<128xf32>
    %50 = vector.multi_reduction <add>, %49, %cst_34 [0] : vector<32x128xf32> to vector<128xf32>
    %51 = vector.shape_cast %50 : vector<128xf32> to vector<1x128xf32>
    %52 = arith.mulf %49, %49 : vector<32x128xf32>
    %cst_35 = arith.constant dense<0.000000e+00> : vector<128xf32>
    %53 = vector.multi_reduction <add>, %52, %cst_35 [0] : vector<32x128xf32> to vector<128xf32>
    %54 = vector.shape_cast %53 : vector<128xf32> to vector<1x128xf32>
    %cst_36 = arith.constant dense<0.000000e+00> : vector<1x128xf32>
    %55 = tpu.matmul %51, %3, %cst_36 {dimension_numbers = #tpu.dot_dimension_numbers<[1], [0], [0], [1], [0, 0, 1, 1], [], []>, precision = #tpu.contract_precision<fp32>} : vector<1x128xf32>, vector<128x128xf32>, vector<1x128xf32> -> vector<1x128xf32>
    %cst_37 = arith.constant 0.001953125 : f32
    %56 = vector.broadcast %cst_37 : f32 to vector<1x128xf32>
    %57 = arith.mulf %55, %56 : vector<1x128xf32>
    %cst_38 = arith.constant dense<0.000000e+00> : vector<1x128xf32>
    %58 = tpu.matmul %54, %3, %cst_38 {dimension_numbers = #tpu.dot_dimension_numbers<[1], [0], [0], [1], [0, 0, 1, 1], [], []>, precision = #tpu.contract_precision<fp32>} : vector<1x128xf32>, vector<128x128xf32>, vector<1x128xf32> -> vector<1x128xf32>
    %cst_39 = arith.constant 0.001953125 : f32
    %59 = vector.broadcast %cst_39 : f32 to vector<1x128xf32>
    %60 = arith.mulf %58, %59 : vector<1x128xf32>
    %61 = arith.mulf %57, %57 : vector<1x128xf32>
    %62 = arith.subf %60, %61 : vector<1x128xf32>
    %63 = vector.broadcast %57 : vector<1x128xf32> to vector<32x128xf32>
    %64 = arith.subf %49, %63 : vector<32x128xf32>
    %cst_40 = arith.constant 9.99999974E-6 : f32
    %65 = vector.broadcast %cst_40 : f32 to vector<1x128xf32>
    %66 = arith.addf %62, %65 : vector<1x128xf32>
    %67 = math.rsqrt %66 : vector<1x128xf32>
    %68 = vector.broadcast %67 : vector<1x128xf32> to vector<32x128xf32>
    %69 = arith.mulf %64, %68 : vector<32x128xf32>
    %70 = vector.broadcast %1 : vector<1x128xf32> to vector<32x128xf32>
    %71 = arith.mulf %69, %70 : vector<32x128xf32>
    %72 = vector.broadcast %2 : vector<1x128xf32> to vector<32x128xf32>
    %73 = arith.addf %71, %72 : vector<32x128xf32>
    %cst_41 = arith.constant dense<0.000000e+00> : vector<32x128xf32>
    %74 = tpu.matmul %5, %73, %cst_41 {dimension_numbers = #tpu.dot_dimension_numbers<[1], [0], [0], [1], [0, 0, 1, 1], [], []>, precision = #tpu.contract_precision<fp32>} : vector<32x32xf32>, vector<32x128xf32>, vector<32x128xf32> -> vector<32x128xf32>
    %cst_42 = arith.constant dense<0.000000e+00> : vector<32x128xf32>
    %75 = tpu.matmul %7, %73, %cst_42 {dimension_numbers = #tpu.dot_dimension_numbers<[1], [0], [0], [1], [0, 0, 1, 1], [], []>, precision = #tpu.contract_precision<fp32>} : vector<32x32xf32>, vector<32x128xf32>, vector<32x128xf32> -> vector<32x128xf32>
    %c0_43 = arith.constant 0 : index
    %c0_44 = arith.constant 0 : index
    %c0_45 = arith.constant 0 : index
    %76 = vector.load %arg5[%c0_43, %c0_44, %c0_45] : memref<3x128x128xf32, #tpu.memory_space<vmem>>, vector<1x128x128xf32>
    %77 = vector.shape_cast %76 : vector<1x128x128xf32> to vector<128x128xf32>
    %cst_46 = arith.constant dense<0.000000e+00> : vector<32x128xf32>
    %78 = tpu.matmul %74, %77, %cst_46 {dimension_numbers = #tpu.dot_dimension_numbers<[1], [0], [0], [1], [0, 0, 1, 1], [], []>, precision = #tpu.contract_precision<fp32>} : vector<32x128xf32>, vector<128x128xf32>, vector<32x128xf32> -> vector<32x128xf32>
    %c1_47 = arith.constant 1 : index
    %c0_48 = arith.constant 0 : index
    %c0_49 = arith.constant 0 : index
    %79 = vector.load %arg5[%c1_47, %c0_48, %c0_49] : memref<3x128x128xf32, #tpu.memory_space<vmem>>, vector<1x128x128xf32>
    %80 = vector.shape_cast %79 : vector<1x128x128xf32> to vector<128x128xf32>
    %cst_50 = arith.constant dense<0.000000e+00> : vector<32x128xf32>
    %81 = tpu.matmul %73, %80, %cst_50 {dimension_numbers = #tpu.dot_dimension_numbers<[1], [0], [0], [1], [0, 0, 1, 1], [], []>, precision = #tpu.contract_precision<fp32>} : vector<32x128xf32>, vector<128x128xf32>, vector<32x128xf32> -> vector<32x128xf32>
    %82 = arith.addf %78, %81 : vector<32x128xf32>
    %c2_51 = arith.constant 2 : index
    %c0_52 = arith.constant 0 : index
    %c0_53 = arith.constant 0 : index
    %83 = vector.load %arg5[%c2_51, %c0_52, %c0_53] : memref<3x128x128xf32, #tpu.memory_space<vmem>>, vector<1x128x128xf32>
    %84 = vector.shape_cast %83 : vector<1x128x128xf32> to vector<128x128xf32>
    %cst_54 = arith.constant dense<0.000000e+00> : vector<32x128xf32>
    %85 = tpu.matmul %75, %84, %cst_54 {dimension_numbers = #tpu.dot_dimension_numbers<[1], [0], [0], [1], [0, 0, 1, 1], [], []>, precision = #tpu.contract_precision<fp32>} : vector<32x128xf32>, vector<128x128xf32>, vector<32x128xf32> -> vector<32x128xf32>
    %86 = arith.addf %82, %85 : vector<32x128xf32>
    %c0_55 = arith.constant 0 : index
    %c0_56 = arith.constant 0 : index
    %87 = vector.load %arg6[%c0_55, %c0_56] : memref<1x128xf32, #tpu.memory_space<vmem>>, vector<1x128xf32>
    %88 = vector.broadcast %87 : vector<1x128xf32> to vector<32x128xf32>
    %89 = arith.addf %86, %88 : vector<32x128xf32>
    %90 = arith.addf %89, %0 : vector<32x128xf32>
    %cst_57 = arith.constant 0.000000e+00 : f32
    %91 = vector.broadcast %cst_57 : f32 to vector<32x128xf32>
    %92 = arith.maximumf %90, %91 : vector<32x128xf32>
    %c0_58 = arith.constant 0 : index
    %c0_59 = arith.constant 0 : index
    %93 = vector.load %arg9[%c0_58, %c0_59] : memref<32x128xf32, #tpu.memory_space<vmem>>, vector<32x128xf32>
    tpu.vector_store %arg9[%c0_58, %c0_59], %92 {strides = array<i32>} : memref<32x128xf32, #tpu.memory_space<vmem>>, vector<32x128xf32>,
    return
  }
}

</mosaic_0001>

<llo_original>
// kernel: tpu_custom_call.1
$region0: #{tpu_custom_call.1}
  #allocation0 [shape = 'u32[]', space=smem, size = 0x4, offset = 0x4, fixed_abs, tag = 'smem constant byte address 0x4 - core index']
  #allocation1 [shape = 'u32[144,128]{1,0:T(1,128)}', space=vmem, size = 0x12000, scoped, tag = 'internal scratch']
  %s0 = inlined_call_operand.hbm [shape: f32[32,128], index: 0, kind: input, shape index: {}]
  %s1 = inlined_call_operand.vmem [shape: f32[1,128], index: 1, kind: input, shape index: {}]
  %s2 = inlined_call_operand.vmem [shape: f32[1,128], index: 2, kind: input, shape index: {}]
  %s3 = inlined_call_operand.hbm [shape: f32[3,128,128], index: 3, kind: input, shape index: {}]
  %s4 = inlined_call_operand.vmem [shape: f32[1,128], index: 4, kind: input, shape index: {}]
  %s5 = inlined_call_operand.hbm [shape: f32[3,128,128], index: 5, kind: input, shape index: {}]
  %s6 = inlined_call_operand.vmem [shape: f32[1,128], index: 6, kind: input, shape index: {}]
  %s7 = inlined_call_operand.hbm [shape: f32[2,32,32], index: 7, kind: input, shape index: {}]
  %s8 = inlined_call_operand.hbm [shape: f32[128,128], index: 8, kind: input, shape index: {}]
  %s9 = inlined_call_operand.hbm [shape: f32[32,128], index: 9, kind: output, shape index: {}]
  %s10 = sld [smem:[#allocation0]]
  $region66: #{tpu_custom_call.1} parent=0
    _
  %s12 = ssub.s32 1, %s10
  %s13 = scalar_select 0, %s12, %s10
  $region1: #{tpu_custom_call.1} parent=0
    #allocation2 [shape = 'u8[16384]{0}', space=vmem, size = 0x4000, scoped, tag = 'input window, operand 0, single buffered']
    #allocation3 [shape = 's32[1]{0}', space=sflag, size = 0x4, scoped, tag = 'scoped memory for tpu_custom_call.1']
    #allocation4 [shape = 's32[1]{0}', space=sflag, size = 0x4, scoped, tag = 'scoped memory for tpu_custom_call.1']
    #allocation5 [shape = 'u8[196608]{0}', space=vmem, size = 0x30000, scoped, tag = 'input window, operand 3, single buffered']
    #allocation6 [shape = 's32[1]{0}', space=sflag, size = 0x4, scoped, tag = 'scoped memory for tpu_custom_call.1']
    #allocation7 [shape = 'u8[196608]{0}', space=vmem, size = 0x30000, scoped, tag = 'input window, operand 5, single buffered']
    #allocation8 [shape = 'u8[32768]{0}', space=vmem, size = 0x8000, scoped, tag = 'input window, operand 7, single buffered']
    #allocation9 [shape = 's32[1]{0}', space=sflag, size = 0x4, scoped, tag = 'scoped memory for tpu_custom_call.1']
    #allocation10 [shape = 'u8[65536]{0}', space=vmem, size = 0x10000, scoped, tag = 'input window, operand 8, single buffered']
    #allocation11 [shape = 'u8[16384]{0}', space=vmem, size = 0x4000, scoped, tag = 'output window, operand 0, single buffered']
    %14 = vsyncpa [#allocation3], 0
    %15 = vsyncpa [#allocation6], 0
    %16 = vsyncpa [#allocation9], 0
    %17 = vsyncpa [#allocation4], 0
    // Predicated region
    $region2: #{tpu_custom_call.1} parent=1 // pred_check
      _
    $region3: #{tpu_custom_call.1} parent=1 // pred_check_branch
      %19 = sbr.rel (0) target = $region5
    $region4: #{tpu_custom_call.1} parent=1 // pred_region
      %s21 = ssub.s32 512, 512
      %22 = vsyncadd [#allocation3], %s21
      %s23 = sshll.u32 [#allocation2], 4
      %s24 = int_to_ptr.vmem [resolvable:$true] %s23
      %29 = dma.hbm_to_vmem [thread:$0]  %s0, 512, %s24, [#allocation3], 128, 128, 8
    $region5: #{tpu_custom_call.1} parent=1 // pred_fallthru
      _
    // Predicated region
    $region6: #{tpu_custom_call.1} parent=1 // pred_check
      _
    $region7: #{tpu_custom_call.1} parent=1 // pred_check_branch
      %31 = sbr.rel (0) target = $region9
    $region8: #{tpu_custom_call.1} parent=1 // pred_region
      _
    $region9: #{tpu_custom_call.1} parent=1 // pred_fallthru
      _
    // Predicated region
    $region10: #{tpu_custom_call.1} parent=1 // pred_check
      _
    $region11: #{tpu_custom_call.1} parent=1 // pred_check_branch
      %33 = sbr.rel (0) target = $region13
    $region12: #{tpu_custom_call.1} parent=1 // pred_region
      _
    $region13: #{tpu_custom_call.1} parent=1 // pred_fallthru
      _
    // Predicated region
    $region14: #{tpu_custom_call.1} parent=1 // pred_check
      _
    $region15: #{tpu_custom_call.1} parent=1 // pred_check_branch
      %35 = sbr.rel (0) target = $region17
    $region16: #{tpu_custom_call.1} parent=1 // pred_region
      %s37 = ssub.s32 6144, 6144
      %38 = vsyncadd [#allocation6], %s37
      %s39 = sshll.u32 [#allocation5], 4
      %s40 = int_to_ptr.vmem [resolvable:$true] %s39
      %45 = dma.hbm_to_vmem [thread:$0]  %s3, 6144, %s40, [#allocation6], 128, 128, 8
    $region17: #{tpu_custom_call.1} parent=1 // pred_fallthru
      _
    // Predicated region
    $region18: #{tpu_custom_call.1} parent=1 // pred_check
      _
    $region19: #{tpu_custom_call.1} parent=1 // pred_check_branch
      %47 = sbr.rel (0) target = $region21
    $region20: #{tpu_custom_call.1} parent=1 // pred_region
      _
    $region21: #{tpu_custom_call.1} parent=1 // pred_fallthru
      _
    // Predicated region
    $region22: #{tpu_custom_call.1} parent=1 // pred_check
      _
    $region23: #{tpu_custom_call.1} parent=1 // pred_check_branch
      %49 = sbr.rel (0) target = $region25
    $region24: #{tpu_custom_call.1} parent=1 // pred_region
      %s51 = ssub.s32 6144, 6144
      %52 = vsyncadd [#allocation6], %s51
      %s53 = sshll.u32 [#allocation7], 4
      %s54 = int_to_ptr.vmem [resolvable:$true] %s53
      %59 = dma.hbm_to_vmem [thread:$0]  %s5, 6144, %s54, [#allocation6], 128, 128, 8
    $region25: #{tpu_custom_call.1} parent=1 // pred_fallthru
      _
    // Predicated region
    $region26: #{tpu_custom_call.1} parent=1 // pred_check
      _
    $region27: #{tpu_custom_call.1} parent=1 // pred_check_branch
      %61 = sbr.rel (0) target = $region29
    $region28: #{tpu_custom_call.1} parent=1 // pred_region
      _
    $region29: #{tpu_custom_call.1} parent=1 // pred_fallthru
      _
    // Predicated region
    $region30: #{tpu_custom_call.1} parent=1 // pred_check
      _
    $region31: #{tpu_custom_call.1} parent=1 // pred_check_branch
      %63 = sbr.rel (0) target = $region33
    $region32: #{tpu_custom_call.1} parent=1 // pred_region
      %s65 = ssub.s32 1024, 1024
      %66 = vsyncadd [#allocation9], %s65
      %s67 = sshll.u32 [#allocation8], 4
      %s68 = int_to_ptr.vmem [resolvable:$true] %s67
      %73 = dma.hbm_to_vmem [thread:$0]  %s7, 1024, %s68, [#allocation9], 128, 128, 8
    $region33: #{tpu_custom_call.1} parent=1 // pred_fallthru
      _
    // Predicated region
    $region34: #{tpu_custom_call.1} parent=1 // pred_check
      _
    $region35: #{tpu_custom_call.1} parent=1 // pred_check_branch
      %75 = sbr.rel (0) target = $region37
    $region36: #{tpu_custom_call.1} parent=1 // pred_region
      %s77 = ssub.s32 2048, 2048
      %78 = vsyncadd [#allocation9], %s77
      %s79 = sshll.u32 [#allocation10], 4
      %s80 = int_to_ptr.vmem [resolvable:$true] %s79
      %85 = dma.hbm_to_vmem [thread:$0]  %s8, 2048, %s80, [#allocation9], 128, 128, 8
    $region37: #{tpu_custom_call.1} parent=1 // pred_fallthru
      _
    // Predicated region
    $region38: #{tpu_custom_call.1} parent=1 // pred_check
      _
    $region39: #{tpu_custom_call.1} parent=1 // pred_check_branch
      %87 = sbr.rel (0) target = $region41
    $region40: #{tpu_custom_call.1} parent=1 // pred_region
      %88 = dma.done [#allocation3], 512
    $region41: #{tpu_custom_call.1} parent=1 // pred_fallthru
      _
    // Predicated region
    $region42: #{tpu_custom_call.1} parent=1 // pred_check
      _
    $region43: #{tpu_custom_call.1} parent=1 // pred_check_branch
      %90 = sbr.rel (0) target = $region45
    $region44: #{tpu_custom_call.1} parent=1 // pred_region
      %91 = dma.done [#allocation6], 6144
    $region45: #{tpu_custom_call.1} parent=1 // pred_fallthru
      _
    // Predicated region
    $region46: #{tpu_custom_call.1} parent=1 // pred_check
      _
    $region47: #{tpu_custom_call.1} parent=1 // pred_check_branch
      %93 = sbr.rel (0) target = $region49
    $region48: #{tpu_custom_call.1} parent=1 // pred_region
      %94 = dma.done [#allocation6], 6144
    $region49: #{tpu_custom_call.1} parent=1 // pred_fallthru
      _
    // Predicated region
    $region50: #{tpu_custom_call.1} parent=1 // pred_check
      _
    $region51: #{tpu_custom_call.1} parent=1 // pred_check_branch
      %96 = sbr.rel (0) target = $region53
    $region52: #{tpu_custom_call.1} parent=1 // pred_region
      %97 = dma.done [#allocation9], 1024
    $region53: #{tpu_custom_call.1} parent=1 // pred_fallthru
      _
    // Predicated region
    $region54: #{tpu_custom_call.1} parent=1 // pred_check
      _
    $region55: #{tpu_custom_call.1} parent=1 // pred_check_branch
      %99 = sbr.rel (0) target = $region57
    $region56: #{tpu_custom_call.1} parent=1 // pred_region
      %100 = dma.done [#allocation9], 2048
    $region57: #{tpu_custom_call.1} parent=1 // pred_fallthru
      _
    %v101 = vld [vmem:[#allocation2] sm:$0xff]
    %v102 = vld [vmem:[#allocation2 + $0x8] sm:$0xff]
    %v103 = vld [vmem:[#allocation2 + $0x10] sm:$0xff]
    %v104 = vld [vmem:[#allocation2 + $0x18] sm:$0xff]
    %v105 = vld [vmem:[%s1] sm:$0x1]
    %v106 = vld [vmem:[%s2] sm:$0x1]
    %v107 = vld [vmem:[#allocation10] sm:$0xff]
    %v108 = vld [vmem:[#allocation10 + $0x8] sm:$0xff]
    %v109 = vld [vmem:[#allocation10 + $0x10] sm:$0xff]
    %v110 = vld [vmem:[#allocation10 + $0x18] sm:$0xff]
    %v111 = vld [vmem:[#allocation10 + $0x20] sm:$0xff]
    %v112 = vld [vmem:[#allocation10 + $0x28] sm:$0xff]
    %v113 = vld [vmem:[#allocation10 + $0x30] sm:$0xff]
    %v114 = vld [vmem:[#allocation10 + $0x38] sm:$0xff]
    %v115 = vld [vmem:[#allocation10 + $0x40] sm:$0xff]
    %v116 = vld [vmem:[#allocation10 + $0x48] sm:$0xff]
    %v117 = vld [vmem:[#allocation10 + $0x50] sm:$0xff]
    %v118 = vld [vmem:[#allocation10 + $0x58] sm:$0xff]
    %v119 = vld [vmem:[#allocation10 + $0x60] sm:$0xff]
    %v120 = vld [vmem:[#allocation10 + $0x68] sm:$0xff]
    %v121 = vld [vmem:[#allocation10 + $0x70] sm:$0xff]
    %v122 = vld [vmem:[#allocation10 + $0x78] sm:$0xff]
    %v123 = vld [vmem:[#allocation8] sm:$0xff]
    %v124 = vld [vmem:[#allocation8 + $0x8] sm:$0xff]
    %v125 = vld [vmem:[#allocation8 + $0x10] sm:$0xff]
    %v126 = vld [vmem:[#allocation8 + $0x18] sm:$0xff]
    %s127 = scalar_lea.vmem [#allocation8], 32
    %v128 = vld [vmem:[%s127] sm:$0xff]
    %v129 = vld [vmem:[%s127 + $0x8] sm:$0xff]
    %v130 = vld [vmem:[%s127 + $0x10] sm:$0xff]
    %v131 = vld [vmem:[%s127 + $0x18] sm:$0xff]
    %v132 = vadd.f32 %v101, %v102
    %v133 = vadd.f32 %v132, %v103
    %v134 = vadd.f32 %v133, %v104
    %v135 = vrot.slane %v134, 4
    %v136 = vadd.f32 %v134, %v135
    %v137 = vrot.slane %v136, 2
    %v138 = vadd.f32 %v136, %v137
    %v139 = vrot.slane %v138, 1
    %v140 = vadd.f32 %v138, %v139
    %v141 = vmul.f32 %v101, %v101
    %v142 = vmul.f32 %v102, %v102
    %v143 = vmul.f32 %v103, %v103
    %v144 = vmul.f32 %v104, %v104
    %v145 = vadd.f32 %v141, %v142
    %v146 = vadd.f32 %v145, %v143
    %v147 = vadd.f32 %v146, %v144
    %v148 = vrot.slane %v147, 4
    %v149 = vadd.f32 %v147, %v148
    %v150 = vrot.slane %v149, 2
    %v151 = vadd.f32 %v149, %v150
    %v152 = vrot.slane %v151, 1
    %v153 = vadd.f32 %v151, %v152
    %154 = vmatprep.subr.mxu0 0.0
    %v155 = vand.u32 %v122, 4294901760
    %156 = vmatpush1.msra.mxu0 %v155
    %157 = vmatprep.subr.mxu0 0.0
    %v158 = vand.u32 %v121, 4294901760
    %159 = vmatpush1.msra.mxu0 %v158
    %160 = vmatprep.subr.mxu0 0.0
    %v161 = vand.u32 %v120, 4294901760
    %162 = vmatpush1.msra.mxu0 %v161
    %163 = vmatprep.subr.mxu0 0.0
    %v164 = vand.u32 %v119, 4294901760
    %165 = vmatpush1.msra.mxu0 %v164
    %166 = vmatprep.subr.mxu0 0.0
    %v167 = vand.u32 %v118, 4294901760
    %168 = vmatpush1.msra.mxu0 %v167
    %169 = vmatprep.subr.mxu0 0.0
    %v170 = vand.u32 %v117, 4294901760
    %171 = vmatpush1.msra.mxu0 %v170
    %172 = vmatprep.subr.mxu0 0.0
    %v173 = vand.u32 %v116, 4294901760
    %174 = vmatpush1.msra.mxu0 %v173
    %175 = vmatprep.subr.mxu0 0.0
    %v176 = vand.u32 %v115, 4294901760
    %177 = vmatpush1.msra.mxu0 %v176
    %178 = vmatprep.subr.mxu0 0.0
    %v179 = vand.u32 %v114, 4294901760
    %180 = vmatpush1.msra.mxu0 %v179
    %181 = vmatprep.subr.mxu0 0.0
    %v182 = vand.u32 %v113, 4294901760
    %183 = vmatpush1.msra.mxu0 %v182
    %184 = vmatprep.subr.mxu0 0.0
    %v185 = vand.u32 %v112, 4294901760
    %186 = vmatpush1.msra.mxu0 %v185
    %187 = vmatprep.subr.mxu0 0.0
    %v188 = vand.u32 %v111, 4294901760
    %189 = vmatpush1.msra.mxu0 %v188
    %190 = vmatprep.subr.mxu0 0.0
    %v191 = vand.u32 %v110, 4294901760
    %192 = vmatpush1.msra.mxu0 %v191
    %193 = vmatprep.subr.mxu0 0.0
    %v194 = vand.u32 %v109, 4294901760
    %195 = vmatpush1.msra.mxu0 %v194
    %196 = vmatprep.subr.mxu0 0.0
    %v197 = vand.u32 %v108, 4294901760
    %198 = vmatpush1.msra.mxu0 %v197
    %199 = vmatprep.subr.mxu0 0.0
    %v200 = vand.u32 %v107, 4294901760
    %201 = vmatpush1.msra.mxu0 %v200
    %202 = vmatprep.subr.mxu0 0.0
    %203 = vmatpush2.msra.mxu0 0.0
    %204 = vmatprep.subr.mxu0 0.0
    %205 = vmatpush2.msra.mxu0 0.0
    %206 = vmatprep.subr.mxu0 0.0
    %207 = vmatpush2.msra.mxu0 0.0
    %208 = vmatprep.subr.mxu0 0.0
    %209 = vmatpush2.msra.mxu0 0.0
    %210 = vmatprep.subr.mxu0 0.0
    %211 = vmatpush2.msra.mxu0 0.0
    %212 = vmatprep.subr.mxu0 0.0
    %213 = vmatpush2.msra.mxu0 0.0
    %214 = vmatprep.subr.mxu0 0.0
    %215 = vmatpush2.msra.mxu0 0.0
    %216 = vmatprep.subr.mxu0 0.0
    %217 = vmatpush2.msra.mxu0 0.0
    %218 = vmatprep.subr.mxu0 0.0
    %219 = vmatpush2.msra.mxu0 0.0
    %220 = vmatprep.subr.mxu0 0.0
    %221 = vmatpush2.msra.mxu0 0.0
    %222 = vmatprep.subr.mxu0 0.0
    %223 = vmatpush2.msra.mxu0 0.0
    %224 = vmatprep.subr.mxu0 0.0
    %225 = vmatpush2.msra.mxu0 0.0
    %226 = vmatprep.subr.mxu0 0.0
    %227 = vmatpush2.msra.mxu0 0.0
    %228 = vmatprep.subr.mxu0 0.0
    %229 = vmatpush2.msra.mxu0 0.0
    %230 = vmatprep.subr.mxu0 0.0
    %231 = vmatpush2.msra.mxu0 0.0
    %232 = vmatprep.subr.mxu0 0.0
    %233 = vmatpush2.msra.mxu0 0.0
    %234 = vmatprep.mubr.f32.mxu0 0.0
    %v235 = vand.u32 %v140, 4294901760
    %v236 = vsub.f32 %v140, %v235
    %v237 = vand.u32 %v236, 4294901760
    %v238 = vsub.f32 %v236, %v237
    %v239 = vand.u32 %v238, 4294901760
    %240 = vmatmul.mubr.f32.gmra.mxu0 %v239
    %v241 = vpop.f32.mrf.mxu0
    %v242 = vadd.f32 0.0, %v241
    %v243 = vpop.f32.mrf.mxu0
    %244 = vdwg.mxu0
    %245 = vmatprep.subr.mxu0 0.0
    %v246 = vand.u32 %v122, 4294901760
    %v247 = vsub.f32 %v122, %v246
    %v248 = vand.u32 %v247, 4294901760
    %v249 = vsub.f32 %v247, %v248
    %v250 = vand.u32 %v249, 4294901760
    %251 = vmatpush1.msra.mxu0 %v250
    %252 = vmatprep.subr.mxu0 0.0
    %v253 = vand.u32 %v121, 4294901760
    %v254 = vsub.f32 %v121, %v253
    %v255 = vand.u32 %v254, 4294901760
    %v256 = vsub.f32 %v254, %v255
    %v257 = vand.u32 %v256, 4294901760
    %258 = vmatpush1.msra.mxu0 %v257
    %259 = vmatprep.subr.mxu0 0.0
    %v260 = vand.u32 %v120, 4294901760
    %v261 = vsub.f32 %v120, %v260
    %v262 = vand.u32 %v261, 4294901760
    %v263 = vsub.f32 %v261, %v262
    %v264 = vand.u32 %v263, 4294901760
    %265 = vmatpush1.msra.mxu0 %v264
    %266 = vmatprep.subr.mxu0 0.0
    %v267 = vand.u32 %v119, 4294901760
    %v268 = vsub.f32 %v119, %v267
    %v269 = vand.u32 %v268, 4294901760
    %v270 = vsub.f32 %v268, %v269
    %v271 = vand.u32 %v270, 4294901760
    %272 = vmatpush1.msra.mxu0 %v271
    %273 = vmatprep.subr.mxu0 0.0
    %v274 = vand.u32 %v118, 4294901760
    %v275 = vsub.f32 %v118, %v274
    %v276 = vand.u32 %v275, 4294901760
    %v277 = vsub.f32 %v275, %v276
    %v278 = vand.u32 %v277, 4294901760
    %279 = vmatpush1.msra.mxu0 %v278
    %280 = vmatprep.subr.mxu0 0.0
    %v281 = vand.u32 %v117, 4294901760
    %v282 = vsub.f32 %v117, %v281
    %v283 = vand.u32 %v282, 4294901760
    %v284 = vsub.f32 %v282, %v283
    %v285 = vand.u32 %v284, 4294901760
    %286 = vmatpush1.msra.mxu0 %v285
    %287 = vmatprep.subr.mxu0 0.0
    %v288 = vand.u32 %v116, 4294901760
    %v289 = vsub.f32 %v116, %v288
    %v290 = vand.u32 %v289, 4294901760
    %v291 = vsub.f32 %v289, %v290
    %v292 = vand.u32 %v291, 4294901760
    %293 = vmatpush1.msra.mxu0 %v292
    %294 = vmatprep.subr.mxu0 0.0
    %v295 = vand.u32 %v115, 4294901760
    %v296 = vsub.f32 %v115, %v295
    %v297 = vand.u32 %v296, 4294901760
    %v298 = vsub.f32 %v296, %v297
    %v299 = vand.u32 %v298, 4294901760
    %300 = vmatpush1.msra.mxu0 %v299
    %301 = vmatprep.subr.mxu0 0.0
    %v302 = vand.u32 %v114, 4294901760
    %v303 = vsub.f32 %v114, %v302
    %v304 = vand.u32 %v303, 4294901760
    %v305 = vsub.f32 %v303, %v304
    %v306 = vand.u32 %v305, 4294901760
    %307 = vmatpush1.msra.mxu0 %v306
    %308 = vmatprep.subr.mxu0 0.0
    %v309 = vand.u32 %v113, 4294901760
    %v310 = vsub.f32 %v113, %v309
    %v311 = vand.u32 %v310, 4294901760
    %v312 = vsub.f32 %v310, %v311
    %v313 = vand.u32 %v312, 4294901760
    %314 = vmatpush1.msra.mxu0 %v313
    %315 = vmatprep.subr.mxu0 0.0
    %v316 = vand.u32 %v112, 4294901760
    %v317 = vsub.f32 %v112, %v316
    %v318 = vand.u32 %v317, 4294901760
    %v319 = vsub.f32 %v317, %v318
    %v320 = vand.u32 %v319, 4294901760
    %321 = vmatpush1.msra.mxu0 %v320
    %322 = vmatprep.subr.mxu0 0.0
    %v323 = vand.u32 %v111, 4294901760
    %v324 = vsub.f32 %v111, %v323
    %v325 = vand.u32 %v324, 4294901760
    %v326 = vsub.f32 %v324, %v325
    %v327 = vand.u32 %v326, 4294901760
    %328 = vmatpush1.msra.mxu0 %v327
    %329 = vmatprep.subr.mxu0 0.0
    %v330 = vand.u32 %v110, 4294901760
    %v331 = vsub.f32 %v110, %v330
    %v332 = vand.u32 %v331, 4294901760
    %v333 = vsub.f32 %v331, %v332
    %v334 = vand.u32 %v333, 4294901760
    %335 = vmatpush1.msra.mxu0 %v334
    %336 = vmatprep.subr.mxu0 0.0
    %v337 = vand.u32 %v109, 4294901760
    %v338 = vsub.f32 %v109, %v337
    %v339 = vand.u32 %v338, 4294901760
    %v340 = vsub.f32 %v338, %v339
    %v341 = vand.u32 %v340, 4294901760
    %342 = vmatpush1.msra.mxu0 %v341
    %343 = vmatprep.subr.mxu0 0.0
    %v344 = vand.u32 %v108, 4294901760
    %v345 = vsub.f32 %v108, %v344
    %v346 = vand.u32 %v345, 4294901760
    %v347 = vsub.f32 %v345, %v346
    %v348 = vand.u32 %v347, 4294901760
    %349 = vmatpush1.msra.mxu0 %v348
    %350 = vmatprep.subr.mxu0 0.0
    %v351 = vand.u32 %v107, 4294901760
    %v352 = vsub.f32 %v107, %v351
    %v353 = vand.u32 %v352, 4294901760
    %v354 = vsub.f32 %v352, %v353
    %v355 = vand.u32 %v354, 4294901760
    %356 = vmatpush1.msra.mxu0 %v355
    %357 = vmatprep.subr.mxu0 0.0
    %358 = vmatpush2.msra.mxu0 0.0
    %359 = vmatprep.subr.mxu0 0.0
    %360 = vmatpush2.msra.mxu0 0.0
    %361 = vmatprep.subr.mxu0 0.0
    %362 = vmatpush2.msra.mxu0 0.0
    %363 = vmatprep.subr.mxu0 0.0
    %364 = vmatpush2.msra.mxu0 0.0
    %365 = vmatprep.subr.mxu0 0.0
    %366 = vmatpush2.msra.mxu0 0.0
    %367 = vmatprep.subr.mxu0 0.0
    %368 = vmatpush2.msra.mxu0 0.0
    %369 = vmatprep.subr.mxu0 0.0
    %370 = vmatpush2.msra.mxu0 0.0
    %371 = vmatprep.subr.mxu0 0.0
    %372 = vmatpush2.msra.mxu0 0.0
    %373 = vmatprep.subr.mxu0 0.0
    %374 = vmatpush2.msra.mxu0 0.0
    %375 = vmatprep.subr.mxu0 0.0
    %376 = vmatpush2.msra.mxu0 0.0
    %377 = vmatprep.subr.mxu0 0.0
    %378 = vmatpush2.msra.mxu0 0.0
    %379 = vmatprep.subr.mxu0 0.0
    %380 = vmatpush2.msra.mxu0 0.0
    %381 = vmatprep.subr.mxu0 0.0
    %382 = vmatpush2.msra.mxu0 0.0
    %383 = vmatprep.subr.mxu0 0.0
    %384 = vmatpush2.msra.mxu0 0.0
    %385 = vmatprep.subr.mxu0 0.0
    %386 = vmatpush2.msra.mxu0 0.0
    %387 = vmatprep.subr.mxu0 0.0
    %388 = vmatpush2.msra.mxu0 0.0
    %389 = vmatprep.mubr.f32.mxu0 0.0
    %v390 = vand.u32 %v140, 4294901760
    %391 = vmatmul.mubr.f32.gmra.mxu0 %v390
    %v392 = vpop.f32.mrf.mxu0
    %v393 = vadd.f32 %v242, %v392
    %v394 = vpop.f32.mrf.mxu0
    %395 = vdwg.mxu0
    %396 = vmatprep.subr.mxu0 0.0
    %v397 = vand.u32 %v122, 4294901760
    %v398 = vsub.f32 %v122, %v397
    %399 = vmatpush1.msra.mxu0 %v398
    %400 = vmatprep.subr.mxu0 0.0
    %v401 = vand.u32 %v121, 4294901760
    %v402 = vsub.f32 %v121, %v401
    %403 = vmatpush1.msra.mxu0 %v402
    %404 = vmatprep.subr.mxu0 0.0
    %v405 = vand.u32 %v120, 4294901760
    %v406 = vsub.f32 %v120, %v405
    %407 = vmatpush1.msra.mxu0 %v406
    %408 = vmatprep.subr.mxu0 0.0
    %v409 = vand.u32 %v119, 4294901760
    %v410 = vsub.f32 %v119, %v409
    %411 = vmatpush1.msra.mxu0 %v410
    %412 = vmatprep.subr.mxu0 0.0
    %v413 = vand.u32 %v118, 4294901760
    %v414 = vsub.f32 %v118, %v413
    %415 = vmatpush1.msra.mxu0 %v414
    %416 = vmatprep.subr.mxu0 0.0
    %v417 = vand.u32 %v117, 4294901760
    %v418 = vsub.f32 %v117, %v417
    %419 = vmatpush1.msra.mxu0 %v418
    %420 = vmatprep.subr.mxu0 0.0
    %v421 = vand.u32 %v116, 4294901760
    %v422 = vsub.f32 %v116, %v421
    %423 = vmatpush1.msra.mxu0 %v422
    %424 = vmatprep.subr.mxu0 0.0
    %v425 = vand.u32 %v115, 4294901760
    %v426 = vsub.f32 %v115, %v425
    %427 = vmatpush1.msra.mxu0 %v426
    %428 = vmatprep.subr.mxu0 0.0
    %v429 = vand.u32 %v114, 4294901760
    %v430 = vsub.f32 %v114, %v429
    %431 = vmatpush1.msra.mxu0 %v430
    %432 = vmatprep.subr.mxu0 0.0
    %v433 = vand.u32 %v113, 4294901760
    %v434 = vsub.f32 %v113, %v433
    %435 = vmatpush1.msra.mxu0 %v434
    %436 = vmatprep.subr.mxu0 0.0
    %v437 = vand.u32 %v112, 4294901760
    %v438 = vsub.f32 %v112, %v437
    %439 = vmatpush1.msra.mxu0 %v438
    %440 = vmatprep.subr.mxu0 0.0
    %v441 = vand.u32 %v111, 4294901760
    %v442 = vsub.f32 %v111, %v441
    %443 = vmatpush1.msra.mxu0 %v442
    %444 = vmatprep.subr.mxu0 0.0
    %v445 = vand.u32 %v110, 4294901760
    %v446 = vsub.f32 %v110, %v445
    %447 = vmatpush1.msra.mxu0 %v446
    %448 = vmatprep.subr.mxu0 0.0
    %v449 = vand.u32 %v109, 4294901760
    %v450 = vsub.f32 %v109, %v449
    %451 = vmatpush1.msra.mxu0 %v450
    %452 = vmatprep.subr.mxu0 0.0
    %v453 = vand.u32 %v108, 4294901760
    %v454 = vsub.f32 %v108, %v453
    %455 = vmatpush1.msra.mxu0 %v454
    %456 = vmatprep.subr.mxu0 0.0
    %v457 = vand.u32 %v107, 4294901760
    %v458 = vsub.f32 %v107, %v457
    %459 = vmatpush1.msra.mxu0 %v458
    %460 = vmatprep.subr.mxu0 0.0
    %461 = vmatpush2.msra.mxu0 0.0
    %462 = vmatprep.subr.mxu0 0.0
    %463 = vmatpush2.msra.mxu0 0.0
    %464 = vmatprep.subr.mxu0 0.0
    %465 = vmatpush2.msra.mxu0 0.0
    %466 = vmatprep.subr.mxu0 0.0
    %467 = vmatpush2.msra.mxu0 0.0
    %468 = vmatprep.subr.mxu0 0.0
    %469 = vmatpush2.msra.mxu0 0.0
    %470 = vmatprep.subr.mxu0 0.0
    %471 = vmatpush2.msra.mxu0 0.0
    %472 = vmatprep.subr.mxu0 0.0
    %473 = vmatpush2.msra.mxu0 0.0
    %474 = vmatprep.subr.mxu0 0.0
    %475 = vmatpush2.msra.mxu0 0.0
    %476 = vmatprep.subr.mxu0 0.0
    %477 = vmatpush2.msra.mxu0 0.0
    %478 = vmatprep.subr.mxu0 0.0
    %479 = vmatpush2.msra.mxu0 0.0
    %480 = vmatprep.subr.mxu0 0.0
    %481 = vmatpush2.msra.mxu0 0.0
    %482 = vmatprep.subr.mxu0 0.0
    %483 = vmatpush2.msra.mxu0 0.0
    %484 = vmatprep.subr.mxu0 0.0
    %485 = vmatpush2.msra.mxu0 0.0
    %486 = vmatprep.subr.mxu0 0.0
    %487 = vmatpush2.msra.mxu0 0.0
    %488 = vmatprep.subr.mxu0 0.0
    %489 = vmatpush2.msra.mxu0 0.0
    %490 = vmatprep.subr.mxu0 0.0
    %491 = vmatpush2.msra.mxu0 0.0
    %492 = vmatprep.mubr.f32.mxu0 0.0
    %v493 = vand.u32 %v140, 4294901760
    %v494 = vsub.f32 %v140, %v493
    %495 = vmatmul.mubr.f32.gmra.mxu0 %v494
    %v496 = vpop.f32.mrf.mxu0
    %v497 = vadd.f32 %v393, %v496
    %v498 = vpop.f32.mrf.mxu0
    %499 = vdwg.mxu0
    %500 = vmatprep.subr.mxu0 0.0
    %v501 = vand.u32 %v122, 4294901760
    %502 = vmatpush1.msra.mxu0 %v501
    %503 = vmatprep.subr.mxu0 0.0
    %v504 = vand.u32 %v121, 4294901760
    %505 = vmatpush1.msra.mxu0 %v504
    %506 = vmatprep.subr.mxu0 0.0
    %v507 = vand.u32 %v120, 4294901760
    %508 = vmatpush1.msra.mxu0 %v507
    %509 = vmatprep.subr.mxu0 0.0
    %v510 = vand.u32 %v119, 4294901760
    %511 = vmatpush1.msra.mxu0 %v510
    %512 = vmatprep.subr.mxu0 0.0
    %v513 = vand.u32 %v118, 4294901760
    %514 = vmatpush1.msra.mxu0 %v513
    %515 = vmatprep.subr.mxu0 0.0
    %v516 = vand.u32 %v117, 4294901760
    %517 = vmatpush1.msra.mxu0 %v516
    %518 = vmatprep.subr.mxu0 0.0
    %v519 = vand.u32 %v116, 4294901760
    %520 = vmatpush1.msra.mxu0 %v519
    %521 = vmatprep.subr.mxu0 0.0
    %v522 = vand.u32 %v115, 4294901760
    %523 = vmatpush1.msra.mxu0 %v522
    %524 = vmatprep.subr.mxu0 0.0
    %v525 = vand.u32 %v114, 4294901760
    %526 = vmatpush1.msra.mxu0 %v525
    %527 = vmatprep.subr.mxu0 0.0
    %v528 = vand.u32 %v113, 4294901760
    %529 = vmatpush1.msra.mxu0 %v528
    %530 = vmatprep.subr.mxu0 0.0
    %v531 = vand.u32 %v112, 4294901760
    %532 = vmatpush1.msra.mxu0 %v531
    %533 = vmatprep.subr.mxu0 0.0
    %v534 = vand.u32 %v111, 4294901760
    %535 = vmatpush1.msra.mxu0 %v534
    %536 = vmatprep.subr.mxu0 0.0
    %v537 = vand.u32 %v110, 4294901760
    %538 = vmatpush1.msra.mxu0 %v537
    %539 = vmatprep.subr.mxu0 0.0
    %v540 = vand.u32 %v109, 4294901760
    %541 = vmatpush1.msra.mxu0 %v540
    %542 = vmatprep.subr.mxu0 0.0
    %v543 = vand.u32 %v108, 4294901760
    %544 = vmatpush1.msra.mxu0 %v543
    %545 = vmatprep.subr.mxu0 0.0
    %v546 = vand.u32 %v107, 4294901760
    %547 = vmatpush1.msra.mxu0 %v546
    %548 = vmatprep.subr.mxu0 0.0
    %549 = vmatpush2.msra.mxu0 0.0
    %550 = vmatprep.subr.mxu0 0.0
    %551 = vmatpush2.msra.mxu0 0.0
    %552 = vmatprep.subr.mxu0 0.0
    %553 = vmatpush2.msra.mxu0 0.0
    %554 = vmatprep.subr.mxu0 0.0
    %555 = vmatpush2.msra.mxu0 0.0
    %556 = vmatprep.subr.mxu0 0.0
    %557 = vmatpush2.msra.mxu0 0.0
    %558 = vmatprep.subr.mxu0 0.0
    %559 = vmatpush2.msra.mxu0 0.0
    %560 = vmatprep.subr.mxu0 0.0
    %561 = vmatpush2.msra.mxu0 0.0
    %562 = vmatprep.subr.mxu0 0.0
    %563 = vmatpush2.msra.mxu0 0.0
    %564 = vmatprep.subr.mxu0 0.0
    %565 = vmatpush2.msra.mxu0 0.0
    %566 = vmatprep.subr.mxu0 0.0
    %567 = vmatpush2.msra.mxu0 0.0
    %568 = vmatprep.subr.mxu0 0.0
    %569 = vmatpush2.msra.mxu0 0.0
    %570 = vmatprep.subr.mxu0 0.0
    %571 = vmatpush2.msra.mxu0 0.0
    %572 = vmatprep.subr.mxu0 0.0
    %573 = vmatpush2.msra.mxu0 0.0
    %574 = vmatprep.subr.mxu0 0.0
    %575 = vmatpush2.msra.mxu0 0.0
    %576 = vmatprep.subr.mxu0 0.0
    %577 = vmatpush2.msra.mxu0 0.0
    %578 = vmatprep.subr.mxu0 0.0
    %579 = vmatpush2.msra.mxu0 0.0
    %580 = vmatprep.mubr.f32.mxu0 0.0
    %v581 = vand.u32 %v140, 4294901760
    %v582 = vsub.f32 %v140, %v581
    %v583 = vand.u32 %v582, 4294901760
    %584 = vmatmul.mubr.f32.gmra.mxu0 %v583
    %v585 = vpop.f32.mrf.mxu0
    %v586 = vadd.f32 %v497, %v585
    %v587 = vpop.f32.mrf.mxu0
    %588 = vdwg.mxu0
    %589 = vmatprep.subr.mxu0 0.0
    %v590 = vand.u32 %v122, 4294901760
    %v591 = vsub.f32 %v122, %v590
    %v592 = vand.u32 %v591, 4294901760
    %593 = vmatpush1.msra.mxu0 %v592
    %594 = vmatprep.subr.mxu0 0.0
    %v595 = vand.u32 %v121, 4294901760
    %v596 = vsub.f32 %v121, %v595
    %v597 = vand.u32 %v596, 4294901760
    %598 = vmatpush1.msra.mxu0 %v597
    %599 = vmatprep.subr.mxu0 0.0
    %v600 = vand.u32 %v120, 4294901760
    %v601 = vsub.f32 %v120, %v600
    %v602 = vand.u32 %v601, 4294901760
    %603 = vmatpush1.msra.mxu0 %v602
    %604 = vmatprep.subr.mxu0 0.0
    %v605 = vand.u32 %v119, 4294901760
    %v606 = vsub.f32 %v119, %v605
    %v607 = vand.u32 %v606, 4294901760
    %608 = vmatpush1.msra.mxu0 %v607
    %609 = vmatprep.subr.mxu0 0.0
    %v610 = vand.u32 %v118, 4294901760
    %v611 = vsub.f32 %v118, %v610
    %v612 = vand.u32 %v611, 4294901760
    %613 = vmatpush1.msra.mxu0 %v612
    %614 = vmatprep.subr.mxu0 0.0
    %v615 = vand.u32 %v117, 4294901760
    %v616 = vsub.f32 %v117, %v615
    %v617 = vand.u32 %v616, 4294901760
    %618 = vmatpush1.msra.mxu0 %v617
    %619 = vmatprep.subr.mxu0 0.0
    %v620 = vand.u32 %v116, 4294901760
    %v621 = vsub.f32 %v116, %v620
    %v622 = vand.u32 %v621, 4294901760
    %623 = vmatpush1.msra.mxu0 %v622
    %624 = vmatprep.subr.mxu0 0.0
    %v625 = vand.u32 %v115, 4294901760
    %v626 = vsub.f32 %v115, %v625
    %v627 = vand.u32 %v626, 4294901760
    %628 = vmatpush1.msra.mxu0 %v627
    %629 = vmatprep.subr.mxu0 0.0
    %v630 = vand.u32 %v114, 4294901760
    %v631 = vsub.f32 %v114, %v630
    %v632 = vand.u32 %v631, 4294901760
    %633 = vmatpush1.msra.mxu0 %v632
    %634 = vmatprep.subr.mxu0 0.0
    %v635 = vand.u32 %v113, 4294901760
    %v636 = vsub.f32 %v113, %v635
    %v637 = vand.u32 %v636, 4294901760
    %638 = vmatpush1.msra.mxu0 %v637
    %639 = vmatprep.subr.mxu0 0.0
    %v640 = vand.u32 %v112, 4294901760
    %v641 = vsub.f32 %v112, %v640
    %v642 = vand.u32 %v641, 4294901760
    %643 = vmatpush1.msra.mxu0 %v642
    %644 = vmatprep.subr.mxu0 0.0
    %v645 = vand.u32 %v111, 4294901760
    %v646 = vsub.f32 %v111, %v645
    %v647 = vand.u32 %v646, 4294901760
    %648 = vmatpush1.msra.mxu0 %v647
    %649 = vmatprep.subr.mxu0 0.0
    %v650 = vand.u32 %v110, 4294901760
    %v651 = vsub.f32 %v110, %v650
    %v652 = vand.u32 %v651, 4294901760
    %653 = vmatpush1.msra.mxu0 %v652
    %654 = vmatprep.subr.mxu0 0.0
    %v655 = vand.u32 %v109, 4294901760
    %v656 = vsub.f32 %v109, %v655
    %v657 = vand.u32 %v656, 4294901760
    %658 = vmatpush1.msra.mxu0 %v657
    %659 = vmatprep.subr.mxu0 0.0
    %v660 = vand.u32 %v108, 4294901760
    %v661 = vsub.f32 %v108, %v660
    %v662 = vand.u32 %v661, 4294901760
    %663 = vmatpush1.msra.mxu0 %v662
    %664 = vmatprep.subr.mxu0 0.0
    %v665 = vand.u32 %v107, 4294901760
    %v666 = vsub.f32 %v107, %v665
    %v667 = vand.u32 %v666, 4294901760
    %668 = vmatpush1.msra.mxu0 %v667
    %669 = vmatprep.subr.mxu0 0.0
    %670 = vmatpush2.msra.mxu0 0.0
    %671 = vmatprep.subr.mxu0 0.0
    %672 = vmatpush2.msra.mxu0 0.0
    %673 = vmatprep.subr.mxu0 0.0
    %674 = vmatpush2.msra.mxu0 0.0
    %675 = vmatprep.subr.mxu0 0.0
    %676 = vmatpush2.msra.mxu0 0.0
    %677 = vmatprep.subr.mxu0 0.0
    %678 = vmatpush2.msra.mxu0 0.0
    %679 = vmatprep.subr.mxu0 0.0
    %680 = vmatpush2.msra.mxu0 0.0
    %681 = vmatprep.subr.mxu0 0.0
    %682 = vmatpush2.msra.mxu0 0.0
    %683 = vmatprep.subr.mxu0 0.0
    %684 = vmatpush2.msra.mxu0 0.0
    %685 = vmatprep.subr.mxu0 0.0
    %686 = vmatpush2.msra.mxu0 0.0
    %687 = vmatprep.subr.mxu0 0.0
    %688 = vmatpush2.msra.mxu0 0.0
    %689 = vmatprep.subr.mxu0 0.0
    %690 = vmatpush2.msra.mxu0 0.0
    %691 = vmatprep.subr.mxu0 0.0
    %692 = vmatpush2.msra.mxu0 0.0
    %693 = vmatprep.subr.mxu0 0.0
    %694 = vmatpush2.msra.mxu0 0.0
    %695 = vmatprep.subr.mxu0 0.0
    %696 = vmatpush2.msra.mxu0 0.0
    %697 = vmatprep.subr.mxu0 0.0
    %698 = vmatpush2.msra.mxu0 0.0
    %699 = vmatprep.subr.mxu0 0.0
    %700 = vmatpush2.msra.mxu0 0.0
    %701 = vmatprep.mubr.f32.mxu0 0.0
    %v702 = vand.u32 %v140, 4294901760
    %703 = vmatmul.mubr.f32.gmra.mxu0 %v702
    %v704 = vpop.f32.mrf.mxu0
    %v705 = vadd.f32 %v586, %v704
    %v706 = vpop.f32.mrf.mxu0
    %707 = vdwg.mxu0
    %708 = vmatprep.subr.mxu0 0.0
    %v709 = vand.u32 %v122, 4294901760
    %710 = vmatpush1.msra.mxu0 %v709
    %711 = vmatprep.subr.mxu0 0.0
    %v712 = vand.u32 %v121, 4294901760
    %713 = vmatpush1.msra.mxu0 %v712
    %714 = vmatprep.subr.mxu0 0.0
    %v715 = vand.u32 %v120, 4294901760
    %716 = vmatpush1.msra.mxu0 %v715
    %717 = vmatprep.subr.mxu0 0.0
    %v718 = vand.u32 %v119, 4294901760
    %719 = vmatpush1.msra.mxu0 %v718
    %720 = vmatprep.subr.mxu0 0.0
    %v721 = vand.u32 %v118, 4294901760
    %722 = vmatpush1.msra.mxu0 %v721
    %723 = vmatprep.subr.mxu0 0.0
    %v724 = vand.u32 %v117, 4294901760
    %725 = vmatpush1.msra.mxu0 %v724
    %726 = vmatprep.subr.mxu0 0.0
    %v727 = vand.u32 %v116, 4294901760
    %728 = vmatpush1.msra.mxu0 %v727
    %729 = vmatprep.subr.mxu0 0.0
    %v730 = vand.u32 %v115, 4294901760
    %731 = vmatpush1.msra.mxu0 %v730
    %732 = vmatprep.subr.mxu0 0.0
    %v733 = vand.u32 %v114, 4294901760
    %734 = vmatpush1.msra.mxu0 %v733
    %735 = vmatprep.subr.mxu0 0.0
    %v736 = vand.u32 %v113, 4294901760
    %737 = vmatpush1.msra.mxu0 %v736
    %738 = vmatprep.subr.mxu0 0.0
    %v739 = vand.u32 %v112, 4294901760
    %740 = vmatpush1.msra.mxu0 %v739
    %741 = vmatprep.subr.mxu0 0.0
    %v742 = vand.u32 %v111, 4294901760
    %743 = vmatpush1.msra.mxu0 %v742
    %744 = vmatprep.subr.mxu0 0.0
    %v745 = vand.u32 %v110, 4294901760
    %746 = vmatpush1.msra.mxu0 %v745
    %747 = vmatprep.subr.mxu0 0.0
    %v748 = vand.u32 %v109, 4294901760
    %749 = vmatpush1.msra.mxu0 %v748
    %750 = vmatprep.subr.mxu0 0.0
    %v751 = vand.u32 %v108, 4294901760
    %752 = vmatpush1.msra.mxu0 %v751
    %753 = vmatprep.subr.mxu0 0.0
    %v754 = vand.u32 %v107, 4294901760
    %755 = vmatpush1.msra.mxu0 %v754
    %756 = vmatprep.subr.mxu0 0.0
    %757 = vmatpush2.msra.mxu0 0.0
    %758 = vmatprep.subr.mxu0 0.0
    %759 = vmatpush2.msra.mxu0 0.0
    %760 = vmatprep.subr.mxu0 0.0
    %761 = vmatpush2.msra.mxu0 0.0
    %762 = vmatprep.subr.mxu0 0.0
    %763 = vmatpush2.msra.mxu0 0.0
    %764 = vmatprep.subr.mxu0 0.0
    %765 = vmatpush2.msra.mxu0 0.0
    %766 = vmatprep.subr.mxu0 0.0
    %767 = vmatpush2.msra.mxu0 0.0
    %768 = vmatprep.subr.mxu0 0.0
    %769 = vmatpush2.msra.mxu0 0.0
    %770 = vmatprep.subr.mxu0 0.0
    %771 = vmatpush2.msra.mxu0 0.0
    %772 = vmatprep.subr.mxu0 0.0
    %773 = vmatpush2.msra.mxu0 0.0
    %774 = vmatprep.subr.mxu0 0.0
    %775 = vmatpush2.msra.mxu0 0.0
    %776 = vmatprep.subr.mxu0 0.0
    %777 = vmatpush2.msra.mxu0 0.0
    %778 = vmatprep.subr.mxu0 0.0
    %779 = vmatpush2.msra.mxu0 0.0
    %780 = vmatprep.subr.mxu0 0.0
    %781 = vmatpush2.msra.mxu0 0.0
    %782 = vmatprep.subr.mxu0 0.0
    %783 = vmatpush2.msra.mxu0 0.0
    %784 = vmatprep.subr.mxu0 0.0
    %785 = vmatpush2.msra.mxu0 0.0
    %786 = vmatprep.subr.mxu0 0.0
    %787 = vmatpush2.msra.mxu0 0.0
    %788 = vmatprep.mubr.f32.mxu0 0.0
    %v789 = vand.u32 %v140, 4294901760
    %790 = vmatmul.mubr.f32.gmra.mxu0 %v789
    %v791 = vpop.f32.mrf.mxu0
    %v792 = vadd.f32 %v705, %v791
    %v793 = vpop.f32.mrf.mxu0
    %794 = vdwg.mxu0
    %v795 = vmul.f32 %v792, 0.001953125
    %796 = vmatprep.subr.mxu0 0.0
    %v797 = vand.u32 %v122, 4294901760
    %798 = vmatpush1.msra.mxu0 %v797
    %799 = vmatprep.subr.mxu0 0.0
    %v800 = vand.u32 %v121, 4294901760
    %801 = vmatpush1.msra.mxu0 %v800
    %802 = vmatprep.subr.mxu0 0.0
    %v803 = vand.u32 %v120, 4294901760
    %804 = vmatpush1.msra.mxu0 %v803
    %805 = vmatprep.subr.mxu0 0.0
    %v806 = vand.u32 %v119, 4294901760
    %807 = vmatpush1.msra.mxu0 %v806
    %808 = vmatprep.subr.mxu0 0.0
    %v809 = vand.u32 %v118, 4294901760
    %810 = vmatpush1.msra.mxu0 %v809
    %811 = vmatprep.subr.mxu0 0.0
    %v812 = vand.u32 %v117, 4294901760
    %813 = vmatpush1.msra.mxu0 %v812
    %814 = vmatprep.subr.mxu0 0.0
    %v815 = vand.u32 %v116, 4294901760
    %816 = vmatpush1.msra.mxu0 %v815
    %817 = vmatprep.subr.mxu0 0.0
    %v818 = vand.u32 %v115, 4294901760
    %819 = vmatpush1.msra.mxu0 %v818
    %820 = vmatprep.subr.mxu0 0.0
    %v821 = vand.u32 %v114, 4294901760
    %822 = vmatpush1.msra.mxu0 %v821
    %823 = vmatprep.subr.mxu0 0.0
    %v824 = vand.u32 %v113, 4294901760
    %825 = vmatpush1.msra.mxu0 %v824
    %826 = vmatprep.subr.mxu0 0.0
    %v827 = vand.u32 %v112, 4294901760
    %828 = vmatpush1.msra.mxu0 %v827
    %829 = vmatprep.subr.mxu0 0.0
    %v830 = vand.u32 %v111, 4294901760
    %831 = vmatpush1.msra.mxu0 %v830
    %832 = vmatprep.subr.mxu0 0.0
    %v833 = vand.u32 %v110, 4294901760
    %834 = vmatpush1.msra.mxu0 %v833
    %835 = vmatprep.subr.mxu0 0.0
    %v836 = vand.u32 %v109, 4294901760
    %837 = vmatpush1.msra.mxu0 %v836
    %838 = vmatprep.subr.mxu0 0.0
    %v839 = vand.u32 %v108, 4294901760
    %840 = vmatpush1.msra.mxu0 %v839
    %841 = vmatprep.subr.mxu0 0.0
    %v842 = vand.u32 %v107, 4294901760
    %843 = vmatpush1.msra.mxu0 %v842
    %844 = vmatprep.subr.mxu0 0.0
    %845 = vmatpush2.msra.mxu0 0.0
    %846 = vmatprep.subr.mxu0 0.0
    %847 = vmatpush2.msra.mxu0 0.0
    %848 = vmatprep.subr.mxu0 0.0
    %849 = vmatpush2.msra.mxu0 0.0
    %850 = vmatprep.subr.mxu0 0.0
    %851 = vmatpush2.msra.mxu0 0.0
    %852 = vmatprep.subr.mxu0 0.0
    %853 = vmatpush2.msra.mxu0 0.0
    %854 = vmatprep.subr.mxu0 0.0
    %855 = vmatpush2.msra.mxu0 0.0
    %856 = vmatprep.subr.mxu0 0.0
    %857 = vmatpush2.msra.mxu0 0.0
    %858 = vmatprep.subr.mxu0 0.0
    %859 = vmatpush2.msra.mxu0 0.0
    %860 = vmatprep.subr.mxu0 0.0
    %861 = vmatpush2.msra.mxu0 0.0
    %862 = vmatprep.subr.mxu0 0.0
    %863 = vmatpush2.msra.mxu0 0.0
    %864 = vmatprep.subr.mxu0 0.0
    %865 = vmatpush2.msra.mxu0 0.0
    %866 = vmatprep.subr.mxu0 0.0
    %867 = vmatpush2.msra.mxu0 0.0
    %868 = vmatprep.subr.mxu0 0.0
    %869 = vmatpush2.msra.mxu0 0.0
    %870 = vmatprep.subr.mxu0 0.0
    %871 = vmatpush2.msra.mxu0 0.0
    %872 = vmatprep.subr.mxu0 0.0
    %873 = vmatpush2.msra.mxu0 0.0
    %874 = vmatprep.subr.mxu0 0.0
    %875 = vmatpush2.msra.mxu0 0.0
    %876 = vmatprep.mubr.f32.mxu0 0.0
    %v877 = vand.u32 %v153, 4294901760
    %v878 = vsub.f32 %v153, %v877
    %v879 = vand.u32 %v878, 4294901760
    %v880 = vsub.f32 %v878, %v879
    %v881 = vand.u32 %v880, 4294901760
    %882 = vmatmul.mubr.f32.gmra.mxu0 %v881
    %v883 = vpop.f32.mrf.mxu0
    %v884 = vadd.f32 0.0, %v883
    %v885 = vpop.f32.mrf.mxu0
    %886 = vdwg.mxu0
    %887 = vmatprep.subr.mxu0 0.0
    %v888 = vand.u32 %v122, 4294901760
    %v889 = vsub.f32 %v122, %v888
    %v890 = vand.u32 %v889, 4294901760
    %v891 = vsub.f32 %v889, %v890
    %v892 = vand.u32 %v891, 4294901760
    %893 = vmatpush1.msra.mxu0 %v892
    %894 = vmatprep.subr.mxu0 0.0
    %v895 = vand.u32 %v121, 4294901760
    %v896 = vsub.f32 %v121, %v895
    %v897 = vand.u32 %v896, 4294901760
    %v898 = vsub.f32 %v896, %v897
    %v899 = vand.u32 %v898, 4294901760
    %900 = vmatpush1.msra.mxu0 %v899
    %901 = vmatprep.subr.mxu0 0.0
    %v902 = vand.u32 %v120, 4294901760
    %v903 = vsub.f32 %v120, %v902
    %v904 = vand.u32 %v903, 4294901760
    %v905 = vsub.f32 %v903, %v904
    %v906 = vand.u32 %v905, 4294901760
    %907 = vmatpush1.msra.mxu0 %v906
    %908 = vmatprep.subr.mxu0 0.0
    %v909 = vand.u32 %v119, 4294901760
    %v910 = vsub.f32 %v119, %v909
    %v911 = vand.u32 %v910, 4294901760
    %v912 = vsub.f32 %v910, %v911
    %v913 = vand.u32 %v912, 4294901760
    %914 = vmatpush1.msra.mxu0 %v913
    %915 = vmatprep.subr.mxu0 0.0
    %v916 = vand.u32 %v118, 4294901760
    %v917 = vsub.f32 %v118, %v916
    %v918 = vand.u32 %v917, 4294901760
    %v919 = vsub.f32 %v917, %v918
    %v920 = vand.u32 %v919, 4294901760
    %921 = vmatpush1.msra.mxu0 %v920
    %922 = vmatprep.subr.mxu0 0.0
    %v923 = vand.u32 %v117, 4294901760
    %v924 = vsub.f32 %v117, %v923
    %v925 = vand.u32 %v924, 4294901760
    %v926 = vsub.f32 %v924, %v925
    %v927 = vand.u32 %v926, 4294901760
    %928 = vmatpush1.msra.mxu0 %v927
    %929 = vmatprep.subr.mxu0 0.0
    %v930 = vand.u32 %v116, 4294901760
    %v931 = vsub.f32 %v116, %v930
    %v932 = vand.u32 %v931, 4294901760
    %v933 = vsub.f32 %v931, %v932
    %v934 = vand.u32 %v933, 4294901760
    %935 = vmatpush1.msra.mxu0 %v934
    %936 = vmatprep.subr.mxu0 0.0
    %v937 = vand.u32 %v115, 4294901760
    %v938 = vsub.f32 %v115, %v937
    %v939 = vand.u32 %v938, 4294901760
    %v940 = vsub.f32 %v938, %v939
    %v941 = vand.u32 %v940, 4294901760
    %942 = vmatpush1.msra.mxu0 %v941
    %943 = vmatprep.subr.mxu0 0.0
    %v944 = vand.u32 %v114, 4294901760
    %v945 = vsub.f32 %v114, %v944
    %v946 = vand.u32 %v945, 4294901760
    %v947 = vsub.f32 %v945, %v946
    %v948 = vand.u32 %v947, 4294901760
    %949 = vmatpush1.msra.mxu0 %v948
    %950 = vmatprep.subr.mxu0 0.0
    %v951 = vand.u32 %v113, 4294901760
    %v952 = vsub.f32 %v113, %v951
    %v953 = vand.u32 %v952, 4294901760
    %v954 = vsub.f32 %v952, %v953
    %v955 = vand.u32 %v954, 4294901760
    %956 = vmatpush1.msra.mxu0 %v955
    %957 = vmatprep.subr.mxu0 0.0
    %v958 = vand.u32 %v112, 4294901760
    %v959 = vsub.f32 %v112, %v958
    %v960 = vand.u32 %v959, 4294901760
    %v961 = vsub.f32 %v959, %v960
    %v962 = vand.u32 %v961, 4294901760
    %963 = vmatpush1.msra.mxu0 %v962
    %964 = vmatprep.subr.mxu0 0.0
    %v965 = vand.u32 %v111, 4294901760
    %v966 = vsub.f32 %v111, %v965
    %v967 = vand.u32 %v966, 4294901760
    %v968 = vsub.f32 %v966, %v967
    %v969 = vand.u32 %v968, 4294901760
    %970 = vmatpush1.msra.mxu0 %v969
    %971 = vmatprep.subr.mxu0 0.0
    %v972 = vand.u32 %v110, 4294901760
    %v973 = vsub.f32 %v110, %v972
    %v974 = vand.u32 %v973, 4294901760
    %v975 = vsub.f32 %v973, %v974
    %v976 = vand.u32 %v975, 4294901760
    %977 = vmatpush1.msra.mxu0 %v976
    %978 = vmatprep.subr.mxu0 0.0
    %v979 = vand.u32 %v109, 4294901760
    %v980 = vsub.f32 %v109, %v979
    %v981 = vand.u32 %v980, 4294901760
    %v982 = vsub.f32 %v980, %v981
    %v983 = vand.u32 %v982, 4294901760
    %984 = vmatpush1.msra.mxu0 %v983
    %985 = vmatprep.subr.mxu0 0.0
    %v986 = vand.u32 %v108, 4294901760
    %v987 = vsub.f32 %v108, %v986
    %v988 = vand.u32 %v987, 4294901760
    %v989 = vsub.f32 %v987, %v988
    %v990 = vand.u32 %v989, 4294901760
    %991 = vmatpush1.msra.mxu0 %v990
    %992 = vmatprep.subr.mxu0 0.0
    %v993 = vand.u32 %v107, 4294901760
    %v994 = vsub.f32 %v107, %v993
    %v995 = vand.u32 %v994, 4294901760
    %v996 = vsub.f32 %v994, %v995
    %v997 = vand.u32 %v996, 4294901760
    %998 = vmatpush1.msra.mxu0 %v997
    %999 = vmatprep.subr.mxu0 0.0
    %1000 = vmatpush2.msra.mxu0 0.0
    %1001 = vmatprep.subr.mxu0 0.0
    %1002 = vmatpush2.msra.mxu0 0.0
    %1003 = vmatprep.subr.mxu0 0.0
    %1004 = vmatpush2.msra.mxu0 0.0
    %1005 = vmatprep.subr.mxu0 0.0
    %1006 = vmatpush2.msra.mxu0 0.0
    %1007 = vmatprep.subr.mxu0 0.0
    %1008 = vmatpush2.msra.mxu0 0.0
    %1009 = vmatprep.subr.mxu0 0.0
    %1010 = vmatpush2.msra.mxu0 0.0
    %1011 = vmatprep.subr.mxu0 0.0
    %1012 = vmatpush2.msra.mxu0 0.0
    %1013 = vmatprep.subr.mxu0 0.0
    %1014 = vmatpush2.msra.mxu0 0.0
    %1015 = vmatprep.subr.mxu0 0.0
    %1016 = vmatpush2.msra.mxu0 0.0
    %1017 = vmatprep.subr.mxu0 0.0
    %1018 = vmatpush2.msra.mxu0 0.0
    %1019 = vmatprep.subr.mxu0 0.0
    %1020 = vmatpush2.msra.mxu0 0.0
    %1021 = vmatprep.subr.mxu0 0.0
    %1022 = vmatpush2.msra.mxu0 0.0
    %1023 = vmatprep.subr.mxu0 0.0
    %1024 = vmatpush2.msra.mxu0 0.0
    %1025 = vmatprep.subr.mxu0 0.0
    %1026 = vmatpush2.msra.mxu0 0.0
    %1027 = vmatprep.subr.mxu0 0.0
    %1028 = vmatpush2.msra.mxu0 0.0
    %1029 = vmatprep.subr.mxu0 0.0
    %1030 = vmatpush2.msra.mxu0 0.0
    %1031 = vmatprep.mubr.f32.mxu0 0.0
    %v1032 = vand.u32 %v153, 4294901760
    %1033 = vmatmul.mubr.f32.gmra.mxu0 %v1032
    %v1034 = vpop.f32.mrf.mxu0
    %v1035 = vadd.f32 %v884, %v1034
    %v1036 = vpop.f32.mrf.mxu0
    %1037 = vdwg.mxu0
    %1038 = vmatprep.subr.mxu0 0.0
    %v1039 = vand.u32 %v122, 4294901760
    %v1040 = vsub.f32 %v122, %v1039
    %1041 = vmatpush1.msra.mxu0 %v1040
    %1042 = vmatprep.subr.mxu0 0.0
    %v1043 = vand.u32 %v121, 4294901760
    %v1044 = vsub.f32 %v121, %v1043
    %1045 = vmatpush1.msra.mxu0 %v1044
    %1046 = vmatprep.subr.mxu0 0.0
    %v1047 = vand.u32 %v120, 4294901760
    %v1048 = vsub.f32 %v120, %v1047
    %1049 = vmatpush1.msra.mxu0 %v1048
    %1050 = vmatprep.subr.mxu0 0.0
    %v1051 = vand.u32 %v119, 4294901760
    %v1052 = vsub.f32 %v119, %v1051
    %1053 = vmatpush1.msra.mxu0 %v1052
    %1054 = vmatprep.subr.mxu0 0.0
    %v1055 = vand.u32 %v118, 4294901760
    %v1056 = vsub.f32 %v118, %v1055
    %1057 = vmatpush1.msra.mxu0 %v1056
    %1058 = vmatprep.subr.mxu0 0.0
    %v1059 = vand.u32 %v117, 4294901760
    %v1060 = vsub.f32 %v117, %v1059
    %1061 = vmatpush1.msra.mxu0 %v1060
    %1062 = vmatprep.subr.mxu0 0.0
    %v1063 = vand.u32 %v116, 4294901760
    %v1064 = vsub.f32 %v116, %v1063
    %1065 = vmatpush1.msra.mxu0 %v1064
    %1066 = vmatprep.subr.mxu0 0.0
    %v1067 = vand.u32 %v115, 4294901760
    %v1068 = vsub.f32 %v115, %v1067
    %1069 = vmatpush1.msra.mxu0 %v1068
    %1070 = vmatprep.subr.mxu0 0.0
    %v1071 = vand.u32 %v114, 4294901760
    %v1072 = vsub.f32 %v114, %v1071
    %1073 = vmatpush1.msra.mxu0 %v1072
    %1074 = vmatprep.subr.mxu0 0.0
    %v1075 = vand.u32 %v113, 4294901760
    %v1076 = vsub.f32 %v113, %v1075
    %1077 = vmatpush1.msra.mxu0 %v1076
    %1078 = vmatprep.subr.mxu0 0.0
    %v1079 = vand.u32 %v112, 4294901760
    %v1080 = vsub.f32 %v112, %v1079
    %1081 = vmatpush1.msra.mxu0 %v1080
    %1082 = vmatprep.subr.mxu0 0.0
    %v1083 = vand.u32 %v111, 4294901760
    %v1084 = vsub.f32 %v111, %v1083
    %1085 = vmatpush1.msra.mxu0 %v1084
    %1086 = vmatprep.subr.mxu0 0.0
    %v1087 = vand.u32 %v110, 4294901760
    %v1088 = vsub.f32 %v110, %v1087
    %1089 = vmatpush1.msra.mxu0 %v1088
    %1090 = vmatprep.subr.mxu0 0.0
    %v1091 = vand.u32 %v109, 4294901760
    %v1092 = vsub.f32 %v109, %v1091
    %1093 = vmatpush1.msra.mxu0 %v1092
    %1094 = vmatprep.subr.mxu0 0.0
    %v1095 = vand.u32 %v108, 4294901760
    %v1096 = vsub.f32 %v108, %v1095
    %1097 = vmatpush1.msra.mxu0 %v1096
    %1098 = vmatprep.subr.mxu0 0.0
    %v1099 = vand.u32 %v107, 4294901760
    %v1100 = vsub.f32 %v107, %v1099
    %1101 = vmatpush1.msra.mxu0 %v1100
    %1102 = vmatprep.subr.mxu0 0.0
    %1103 = vmatpush2.msra.mxu0 0.0
    %1104 = vmatprep.subr.mxu0 0.0
    %1105 = vmatpush2.msra.mxu0 0.0
    %1106 = vmatprep.subr.mxu0 0.0
    %1107 = vmatpush2.msra.mxu0 0.0
    %1108 = vmatprep.subr.mxu0 0.0
    %1109 = vmatpush2.msra.mxu0 0.0
    %1110 = vmatprep.subr.mxu0 0.0
    %1111 = vmatpush2.msra.mxu0 0.0
    %1112 = vmatprep.subr.mxu0 0.0
    %1113 = vmatpush2.msra.mxu0 0.0
    %1114 = vmatprep.subr.mxu0 0.0
    %1115 = vmatpush2.msra.mxu0 0.0
    %1116 = vmatprep.subr.mxu0 0.0
    %1117 = vmatpush2.msra.mxu0 0.0
    %1118 = vmatprep.subr.mxu0 0.0
    %1119 = vmatpush2.msra.mxu0 0.0
    %1120 = vmatprep.subr.mxu0 0.0
    %1121 = vmatpush2.msra.mxu0 0.0
    %1122 = vmatprep.subr.mxu0 0.0
    %1123 = vmatpush2.msra.mxu0 0.0
    %1124 = vmatprep.subr.mxu0 0.0
    %1125 = vmatpush2.msra.mxu0 0.0
    %1126 = vmatprep.subr.mxu0 0.0
    %1127 = vmatpush2.msra.mxu0 0.0
    %1128 = vmatprep.subr.mxu0 0.0
    %1129 = vmatpush2.msra.mxu0 0.0
    %1130 = vmatprep.subr.mxu0 0.0
    %1131 = vmatpush2.msra.mxu0 0.0
    %1132 = vmatprep.subr.mxu0 0.0
    %1133 = vmatpush2.msra.mxu0 0.0
    %1134 = vmatprep.mubr.f32.mxu0 0.0
    %v1135 = vand.u32 %v153, 4294901760
    %v1136 = vsub.f32 %v153, %v1135
    %1137 = vmatmul.mubr.f32.gmra.mxu0 %v1136
    %v1138 = vpop.f32.mrf.mxu0
    %v1139 = vadd.f32 %v1035, %v1138
    %v1140 = vpop.f32.mrf.mxu0
    %1141 = vdwg.mxu0
    %1142 = vmatprep.subr.mxu0 0.0
    %v1143 = vand.u32 %v122, 4294901760
    %1144 = vmatpush1.msra.mxu0 %v1143
    %1145 = vmatprep.subr.mxu0 0.0
    %v1146 = vand.u32 %v121, 4294901760
    %1147 = vmatpush1.msra.mxu0 %v1146
    %1148 = vmatprep.subr.mxu0 0.0
    %v1149 = vand.u32 %v120, 4294901760
    %1150 = vmatpush1.msra.mxu0 %v1149
    %1151 = vmatprep.subr.mxu0 0.0
    %v1152 = vand.u32 %v119, 4294901760
    %1153 = vmatpush1.msra.mxu0 %v1152
    %1154 = vmatprep.subr.mxu0 0.0
    %v1155 = vand.u32 %v118, 4294901760
    %1156 = vmatpush1.msra.mxu0 %v1155
    %1157 = vmatprep.subr.mxu0 0.0
    %v1158 = vand.u32 %v117, 4294901760
    %1159 = vmatpush1.msra.mxu0 %v1158
    %1160 = vmatprep.subr.mxu0 0.0
    %v1161 = vand.u32 %v116, 4294901760
    %1162 = vmatpush1.msra.mxu0 %v1161
    %1163 = vmatprep.subr.mxu0 0.0
    %v1164 = vand.u32 %v115, 4294901760
    %1165 = vmatpush1.msra.mxu0 %v1164
    %1166 = vmatprep.subr.mxu0 0.0
    %v1167 = vand.u32 %v114, 4294901760
    %1168 = vmatpush1.msra.mxu0 %v1167
    %1169 = vmatprep.subr.mxu0 0.0
    %v1170 = vand.u32 %v113, 4294901760
    %1171 = vmatpush1.msra.mxu0 %v1170
    %1172 = vmatprep.subr.mxu0 0.0
    %v1173 = vand.u32 %v112, 4294901760
    %1174 = vmatpush1.msra.mxu0 %v1173
    %1175 = vmatprep.subr.mxu0 0.0
    %v1176 = vand.u32 %v111, 4294901760
    %1177 = vmatpush1.msra.mxu0 %v1176
    %1178 = vmatprep.subr.mxu0 0.0
    %v1179 = vand.u32 %v110, 4294901760
    %1180 = vmatpush1.msra.mxu0 %v1179
    %1181 = vmatprep.subr.mxu0 0.0
    %v1182 = vand.u32 %v109, 4294901760
    %1183 = vmatpush1.msra.mxu0 %v1182
    %1184 = vmatprep.subr.mxu0 0.0
    %v1185 = vand.u32 %v108, 4294901760
    %1186 = vmatpush1.msra.mxu0 %v1185
    %1187 = vmatprep.subr.mxu0 0.0
    %v1188 = vand.u32 %v107, 4294901760
    %1189 = vmatpush1.msra.mxu0 %v1188
    %1190 = vmatprep.subr.mxu0 0.0
    %1191 = vmatpush2.msra.mxu0 0.0
    %1192 = vmatprep.subr.mxu0 0.0
    %1193 = vmatpush2.msra.mxu0 0.0
    %1194 = vmatprep.subr.mxu0 0.0
    %1195 = vmatpush2.msra.mxu0 0.0
    %1196 = vmatprep.subr.mxu0 0.0
    %1197 = vmatpush2.msra.mxu0 0.0
    %1198 = vmatprep.subr.mxu0 0.0
    %1199 = vmatpush2.msra.mxu0 0.0
    %1200 = vmatprep.subr.mxu0 0.0
    %1201 = vmatpush2.msra.mxu0 0.0
    %1202 = vmatprep.subr.mxu0 0.0
    %1203 = vmatpush2.msra.mxu0 0.0
    %1204 = vmatprep.subr.mxu0 0.0
    %1205 = vmatpush2.msra.mxu0 0.0
    %1206 = vmatprep.subr.mxu0 0.0
    %1207 = vmatpush2.msra.mxu0 0.0
    %1208 = vmatprep.subr.mxu0 0.0
    %1209 = vmatpush2.msra.mxu0 0.0
    %1210 = vmatprep.subr.mxu0 0.0
    %1211 = vmatpush2.msra.mxu0 0.0
    %1212 = vmatprep.subr.mxu0 0.0
    %1213 = vmatpush2.msra.mxu0 0.0
    %1214 = vmatprep.subr.mxu0 0.0
    %1215 = vmatpush2.msra.mxu0 0.0
    %1216 = vmatprep.subr.mxu0 0.0
    %1217 = vmatpush2.msra.mxu0 0.0
    %1218 = vmatprep.subr.mxu0 0.0
    %1219 = vmatpush2.msra.mxu0 0.0
    %1220 = vmatprep.subr.mxu0 0.0
    %1221 = vmatpush2.msra.mxu0 0.0
    %1222 = vmatprep.mubr.f32.mxu0 0.0
    %v1223 = vand.u32 %v153, 4294901760
    %v1224 = vsub.f32 %v153, %v1223
    %v1225 = vand.u32 %v1224, 4294901760
    %1226 = vmatmul.mubr.f32.gmra.mxu0 %v1225
    %v1227 = vpop.f32.mrf.mxu0
    %v1228 = vadd.f32 %v1139, %v1227
    %v1229 = vpop.f32.mrf.mxu0
    %1230 = vdwg.mxu0
    %1231 = vmatprep.subr.mxu0 0.0
    %v1232 = vand.u32 %v122, 4294901760
    %v1233 = vsub.f32 %v122, %v1232
    %v1234 = vand.u32 %v1233, 4294901760
    %1235 = vmatpush1.msra.mxu0 %v1234
    %1236 = vmatprep.subr.mxu0 0.0
    %v1237 = vand.u32 %v121, 4294901760
    %v1238 = vsub.f32 %v121, %v1237
    %v1239 = vand.u32 %v1238, 4294901760
    %1240 = vmatpush1.msra.mxu0 %v1239
    %1241 = vmatprep.subr.mxu0 0.0
    %v1242 = vand.u32 %v120, 4294901760
    %v1243 = vsub.f32 %v120, %v1242
    %v1244 = vand.u32 %v1243, 4294901760
    %1245 = vmatpush1.msra.mxu0 %v1244
    %1246 = vmatprep.subr.mxu0 0.0
    %v1247 = vand.u32 %v119, 4294901760
    %v1248 = vsub.f32 %v119, %v1247
    %v1249 = vand.u32 %v1248, 4294901760
    %1250 = vmatpush1.msra.mxu0 %v1249
    %1251 = vmatprep.subr.mxu0 0.0
    %v1252 = vand.u32 %v118, 4294901760
    %v1253 = vsub.f32 %v118, %v1252
    %v1254 = vand.u32 %v1253, 4294901760
    %1255 = vmatpush1.msra.mxu0 %v1254
    %1256 = vmatprep.subr.mxu0 0.0
    %v1257 = vand.u32 %v117, 4294901760
    %v1258 = vsub.f32 %v117, %v1257
    %v1259 = vand.u32 %v1258, 4294901760
    %1260 = vmatpush1.msra.mxu0 %v1259
    %1261 = vmatprep.subr.mxu0 0.0
    %v1262 = vand.u32 %v116, 4294901760
    %v1263 = vsub.f32 %v116, %v1262
    %v1264 = vand.u32 %v1263, 4294901760
    %1265 = vmatpush1.msra.mxu0 %v1264
    %1266 = vmatprep.subr.mxu0 0.0
    %v1267 = vand.u32 %v115, 4294901760
    %v1268 = vsub.f32 %v115, %v1267
    %v1269 = vand.u32 %v1268, 4294901760
    %1270 = vmatpush1.msra.mxu0 %v1269
    %1271 = vmatprep.subr.mxu0 0.0
    %v1272 = vand.u32 %v114, 4294901760
    %v1273 = vsub.f32 %v114, %v1272
    %v1274 = vand.u32 %v1273, 4294901760
    %1275 = vmatpush1.msra.mxu0 %v1274
    %1276 = vmatprep.subr.mxu0 0.0
    %v1277 = vand.u32 %v113, 4294901760
    %v1278 = vsub.f32 %v113, %v1277
    %v1279 = vand.u32 %v1278, 4294901760
    %1280 = vmatpush1.msra.mxu0 %v1279
    %1281 = vmatprep.subr.mxu0 0.0
    %v1282 = vand.u32 %v112, 4294901760
    %v1283 = vsub.f32 %v112, %v1282
    %v1284 = vand.u32 %v1283, 4294901760
    %1285 = vmatpush1.msra.mxu0 %v1284
    %1286 = vmatprep.subr.mxu0 0.0
    %v1287 = vand.u32 %v111, 4294901760
    %v1288 = vsub.f32 %v111, %v1287
    %v1289 = vand.u32 %v1288, 4294901760
    %1290 = vmatpush1.msra.mxu0 %v1289
    %1291 = vmatprep.subr.mxu0 0.0
    %v1292 = vand.u32 %v110, 4294901760
    %v1293 = vsub.f32 %v110, %v1292
    %v1294 = vand.u32 %v1293, 4294901760
    %1295 = vmatpush1.msra.mxu0 %v1294
    %1296 = vmatprep.subr.mxu0 0.0
    %v1297 = vand.u32 %v109, 4294901760
    %v1298 = vsub.f32 %v109, %v1297
    %v1299 = vand.u32 %v1298, 4294901760
    %1300 = vmatpush1.msra.mxu0 %v1299
    %1301 = vmatprep.subr.mxu0 0.0
    %v1302 = vand.u32 %v108, 4294901760
    %v1303 = vsub.f32 %v108, %v1302
    %v1304 = vand.u32 %v1303, 4294901760
    %1305 = vmatpush1.msra.mxu0 %v1304
    %1306 = vmatprep.subr.mxu0 0.0
    %v1307 = vand.u32 %v107, 4294901760
    %v1308 = vsub.f32 %v107, %v1307
    %v1309 = vand.u32 %v1308, 4294901760
    %1310 = vmatpush1.msra.mxu0 %v1309
    %1311 = vmatprep.subr.mxu0 0.0
    %1312 = vmatpush2.msra.mxu0 0.0
    %1313 = vmatprep.subr.mxu0 0.0
    %1314 = vmatpush2.msra.mxu0 0.0
    %1315 = vmatprep.subr.mxu0 0.0
    %1316 = vmatpush2.msra.mxu0 0.0
    %1317 = vmatprep.subr.mxu0 0.0
    %1318 = vmatpush2.msra.mxu0 0.0
    %1319 = vmatprep.subr.mxu0 0.0
    %1320 = vmatpush2.msra.mxu0 0.0
    %1321 = vmatprep.subr.mxu0 0.0
    %1322 = vmatpush2.msra.mxu0 0.0
    %1323 = vmatprep.subr.mxu0 0.0
    %1324 = vmatpush2.msra.mxu0 0.0
    %1325 = vmatprep.subr.mxu0 0.0
    %1326 = vmatpush2.msra.mxu0 0.0
    %1327 = vmatprep.subr.mxu0 0.0
    %1328 = vmatpush2.msra.mxu0 0.0
    %1329 = vmatprep.subr.mxu0 0.0
    %1330 = vmatpush2.msra.mxu0 0.0
    %1331 = vmatprep.subr.mxu0 0.0
    %1332 = vmatpush2.msra.mxu0 0.0
    %1333 = vmatprep.subr.mxu0 0.0
    %1334 = vmatpush2.msra.mxu0 0.0
    %1335 = vmatprep.subr.mxu0 0.0
    %1336 = vmatpush2.msra.mxu0 0.0
    %1337 = vmatprep.subr.mxu0 0.0
    %1338 = vmatpush2.msra.mxu0 0.0
    %1339 = vmatprep.subr.mxu0 0.0
    %1340 = vmatpush2.msra.mxu0 0.0
    %1341 = vmatprep.subr.mxu0 0.0
    %1342 = vmatpush2.msra.mxu0 0.0
    %1343 = vmatprep.mubr.f32.mxu0 0.0
    %v1344 = vand.u32 %v153, 4294901760
    %1345 = vmatmul.mubr.f32.gmra.mxu0 %v1344
    %v1346 = vpop.f32.mrf.mxu0
    %v1347 = vadd.f32 %v1228, %v1346
    %v1348 = vpop.f32.mrf.mxu0
    %1349 = vdwg.mxu0
    %1350 = vmatprep.subr.mxu0 0.0
    %v1351 = vand.u32 %v122, 4294901760
    %1352 = vmatpush1.msra.mxu0 %v1351
    %1353 = vmatprep.subr.mxu0 0.0
    %v1354 = vand.u32 %v121, 4294901760
    %1355 = vmatpush1.msra.mxu0 %v1354
    %1356 = vmatprep.subr.mxu0 0.0
    %v1357 = vand.u32 %v120, 4294901760
    %1358 = vmatpush1.msra.mxu0 %v1357
    %1359 = vmatprep.subr.mxu0 0.0
    %v1360 = vand.u32 %v119, 4294901760
    %1361 = vmatpush1.msra.mxu0 %v1360
    %1362 = vmatprep.subr.mxu0 0.0
    %v1363 = vand.u32 %v118, 4294901760
    %1364 = vmatpush1.msra.mxu0 %v1363
    %1365 = vmatprep.subr.mxu0 0.0
    %v1366 = vand.u32 %v117, 4294901760
    %1367 = vmatpush1.msra.mxu0 %v1366
    %1368 = vmatprep.subr.mxu0 0.0
    %v1369 = vand.u32 %v116, 4294901760
    %1370 = vmatpush1.msra.mxu0 %v1369
    %1371 = vmatprep.subr.mxu0 0.0
    %v1372 = vand.u32 %v115, 4294901760
    %1373 = vmatpush1.msra.mxu0 %v1372
    %1374 = vmatprep.subr.mxu0 0.0
    %v1375 = vand.u32 %v114, 4294901760
    %1376 = vmatpush1.msra.mxu0 %v1375
    %1377 = vmatprep.subr.mxu0 0.0
    %v1378 = vand.u32 %v113, 4294901760
    %1379 = vmatpush1.msra.mxu0 %v1378
    %1380 = vmatprep.subr.mxu0 0.0
    %v1381 = vand.u32 %v112, 4294901760
    %1382 = vmatpush1.msra.mxu0 %v1381
    %1383 = vmatprep.subr.mxu0 0.0
    %v1384 = vand.u32 %v111, 4294901760
    %1385 = vmatpush1.msra.mxu0 %v1384
    %1386 = vmatprep.subr.mxu0 0.0
    %v1387 = vand.u32 %v110, 4294901760
    %1388 = vmatpush1.msra.mxu0 %v1387
    %1389 = vmatprep.subr.mxu0 0.0
    %v1390 = vand.u32 %v109, 4294901760
    %1391 = vmatpush1.msra.mxu0 %v1390
    %1392 = vmatprep.subr.mxu0 0.0
    %v1393 = vand.u32 %v108, 4294901760
    %1394 = vmatpush1.msra.mxu0 %v1393
    %1395 = vmatprep.subr.mxu0 0.0
    %v1396 = vand.u32 %v107, 4294901760
    %1397 = vmatpush1.msra.mxu0 %v1396
    %1398 = vmatprep.subr.mxu0 0.0
    %1399 = vmatpush2.msra.mxu0 0.0
    %1400 = vmatprep.subr.mxu0 0.0
    %1401 = vmatpush2.msra.mxu0 0.0
    %1402 = vmatprep.subr.mxu0 0.0
    %1403 = vmatpush2.msra.mxu0 0.0
    %1404 = vmatprep.subr.mxu0 0.0
    %1405 = vmatpush2.msra.mxu0 0.0
    %1406 = vmatprep.subr.mxu0 0.0
    %1407 = vmatpush2.msra.mxu0 0.0
    %1408 = vmatprep.subr.mxu0 0.0
    %1409 = vmatpush2.msra.mxu0 0.0
    %1410 = vmatprep.subr.mxu0 0.0
    %1411 = vmatpush2.msra.mxu0 0.0
    %1412 = vmatprep.subr.mxu0 0.0
    %1413 = vmatpush2.msra.mxu0 0.0
    %1414 = vmatprep.subr.mxu0 0.0
    %1415 = vmatpush2.msra.mxu0 0.0
    %1416 = vmatprep.subr.mxu0 0.0
    %1417 = vmatpush2.msra.mxu0 0.0
    %1418 = vmatprep.subr.mxu0 0.0
    %1419 = vmatpush2.msra.mxu0 0.0
    %1420 = vmatprep.subr.mxu0 0.0
    %1421 = vmatpush2.msra.mxu0 0.0
    %1422 = vmatprep.subr.mxu0 0.0
    %1423 = vmatpush2.msra.mxu0 0.0
    %1424 = vmatprep.subr.mxu0 0.0
    %1425 = vmatpush2.msra.mxu0 0.0
    %1426 = vmatprep.subr.mxu0 0.0
    %1427 = vmatpush2.msra.mxu0 0.0
    %1428 = vmatprep.subr.mxu0 0.0
    %1429 = vmatpush2.msra.mxu0 0.0
    %1430 = vmatprep.mubr.f32.mxu0 0.0
    %v1431 = vand.u32 %v153, 4294901760
    %1432 = vmatmul.mubr.f32.gmra.mxu0 %v1431
    %v1433 = vpop.f32.mrf.mxu0
    %v1434 = vadd.f32 %v1347, %v1433
    %v1435 = vpop.f32.mrf.mxu0
    %1436 = vdwg.mxu0
    %v1437 = vmul.f32 %v1434, 0.001953125
    %v1438 = vmul.f32 %v795, %v795
    %v1439 = vsub.f32 %v1437, %v1438
    %v1440 = vlaneseq
    %v1441 = vshrl.u32 %v1440, 7
    %v1442 = vsub.s32 0, %v1441
    %v1443 = vrot.slane %v795, %v1442
    %v1444 = vsub.f32 %v101, %v1443
    %v1445 = vsub.f32 %v102, %v1443
    %v1446 = vsub.f32 %v103, %v1443
    %v1447 = vsub.f32 %v104, %v1443
    %v1448 = vadd.f32 %v1439, 1e-05
    %v1449 = vrsqrt.pop %v1448
    %v1450 = vlaneseq
    %v1451 = vshrl.u32 %v1450, 7
    %v1452 = vsub.s32 0, %v1451
    %v1453 = vrot.slane %v1449, %v1452
    %v1454 = vmul.f32 %v1444, %v1453
    %v1455 = vmul.f32 %v1445, %v1453
    %v1456 = vmul.f32 %v1446, %v1453
    %v1457 = vmul.f32 %v1447, %v1453
    %v1459 = vlaneseq
    %v1460 = vshrl.u32 %v1459, 7
    %v1461 = vsub.s32 0, %v1460
    %v1462 = vrot.slane %v105, %v1461
    %v1464 = vmul.f32 %v1454, %v1462
    %v1465 = vmul.f32 %v1455, %v1462
    %v1466 = vmul.f32 %v1456, %v1462
    %v1467 = vmul.f32 %v1457, %v1462
    %v1469 = vlaneseq
    %v1470 = vshrl.u32 %v1469, 7
    %v1471 = vsub.s32 0, %v1470
    %v1472 = vrot.slane %v106, %v1471
    %v1474 = vadd.f32 %v1464, %v1472
    %v1475 = vadd.f32 %v1465, %v1472
    %v1476 = vadd.f32 %v1466, %v1472
    %v1477 = vadd.f32 %v1467, %v1472
    %v1478 = vmax.f32 %v1474, 0.0
    %v1479 = vmax.f32 %v1475, 0.0
    %v1480 = vmax.f32 %v1476, 0.0
    %v1481 = vmax.f32 %v1477, 0.0
    %vm1482 = vcmask 261120
    %v1484 = vsel %vm1482, %v123, 0
    %v1487 = vsel %vm1482, %v124, 0
    %v1490 = vsel %vm1482, %v125, 0
    %v1493 = vsel %vm1482, %v126, 0
    %1495 = vmatprep.subr.mxu0 0.0
    %1496 = vmatpush1.msra.mxu0 0.0
    %1497 = vmatprep.subr.mxu0 0.0
    %1498 = vmatpush1.msra.mxu0 0.0
    %1499 = vmatprep.subr.mxu0 0.0
    %1500 = vmatpush1.msra.mxu0 0.0
    %1501 = vmatprep.subr.mxu0 0.0
    %1502 = vmatpush1.msra.mxu0 0.0
    %1503 = vmatprep.subr.mxu0 0.0
    %1504 = vmatpush1.msra.mxu0 0.0
    %1505 = vmatprep.subr.mxu0 0.0
    %1506 = vmatpush1.msra.mxu0 0.0
    %1507 = vmatprep.subr.mxu0 0.0
    %1508 = vmatpush1.msra.mxu0 0.0
    %1509 = vmatprep.subr.mxu0 0.0
    %1510 = vmatpush1.msra.mxu0 0.0
    %1511 = vmatprep.subr.mxu0 0.0
    %1512 = vmatpush1.msra.mxu0 0.0
    %1513 = vmatprep.subr.mxu0 0.0
    %1514 = vmatpush1.msra.mxu0 0.0
    %1515 = vmatprep.subr.mxu0 0.0
    %1516 = vmatpush1.msra.mxu0 0.0
    %1517 = vmatprep.subr.mxu0 0.0
    %1518 = vmatpush1.msra.mxu0 0.0
    %1519 = vmatprep.subr.mxu0 0.0
    %v1520 = vand.u32 %v1481, 4294901760
    %1521 = vmatpush1.msra.mxu0 %v1520
    %1522 = vmatprep.subr.mxu0 0.0
    %v1523 = vand.u32 %v1480, 4294901760
    %1524 = vmatpush1.msra.mxu0 %v1523
    %1525 = vmatprep.subr.mxu0 0.0
    %v1526 = vand.u32 %v1479, 4294901760
    %1527 = vmatpush1.msra.mxu0 %v1526
    %1528 = vmatprep.subr.mxu0 0.0
    %v1529 = vand.u32 %v1478, 4294901760
    %1530 = vmatpush1.msra.mxu0 %v1529
    %1531 = vmatprep.subr.mxu0 0.0
    %1532 = vmatpush2.msra.mxu0 0.0
    %1533 = vmatprep.subr.mxu0 0.0
    %1534 = vmatpush2.msra.mxu0 0.0
    %1535 = vmatprep.subr.mxu0 0.0
    %1536 = vmatpush2.msra.mxu0 0.0
    %1537 = vmatprep.subr.mxu0 0.0
    %1538 = vmatpush2.msra.mxu0 0.0
    %1539 = vmatprep.subr.mxu0 0.0
    %1540 = vmatpush2.msra.mxu0 0.0
    %1541 = vmatprep.subr.mxu0 0.0
    %1542 = vmatpush2.msra.mxu0 0.0
    %1543 = vmatprep.subr.mxu0 0.0
    %1544 = vmatpush2.msra.mxu0 0.0
    %1545 = vmatprep.subr.mxu0 0.0
    %1546 = vmatpush2.msra.mxu0 0.0
    %1547 = vmatprep.subr.mxu0 0.0
    %1548 = vmatpush2.msra.mxu0 0.0
    %1549 = vmatprep.subr.mxu0 0.0
    %1550 = vmatpush2.msra.mxu0 0.0
    %1551 = vmatprep.subr.mxu0 0.0
    %1552 = vmatpush2.msra.mxu0 0.0
    %1553 = vmatprep.subr.mxu0 0.0
    %1554 = vmatpush2.msra.mxu0 0.0
    %1555 = vmatprep.subr.mxu0 0.0
    %1556 = vmatpush2.msra.mxu0 0.0
    %1557 = vmatprep.subr.mxu0 0.0
    %1558 = vmatpush2.msra.mxu0 0.0
    %1559 = vmatprep.subr.mxu0 0.0
    %1560 = vmatpush2.msra.mxu0 0.0
    %1561 = vmatprep.subr.mxu0 0.0
    %1562 = vmatpush2.msra.mxu0 0.0
    %1563 = vmatprep.mubr.f32.mxu0 0.0
    %v1564 = vand.u32 %v1484, 4294901760
    %v1565 = vsub.f32 %v1484, %v1564
    %v1566 = vand.u32 %v1565, 4294901760
    %v1567 = vsub.f32 %v1565, %v1566
    %v1568 = vand.u32 %v1567, 4294901760
    %1569 = vmatmul.mubr.f32.gmra.mxu0 %v1568
    %v1570 = vpop.f32.mrf.mxu0
    %v1571 = vadd.f32 0.0, %v1570
    %v1572 = vpop.f32.mrf.mxu0
    %1573 = vmatprep.mubr.f32.mxu0 0.0
    %v1574 = vand.u32 %v1487, 4294901760
    %v1575 = vsub.f32 %v1487, %v1574
    %v1576 = vand.u32 %v1575, 4294901760
    %v1577 = vsub.f32 %v1575, %v1576
    %v1578 = vand.u32 %v1577, 4294901760
    %1579 = vmatmul.mubr.f32.gmra.mxu0 %v1578
    %v1580 = vpop.f32.mrf.mxu0
    %v1581 = vadd.f32 0.0, %v1580
    %v1582 = vpop.f32.mrf.mxu0
    %1583 = vmatprep.mubr.f32.mxu0 0.0
    %v1584 = vand.u32 %v1490, 4294901760
    %v1585 = vsub.f32 %v1490, %v1584
    %v1586 = vand.u32 %v1585, 4294901760
    %v1587 = vsub.f32 %v1585, %v1586
    %v1588 = vand.u32 %v1587, 4294901760
    %1589 = vmatmul.mubr.f32.gmra.mxu0 %v1588
    %v1590 = vpop.f32.mrf.mxu0
    %v1591 = vadd.f32 0.0, %v1590
    %v1592 = vpop.f32.mrf.mxu0
    %1593 = vmatprep.mubr.f32.mxu0 0.0
    %v1594 = vand.u32 %v1493, 4294901760
    %v1595 = vsub.f32 %v1493, %v1594
    %v1596 = vand.u32 %v1595, 4294901760
    %v1597 = vsub.f32 %v1595, %v1596
    %v1598 = vand.u32 %v1597, 4294901760
    %1599 = vmatmul.mubr.f32.gmra.mxu0 %v1598
    %v1600 = vpop.f32.mrf.mxu0
    %v1601 = vadd.f32 0.0, %v1600
    %v1602 = vpop.f32.mrf.mxu0
    %1603 = vdwg.mxu0
    %1604 = vmatprep.subr.mxu0 0.0
    %1605 = vmatpush1.msra.mxu0 0.0
    %1606 = vmatprep.subr.mxu0 0.0
    %1607 = vmatpush1.msra.mxu0 0.0
    %1608 = vmatprep.subr.mxu0 0.0
    %1609 = vmatpush1.msra.mxu0 0.0
    %1610 = vmatprep.subr.mxu0 0.0
    %1611 = vmatpush1.msra.mxu0 0.0
    %1612 = vmatprep.subr.mxu0 0.0
    %1613 = vmatpush1.msra.mxu0 0.0
    %1614 = vmatprep.subr.mxu0 0.0
    %1615 = vmatpush1.msra.mxu0 0.0
    %1616 = vmatprep.subr.mxu0 0.0
    %1617 = vmatpush1.msra.mxu0 0.0
    %1618 = vmatprep.subr.mxu0 0.0
    %1619 = vmatpush1.msra.mxu0 0.0
    %1620 = vmatprep.subr.mxu0 0.0
    %1621 = vmatpush1.msra.mxu0 0.0
    %1622 = vmatprep.subr.mxu0 0.0
    %1623 = vmatpush1.msra.mxu0 0.0
    %1624 = vmatprep.subr.mxu0 0.0
    %1625 = vmatpush1.msra.mxu0 0.0
    %1626 = vmatprep.subr.mxu0 0.0
    %1627 = vmatpush1.msra.mxu0 0.0
    %1628 = vmatprep.subr.mxu0 0.0
    %v1629 = vand.u32 %v1481, 4294901760
    %v1630 = vsub.f32 %v1481, %v1629
    %v1631 = vand.u32 %v1630, 4294901760
    %v1632 = vsub.f32 %v1630, %v1631
    %v1633 = vand.u32 %v1632, 4294901760
    %1634 = vmatpush1.msra.mxu0 %v1633
    %1635 = vmatprep.subr.mxu0 0.0
    %v1636 = vand.u32 %v1480, 4294901760
    %v1637 = vsub.f32 %v1480, %v1636
    %v1638 = vand.u32 %v1637, 4294901760
    %v1639 = vsub.f32 %v1637, %v1638
    %v1640 = vand.u32 %v1639, 4294901760
    %1641 = vmatpush1.msra.mxu0 %v1640
    %1642 = vmatprep.subr.mxu0 0.0
    %v1643 = vand.u32 %v1479, 4294901760
    %v1644 = vsub.f32 %v1479, %v1643
    %v1645 = vand.u32 %v1644, 4294901760
    %v1646 = vsub.f32 %v1644, %v1645
    %v1647 = vand.u32 %v1646, 4294901760
    %1648 = vmatpush1.msra.mxu0 %v1647
    %1649 = vmatprep.subr.mxu0 0.0
    %v1650 = vand.u32 %v1478, 4294901760
    %v1651 = vsub.f32 %v1478, %v1650
    %v1652 = vand.u32 %v1651, 4294901760
    %v1653 = vsub.f32 %v1651, %v1652
    %v1654 = vand.u32 %v1653, 4294901760
    %1655 = vmatpush1.msra.mxu0 %v1654
    %1656 = vmatprep.subr.mxu0 0.0
    %1657 = vmatpush2.msra.mxu0 0.0
    %1658 = vmatprep.subr.mxu0 0.0
    %1659 = vmatpush2.msra.mxu0 0.0
    %1660 = vmatprep.subr.mxu0 0.0
    %1661 = vmatpush2.msra.mxu0 0.0
    %1662 = vmatprep.subr.mxu0 0.0
    %1663 = vmatpush2.msra.mxu0 0.0
    %1664 = vmatprep.subr.mxu0 0.0
    %1665 = vmatpush2.msra.mxu0 0.0
    %1666 = vmatprep.subr.mxu0 0.0
    %1667 = vmatpush2.msra.mxu0 0.0
    %1668 = vmatprep.subr.mxu0 0.0
    %1669 = vmatpush2.msra.mxu0 0.0
    %1670 = vmatprep.subr.mxu0 0.0
    %1671 = vmatpush2.msra.mxu0 0.0
    %1672 = vmatprep.subr.mxu0 0.0
    %1673 = vmatpush2.msra.mxu0 0.0
    %1674 = vmatprep.subr.mxu0 0.0
    %1675 = vmatpush2.msra.mxu0 0.0
    %1676 = vmatprep.subr.mxu0 0.0
    %1677 = vmatpush2.msra.mxu0 0.0
    %1678 = vmatprep.subr.mxu0 0.0
    %1679 = vmatpush2.msra.mxu0 0.0
    %1680 = vmatprep.subr.mxu0 0.0
    %1681 = vmatpush2.msra.mxu0 0.0
    %1682 = vmatprep.subr.mxu0 0.0
    %1683 = vmatpush2.msra.mxu0 0.0
    %1684 = vmatprep.subr.mxu0 0.0
    %1685 = vmatpush2.msra.mxu0 0.0
    %1686 = vmatprep.subr.mxu0 0.0
    %1687 = vmatpush2.msra.mxu0 0.0
    %1688 = vmatprep.mubr.f32.mxu0 0.0
    %v1689 = vand.u32 %v1484, 4294901760
    %1690 = vmatmul.mubr.f32.gmra.mxu0 %v1689
    %v1691 = vpop.f32.mrf.mxu0
    %v1692 = vadd.f32 %v1571, %v1691
    %v1693 = vpop.f32.mrf.mxu0
    %1694 = vmatprep.mubr.f32.mxu0 0.0
    %v1695 = vand.u32 %v1487, 4294901760
    %1696 = vmatmul.mubr.f32.gmra.mxu0 %v1695
    %v1697 = vpop.f32.mrf.mxu0
    %v1698 = vadd.f32 %v1581, %v1697
    %v1699 = vpop.f32.mrf.mxu0
    %1700 = vmatprep.mubr.f32.mxu0 0.0
    %v1701 = vand.u32 %v1490, 4294901760
    %1702 = vmatmul.mubr.f32.gmra.mxu0 %v1701
    %v1703 = vpop.f32.mrf.mxu0
    %v1704 = vadd.f32 %v1591, %v1703
    %v1705 = vpop.f32.mrf.mxu0
    %1706 = vmatprep.mubr.f32.mxu0 0.0
    %v1707 = vand.u32 %v1493, 4294901760
    %1708 = vmatmul.mubr.f32.gmra.mxu0 %v1707
    %v1709 = vpop.f32.mrf.mxu0
    %v1710 = vadd.f32 %v1601, %v1709
    %v1711 = vpop.f32.mrf.mxu0
    %1712 = vdwg.mxu0
    %1713 = vmatprep.subr.mxu0 0.0
    %1714 = vmatpush1.msra.mxu0 0.0
    %1715 = vmatprep.subr.mxu0 0.0
    %1716 = vmatpush1.msra.mxu0 0.0
    %1717 = vmatprep.subr.mxu0 0.0
    %1718 = vmatpush1.msra.mxu0 0.0
    %1719 = vmatprep.subr.mxu0 0.0
    %1720 = vmatpush1.msra.mxu0 0.0
    %1721 = vmatprep.subr.mxu0 0.0
    %1722 = vmatpush1.msra.mxu0 0.0
    %1723 = vmatprep.subr.mxu0 0.0
    %1724 = vmatpush1.msra.mxu0 0.0
    %1725 = vmatprep.subr.mxu0 0.0
    %1726 = vmatpush1.msra.mxu0 0.0
    %1727 = vmatprep.subr.mxu0 0.0
    %1728 = vmatpush1.msra.mxu0 0.0
    %1729 = vmatprep.subr.mxu0 0.0
    %1730 = vmatpush1.msra.mxu0 0.0
    %1731 = vmatprep.subr.mxu0 0.0
    %1732 = vmatpush1.msra.mxu0 0.0
    %1733 = vmatprep.subr.mxu0 0.0
    %1734 = vmatpush1.msra.mxu0 0.0
    %1735 = vmatprep.subr.mxu0 0.0
    %1736 = vmatpush1.msra.mxu0 0.0
    %1737 = vmatprep.subr.mxu0 0.0
    %v1738 = vand.u32 %v1481, 4294901760
    %v1739 = vsub.f32 %v1481, %v1738
    %1740 = vmatpush1.msra.mxu0 %v1739
    %1741 = vmatprep.subr.mxu0 0.0
    %v1742 = vand.u32 %v1480, 4294901760
    %v1743 = vsub.f32 %v1480, %v1742
    %1744 = vmatpush1.msra.mxu0 %v1743
    %1745 = vmatprep.subr.mxu0 0.0
    %v1746 = vand.u32 %v1479, 4294901760
    %v1747 = vsub.f32 %v1479, %v1746
    %1748 = vmatpush1.msra.mxu0 %v1747
    %1749 = vmatprep.subr.mxu0 0.0
    %v1750 = vand.u32 %v1478, 4294901760
    %v1751 = vsub.f32 %v1478, %v1750
    %1752 = vmatpush1.msra.mxu0 %v1751
    %1753 = vmatprep.subr.mxu0 0.0
    %1754 = vmatpush2.msra.mxu0 0.0
    %1755 = vmatprep.subr.mxu0 0.0
    %1756 = vmatpush2.msra.mxu0 0.0
    %1757 = vmatprep.subr.mxu0 0.0
    %1758 = vmatpush2.msra.mxu0 0.0
    %1759 = vmatprep.subr.mxu0 0.0
    %1760 = vmatpush2.msra.mxu0 0.0
    %1761 = vmatprep.subr.mxu0 0.0
    %1762 = vmatpush2.msra.mxu0 0.0
    %1763 = vmatprep.subr.mxu0 0.0
    %1764 = vmatpush2.msra.mxu0 0.0
    %1765 = vmatprep.subr.mxu0 0.0
    %1766 = vmatpush2.msra.mxu0 0.0
    %1767 = vmatprep.subr.mxu0 0.0
    %1768 = vmatpush2.msra.mxu0 0.0
    %1769 = vmatprep.subr.mxu0 0.0
    %1770 = vmatpush2.msra.mxu0 0.0
    %1771 = vmatprep.subr.mxu0 0.0
    %1772 = vmatpush2.msra.mxu0 0.0
    %1773 = vmatprep.subr.mxu0 0.0
    %1774 = vmatpush2.msra.mxu0 0.0
    %1775 = vmatprep.subr.mxu0 0.0
    %1776 = vmatpush2.msra.mxu0 0.0
    %1777 = vmatprep.subr.mxu0 0.0
    %1778 = vmatpush2.msra.mxu0 0.0
    %1779 = vmatprep.subr.mxu0 0.0
    %1780 = vmatpush2.msra.mxu0 0.0
    %1781 = vmatprep.subr.mxu0 0.0
    %1782 = vmatpush2.msra.mxu0 0.0
    %1783 = vmatprep.subr.mxu0 0.0
    %1784 = vmatpush2.msra.mxu0 0.0
    %1785 = vmatprep.mubr.f32.mxu0 0.0
    %v1786 = vand.u32 %v1484, 4294901760
    %v1787 = vsub.f32 %v1484, %v1786
    %1788 = vmatmul.mubr.f32.gmra.mxu0 %v1787
    %v1789 = vpop.f32.mrf.mxu0
    %v1790 = vadd.f32 %v1692, %v1789
    %v1791 = vpop.f32.mrf.mxu0
    %1792 = vmatprep.mubr.f32.mxu0 0.0
    %v1793 = vand.u32 %v1487, 4294901760
    %v1794 = vsub.f32 %v1487, %v1793
    %1795 = vmatmul.mubr.f32.gmra.mxu0 %v1794
    %v1796 = vpop.f32.mrf.mxu0
    %v1797 = vadd.f32 %v1698, %v1796
    %v1798 = vpop.f32.mrf.mxu0
    %1799 = vmatprep.mubr.f32.mxu0 0.0
    %v1800 = vand.u32 %v1490, 4294901760
    %v1801 = vsub.f32 %v1490, %v1800
    %1802 = vmatmul.mubr.f32.gmra.mxu0 %v1801
    %v1803 = vpop.f32.mrf.mxu0
    %v1804 = vadd.f32 %v1704, %v1803
    %v1805 = vpop.f32.mrf.mxu0
    %1806 = vmatprep.mubr.f32.mxu0 0.0
    %v1807 = vand.u32 %v1493, 4294901760
    %v1808 = vsub.f32 %v1493, %v1807
    %1809 = vmatmul.mubr.f32.gmra.mxu0 %v1808
    %v1810 = vpop.f32.mrf.mxu0
    %v1811 = vadd.f32 %v1710, %v1810
    %v1812 = vpop.f32.mrf.mxu0
    %1813 = vdwg.mxu0
    %1814 = vmatprep.subr.mxu0 0.0
    %1815 = vmatpush1.msra.mxu0 0.0
    %1816 = vmatprep.subr.mxu0 0.0
    %1817 = vmatpush1.msra.mxu0 0.0
    %1818 = vmatprep.subr.mxu0 0.0
    %1819 = vmatpush1.msra.mxu0 0.0
    %1820 = vmatprep.subr.mxu0 0.0
    %1821 = vmatpush1.msra.mxu0 0.0
    %1822 = vmatprep.subr.mxu0 0.0
    %1823 = vmatpush1.msra.mxu0 0.0
    %1824 = vmatprep.subr.mxu0 0.0
    %1825 = vmatpush1.msra.mxu0 0.0
    %1826 = vmatprep.subr.mxu0 0.0
    %1827 = vmatpush1.msra.mxu0 0.0
    %1828 = vmatprep.subr.mxu0 0.0
    %1829 = vmatpush1.msra.mxu0 0.0
    %1830 = vmatprep.subr.mxu0 0.0
    %1831 = vmatpush1.msra.mxu0 0.0
    %1832 = vmatprep.subr.mxu0 0.0
    %1833 = vmatpush1.msra.mxu0 0.0
    %1834 = vmatprep.subr.mxu0 0.0
    %1835 = vmatpush1.msra.mxu0 0.0
    %1836 = vmatprep.subr.mxu0 0.0
    %1837 = vmatpush1.msra.mxu0 0.0
    %1838 = vmatprep.subr.mxu0 0.0
    %v1839 = vand.u32 %v1481, 4294901760
    %1840 = vmatpush1.msra.mxu0 %v1839
    %1841 = vmatprep.subr.mxu0 0.0
    %v1842 = vand.u32 %v1480, 4294901760
    %1843 = vmatpush1.msra.mxu0 %v1842
    %1844 = vmatprep.subr.mxu0 0.0
    %v1845 = vand.u32 %v1479, 4294901760
    %1846 = vmatpush1.msra.mxu0 %v1845
    %1847 = vmatprep.subr.mxu0 0.0
    %v1848 = vand.u32 %v1478, 4294901760
    %1849 = vmatpush1.msra.mxu0 %v1848
    %1850 = vmatprep.subr.mxu0 0.0
    %1851 = vmatpush2.msra.mxu0 0.0
    %1852 = vmatprep.subr.mxu0 0.0
    %1853 = vmatpush2.msra.mxu0 0.0
    %1854 = vmatprep.subr.mxu0 0.0
    %1855 = vmatpush2.msra.mxu0 0.0
    %1856 = vmatprep.subr.mxu0 0.0
    %1857 = vmatpush2.msra.mxu0 0.0
    %1858 = vmatprep.subr.mxu0 0.0
    %1859 = vmatpush2.msra.mxu0 0.0
    %1860 = vmatprep.subr.mxu0 0.0
    %1861 = vmatpush2.msra.mxu0 0.0
    %1862 = vmatprep.subr.mxu0 0.0
    %1863 = vmatpush2.msra.mxu0 0.0
    %1864 = vmatprep.subr.mxu0 0.0
    %1865 = vmatpush2.msra.mxu0 0.0
    %1866 = vmatprep.subr.mxu0 0.0
    %1867 = vmatpush2.msra.mxu0 0.0
    %1868 = vmatprep.subr.mxu0 0.0
    %1869 = vmatpush2.msra.mxu0 0.0
    %1870 = vmatprep.subr.mxu0 0.0
    %1871 = vmatpush2.msra.mxu0 0.0
    %1872 = vmatprep.subr.mxu0 0.0
    %1873 = vmatpush2.msra.mxu0 0.0
    %1874 = vmatprep.subr.mxu0 0.0
    %1875 = vmatpush2.msra.mxu0 0.0
    %1876 = vmatprep.subr.mxu0 0.0
    %1877 = vmatpush2.msra.mxu0 0.0
    %1878 = vmatprep.subr.mxu0 0.0
    %1879 = vmatpush2.msra.mxu0 0.0
    %1880 = vmatprep.subr.mxu0 0.0
    %1881 = vmatpush2.msra.mxu0 0.0
    %1882 = vmatprep.mubr.f32.mxu0 0.0
    %v1883 = vand.u32 %v1484, 4294901760
    %v1884 = vsub.f32 %v1484, %v1883
    %v1885 = vand.u32 %v1884, 4294901760
    %1886 = vmatmul.mubr.f32.gmra.mxu0 %v1885
    %v1887 = vpop.f32.mrf.mxu0
    %v1888 = vadd.f32 %v1790, %v1887
    %v1889 = vpop.f32.mrf.mxu0
    %1890 = vmatprep.mubr.f32.mxu0 0.0
    %v1891 = vand.u32 %v1487, 4294901760
    %v1892 = vsub.f32 %v1487, %v1891
    %v1893 = vand.u32 %v1892, 4294901760
    %1894 = vmatmul.mubr.f32.gmra.mxu0 %v1893
    %v1895 = vpop.f32.mrf.mxu0
    %v1896 = vadd.f32 %v1797, %v1895
    %v1897 = vpop.f32.mrf.mxu0
    %1898 = vmatprep.mubr.f32.mxu0 0.0
    %v1899 = vand.u32 %v1490, 4294901760
    %v1900 = vsub.f32 %v1490, %v1899
    %v1901 = vand.u32 %v1900, 4294901760
    %1902 = vmatmul.mubr.f32.gmra.mxu0 %v1901
    %v1903 = vpop.f32.mrf.mxu0
    %v1904 = vadd.f32 %v1804, %v1903
    %v1905 = vpop.f32.mrf.mxu0
    %1906 = vmatprep.mubr.f32.mxu0 0.0
    %v1907 = vand.u32 %v1493, 4294901760
    %v1908 = vsub.f32 %v1493, %v1907
    %v1909 = vand.u32 %v1908, 4294901760
    %1910 = vmatmul.mubr.f32.gmra.mxu0 %v1909
    %v1911 = vpop.f32.mrf.mxu0
    %v1912 = vadd.f32 %v1811, %v1911
    %v1913 = vpop.f32.mrf.mxu0
    %1914 = vdwg.mxu0
    %1915 = vmatprep.subr.mxu0 0.0
    %1916 = vmatpush1.msra.mxu0 0.0
    %1917 = vmatprep.subr.mxu0 0.0
    %1918 = vmatpush1.msra.mxu0 0.0
    %1919 = vmatprep.subr.mxu0 0.0
    %1920 = vmatpush1.msra.mxu0 0.0
    %1921 = vmatprep.subr.mxu0 0.0
    %1922 = vmatpush1.msra.mxu0 0.0
    %1923 = vmatprep.subr.mxu0 0.0
    %1924 = vmatpush1.msra.mxu0 0.0
    %1925 = vmatprep.subr.mxu0 0.0
    %1926 = vmatpush1.msra.mxu0 0.0
    %1927 = vmatprep.subr.mxu0 0.0
    %1928 = vmatpush1.msra.mxu0 0.0
    %1929 = vmatprep.subr.mxu0 0.0
    %1930 = vmatpush1.msra.mxu0 0.0
    %1931 = vmatprep.subr.mxu0 0.0
    %1932 = vmatpush1.msra.mxu0 0.0
    %1933 = vmatprep.subr.mxu0 0.0
    %1934 = vmatpush1.msra.mxu0 0.0
    %1935 = vmatprep.subr.mxu0 0.0
    %1936 = vmatpush1.msra.mxu0 0.0
    %1937 = vmatprep.subr.mxu0 0.0
    %1938 = vmatpush1.msra.mxu0 0.0
    %1939 = vmatprep.subr.mxu0 0.0
    %v1940 = vand.u32 %v1481, 4294901760
    %v1941 = vsub.f32 %v1481, %v1940
    %v1942 = vand.u32 %v1941, 4294901760
    %1943 = vmatpush1.msra.mxu0 %v1942
    %1944 = vmatprep.subr.mxu0 0.0
    %v1945 = vand.u32 %v1480, 4294901760
    %v1946 = vsub.f32 %v1480, %v1945
    %v1947 = vand.u32 %v1946, 4294901760
    %1948 = vmatpush1.msra.mxu0 %v1947
    %1949 = vmatprep.subr.mxu0 0.0
    %v1950 = vand.u32 %v1479, 4294901760
    %v1951 = vsub.f32 %v1479, %v1950
    %v1952 = vand.u32 %v1951, 4294901760
    %1953 = vmatpush1.msra.mxu0 %v1952
    %1954 = vmatprep.subr.mxu0 0.0
    %v1955 = vand.u32 %v1478, 4294901760
    %v1956 = vsub.f32 %v1478, %v1955
    %v1957 = vand.u32 %v1956, 4294901760
    %1958 = vmatpush1.msra.mxu0 %v1957
    %1959 = vmatprep.subr.mxu0 0.0
    %1960 = vmatpush2.msra.mxu0 0.0
    %1961 = vmatprep.subr.mxu0 0.0
    %1962 = vmatpush2.msra.mxu0 0.0
    %1963 = vmatprep.subr.mxu0 0.0
    %1964 = vmatpush2.msra.mxu0 0.0
    %1965 = vmatprep.subr.mxu0 0.0
    %1966 = vmatpush2.msra.mxu0 0.0
    %1967 = vmatprep.subr.mxu0 0.0
    %1968 = vmatpush2.msra.mxu0 0.0
    %1969 = vmatprep.subr.mxu0 0.0
    %1970 = vmatpush2.msra.mxu0 0.0
    %1971 = vmatprep.subr.mxu0 0.0
    %1972 = vmatpush2.msra.mxu0 0.0
    %1973 = vmatprep.subr.mxu0 0.0
    %1974 = vmatpush2.msra.mxu0 0.0
    %1975 = vmatprep.subr.mxu0 0.0
    %1976 = vmatpush2.msra.mxu0 0.0
    %1977 = vmatprep.subr.mxu0 0.0
    %1978 = vmatpush2.msra.mxu0 0.0
    %1979 = vmatprep.subr.mxu0 0.0
    %1980 = vmatpush2.msra.mxu0 0.0
    %1981 = vmatprep.subr.mxu0 0.0
    %1982 = vmatpush2.msra.mxu0 0.0
    %1983 = vmatprep.subr.mxu0 0.0
    %1984 = vmatpush2.msra.mxu0 0.0
    %1985 = vmatprep.subr.mxu0 0.0
    %1986 = vmatpush2.msra.mxu0 0.0
    %1987 = vmatprep.subr.mxu0 0.0
    %1988 = vmatpush2.msra.mxu0 0.0
    %1989 = vmatprep.subr.mxu0 0.0
    %1990 = vmatpush2.msra.mxu0 0.0
    %1991 = vmatprep.mubr.f32.mxu0 0.0
    %v1992 = vand.u32 %v1484, 4294901760
    %1993 = vmatmul.mubr.f32.gmra.mxu0 %v1992
    %v1994 = vpop.f32.mrf.mxu0
    %v1995 = vadd.f32 %v1888, %v1994
    %v1996 = vpop.f32.mrf.mxu0
    %1997 = vmatprep.mubr.f32.mxu0 0.0
    %v1998 = vand.u32 %v1487, 4294901760
    %1999 = vmatmul.mubr.f32.gmra.mxu0 %v1998
    %v2000 = vpop.f32.mrf.mxu0
    %v2001 = vadd.f32 %v1896, %v2000
    %v2002 = vpop.f32.mrf.mxu0
    %2003 = vmatprep.mubr.f32.mxu0 0.0
    %v2004 = vand.u32 %v1490, 4294901760
    %2005 = vmatmul.mubr.f32.gmra.mxu0 %v2004
    %v2006 = vpop.f32.mrf.mxu0
    %v2007 = vadd.f32 %v1904, %v2006
    %v2008 = vpop.f32.mrf.mxu0
    %2009 = vmatprep.mubr.f32.mxu0 0.0
    %v2010 = vand.u32 %v1493, 4294901760
    %2011 = vmatmul.mubr.f32.gmra.mxu0 %v2010
    %v2012 = vpop.f32.mrf.mxu0
    %v2013 = vadd.f32 %v1912, %v2012
    %v2014 = vpop.f32.mrf.mxu0
    %2015 = vdwg.mxu0
    %2016 = vmatprep.subr.mxu0 0.0
    %2017 = vmatpush1.msra.mxu0 0.0
    %2018 = vmatprep.subr.mxu0 0.0
    %2019 = vmatpush1.msra.mxu0 0.0
    %2020 = vmatprep.subr.mxu0 0.0
    %2021 = vmatpush1.msra.mxu0 0.0
    %2022 = vmatprep.subr.mxu0 0.0
    %2023 = vmatpush1.msra.mxu0 0.0
    %2024 = vmatprep.subr.mxu0 0.0
    %2025 = vmatpush1.msra.mxu0 0.0
    %2026 = vmatprep.subr.mxu0 0.0
    %2027 = vmatpush1.msra.mxu0 0.0
    %2028 = vmatprep.subr.mxu0 0.0
    %2029 = vmatpush1.msra.mxu0 0.0
    %2030 = vmatprep.subr.mxu0 0.0
    %2031 = vmatpush1.msra.mxu0 0.0
    %2032 = vmatprep.subr.mxu0 0.0
    %2033 = vmatpush1.msra.mxu0 0.0
    %2034 = vmatprep.subr.mxu0 0.0
    %2035 = vmatpush1.msra.mxu0 0.0
    %2036 = vmatprep.subr.mxu0 0.0
    %2037 = vmatpush1.msra.mxu0 0.0
    %2038 = vmatprep.subr.mxu0 0.0
    %2039 = vmatpush1.msra.mxu0 0.0
    %2040 = vmatprep.subr.mxu0 0.0
    %v2041 = vand.u32 %v1481, 4294901760
    %2042 = vmatpush1.msra.mxu0 %v2041
    %2043 = vmatprep.subr.mxu0 0.0
    %v2044 = vand.u32 %v1480, 4294901760
    %2045 = vmatpush1.msra.mxu0 %v2044
    %2046 = vmatprep.subr.mxu0 0.0
    %v2047 = vand.u32 %v1479, 4294901760
    %2048 = vmatpush1.msra.mxu0 %v2047
    %2049 = vmatprep.subr.mxu0 0.0
    %v2050 = vand.u32 %v1478, 4294901760
    %2051 = vmatpush1.msra.mxu0 %v2050
    %2052 = vmatprep.subr.mxu0 0.0
    %2053 = vmatpush2.msra.mxu0 0.0
    %2054 = vmatprep.subr.mxu0 0.0
    %2055 = vmatpush2.msra.mxu0 0.0
    %2056 = vmatprep.subr.mxu0 0.0
    %2057 = vmatpush2.msra.mxu0 0.0
    %2058 = vmatprep.subr.mxu0 0.0
    %2059 = vmatpush2.msra.mxu0 0.0
    %2060 = vmatprep.subr.mxu0 0.0
    %2061 = vmatpush2.msra.mxu0 0.0
    %2062 = vmatprep.subr.mxu0 0.0
    %2063 = vmatpush2.msra.mxu0 0.0
    %2064 = vmatprep.subr.mxu0 0.0
    %2065 = vmatpush2.msra.mxu0 0.0
    %2066 = vmatprep.subr.mxu0 0.0
    %2067 = vmatpush2.msra.mxu0 0.0
    %2068 = vmatprep.subr.mxu0 0.0
    %2069 = vmatpush2.msra.mxu0 0.0
    %2070 = vmatprep.subr.mxu0 0.0
    %2071 = vmatpush2.msra.mxu0 0.0
    %2072 = vmatprep.subr.mxu0 0.0
    %2073 = vmatpush2.msra.mxu0 0.0
    %2074 = vmatprep.subr.mxu0 0.0
    %2075 = vmatpush2.msra.mxu0 0.0
    %2076 = vmatprep.subr.mxu0 0.0
    %2077 = vmatpush2.msra.mxu0 0.0
    %2078 = vmatprep.subr.mxu0 0.0
    %2079 = vmatpush2.msra.mxu0 0.0
    %2080 = vmatprep.subr.mxu0 0.0
    %2081 = vmatpush2.msra.mxu0 0.0
    %2082 = vmatprep.subr.mxu0 0.0
    %2083 = vmatpush2.msra.mxu0 0.0
    %2084 = vmatprep.mubr.f32.mxu0 0.0
    %v2085 = vand.u32 %v1484, 4294901760
    %2086 = vmatmul.mubr.f32.gmra.mxu0 %v2085
    %v2087 = vpop.f32.mrf.mxu0
    %v2088 = vadd.f32 %v1995, %v2087
    %v2089 = vpop.f32.mrf.mxu0
    %2090 = vmatprep.mubr.f32.mxu0 0.0
    %v2091 = vand.u32 %v1487, 4294901760
    %2092 = vmatmul.mubr.f32.gmra.mxu0 %v2091
    %v2093 = vpop.f32.mrf.mxu0
    %v2094 = vadd.f32 %v2001, %v2093
    %v2095 = vpop.f32.mrf.mxu0
    %2096 = vmatprep.mubr.f32.mxu0 0.0
    %v2097 = vand.u32 %v1490, 4294901760
    %2098 = vmatmul.mubr.f32.gmra.mxu0 %v2097
    %v2099 = vpop.f32.mrf.mxu0
    %v2100 = vadd.f32 %v2007, %v2099
    %v2101 = vpop.f32.mrf.mxu0
    %2102 = vmatprep.mubr.f32.mxu0 0.0
    %v2103 = vand.u32 %v1493, 4294901760
    %2104 = vmatmul.mubr.f32.gmra.mxu0 %v2103
    %v2105 = vpop.f32.mrf.mxu0
    %v2106 = vadd.f32 %v2013, %v2105
    %v2107 = vpop.f32.mrf.mxu0
    %2108 = vdwg.mxu0
    %v2110 = vsel %vm1482, %v128, 0
    %v2113 = vsel %vm1482, %v129, 0
    %v2116 = vsel %vm1482, %v130, 0
    %v2119 = vsel %vm1482, %v131, 0
    %2121 = vmatprep.subr.mxu0 0.0
    %2122 = vmatpush1.msra.mxu0 0.0
    %2123 = vmatprep.subr.mxu0 0.0
    %2124 = vmatpush1.msra.mxu0 0.0
    %2125 = vmatprep.subr.mxu0 0.0
    %2126 = vmatpush1.msra.mxu0 0.0
    %2127 = vmatprep.subr.mxu0 0.0
    %2128 = vmatpush1.msra.mxu0 0.0
    %2129 = vmatprep.subr.mxu0 0.0
    %2130 = vmatpush1.msra.mxu0 0.0
    %2131 = vmatprep.subr.mxu0 0.0
    %2132 = vmatpush1.msra.mxu0 0.0
    %2133 = vmatprep.subr.mxu0 0.0
    %2134 = vmatpush1.msra.mxu0 0.0
    %2135 = vmatprep.subr.mxu0 0.0
    %2136 = vmatpush1.msra.mxu0 0.0
    %2137 = vmatprep.subr.mxu0 0.0
    %2138 = vmatpush1.msra.mxu0 0.0
    %2139 = vmatprep.subr.mxu0 0.0
    %2140 = vmatpush1.msra.mxu0 0.0
    %2141 = vmatprep.subr.mxu0 0.0
    %2142 = vmatpush1.msra.mxu0 0.0
    %2143 = vmatprep.subr.mxu0 0.0
    %2144 = vmatpush1.msra.mxu0 0.0
    %2145 = vmatprep.subr.mxu0 0.0
    %v2146 = vand.u32 %v1481, 4294901760
    %2147 = vmatpush1.msra.mxu0 %v2146
    %2148 = vmatprep.subr.mxu0 0.0
    %v2149 = vand.u32 %v1480, 4294901760
    %2150 = vmatpush1.msra.mxu0 %v2149
    %2151 = vmatprep.subr.mxu0 0.0
    %v2152 = vand.u32 %v1479, 4294901760
    %2153 = vmatpush1.msra.mxu0 %v2152
    %2154 = vmatprep.subr.mxu0 0.0
    %v2155 = vand.u32 %v1478, 4294901760
    %2156 = vmatpush1.msra.mxu0 %v2155
    %2157 = vmatprep.subr.mxu0 0.0
    %2158 = vmatpush2.msra.mxu0 0.0
    %2159 = vmatprep.subr.mxu0 0.0
    %2160 = vmatpush2.msra.mxu0 0.0
    %2161 = vmatprep.subr.mxu0 0.0
    %2162 = vmatpush2.msra.mxu0 0.0
    %2163 = vmatprep.subr.mxu0 0.0
    %2164 = vmatpush2.msra.mxu0 0.0
    %2165 = vmatprep.subr.mxu0 0.0
    %2166 = vmatpush2.msra.mxu0 0.0
    %2167 = vmatprep.subr.mxu0 0.0
    %2168 = vmatpush2.msra.mxu0 0.0
    %2169 = vmatprep.subr.mxu0 0.0
    %2170 = vmatpush2.msra.mxu0 0.0
    %2171 = vmatprep.subr.mxu0 0.0
    %2172 = vmatpush2.msra.mxu0 0.0
    %2173 = vmatprep.subr.mxu0 0.0
    %2174 = vmatpush2.msra.mxu0 0.0
    %2175 = vmatprep.subr.mxu0 0.0
    %2176 = vmatpush2.msra.mxu0 0.0
    %2177 = vmatprep.subr.mxu0 0.0
    %2178 = vmatpush2.msra.mxu0 0.0
    %2179 = vmatprep.subr.mxu0 0.0
    %2180 = vmatpush2.msra.mxu0 0.0
    %2181 = vmatprep.subr.mxu0 0.0
    %2182 = vmatpush2.msra.mxu0 0.0
    %2183 = vmatprep.subr.mxu0 0.0
    %2184 = vmatpush2.msra.mxu0 0.0
    %2185 = vmatprep.subr.mxu0 0.0
    %2186 = vmatpush2.msra.mxu0 0.0
    %2187 = vmatprep.subr.mxu0 0.0
    %2188 = vmatpush2.msra.mxu0 0.0
    %2189 = vmatprep.mubr.f32.mxu0 0.0
    %v2190 = vand.u32 %v2110, 4294901760
    %v2191 = vsub.f32 %v2110, %v2190
    %v2192 = vand.u32 %v2191, 4294901760
    %v2193 = vsub.f32 %v2191, %v2192
    %v2194 = vand.u32 %v2193, 4294901760
    %2195 = vmatmul.mubr.f32.gmra.mxu0 %v2194
    %v2196 = vpop.f32.mrf.mxu0
    %v2197 = vadd.f32 0.0, %v2196
    %v2198 = vpop.f32.mrf.mxu0
    %2199 = vmatprep.mubr.f32.mxu0 0.0
    %v2200 = vand.u32 %v2113, 4294901760
    %v2201 = vsub.f32 %v2113, %v2200
    %v2202 = vand.u32 %v2201, 4294901760
    %v2203 = vsub.f32 %v2201, %v2202
    %v2204 = vand.u32 %v2203, 4294901760
    %2205 = vmatmul.mubr.f32.gmra.mxu0 %v2204
    %v2206 = vpop.f32.mrf.mxu0
    %v2207 = vadd.f32 0.0, %v2206
    %v2208 = vpop.f32.mrf.mxu0
    %2209 = vmatprep.mubr.f32.mxu0 0.0
    %v2210 = vand.u32 %v2116, 4294901760
    %v2211 = vsub.f32 %v2116, %v2210
    %v2212 = vand.u32 %v2211, 4294901760
    %v2213 = vsub.f32 %v2211, %v2212
    %v2214 = vand.u32 %v2213, 4294901760
    %2215 = vmatmul.mubr.f32.gmra.mxu0 %v2214
    %v2216 = vpop.f32.mrf.mxu0
    %v2217 = vadd.f32 0.0, %v2216
    %v2218 = vpop.f32.mrf.mxu0
    %2219 = vmatprep.mubr.f32.mxu0 0.0
    %v2220 = vand.u32 %v2119, 4294901760
    %v2221 = vsub.f32 %v2119, %v2220
    %v2222 = vand.u32 %v2221, 4294901760
    %v2223 = vsub.f32 %v2221, %v2222
    %v2224 = vand.u32 %v2223, 4294901760
    %2225 = vmatmul.mubr.f32.gmra.mxu0 %v2224
    %v2226 = vpop.f32.mrf.mxu0
    %v2227 = vadd.f32 0.0, %v2226
    %v2228 = vpop.f32.mrf.mxu0
    %2229 = vdwg.mxu0
    %2230 = vmatprep.subr.mxu0 0.0
    %2231 = vmatpush1.msra.mxu0 0.0
    %2232 = vmatprep.subr.mxu0 0.0
    %2233 = vmatpush1.msra.mxu0 0.0
    %2234 = vmatprep.subr.mxu0 0.0
    %2235 = vmatpush1.msra.mxu0 0.0
    %2236 = vmatprep.subr.mxu0 0.0
    %2237 = vmatpush1.msra.mxu0 0.0
    %2238 = vmatprep.subr.mxu0 0.0
    %2239 = vmatpush1.msra.mxu0 0.0
    %2240 = vmatprep.subr.mxu0 0.0
    %2241 = vmatpush1.msra.mxu0 0.0
    %2242 = vmatprep.subr.mxu0 0.0
    %2243 = vmatpush1.msra.mxu0 0.0
    %2244 = vmatprep.subr.mxu0 0.0
    %2245 = vmatpush1.msra.mxu0 0.0
    %2246 = vmatprep.subr.mxu0 0.0
    %2247 = vmatpush1.msra.mxu0 0.0
    %2248 = vmatprep.subr.mxu0 0.0
    %2249 = vmatpush1.msra.mxu0 0.0
    %2250 = vmatprep.subr.mxu0 0.0
    %2251 = vmatpush1.msra.mxu0 0.0
    %2252 = vmatprep.subr.mxu0 0.0
    %2253 = vmatpush1.msra.mxu0 0.0
    %2254 = vmatprep.subr.mxu0 0.0
    %v2255 = vand.u32 %v1481, 4294901760
    %v2256 = vsub.f32 %v1481, %v2255
    %v2257 = vand.u32 %v2256, 4294901760
    %v2258 = vsub.f32 %v2256, %v2257
    %v2259 = vand.u32 %v2258, 4294901760
    %2260 = vmatpush1.msra.mxu0 %v2259
    %2261 = vmatprep.subr.mxu0 0.0
    %v2262 = vand.u32 %v1480, 4294901760
    %v2263 = vsub.f32 %v1480, %v2262
    %v2264 = vand.u32 %v2263, 4294901760
    %v2265 = vsub.f32 %v2263, %v2264
    %v2266 = vand.u32 %v2265, 4294901760
    %2267 = vmatpush1.msra.mxu0 %v2266
    %2268 = vmatprep.subr.mxu0 0.0
    %v2269 = vand.u32 %v1479, 4294901760
    %v2270 = vsub.f32 %v1479, %v2269
    %v2271 = vand.u32 %v2270, 4294901760
    %v2272 = vsub.f32 %v2270, %v2271
    %v2273 = vand.u32 %v2272, 4294901760
    %2274 = vmatpush1.msra.mxu0 %v2273
    %2275 = vmatprep.subr.mxu0 0.0
    %v2276 = vand.u32 %v1478, 4294901760
    %v2277 = vsub.f32 %v1478, %v2276
    %v2278 = vand.u32 %v2277, 4294901760
    %v2279 = vsub.f32 %v2277, %v2278
    %v2280 = vand.u32 %v2279, 4294901760
    %2281 = vmatpush1.msra.mxu0 %v2280
    %2282 = vmatprep.subr.mxu0 0.0
    %2283 = vmatpush2.msra.mxu0 0.0
    %2284 = vmatprep.subr.mxu0 0.0
    %2285 = vmatpush2.msra.mxu0 0.0
    %2286 = vmatprep.subr.mxu0 0.0
    %2287 = vmatpush2.msra.mxu0 0.0
    %2288 = vmatprep.subr.mxu0 0.0
    %2289 = vmatpush2.msra.mxu0 0.0
    %2290 = vmatprep.subr.mxu0 0.0
    %2291 = vmatpush2.msra.mxu0 0.0
    %2292 = vmatprep.subr.mxu0 0.0
    %2293 = vmatpush2.msra.mxu0 0.0
    %2294 = vmatprep.subr.mxu0 0.0
    %2295 = vmatpush2.msra.mxu0 0.0
    %2296 = vmatprep.subr.mxu0 0.0
    %2297 = vmatpush2.msra.mxu0 0.0
    %2298 = vmatprep.subr.mxu0 0.0
    %2299 = vmatpush2.msra.mxu0 0.0
    %2300 = vmatprep.subr.mxu0 0.0
    %2301 = vmatpush2.msra.mxu0 0.0
    %2302 = vmatprep.subr.mxu0 0.0
    %2303 = vmatpush2.msra.mxu0 0.0
    %2304 = vmatprep.subr.mxu0 0.0
    %2305 = vmatpush2.msra.mxu0 0.0
    %2306 = vmatprep.subr.mxu0 0.0
    %2307 = vmatpush2.msra.mxu0 0.0
    %2308 = vmatprep.subr.mxu0 0.0
    %2309 = vmatpush2.msra.mxu0 0.0
    %2310 = vmatprep.subr.mxu0 0.0
    %2311 = vmatpush2.msra.mxu0 0.0
    %2312 = vmatprep.subr.mxu0 0.0
    %2313 = vmatpush2.msra.mxu0 0.0
    %2314 = vmatprep.mubr.f32.mxu0 0.0
    %v2315 = vand.u32 %v2110, 4294901760
    %2316 = vmatmul.mubr.f32.gmra.mxu0 %v2315
    %v2317 = vpop.f32.mrf.mxu0
    %v2318 = vadd.f32 %v2197, %v2317
    %v2319 = vpop.f32.mrf.mxu0
    %2320 = vmatprep.mubr.f32.mxu0 0.0
    %v2321 = vand.u32 %v2113, 4294901760
    %2322 = vmatmul.mubr.f32.gmra.mxu0 %v2321
    %v2323 = vpop.f32.mrf.mxu0
    %v2324 = vadd.f32 %v2207, %v2323
    %v2325 = vpop.f32.mrf.mxu0
    %2326 = vmatprep.mubr.f32.mxu0 0.0
    %v2327 = vand.u32 %v2116, 4294901760
    %2328 = vmatmul.mubr.f32.gmra.mxu0 %v2327
    %v2329 = vpop.f32.mrf.mxu0
    %v2330 = vadd.f32 %v2217, %v2329
    %v2331 = vpop.f32.mrf.mxu0
    %2332 = vmatprep.mubr.f32.mxu0 0.0
    %v2333 = vand.u32 %v2119, 4294901760
    %2334 = vmatmul.mubr.f32.gmra.mxu0 %v2333
    %v2335 = vpop.f32.mrf.mxu0
    %v2336 = vadd.f32 %v2227, %v2335
    %v2337 = vpop.f32.mrf.mxu0
    %2338 = vdwg.mxu0
    %2339 = vmatprep.subr.mxu0 0.0
    %2340 = vmatpush1.msra.mxu0 0.0
    %2341 = vmatprep.subr.mxu0 0.0
    %2342 = vmatpush1.msra.mxu0 0.0
    %2343 = vmatprep.subr.mxu0 0.0
    %2344 = vmatpush1.msra.mxu0 0.0
    %2345 = vmatprep.subr.mxu0 0.0
    %2346 = vmatpush1.msra.mxu0 0.0
    %2347 = vmatprep.subr.mxu0 0.0
    %2348 = vmatpush1.msra.mxu0 0.0
    %2349 = vmatprep.subr.mxu0 0.0
    %2350 = vmatpush1.msra.mxu0 0.0
    %2351 = vmatprep.subr.mxu0 0.0
    %2352 = vmatpush1.msra.mxu0 0.0
    %2353 = vmatprep.subr.mxu0 0.0
    %2354 = vmatpush1.msra.mxu0 0.0
    %2355 = vmatprep.subr.mxu0 0.0
    %2356 = vmatpush1.msra.mxu0 0.0
    %2357 = vmatprep.subr.mxu0 0.0
    %2358 = vmatpush1.msra.mxu0 0.0
    %2359 = vmatprep.subr.mxu0 0.0
    %2360 = vmatpush1.msra.mxu0 0.0
    %2361 = vmatprep.subr.mxu0 0.0
    %2362 = vmatpush1.msra.mxu0 0.0
    %2363 = vmatprep.subr.mxu0 0.0
    %v2364 = vand.u32 %v1481, 4294901760
    %v2365 = vsub.f32 %v1481, %v2364
    %2366 = vmatpush1.msra.mxu0 %v2365
    %2367 = vmatprep.subr.mxu0 0.0
    %v2368 = vand.u32 %v1480, 4294901760
    %v2369 = vsub.f32 %v1480, %v2368
    %2370 = vmatpush1.msra.mxu0 %v2369
    %2371 = vmatprep.subr.mxu0 0.0
    %v2372 = vand.u32 %v1479, 4294901760
    %v2373 = vsub.f32 %v1479, %v2372
    %2374 = vmatpush1.msra.mxu0 %v2373
    %2375 = vmatprep.subr.mxu0 0.0
    %v2376 = vand.u32 %v1478, 4294901760
    %v2377 = vsub.f32 %v1478, %v2376
    %2378 = vmatpush1.msra.mxu0 %v2377
    %2379 = vmatprep.subr.mxu0 0.0
    %2380 = vmatpush2.msra.mxu0 0.0
    %2381 = vmatprep.subr.mxu0 0.0
    %2382 = vmatpush2.msra.mxu0 0.0
    %2383 = vmatprep.subr.mxu0 0.0
    %2384 = vmatpush2.msra.mxu0 0.0
    %2385 = vmatprep.subr.mxu0 0.0
    %2386 = vmatpush2.msra.mxu0 0.0
    %2387 = vmatprep.subr.mxu0 0.0
    %2388 = vmatpush2.msra.mxu0 0.0
    %2389 = vmatprep.subr.mxu0 0.0
    %2390 = vmatpush2.msra.mxu0 0.0
    %2391 = vmatprep.subr.mxu0 0.0
    %2392 = vmatpush2.msra.mxu0 0.0
    %2393 = vmatprep.subr.mxu0 0.0
    %2394 = vmatpush2.msra.mxu0 0.0
    %2395 = vmatprep.subr.mxu0 0.0
    %2396 = vmatpush2.msra.mxu0 0.0
    %2397 = vmatprep.subr.mxu0 0.0
    %2398 = vmatpush2.msra.mxu0 0.0
    %2399 = vmatprep.subr.mxu0 0.0
    %2400 = vmatpush2.msra.mxu0 0.0
    %2401 = vmatprep.subr.mxu0 0.0
    %2402 = vmatpush2.msra.mxu0 0.0
    %2403 = vmatprep.subr.mxu0 0.0
    %2404 = vmatpush2.msra.mxu0 0.0
    %2405 = vmatprep.subr.mxu0 0.0
    %2406 = vmatpush2.msra.mxu0 0.0
    %2407 = vmatprep.subr.mxu0 0.0
    %2408 = vmatpush2.msra.mxu0 0.0
    %2409 = vmatprep.subr.mxu0 0.0
    %2410 = vmatpush2.msra.mxu0 0.0
    %2411 = vmatprep.mubr.f32.mxu0 0.0
    %v2412 = vand.u32 %v2110, 4294901760
    %v2413 = vsub.f32 %v2110, %v2412
    %2414 = vmatmul.mubr.f32.gmra.mxu0 %v2413
    %v2415 = vpop.f32.mrf.mxu0
    %v2416 = vadd.f32 %v2318, %v2415
    %v2417 = vpop.f32.mrf.mxu0
    %2418 = vmatprep.mubr.f32.mxu0 0.0
    %v2419 = vand.u32 %v2113, 4294901760
    %v2420 = vsub.f32 %v2113, %v2419
    %2421 = vmatmul.mubr.f32.gmra.mxu0 %v2420
    %v2422 = vpop.f32.mrf.mxu0
    %v2423 = vadd.f32 %v2324, %v2422
    %v2424 = vpop.f32.mrf.mxu0
    %2425 = vmatprep.mubr.f32.mxu0 0.0
    %v2426 = vand.u32 %v2116, 4294901760
    %v2427 = vsub.f32 %v2116, %v2426
    %2428 = vmatmul.mubr.f32.gmra.mxu0 %v2427
    %v2429 = vpop.f32.mrf.mxu0
    %v2430 = vadd.f32 %v2330, %v2429
    %v2431 = vpop.f32.mrf.mxu0
    %2432 = vmatprep.mubr.f32.mxu0 0.0
    %v2433 = vand.u32 %v2119, 4294901760
    %v2434 = vsub.f32 %v2119, %v2433
    %2435 = vmatmul.mubr.f32.gmra.mxu0 %v2434
    %v2436 = vpop.f32.mrf.mxu0
    %v2437 = vadd.f32 %v2336, %v2436
    %v2438 = vpop.f32.mrf.mxu0
    %2439 = vdwg.mxu0
    %2440 = vmatprep.subr.mxu0 0.0
    %2441 = vmatpush1.msra.mxu0 0.0
    %2442 = vmatprep.subr.mxu0 0.0
    %2443 = vmatpush1.msra.mxu0 0.0
    %2444 = vmatprep.subr.mxu0 0.0
    %2445 = vmatpush1.msra.mxu0 0.0
    %2446 = vmatprep.subr.mxu0 0.0
    %2447 = vmatpush1.msra.mxu0 0.0
    %2448 = vmatprep.subr.mxu0 0.0
    %2449 = vmatpush1.msra.mxu0 0.0
    %2450 = vmatprep.subr.mxu0 0.0
    %2451 = vmatpush1.msra.mxu0 0.0
    %2452 = vmatprep.subr.mxu0 0.0
    %2453 = vmatpush1.msra.mxu0 0.0
    %2454 = vmatprep.subr.mxu0 0.0
    %2455 = vmatpush1.msra.mxu0 0.0
    %2456 = vmatprep.subr.mxu0 0.0
    %2457 = vmatpush1.msra.mxu0 0.0
    %2458 = vmatprep.subr.mxu0 0.0
    %2459 = vmatpush1.msra.mxu0 0.0
    %2460 = vmatprep.subr.mxu0 0.0
    %2461 = vmatpush1.msra.mxu0 0.0
    %2462 = vmatprep.subr.mxu0 0.0
    %2463 = vmatpush1.msra.mxu0 0.0
    %2464 = vmatprep.subr.mxu0 0.0
    %v2465 = vand.u32 %v1481, 4294901760
    %2466 = vmatpush1.msra.mxu0 %v2465
    %2467 = vmatprep.subr.mxu0 0.0
    %v2468 = vand.u32 %v1480, 4294901760
    %2469 = vmatpush1.msra.mxu0 %v2468
    %2470 = vmatprep.subr.mxu0 0.0
    %v2471 = vand.u32 %v1479, 4294901760
    %2472 = vmatpush1.msra.mxu0 %v2471
    %2473 = vmatprep.subr.mxu0 0.0
    %v2474 = vand.u32 %v1478, 4294901760
    %2475 = vmatpush1.msra.mxu0 %v2474
    %2476 = vmatprep.subr.mxu0 0.0
    %2477 = vmatpush2.msra.mxu0 0.0
    %2478 = vmatprep.subr.mxu0 0.0
    %2479 = vmatpush2.msra.mxu0 0.0
    %2480 = vmatprep.subr.mxu0 0.0
    %2481 = vmatpush2.msra.mxu0 0.0
    %2482 = vmatprep.subr.mxu0 0.0
    %2483 = vmatpush2.msra.mxu0 0.0
    %2484 = vmatprep.subr.mxu0 0.0
    %2485 = vmatpush2.msra.mxu0 0.0
    %2486 = vmatprep.subr.mxu0 0.0
    %2487 = vmatpush2.msra.mxu0 0.0
    %2488 = vmatprep.subr.mxu0 0.0
    %2489 = vmatpush2.msra.mxu0 0.0
    %2490 = vmatprep.subr.mxu0 0.0
    %2491 = vmatpush2.msra.mxu0 0.0
    %2492 = vmatprep.subr.mxu0 0.0
    %2493 = vmatpush2.msra.mxu0 0.0
    %2494 = vmatprep.subr.mxu0 0.0
    %2495 = vmatpush2.msra.mxu0 0.0
    %2496 = vmatprep.subr.mxu0 0.0
    %2497 = vmatpush2.msra.mxu0 0.0
    %2498 = vmatprep.subr.mxu0 0.0
    %2499 = vmatpush2.msra.mxu0 0.0
    %2500 = vmatprep.subr.mxu0 0.0
    %2501 = vmatpush2.msra.mxu0 0.0
    %2502 = vmatprep.subr.mxu0 0.0
    %2503 = vmatpush2.msra.mxu0 0.0
    %2504 = vmatprep.subr.mxu0 0.0
    %2505 = vmatpush2.msra.mxu0 0.0
    %2506 = vmatprep.subr.mxu0 0.0
    %2507 = vmatpush2.msra.mxu0 0.0
    %2508 = vmatprep.mubr.f32.mxu0 0.0
    %v2509 = vand.u32 %v2110, 4294901760
    %v2510 = vsub.f32 %v2110, %v2509
    %v2511 = vand.u32 %v2510, 4294901760
    %2512 = vmatmul.mubr.f32.gmra.mxu0 %v2511
    %v2513 = vpop.f32.mrf.mxu0
    %v2514 = vadd.f32 %v2416, %v2513
    %v2515 = vpop.f32.mrf.mxu0
    %2516 = vmatprep.mubr.f32.mxu0 0.0
    %v2517 = vand.u32 %v2113, 4294901760
    %v2518 = vsub.f32 %v2113, %v2517
    %v2519 = vand.u32 %v2518, 4294901760
    %2520 = vmatmul.mubr.f32.gmra.mxu0 %v2519
    %v2521 = vpop.f32.mrf.mxu0
    %v2522 = vadd.f32 %v2423, %v2521
    %v2523 = vpop.f32.mrf.mxu0
    %2524 = vmatprep.mubr.f32.mxu0 0.0
    %v2525 = vand.u32 %v2116, 4294901760
    %v2526 = vsub.f32 %v2116, %v2525
    %v2527 = vand.u32 %v2526, 4294901760
    %2528 = vmatmul.mubr.f32.gmra.mxu0 %v2527
    %v2529 = vpop.f32.mrf.mxu0
    %v2530 = vadd.f32 %v2430, %v2529
    %v2531 = vpop.f32.mrf.mxu0
    %2532 = vmatprep.mubr.f32.mxu0 0.0
    %v2533 = vand.u32 %v2119, 4294901760
    %v2534 = vsub.f32 %v2119, %v2533
    %v2535 = vand.u32 %v2534, 4294901760
    %2536 = vmatmul.mubr.f32.gmra.mxu0 %v2535
    %v2537 = vpop.f32.mrf.mxu0
    %v2538 = vadd.f32 %v2437, %v2537
    %v2539 = vpop.f32.mrf.mxu0
    %2540 = vdwg.mxu0
    %2541 = vmatprep.subr.mxu0 0.0
    %2542 = vmatpush1.msra.mxu0 0.0
    %2543 = vmatprep.subr.mxu0 0.0
    %2544 = vmatpush1.msra.mxu0 0.0
    %2545 = vmatprep.subr.mxu0 0.0
    %2546 = vmatpush1.msra.mxu0 0.0
    %2547 = vmatprep.subr.mxu0 0.0
    %2548 = vmatpush1.msra.mxu0 0.0
    %2549 = vmatprep.subr.mxu0 0.0
    %2550 = vmatpush1.msra.mxu0 0.0
    %2551 = vmatprep.subr.mxu0 0.0
    %2552 = vmatpush1.msra.mxu0 0.0
    %2553 = vmatprep.subr.mxu0 0.0
    %2554 = vmatpush1.msra.mxu0 0.0
    %2555 = vmatprep.subr.mxu0 0.0
    %2556 = vmatpush1.msra.mxu0 0.0
    %2557 = vmatprep.subr.mxu0 0.0
    %2558 = vmatpush1.msra.mxu0 0.0
    %2559 = vmatprep.subr.mxu0 0.0
    %2560 = vmatpush1.msra.mxu0 0.0
    %2561 = vmatprep.subr.mxu0 0.0
    %2562 = vmatpush1.msra.mxu0 0.0
    %2563 = vmatprep.subr.mxu0 0.0
    %2564 = vmatpush1.msra.mxu0 0.0
    %2565 = vmatprep.subr.mxu0 0.0
    %v2566 = vand.u32 %v1481, 4294901760
    %v2567 = vsub.f32 %v1481, %v2566
    %v2568 = vand.u32 %v2567, 4294901760
    %2569 = vmatpush1.msra.mxu0 %v2568
    %2570 = vmatprep.subr.mxu0 0.0
    %v2571 = vand.u32 %v1480, 4294901760
    %v2572 = vsub.f32 %v1480, %v2571
    %v2573 = vand.u32 %v2572, 4294901760
    %2574 = vmatpush1.msra.mxu0 %v2573
    %2575 = vmatprep.subr.mxu0 0.0
    %v2576 = vand.u32 %v1479, 4294901760
    %v2577 = vsub.f32 %v1479, %v2576
    %v2578 = vand.u32 %v2577, 4294901760
    %2579 = vmatpush1.msra.mxu0 %v2578
    %2580 = vmatprep.subr.mxu0 0.0
    %v2581 = vand.u32 %v1478, 4294901760
    %v2582 = vsub.f32 %v1478, %v2581
    %v2583 = vand.u32 %v2582, 4294901760
    %2584 = vmatpush1.msra.mxu0 %v2583
    %2585 = vmatprep.subr.mxu0 0.0
    %2586 = vmatpush2.msra.mxu0 0.0
    %2587 = vmatprep.subr.mxu0 0.0
    %2588 = vmatpush2.msra.mxu0 0.0
    %2589 = vmatprep.subr.mxu0 0.0
    %2590 = vmatpush2.msra.mxu0 0.0
    %2591 = vmatprep.subr.mxu0 0.0
    %2592 = vmatpush2.msra.mxu0 0.0
    %2593 = vmatprep.subr.mxu0 0.0
    %2594 = vmatpush2.msra.mxu0 0.0
    %2595 = vmatprep.subr.mxu0 0.0
    %2596 = vmatpush2.msra.mxu0 0.0
    %2597 = vmatprep.subr.mxu0 0.0
    %2598 = vmatpush2.msra.mxu0 0.0
    %2599 = vmatprep.subr.mxu0 0.0
    %2600 = vmatpush2.msra.mxu0 0.0
    %2601 = vmatprep.subr.mxu0 0.0
    %2602 = vmatpush2.msra.mxu0 0.0
    %2603 = vmatprep.subr.mxu0 0.0
    %2604 = vmatpush2.msra.mxu0 0.0
    %2605 = vmatprep.subr.mxu0 0.0
    %2606 = vmatpush2.msra.mxu0 0.0
    %2607 = vmatprep.subr.mxu0 0.0
    %2608 = vmatpush2.msra.mxu0 0.0
    %2609 = vmatprep.subr.mxu0 0.0
    %2610 = vmatpush2.msra.mxu0 0.0
    %2611 = vmatprep.subr.mxu0 0.0
    %2612 = vmatpush2.msra.mxu0 0.0
    %2613 = vmatprep.subr.mxu0 0.0
    %2614 = vmatpush2.msra.mxu0 0.0
    %2615 = vmatprep.subr.mxu0 0.0
    %2616 = vmatpush2.msra.mxu0 0.0
    %2617 = vmatprep.mubr.f32.mxu0 0.0
    %v2618 = vand.u32 %v2110, 4294901760
    %2619 = vmatmul.mubr.f32.gmra.mxu0 %v2618
    %v2620 = vpop.f32.mrf.mxu0
    %v2621 = vadd.f32 %v2514, %v2620
    %v2622 = vpop.f32.mrf.mxu0
    %2623 = vmatprep.mubr.f32.mxu0 0.0
    %v2624 = vand.u32 %v2113, 4294901760
    %2625 = vmatmul.mubr.f32.gmra.mxu0 %v2624
    %v2626 = vpop.f32.mrf.mxu0
    %v2627 = vadd.f32 %v2522, %v2626
    %v2628 = vpop.f32.mrf.mxu0
    %2629 = vmatprep.mubr.f32.mxu0 0.0
    %v2630 = vand.u32 %v2116, 4294901760
    %2631 = vmatmul.mubr.f32.gmra.mxu0 %v2630
    %v2632 = vpop.f32.mrf.mxu0
    %v2633 = vadd.f32 %v2530, %v2632
    %v2634 = vpop.f32.mrf.mxu0
    %2635 = vmatprep.mubr.f32.mxu0 0.0
    %v2636 = vand.u32 %v2119, 4294901760
    %2637 = vmatmul.mubr.f32.gmra.mxu0 %v2636
    %v2638 = vpop.f32.mrf.mxu0
    %v2639 = vadd.f32 %v2538, %v2638
    %v2640 = vpop.f32.mrf.mxu0
    %2641 = vdwg.mxu0
    %2642 = vmatprep.subr.mxu0 0.0
    %2643 = vmatpush1.msra.mxu0 0.0
    %2644 = vmatprep.subr.mxu0 0.0
    %2645 = vmatpush1.msra.mxu0 0.0
    %2646 = vmatprep.subr.mxu0 0.0
    %2647 = vmatpush1.msra.mxu0 0.0
    %2648 = vmatprep.subr.mxu0 0.0
    %2649 = vmatpush1.msra.mxu0 0.0
    %2650 = vmatprep.subr.mxu0 0.0
    %2651 = vmatpush1.msra.mxu0 0.0
    %2652 = vmatprep.subr.mxu0 0.0
    %2653 = vmatpush1.msra.mxu0 0.0
    %2654 = vmatprep.subr.mxu0 0.0
    %2655 = vmatpush1.msra.mxu0 0.0
    %2656 = vmatprep.subr.mxu0 0.0
    %2657 = vmatpush1.msra.mxu0 0.0
    %2658 = vmatprep.subr.mxu0 0.0
    %2659 = vmatpush1.msra.mxu0 0.0
    %2660 = vmatprep.subr.mxu0 0.0
    %2661 = vmatpush1.msra.mxu0 0.0
    %2662 = vmatprep.subr.mxu0 0.0
    %2663 = vmatpush1.msra.mxu0 0.0
    %2664 = vmatprep.subr.mxu0 0.0
    %2665 = vmatpush1.msra.mxu0 0.0
    %2666 = vmatprep.subr.mxu0 0.0
    %v2667 = vand.u32 %v1481, 4294901760
    %2668 = vmatpush1.msra.mxu0 %v2667
    %2669 = vmatprep.subr.mxu0 0.0
    %v2670 = vand.u32 %v1480, 4294901760
    %2671 = vmatpush1.msra.mxu0 %v2670
    %2672 = vmatprep.subr.mxu0 0.0
    %v2673 = vand.u32 %v1479, 4294901760
    %2674 = vmatpush1.msra.mxu0 %v2673
    %2675 = vmatprep.subr.mxu0 0.0
    %v2676 = vand.u32 %v1478, 4294901760
    %2677 = vmatpush1.msra.mxu0 %v2676
    %2678 = vmatprep.subr.mxu0 0.0
    %2679 = vmatpush2.msra.mxu0 0.0
    %2680 = vmatprep.subr.mxu0 0.0
    %2681 = vmatpush2.msra.mxu0 0.0
    %2682 = vmatprep.subr.mxu0 0.0
    %2683 = vmatpush2.msra.mxu0 0.0
    %2684 = vmatprep.subr.mxu0 0.0
    %2685 = vmatpush2.msra.mxu0 0.0
    %2686 = vmatprep.subr.mxu0 0.0
    %2687 = vmatpush2.msra.mxu0 0.0
    %2688 = vmatprep.subr.mxu0 0.0
    %2689 = vmatpush2.msra.mxu0 0.0
    %2690 = vmatprep.subr.mxu0 0.0
    %2691 = vmatpush2.msra.mxu0 0.0
    %2692 = vmatprep.subr.mxu0 0.0
    %2693 = vmatpush2.msra.mxu0 0.0
    %2694 = vmatprep.subr.mxu0 0.0
    %2695 = vmatpush2.msra.mxu0 0.0
    %2696 = vmatprep.subr.mxu0 0.0
    %2697 = vmatpush2.msra.mxu0 0.0
    %2698 = vmatprep.subr.mxu0 0.0
    %2699 = vmatpush2.msra.mxu0 0.0
    %2700 = vmatprep.subr.mxu0 0.0
    %2701 = vmatpush2.msra.mxu0 0.0
    %2702 = vmatprep.subr.mxu0 0.0
    %2703 = vmatpush2.msra.mxu0 0.0
    %2704 = vmatprep.subr.mxu0 0.0
    %2705 = vmatpush2.msra.mxu0 0.0
    %2706 = vmatprep.subr.mxu0 0.0
    %2707 = vmatpush2.msra.mxu0 0.0
    %2708 = vmatprep.subr.mxu0 0.0
    %2709 = vmatpush2.msra.mxu0 0.0
    %2710 = vmatprep.mubr.f32.mxu0 0.0
    %v2711 = vand.u32 %v2110, 4294901760
    %2712 = vmatmul.mubr.f32.gmra.mxu0 %v2711
    %v2713 = vpop.f32.mrf.mxu0
    %v2714 = vadd.f32 %v2621, %v2713
    %v2715 = vpop.f32.mrf.mxu0
    %2716 = vmatprep.mubr.f32.mxu0 0.0
    %v2717 = vand.u32 %v2113, 4294901760
    %2718 = vmatmul.mubr.f32.gmra.mxu0 %v2717
    %v2719 = vpop.f32.mrf.mxu0
    %v2720 = vadd.f32 %v2627, %v2719
    %v2721 = vpop.f32.mrf.mxu0
    %2722 = vmatprep.mubr.f32.mxu0 0.0
    %v2723 = vand.u32 %v2116, 4294901760
    %2724 = vmatmul.mubr.f32.gmra.mxu0 %v2723
    %v2725 = vpop.f32.mrf.mxu0
    %v2726 = vadd.f32 %v2633, %v2725
    %v2727 = vpop.f32.mrf.mxu0
    %2728 = vmatprep.mubr.f32.mxu0 0.0
    %v2729 = vand.u32 %v2119, 4294901760
    %2730 = vmatmul.mubr.f32.gmra.mxu0 %v2729
    %v2731 = vpop.f32.mrf.mxu0
    %v2732 = vadd.f32 %v2639, %v2731
    %v2733 = vpop.f32.mrf.mxu0
    %2734 = vdwg.mxu0
    %v2735 = vld [vmem:[#allocation5] sm:$0xff]
    %v2736 = vld [vmem:[#allocation5 + $0x8] sm:$0xff]
    %v2737 = vld [vmem:[#allocation5 + $0x10] sm:$0xff]
    %v2738 = vld [vmem:[#allocation5 + $0x18] sm:$0xff]
    %v2739 = vld [vmem:[#allocation5 + $0x20] sm:$0xff]
    %v2740 = vld [vmem:[#allocation5 + $0x28] sm:$0xff]
    %v2741 = vld [vmem:[#allocation5 + $0x30] sm:$0xff]
    %v2742 = vld [vmem:[#allocation5 + $0x38] sm:$0xff]
    %v2743 = vld [vmem:[#allocation5 + $0x40] sm:$0xff]
    %v2744 = vld [vmem:[#allocation5 + $0x48] sm:$0xff]
    %v2745 = vld [vmem:[#allocation5 + $0x50] sm:$0xff]
    %v2746 = vld [vmem:[#allocation5 + $0x58] sm:$0xff]
    %v2747 = vld [vmem:[#allocation5 + $0x60] sm:$0xff]
    %v2748 = vld [vmem:[#allocation5 + $0x68] sm:$0xff]
    %v2749 = vld [vmem:[#allocation5 + $0x70] sm:$0xff]
    %v2750 = vld [vmem:[#allocation5 + $0x78] sm:$0xff]
    %s2751 = scalar_lea.vmem [#allocation5], 128
    %v2752 = vld [vmem:[%s2751] sm:$0xff]
    %v2753 = vld [vmem:[%s2751 + $0x8] sm:$0xff]
    %v2754 = vld [vmem:[%s2751 + $0x10] sm:$0xff]
    %v2755 = vld [vmem:[%s2751 + $0x18] sm:$0xff]
    %v2756 = vld [vmem:[%s2751 + $0x20] sm:$0xff]
    %v2757 = vld [vmem:[%s2751 + $0x28] sm:$0xff]
    %v2758 = vld [vmem:[%s2751 + $0x30] sm:$0xff]
    %v2759 = vld [vmem:[%s2751 + $0x38] sm:$0xff]
    %v2760 = vld [vmem:[%s2751 + $0x40] sm:$0xff]
    %v2761 = vld [vmem:[%s2751 + $0x48] sm:$0xff]
    %v2762 = vld [vmem:[%s2751 + $0x50] sm:$0xff]
    %v2763 = vld [vmem:[%s2751 + $0x58] sm:$0xff]
    %v2764 = vld [vmem:[%s2751 + $0x60] sm:$0xff]
    %v2765 = vld [vmem:[%s2751 + $0x68] sm:$0xff]
    %v2766 = vld [vmem:[%s2751 + $0x70] sm:$0xff]
    %v2767 = vld [vmem:[%s2751 + $0x78] sm:$0xff]
    %2768 = vmatprep.subr.mxu0 0.0
    %v2769 = vand.u32 %v2767, 4294901760
    %2770 = vmatpush1.msra.mxu0 %v2769
    %2771 = vmatprep.subr.mxu0 0.0
    %v2772 = vand.u32 %v2766, 4294901760
    %2773 = vmatpush1.msra.mxu0 %v2772
    %2774 = vmatprep.subr.mxu0 0.0
    %v2775 = vand.u32 %v2765, 4294901760
    %2776 = vmatpush1.msra.mxu0 %v2775
    %2777 = vmatprep.subr.mxu0 0.0
    %v2778 = vand.u32 %v2764, 4294901760
    %2779 = vmatpush1.msra.mxu0 %v2778
    %2780 = vmatprep.subr.mxu0 0.0
    %v2781 = vand.u32 %v2763, 4294901760
    %2782 = vmatpush1.msra.mxu0 %v2781
    %2783 = vmatprep.subr.mxu0 0.0
    %v2784 = vand.u32 %v2762, 4294901760
    %2785 = vmatpush1.msra.mxu0 %v2784
    %2786 = vmatprep.subr.mxu0 0.0
    %v2787 = vand.u32 %v2761, 4294901760
    %2788 = vmatpush1.msra.mxu0 %v2787
    %2789 = vmatprep.subr.mxu0 0.0
    %v2790 = vand.u32 %v2760, 4294901760
    %2791 = vmatpush1.msra.mxu0 %v2790
    %2792 = vmatprep.subr.mxu0 0.0
    %v2793 = vand.u32 %v2759, 4294901760
    %2794 = vmatpush1.msra.mxu0 %v2793
    %2795 = vmatprep.subr.mxu0 0.0
    %v2796 = vand.u32 %v2758, 4294901760
    %2797 = vmatpush1.msra.mxu0 %v2796
    %2798 = vmatprep.subr.mxu0 0.0
    %v2799 = vand.u32 %v2757, 4294901760
    %2800 = vmatpush1.msra.mxu0 %v2799
    %2801 = vmatprep.subr.mxu0 0.0
    %v2802 = vand.u32 %v2756, 4294901760
    %2803 = vmatpush1.msra.mxu0 %v2802
    %2804 = vmatprep.subr.mxu0 0.0
    %v2805 = vand.u32 %v2755, 4294901760
    %2806 = vmatpush1.msra.mxu0 %v2805
    %2807 = vmatprep.subr.mxu0 0.0
    %v2808 = vand.u32 %v2754, 4294901760
    %2809 = vmatpush1.msra.mxu0 %v2808
    %2810 = vmatprep.subr.mxu0 0.0
    %v2811 = vand.u32 %v2753, 4294901760
    %2812 = vmatpush1.msra.mxu0 %v2811
    %2813 = vmatprep.subr.mxu0 0.0
    %v2814 = vand.u32 %v2752, 4294901760
    %2815 = vmatpush1.msra.mxu0 %v2814
    %2816 = vmatprep.subr.mxu0 0.0
    %2817 = vmatpush2.msra.mxu0 0.0
    %2818 = vmatprep.subr.mxu0 0.0
    %2819 = vmatpush2.msra.mxu0 0.0
    %2820 = vmatprep.subr.mxu0 0.0
    %2821 = vmatpush2.msra.mxu0 0.0
    %2822 = vmatprep.subr.mxu0 0.0
    %2823 = vmatpush2.msra.mxu0 0.0
    %2824 = vmatprep.subr.mxu0 0.0
    %2825 = vmatpush2.msra.mxu0 0.0
    %2826 = vmatprep.subr.mxu0 0.0
    %2827 = vmatpush2.msra.mxu0 0.0
    %2828 = vmatprep.subr.mxu0 0.0
    %2829 = vmatpush2.msra.mxu0 0.0
    %2830 = vmatprep.subr.mxu0 0.0
    %2831 = vmatpush2.msra.mxu0 0.0
    %2832 = vmatprep.subr.mxu0 0.0
    %2833 = vmatpush2.msra.mxu0 0.0
    %2834 = vmatprep.subr.mxu0 0.0
    %2835 = vmatpush2.msra.mxu0 0.0
    %2836 = vmatprep.subr.mxu0 0.0
    %2837 = vmatpush2.msra.mxu0 0.0
    %2838 = vmatprep.subr.mxu0 0.0
    %2839 = vmatpush2.msra.mxu0 0.0
    %2840 = vmatprep.subr.mxu0 0.0
    %2841 = vmatpush2.msra.mxu0 0.0
    %2842 = vmatprep.subr.mxu0 0.0
    %2843 = vmatpush2.msra.mxu0 0.0
    %2844 = vmatprep.subr.mxu0 0.0
    %2845 = vmatpush2.msra.mxu0 0.0
    %2846 = vmatprep.subr.mxu0 0.0
    %2847 = vmatpush2.msra.mxu0 0.0
    %2848 = vmatprep.mubr.f32.mxu0 0.0
    %v2849 = vand.u32 %v1478, 4294901760
    %v2850 = vsub.f32 %v1478, %v2849
    %v2851 = vand.u32 %v2850, 4294901760
    %v2852 = vsub.f32 %v2850, %v2851
    %v2853 = vand.u32 %v2852, 4294901760
    %2854 = vmatmul.mubr.f32.gmra.mxu0 %v2853
    %v2855 = vpop.f32.mrf.mxu0
    %v2856 = vadd.f32 0.0, %v2855
    %v2857 = vpop.f32.mrf.mxu0
    %2858 = vmatprep.mubr.f32.mxu0 0.0
    %v2859 = vand.u32 %v1479, 4294901760
    %v2860 = vsub.f32 %v1479, %v2859
    %v2861 = vand.u32 %v2860, 4294901760
    %v2862 = vsub.f32 %v2860, %v2861
    %v2863 = vand.u32 %v2862, 4294901760
    %2864 = vmatmul.mubr.f32.gmra.mxu0 %v2863
    %v2865 = vpop.f32.mrf.mxu0
    %v2866 = vadd.f32 0.0, %v2865
    %v2867 = vpop.f32.mrf.mxu0
    %2868 = vmatprep.mubr.f32.mxu0 0.0
    %v2869 = vand.u32 %v1480, 4294901760
    %v2870 = vsub.f32 %v1480, %v2869
    %v2871 = vand.u32 %v2870, 4294901760
    %v2872 = vsub.f32 %v2870, %v2871
    %v2873 = vand.u32 %v2872, 4294901760
    %2874 = vmatmul.mubr.f32.gmra.mxu0 %v2873
    %v2875 = vpop.f32.mrf.mxu0
    %v2876 = vadd.f32 0.0, %v2875
    %v2877 = vpop.f32.mrf.mxu0
    %2878 = vmatprep.mubr.f32.mxu0 0.0
    %v2879 = vand.u32 %v1481, 4294901760
    %v2880 = vsub.f32 %v1481, %v2879
    %v2881 = vand.u32 %v2880, 4294901760
    %v2882 = vsub.f32 %v2880, %v2881
    %v2883 = vand.u32 %v2882, 4294901760
    %2884 = vmatmul.mubr.f32.gmra.mxu0 %v2883
    %v2885 = vpop.f32.mrf.mxu0
    %v2886 = vadd.f32 0.0, %v2885
    %v2887 = vpop.f32.mrf.mxu0
    %2888 = vdwg.mxu0
    %2889 = vmatprep.subr.mxu0 0.0
    %v2890 = vand.u32 %v2767, 4294901760
    %v2891 = vsub.f32 %v2767, %v2890
    %v2892 = vand.u32 %v2891, 4294901760
    %v2893 = vsub.f32 %v2891, %v2892
    %v2894 = vand.u32 %v2893, 4294901760
    %2895 = vmatpush1.msra.mxu0 %v2894
    %2896 = vmatprep.subr.mxu0 0.0
    %v2897 = vand.u32 %v2766, 4294901760
    %v2898 = vsub.f32 %v2766, %v2897
    %v2899 = vand.u32 %v2898, 4294901760
    %v2900 = vsub.f32 %v2898, %v2899
    %v2901 = vand.u32 %v2900, 4294901760
    %2902 = vmatpush1.msra.mxu0 %v2901
    %2903 = vmatprep.subr.mxu0 0.0
    %v2904 = vand.u32 %v2765, 4294901760
    %v2905 = vsub.f32 %v2765, %v2904
    %v2906 = vand.u32 %v2905, 4294901760
    %v2907 = vsub.f32 %v2905, %v2906
    %v2908 = vand.u32 %v2907, 4294901760
    %2909 = vmatpush1.msra.mxu0 %v2908
    %2910 = vmatprep.subr.mxu0 0.0
    %v2911 = vand.u32 %v2764, 4294901760
    %v2912 = vsub.f32 %v2764, %v2911
    %v2913 = vand.u32 %v2912, 4294901760
    %v2914 = vsub.f32 %v2912, %v2913
    %v2915 = vand.u32 %v2914, 4294901760
    %2916 = vmatpush1.msra.mxu0 %v2915
    %2917 = vmatprep.subr.mxu0 0.0
    %v2918 = vand.u32 %v2763, 4294901760
    %v2919 = vsub.f32 %v2763, %v2918
    %v2920 = vand.u32 %v2919, 4294901760
    %v2921 = vsub.f32 %v2919, %v2920
    %v2922 = vand.u32 %v2921, 4294901760
    %2923 = vmatpush1.msra.mxu0 %v2922
    %2924 = vmatprep.subr.mxu0 0.0
    %v2925 = vand.u32 %v2762, 4294901760
    %v2926 = vsub.f32 %v2762, %v2925
    %v2927 = vand.u32 %v2926, 4294901760
    %v2928 = vsub.f32 %v2926, %v2927
    %v2929 = vand.u32 %v2928, 4294901760
    %2930 = vmatpush1.msra.mxu0 %v2929
    %2931 = vmatprep.subr.mxu0 0.0
    %v2932 = vand.u32 %v2761, 4294901760
    %v2933 = vsub.f32 %v2761, %v2932
    %v2934 = vand.u32 %v2933, 4294901760
    %v2935 = vsub.f32 %v2933, %v2934
    %v2936 = vand.u32 %v2935, 4294901760
    %2937 = vmatpush1.msra.mxu0 %v2936
    %2938 = vmatprep.subr.mxu0 0.0
    %v2939 = vand.u32 %v2760, 4294901760
    %v2940 = vsub.f32 %v2760, %v2939
    %v2941 = vand.u32 %v2940, 4294901760
    %v2942 = vsub.f32 %v2940, %v2941
    %v2943 = vand.u32 %v2942, 4294901760
    %2944 = vmatpush1.msra.mxu0 %v2943
    %2945 = vmatprep.subr.mxu0 0.0
    %v2946 = vand.u32 %v2759, 4294901760
    %v2947 = vsub.f32 %v2759, %v2946
    %v2948 = vand.u32 %v2947, 4294901760
    %v2949 = vsub.f32 %v2947, %v2948
    %v2950 = vand.u32 %v2949, 4294901760
    %2951 = vmatpush1.msra.mxu0 %v2950
    %2952 = vmatprep.subr.mxu0 0.0
    %v2953 = vand.u32 %v2758, 4294901760
    %v2954 = vsub.f32 %v2758, %v2953
    %v2955 = vand.u32 %v2954, 4294901760
    %v2956 = vsub.f32 %v2954, %v2955
    %v2957 = vand.u32 %v2956, 4294901760
    %2958 = vmatpush1.msra.mxu0 %v2957
    %2959 = vmatprep.subr.mxu0 0.0
    %v2960 = vand.u32 %v2757, 4294901760
    %v2961 = vsub.f32 %v2757, %v2960
    %v2962 = vand.u32 %v2961, 4294901760
    %v2963 = vsub.f32 %v2961, %v2962
    %v2964 = vand.u32 %v2963, 4294901760
    %2965 = vmatpush1.msra.mxu0 %v2964
    %2966 = vmatprep.subr.mxu0 0.0
    %v2967 = vand.u32 %v2756, 4294901760
    %v2968 = vsub.f32 %v2756, %v2967
    %v2969 = vand.u32 %v2968, 4294901760
    %v2970 = vsub.f32 %v2968, %v2969
    %v2971 = vand.u32 %v2970, 4294901760
    %2972 = vmatpush1.msra.mxu0 %v2971
    %2973 = vmatprep.subr.mxu0 0.0
    %v2974 = vand.u32 %v2755, 4294901760
    %v2975 = vsub.f32 %v2755, %v2974
    %v2976 = vand.u32 %v2975, 4294901760
    %v2977 = vsub.f32 %v2975, %v2976
    %v2978 = vand.u32 %v2977, 4294901760
    %2979 = vmatpush1.msra.mxu0 %v2978
    %2980 = vmatprep.subr.mxu0 0.0
    %v2981 = vand.u32 %v2754, 4294901760
    %v2982 = vsub.f32 %v2754, %v2981
    %v2983 = vand.u32 %v2982, 4294901760
    %v2984 = vsub.f32 %v2982, %v2983
    %v2985 = vand.u32 %v2984, 4294901760
    %2986 = vmatpush1.msra.mxu0 %v2985
    %2987 = vmatprep.subr.mxu0 0.0
    %v2988 = vand.u32 %v2753, 4294901760
    %v2989 = vsub.f32 %v2753, %v2988
    %v2990 = vand.u32 %v2989, 4294901760
    %v2991 = vsub.f32 %v2989, %v2990
    %v2992 = vand.u32 %v2991, 4294901760
    %2993 = vmatpush1.msra.mxu0 %v2992
    %2994 = vmatprep.subr.mxu0 0.0
    %v2995 = vand.u32 %v2752, 4294901760
    %v2996 = vsub.f32 %v2752, %v2995
    %v2997 = vand.u32 %v2996, 4294901760
    %v2998 = vsub.f32 %v2996, %v2997
    %v2999 = vand.u32 %v2998, 4294901760
    %3000 = vmatpush1.msra.mxu0 %v2999
    %3001 = vmatprep.subr.mxu0 0.0
    %3002 = vmatpush2.msra.mxu0 0.0
    %3003 = vmatprep.subr.mxu0 0.0
    %3004 = vmatpush2.msra.mxu0 0.0
    %3005 = vmatprep.subr.mxu0 0.0
    %3006 = vmatpush2.msra.mxu0 0.0
    %3007 = vmatprep.subr.mxu0 0.0
    %3008 = vmatpush2.msra.mxu0 0.0
    %3009 = vmatprep.subr.mxu0 0.0
    %3010 = vmatpush2.msra.mxu0 0.0
    %3011 = vmatprep.subr.mxu0 0.0
    %3012 = vmatpush2.msra.mxu0 0.0
    %3013 = vmatprep.subr.mxu0 0.0
    %3014 = vmatpush2.msra.mxu0 0.0
    %3015 = vmatprep.subr.mxu0 0.0
    %3016 = vmatpush2.msra.mxu0 0.0
    %3017 = vmatprep.subr.mxu0 0.0
    %3018 = vmatpush2.msra.mxu0 0.0
    %3019 = vmatprep.subr.mxu0 0.0
    %3020 = vmatpush2.msra.mxu0 0.0
    %3021 = vmatprep.subr.mxu0 0.0
    %3022 = vmatpush2.msra.mxu0 0.0
    %3023 = vmatprep.subr.mxu0 0.0
    %3024 = vmatpush2.msra.mxu0 0.0
    %3025 = vmatprep.subr.mxu0 0.0
    %3026 = vmatpush2.msra.mxu0 0.0
    %3027 = vmatprep.subr.mxu0 0.0
    %3028 = vmatpush2.msra.mxu0 0.0
    %3029 = vmatprep.subr.mxu0 0.0
    %3030 = vmatpush2.msra.mxu0 0.0
    %3031 = vmatprep.subr.mxu0 0.0
    %3032 = vmatpush2.msra.mxu0 0.0
    %3033 = vmatprep.mubr.f32.mxu0 0.0
    %v3034 = vand.u32 %v1478, 4294901760
    %3035 = vmatmul.mubr.f32.gmra.mxu0 %v3034
    %v3036 = vpop.f32.mrf.mxu0
    %v3037 = vadd.f32 %v2856, %v3036
    %v3038 = vpop.f32.mrf.mxu0
    %3039 = vmatprep.mubr.f32.mxu0 0.0
    %v3040 = vand.u32 %v1479, 4294901760
    %3041 = vmatmul.mubr.f32.gmra.mxu0 %v3040
    %v3042 = vpop.f32.mrf.mxu0
    %v3043 = vadd.f32 %v2866, %v3042
    %v3044 = vpop.f32.mrf.mxu0
    %3045 = vmatprep.mubr.f32.mxu0 0.0
    %v3046 = vand.u32 %v1480, 4294901760
    %3047 = vmatmul.mubr.f32.gmra.mxu0 %v3046
    %v3048 = vpop.f32.mrf.mxu0
    %v3049 = vadd.f32 %v2876, %v3048
    %v3050 = vpop.f32.mrf.mxu0
    %3051 = vmatprep.mubr.f32.mxu0 0.0
    %v3052 = vand.u32 %v1481, 4294901760
    %3053 = vmatmul.mubr.f32.gmra.mxu0 %v3052
    %v3054 = vpop.f32.mrf.mxu0
    %v3055 = vadd.f32 %v2886, %v3054
    %v3056 = vpop.f32.mrf.mxu0
    %3057 = vdwg.mxu0
    %3058 = vmatprep.subr.mxu0 0.0
    %v3059 = vand.u32 %v2767, 4294901760
    %v3060 = vsub.f32 %v2767, %v3059
    %3061 = vmatpush1.msra.mxu0 %v3060
    %3062 = vmatprep.subr.mxu0 0.0
    %v3063 = vand.u32 %v2766, 4294901760
    %v3064 = vsub.f32 %v2766, %v3063
    %3065 = vmatpush1.msra.mxu0 %v3064
    %3066 = vmatprep.subr.mxu0 0.0
    %v3067 = vand.u32 %v2765, 4294901760
    %v3068 = vsub.f32 %v2765, %v3067
    %3069 = vmatpush1.msra.mxu0 %v3068
    %3070 = vmatprep.subr.mxu0 0.0
    %v3071 = vand.u32 %v2764, 4294901760
    %v3072 = vsub.f32 %v2764, %v3071
    %3073 = vmatpush1.msra.mxu0 %v3072
    %3074 = vmatprep.subr.mxu0 0.0
    %v3075 = vand.u32 %v2763, 4294901760
    %v3076 = vsub.f32 %v2763, %v3075
    %3077 = vmatpush1.msra.mxu0 %v3076
    %3078 = vmatprep.subr.mxu0 0.0
    %v3079 = vand.u32 %v2762, 4294901760
    %v3080 = vsub.f32 %v2762, %v3079
    %3081 = vmatpush1.msra.mxu0 %v3080
    %3082 = vmatprep.subr.mxu0 0.0
    %v3083 = vand.u32 %v2761, 4294901760
    %v3084 = vsub.f32 %v2761, %v3083
    %3085 = vmatpush1.msra.mxu0 %v3084
    %3086 = vmatprep.subr.mxu0 0.0
    %v3087 = vand.u32 %v2760, 4294901760
    %v3088 = vsub.f32 %v2760, %v3087
    %3089 = vmatpush1.msra.mxu0 %v3088
    %3090 = vmatprep.subr.mxu0 0.0
    %v3091 = vand.u32 %v2759, 4294901760
    %v3092 = vsub.f32 %v2759, %v3091
    %3093 = vmatpush1.msra.mxu0 %v3092
    %3094 = vmatprep.subr.mxu0 0.0
    %v3095 = vand.u32 %v2758, 4294901760
    %v3096 = vsub.f32 %v2758, %v3095
    %3097 = vmatpush1.msra.mxu0 %v3096
    %3098 = vmatprep.subr.mxu0 0.0
    %v3099 = vand.u32 %v2757, 4294901760
    %v3100 = vsub.f32 %v2757, %v3099
    %3101 = vmatpush1.msra.mxu0 %v3100
    %3102 = vmatprep.subr.mxu0 0.0
    %v3103 = vand.u32 %v2756, 4294901760
    %v3104 = vsub.f32 %v2756, %v3103
    %3105 = vmatpush1.msra.mxu0 %v3104
    %3106 = vmatprep.subr.mxu0 0.0
    %v3107 = vand.u32 %v2755, 4294901760
    %v3108 = vsub.f32 %v2755, %v3107
    %3109 = vmatpush1.msra.mxu0 %v3108
    %3110 = vmatprep.subr.mxu0 0.0
    %v3111 = vand.u32 %v2754, 4294901760
    %v3112 = vsub.f32 %v2754, %v3111
    %3113 = vmatpush1.msra.mxu0 %v3112
    %3114 = vmatprep.subr.mxu0 0.0
    %v3115 = vand.u32 %v2753, 4294901760
    %v3116 = vsub.f32 %v2753, %v3115
    %3117 = vmatpush1.msra.mxu0 %v3116
    %3118 = vmatprep.subr.mxu0 0.0
    %v3119 = vand.u32 %v2752, 4294901760
    %v3120 = vsub.f32 %v2752, %v3119
    %3121 = vmatpush1.msra.mxu0 %v3120
    %3122 = vmatprep.subr.mxu0 0.0
    %3123 = vmatpush2.msra.mxu0 0.0
    %3124 = vmatprep.subr.mxu0 0.0
    %3125 = vmatpush2.msra.mxu0 0.0
    %3126 = vmatprep.subr.mxu0 0.0
    %3127 = vmatpush2.msra.mxu0 0.0
    %3128 = vmatprep.subr.mxu0 0.0
    %3129 = vmatpush2.msra.mxu0 0.0
    %3130 = vmatprep.subr.mxu0 0.0
    %3131 = vmatpush2.msra.mxu0 0.0
    %3132 = vmatprep.subr.mxu0 0.0
    %3133 = vmatpush2.msra.mxu0 0.0
    %3134 = vmatprep.subr.mxu0 0.0
    %3135 = vmatpush2.msra.mxu0 0.0
    %3136 = vmatprep.subr.mxu0 0.0
    %3137 = vmatpush2.msra.mxu0 0.0
    %3138 = vmatprep.subr.mxu0 0.0
    %3139 = vmatpush2.msra.mxu0 0.0
    %3140 = vmatprep.subr.mxu0 0.0
    %3141 = vmatpush2.msra.mxu0 0.0
    %3142 = vmatprep.subr.mxu0 0.0
    %3143 = vmatpush2.msra.mxu0 0.0
    %3144 = vmatprep.subr.mxu0 0.0
    %3145 = vmatpush2.msra.mxu0 0.0
    %3146 = vmatprep.subr.mxu0 0.0
    %3147 = vmatpush2.msra.mxu0 0.0
    %3148 = vmatprep.subr.mxu0 0.0
    %3149 = vmatpush2.msra.mxu0 0.0
    %3150 = vmatprep.subr.mxu0 0.0
    %3151 = vmatpush2.msra.mxu0 0.0
    %3152 = vmatprep.subr.mxu0 0.0
    %3153 = vmatpush2.msra.mxu0 0.0
    %3154 = vmatprep.mubr.f32.mxu0 0.0
    %v3155 = vand.u32 %v1478, 4294901760
    %v3156 = vsub.f32 %v1478, %v3155
    %3157 = vmatmul.mubr.f32.gmra.mxu0 %v3156
    %v3158 = vpop.f32.mrf.mxu0
    %v3159 = vadd.f32 %v3037, %v3158
    %v3160 = vpop.f32.mrf.mxu0
    %3161 = vmatprep.mubr.f32.mxu0 0.0
    %v3162 = vand.u32 %v1479, 4294901760
    %v3163 = vsub.f32 %v1479, %v3162
    %3164 = vmatmul.mubr.f32.gmra.mxu0 %v3163
    %v3165 = vpop.f32.mrf.mxu0
    %v3166 = vadd.f32 %v3043, %v3165
    %v3167 = vpop.f32.mrf.mxu0
    %3168 = vmatprep.mubr.f32.mxu0 0.0
    %v3169 = vand.u32 %v1480, 4294901760
    %v3170 = vsub.f32 %v1480, %v3169
    %3171 = vmatmul.mubr.f32.gmra.mxu0 %v3170
    %v3172 = vpop.f32.mrf.mxu0
    %v3173 = vadd.f32 %v3049, %v3172
    %v3174 = vpop.f32.mrf.mxu0
    %3175 = vmatprep.mubr.f32.mxu0 0.0
    %v3176 = vand.u32 %v1481, 4294901760
    %v3177 = vsub.f32 %v1481, %v3176
    %3178 = vmatmul.mubr.f32.gmra.mxu0 %v3177
    %v3179 = vpop.f32.mrf.mxu0
    %v3180 = vadd.f32 %v3055, %v3179
    %v3181 = vpop.f32.mrf.mxu0
    %3182 = vdwg.mxu0
    %3183 = vmatprep.subr.mxu0 0.0
    %v3184 = vand.u32 %v2767, 4294901760
    %3185 = vmatpush1.msra.mxu0 %v3184
    %3186 = vmatprep.subr.mxu0 0.0
    %v3187 = vand.u32 %v2766, 4294901760
    %3188 = vmatpush1.msra.mxu0 %v3187
    %3189 = vmatprep.subr.mxu0 0.0
    %v3190 = vand.u32 %v2765, 4294901760
    %3191 = vmatpush1.msra.mxu0 %v3190
    %3192 = vmatprep.subr.mxu0 0.0
    %v3193 = vand.u32 %v2764, 4294901760
    %3194 = vmatpush1.msra.mxu0 %v3193
    %3195 = vmatprep.subr.mxu0 0.0
    %v3196 = vand.u32 %v2763, 4294901760
    %3197 = vmatpush1.msra.mxu0 %v3196
    %3198 = vmatprep.subr.mxu0 0.0
    %v3199 = vand.u32 %v2762, 4294901760
    %3200 = vmatpush1.msra.mxu0 %v3199
    %3201 = vmatprep.subr.mxu0 0.0
    %v3202 = vand.u32 %v2761, 4294901760
    %3203 = vmatpush1.msra.mxu0 %v3202
    %3204 = vmatprep.subr.mxu0 0.0
    %v3205 = vand.u32 %v2760, 4294901760
    %3206 = vmatpush1.msra.mxu0 %v3205
    %3207 = vmatprep.subr.mxu0 0.0
    %v3208 = vand.u32 %v2759, 4294901760
    %3209 = vmatpush1.msra.mxu0 %v3208
    %3210 = vmatprep.subr.mxu0 0.0
    %v3211 = vand.u32 %v2758, 4294901760
    %3212 = vmatpush1.msra.mxu0 %v3211
    %3213 = vmatprep.subr.mxu0 0.0
    %v3214 = vand.u32 %v2757, 4294901760
    %3215 = vmatpush1.msra.mxu0 %v3214
    %3216 = vmatprep.subr.mxu0 0.0
    %v3217 = vand.u32 %v2756, 4294901760
    %3218 = vmatpush1.msra.mxu0 %v3217
    %3219 = vmatprep.subr.mxu0 0.0
    %v3220 = vand.u32 %v2755, 4294901760
    %3221 = vmatpush1.msra.mxu0 %v3220
    %3222 = vmatprep.subr.mxu0 0.0
    %v3223 = vand.u32 %v2754, 4294901760
    %3224 = vmatpush1.msra.mxu0 %v3223
    %3225 = vmatprep.subr.mxu0 0.0
    %v3226 = vand.u32 %v2753, 4294901760
    %3227 = vmatpush1.msra.mxu0 %v3226
    %3228 = vmatprep.subr.mxu0 0.0
    %v3229 = vand.u32 %v2752, 4294901760
    %3230 = vmatpush1.msra.mxu0 %v3229
    %3231 = vmatprep.subr.mxu0 0.0
    %3232 = vmatpush2.msra.mxu0 0.0
    %3233 = vmatprep.subr.mxu0 0.0
    %3234 = vmatpush2.msra.mxu0 0.0
    %3235 = vmatprep.subr.mxu0 0.0
    %3236 = vmatpush2.msra.mxu0 0.0
    %3237 = vmatprep.subr.mxu0 0.0
    %3238 = vmatpush2.msra.mxu0 0.0
    %3239 = vmatprep.subr.mxu0 0.0
    %3240 = vmatpush2.msra.mxu0 0.0
    %3241 = vmatprep.subr.mxu0 0.0
    %3242 = vmatpush2.msra.mxu0 0.0
    %3243 = vmatprep.subr.mxu0 0.0
    %3244 = vmatpush2.msra.mxu0 0.0
    %3245 = vmatprep.subr.mxu0 0.0
    %3246 = vmatpush2.msra.mxu0 0.0
    %3247 = vmatprep.subr.mxu0 0.0
    %3248 = vmatpush2.msra.mxu0 0.0
    %3249 = vmatprep.subr.mxu0 0.0
    %3250 = vmatpush2.msra.mxu0 0.0
    %3251 = vmatprep.subr.mxu0 0.0
    %3252 = vmatpush2.msra.mxu0 0.0
    %3253 = vmatprep.subr.mxu0 0.0
    %3254 = vmatpush2.msra.mxu0 0.0
    %3255 = vmatprep.subr.mxu0 0.0
    %3256 = vmatpush2.msra.mxu0 0.0
    %3257 = vmatprep.subr.mxu0 0.0
    %3258 = vmatpush2.msra.mxu0 0.0
    %3259 = vmatprep.subr.mxu0 0.0
    %3260 = vmatpush2.msra.mxu0 0.0
    %3261 = vmatprep.subr.mxu0 0.0
    %3262 = vmatpush2.msra.mxu0 0.0
    %3263 = vmatprep.mubr.f32.mxu0 0.0
    %v3264 = vand.u32 %v1478, 4294901760
    %v3265 = vsub.f32 %v1478, %v3264
    %v3266 = vand.u32 %v3265, 4294901760
    %3267 = vmatmul.mubr.f32.gmra.mxu0 %v3266
    %v3268 = vpop.f32.mrf.mxu0
    %v3269 = vadd.f32 %v3159, %v3268
    %v3270 = vpop.f32.mrf.mxu0
    %3271 = vmatprep.mubr.f32.mxu0 0.0
    %v3272 = vand.u32 %v1479, 4294901760
    %v3273 = vsub.f32 %v1479, %v3272
    %v3274 = vand.u32 %v3273, 4294901760
    %3275 = vmatmul.mubr.f32.gmra.mxu0 %v3274
    %v3276 = vpop.f32.mrf.mxu0
    %v3277 = vadd.f32 %v3166, %v3276
    %v3278 = vpop.f32.mrf.mxu0
    %3279 = vmatprep.mubr.f32.mxu0 0.0
    %v3280 = vand.u32 %v1480, 4294901760
    %v3281 = vsub.f32 %v1480, %v3280
    %v3282 = vand.u32 %v3281, 4294901760
    %3283 = vmatmul.mubr.f32.gmra.mxu0 %v3282
    %v3284 = vpop.f32.mrf.mxu0
    %v3285 = vadd.f32 %v3173, %v3284
    %v3286 = vpop.f32.mrf.mxu0
    %3287 = vmatprep.mubr.f32.mxu0 0.0
    %v3288 = vand.u32 %v1481, 4294901760
    %v3289 = vsub.f32 %v1481, %v3288
    %v3290 = vand.u32 %v3289, 4294901760
    %3291 = vmatmul.mubr.f32.gmra.mxu0 %v3290
    %v3292 = vpop.f32.mrf.mxu0
    %v3293 = vadd.f32 %v3180, %v3292
    %v3294 = vpop.f32.mrf.mxu0
    %3295 = vdwg.mxu0
    %3296 = vmatprep.subr.mxu0 0.0
    %v3297 = vand.u32 %v2767, 4294901760
    %v3298 = vsub.f32 %v2767, %v3297
    %v3299 = vand.u32 %v3298, 4294901760
    %3300 = vmatpush1.msra.mxu0 %v3299
    %3301 = vmatprep.subr.mxu0 0.0
    %v3302 = vand.u32 %v2766, 4294901760
    %v3303 = vsub.f32 %v2766, %v3302
    %v3304 = vand.u32 %v3303, 4294901760
    %3305 = vmatpush1.msra.mxu0 %v3304
    %3306 = vmatprep.subr.mxu0 0.0
    %v3307 = vand.u32 %v2765, 4294901760
    %v3308 = vsub.f32 %v2765, %v3307
    %v3309 = vand.u32 %v3308, 4294901760
    %3310 = vmatpush1.msra.mxu0 %v3309
    %3311 = vmatprep.subr.mxu0 0.0
    %v3312 = vand.u32 %v2764, 4294901760
    %v3313 = vsub.f32 %v2764, %v3312
    %v3314 = vand.u32 %v3313, 4294901760
    %3315 = vmatpush1.msra.mxu0 %v3314
    %3316 = vmatprep.subr.mxu0 0.0
    %v3317 = vand.u32 %v2763, 4294901760
    %v3318 = vsub.f32 %v2763, %v3317
    %v3319 = vand.u32 %v3318, 4294901760
    %3320 = vmatpush1.msra.mxu0 %v3319
    %3321 = vmatprep.subr.mxu0 0.0
    %v3322 = vand.u32 %v2762, 4294901760
    %v3323 = vsub.f32 %v2762, %v3322
    %v3324 = vand.u32 %v3323, 4294901760
    %3325 = vmatpush1.msra.mxu0 %v3324
    %3326 = vmatprep.subr.mxu0 0.0
    %v3327 = vand.u32 %v2761, 4294901760
    %v3328 = vsub.f32 %v2761, %v3327
    %v3329 = vand.u32 %v3328, 4294901760
    %3330 = vmatpush1.msra.mxu0 %v3329
    %3331 = vmatprep.subr.mxu0 0.0
    %v3332 = vand.u32 %v2760, 4294901760
    %v3333 = vsub.f32 %v2760, %v3332
    %v3334 = vand.u32 %v3333, 4294901760
    %3335 = vmatpush1.msra.mxu0 %v3334
    %3336 = vmatprep.subr.mxu0 0.0
    %v3337 = vand.u32 %v2759, 4294901760
    %v3338 = vsub.f32 %v2759, %v3337
    %v3339 = vand.u32 %v3338, 4294901760
    %3340 = vmatpush1.msra.mxu0 %v3339
    %3341 = vmatprep.subr.mxu0 0.0
    %v3342 = vand.u32 %v2758, 4294901760
    %v3343 = vsub.f32 %v2758, %v3342
    %v3344 = vand.u32 %v3343, 4294901760
    %3345 = vmatpush1.msra.mxu0 %v3344
    %3346 = vmatprep.subr.mxu0 0.0
    %v3347 = vand.u32 %v2757, 4294901760
    %v3348 = vsub.f32 %v2757, %v3347
    %v3349 = vand.u32 %v3348, 4294901760
    %3350 = vmatpush1.msra.mxu0 %v3349
    %3351 = vmatprep.subr.mxu0 0.0
    %v3352 = vand.u32 %v2756, 4294901760
    %v3353 = vsub.f32 %v2756, %v3352
    %v3354 = vand.u32 %v3353, 4294901760
    %3355 = vmatpush1.msra.mxu0 %v3354
    %3356 = vmatprep.subr.mxu0 0.0
    %v3357 = vand.u32 %v2755, 4294901760
    %v3358 = vsub.f32 %v2755, %v3357
    %v3359 = vand.u32 %v3358, 4294901760
    %3360 = vmatpush1.msra.mxu0 %v3359
    %3361 = vmatprep.subr.mxu0 0.0
    %v3362 = vand.u32 %v2754, 4294901760
    %v3363 = vsub.f32 %v2754, %v3362
    %v3364 = vand.u32 %v3363, 4294901760
    %3365 = vmatpush1.msra.mxu0 %v3364
    %3366 = vmatprep.subr.mxu0 0.0
    %v3367 = vand.u32 %v2753, 4294901760
    %v3368 = vsub.f32 %v2753, %v3367
    %v3369 = vand.u32 %v3368, 4294901760
    %3370 = vmatpush1.msra.mxu0 %v3369
    %3371 = vmatprep.subr.mxu0 0.0
    %v3372 = vand.u32 %v2752, 4294901760
    %v3373 = vsub.f32 %v2752, %v3372
    %v3374 = vand.u32 %v3373, 4294901760
    %3375 = vmatpush1.msra.mxu0 %v3374
    %3376 = vmatprep.subr.mxu0 0.0
    %3377 = vmatpush2.msra.mxu0 0.0
    %3378 = vmatprep.subr.mxu0 0.0
    %3379 = vmatpush2.msra.mxu0 0.0
    %3380 = vmatprep.subr.mxu0 0.0
    %3381 = vmatpush2.msra.mxu0 0.0
    %3382 = vmatprep.subr.mxu0 0.0
    %3383 = vmatpush2.msra.mxu0 0.0
    %3384 = vmatprep.subr.mxu0 0.0
    %3385 = vmatpush2.msra.mxu0 0.0
    %3386 = vmatprep.subr.mxu0 0.0
    %3387 = vmatpush2.msra.mxu0 0.0
    %3388 = vmatprep.subr.mxu0 0.0
    %3389 = vmatpush2.msra.mxu0 0.0
    %3390 = vmatprep.subr.mxu0 0.0
    %3391 = vmatpush2.msra.mxu0 0.0
    %3392 = vmatprep.subr.mxu0 0.0
    %3393 = vmatpush2.msra.mxu0 0.0
    %3394 = vmatprep.subr.mxu0 0.0
    %3395 = vmatpush2.msra.mxu0 0.0
    %3396 = vmatprep.subr.mxu0 0.0
    %3397 = vmatpush2.msra.mxu0 0.0
    %3398 = vmatprep.subr.mxu0 0.0
    %3399 = vmatpush2.msra.mxu0 0.0
    %3400 = vmatprep.subr.mxu0 0.0
    %3401 = vmatpush2.msra.mxu0 0.0
    %3402 = vmatprep.subr.mxu0 0.0
    %3403 = vmatpush2.msra.mxu0 0.0
    %3404 = vmatprep.subr.mxu0 0.0
    %3405 = vmatpush2.msra.mxu0 0.0
    %3406 = vmatprep.subr.mxu0 0.0
    %3407 = vmatpush2.msra.mxu0 0.0
    %3408 = vmatprep.mubr.f32.mxu0 0.0
    %v3409 = vand.u32 %v1478, 4294901760
    %3410 = vmatmul.mubr.f32.gmra.mxu0 %v3409
    %v3411 = vpop.f32.mrf.mxu0
    %v3412 = vadd.f32 %v3269, %v3411
    %v3413 = vpop.f32.mrf.mxu0
    %3414 = vmatprep.mubr.f32.mxu0 0.0
    %v3415 = vand.u32 %v1479, 4294901760
    %3416 = vmatmul.mubr.f32.gmra.mxu0 %v3415
    %v3417 = vpop.f32.mrf.mxu0
    %v3418 = vadd.f32 %v3277, %v3417
    %v3419 = vpop.f32.mrf.mxu0
    %3420 = vmatprep.mubr.f32.mxu0 0.0
    %v3421 = vand.u32 %v1480, 4294901760
    %3422 = vmatmul.mubr.f32.gmra.mxu0 %v3421
    %v3423 = vpop.f32.mrf.mxu0
    %v3424 = vadd.f32 %v3285, %v3423
    %v3425 = vpop.f32.mrf.mxu0
    %3426 = vmatprep.mubr.f32.mxu0 0.0
    %v3427 = vand.u32 %v1481, 4294901760
    %3428 = vmatmul.mubr.f32.gmra.mxu0 %v3427
    %v3429 = vpop.f32.mrf.mxu0
    %v3430 = vadd.f32 %v3293, %v3429
    %v3431 = vpop.f32.mrf.mxu0
    %3432 = vdwg.mxu0
    %3433 = vmatprep.subr.mxu0 0.0
    %v3434 = vand.u32 %v2767, 4294901760
    %3435 = vmatpush1.msra.mxu0 %v3434
    %3436 = vmatprep.subr.mxu0 0.0
    %v3437 = vand.u32 %v2766, 4294901760
    %3438 = vmatpush1.msra.mxu0 %v3437
    %3439 = vmatprep.subr.mxu0 0.0
    %v3440 = vand.u32 %v2765, 4294901760
    %3441 = vmatpush1.msra.mxu0 %v3440
    %3442 = vmatprep.subr.mxu0 0.0
    %v3443 = vand.u32 %v2764, 4294901760
    %3444 = vmatpush1.msra.mxu0 %v3443
    %3445 = vmatprep.subr.mxu0 0.0
    %v3446 = vand.u32 %v2763, 4294901760
    %3447 = vmatpush1.msra.mxu0 %v3446
    %3448 = vmatprep.subr.mxu0 0.0
    %v3449 = vand.u32 %v2762, 4294901760
    %3450 = vmatpush1.msra.mxu0 %v3449
    %3451 = vmatprep.subr.mxu0 0.0
    %v3452 = vand.u32 %v2761, 4294901760
    %3453 = vmatpush1.msra.mxu0 %v3452
    %3454 = vmatprep.subr.mxu0 0.0
    %v3455 = vand.u32 %v2760, 4294901760
    %3456 = vmatpush1.msra.mxu0 %v3455
    %3457 = vmatprep.subr.mxu0 0.0
    %v3458 = vand.u32 %v2759, 4294901760
    %3459 = vmatpush1.msra.mxu0 %v3458
    %3460 = vmatprep.subr.mxu0 0.0
    %v3461 = vand.u32 %v2758, 4294901760
    %3462 = vmatpush1.msra.mxu0 %v3461
    %3463 = vmatprep.subr.mxu0 0.0
    %v3464 = vand.u32 %v2757, 4294901760
    %3465 = vmatpush1.msra.mxu0 %v3464
    %3466 = vmatprep.subr.mxu0 0.0
    %v3467 = vand.u32 %v2756, 4294901760
    %3468 = vmatpush1.msra.mxu0 %v3467
    %3469 = vmatprep.subr.mxu0 0.0
    %v3470 = vand.u32 %v2755, 4294901760
    %3471 = vmatpush1.msra.mxu0 %v3470
    %3472 = vmatprep.subr.mxu0 0.0
    %v3473 = vand.u32 %v2754, 4294901760
    %3474 = vmatpush1.msra.mxu0 %v3473
    %3475 = vmatprep.subr.mxu0 0.0
    %v3476 = vand.u32 %v2753, 4294901760
    %3477 = vmatpush1.msra.mxu0 %v3476
    %3478 = vmatprep.subr.mxu0 0.0
    %v3479 = vand.u32 %v2752, 4294901760
    %3480 = vmatpush1.msra.mxu0 %v3479
    %3481 = vmatprep.subr.mxu0 0.0
    %3482 = vmatpush2.msra.mxu0 0.0
    %3483 = vmatprep.subr.mxu0 0.0
    %3484 = vmatpush2.msra.mxu0 0.0
    %3485 = vmatprep.subr.mxu0 0.0
    %3486 = vmatpush2.msra.mxu0 0.0
    %3487 = vmatprep.subr.mxu0 0.0
    %3488 = vmatpush2.msra.mxu0 0.0
    %3489 = vmatprep.subr.mxu0 0.0
    %3490 = vmatpush2.msra.mxu0 0.0
    %3491 = vmatprep.subr.mxu0 0.0
    %3492 = vmatpush2.msra.mxu0 0.0
    %3493 = vmatprep.subr.mxu0 0.0
    %3494 = vmatpush2.msra.mxu0 0.0
    %3495 = vmatprep.subr.mxu0 0.0
    %3496 = vmatpush2.msra.mxu0 0.0
    %3497 = vmatprep.subr.mxu0 0.0
    %3498 = vmatpush2.msra.mxu0 0.0
    %3499 = vmatprep.subr.mxu0 0.0
    %3500 = vmatpush2.msra.mxu0 0.0
    %3501 = vmatprep.subr.mxu0 0.0
    %3502 = vmatpush2.msra.mxu0 0.0
    %3503 = vmatprep.subr.mxu0 0.0
    %3504 = vmatpush2.msra.mxu0 0.0
    %3505 = vmatprep.subr.mxu0 0.0
    %3506 = vmatpush2.msra.mxu0 0.0
    %3507 = vmatprep.subr.mxu0 0.0
    %3508 = vmatpush2.msra.mxu0 0.0
    %3509 = vmatprep.subr.mxu0 0.0
    %3510 = vmatpush2.msra.mxu0 0.0
    %3511 = vmatprep.subr.mxu0 0.0
    %3512 = vmatpush2.msra.mxu0 0.0
    %3513 = vmatprep.mubr.f32.mxu0 0.0
    %v3514 = vand.u32 %v1478, 4294901760
    %3515 = vmatmul.mubr.f32.gmra.mxu0 %v3514
    %v3516 = vpop.f32.mrf.mxu0
    %v3517 = vadd.f32 %v3412, %v3516
    %v3518 = vpop.f32.mrf.mxu0
    %3519 = vmatprep.mubr.f32.mxu0 0.0
    %v3520 = vand.u32 %v1479, 4294901760
    %3521 = vmatmul.mubr.f32.gmra.mxu0 %v3520
    %v3522 = vpop.f32.mrf.mxu0
    %v3523 = vadd.f32 %v3418, %v3522
    %v3524 = vpop.f32.mrf.mxu0
    %3525 = vmatprep.mubr.f32.mxu0 0.0
    %v3526 = vand.u32 %v1480, 4294901760
    %3527 = vmatmul.mubr.f32.gmra.mxu0 %v3526
    %v3528 = vpop.f32.mrf.mxu0
    %v3529 = vadd.f32 %v3424, %v3528
    %v3530 = vpop.f32.mrf.mxu0
    %3531 = vmatprep.mubr.f32.mxu0 0.0
    %v3532 = vand.u32 %v1481, 4294901760
    %3533 = vmatmul.mubr.f32.gmra.mxu0 %v3532
    %v3534 = vpop.f32.mrf.mxu0
    %v3535 = vadd.f32 %v3430, %v3534
    %v3536 = vpop.f32.mrf.mxu0
    %3537 = vdwg.mxu0
    %3538 = vmatprep.subr.mxu0 0.0
    %v3539 = vand.u32 %v2750, 4294901760
    %3540 = vmatpush1.msra.mxu0 %v3539
    %3541 = vmatprep.subr.mxu0 0.0
    %v3542 = vand.u32 %v2749, 4294901760
    %3543 = vmatpush1.msra.mxu0 %v3542
    %3544 = vmatprep.subr.mxu0 0.0
    %v3545 = vand.u32 %v2748, 4294901760
    %3546 = vmatpush1.msra.mxu0 %v3545
    %3547 = vmatprep.subr.mxu0 0.0
    %v3548 = vand.u32 %v2747, 4294901760
    %3549 = vmatpush1.msra.mxu0 %v3548
    %3550 = vmatprep.subr.mxu0 0.0
    %v3551 = vand.u32 %v2746, 4294901760
    %3552 = vmatpush1.msra.mxu0 %v3551
    %3553 = vmatprep.subr.mxu0 0.0
    %v3554 = vand.u32 %v2745, 4294901760
    %3555 = vmatpush1.msra.mxu0 %v3554
    %3556 = vmatprep.subr.mxu0 0.0
    %v3557 = vand.u32 %v2744, 4294901760
    %3558 = vmatpush1.msra.mxu0 %v3557
    %3559 = vmatprep.subr.mxu0 0.0
    %v3560 = vand.u32 %v2743, 4294901760
    %3561 = vmatpush1.msra.mxu0 %v3560
    %3562 = vmatprep.subr.mxu0 0.0
    %v3563 = vand.u32 %v2742, 4294901760
    %3564 = vmatpush1.msra.mxu0 %v3563
    %3565 = vmatprep.subr.mxu0 0.0
    %v3566 = vand.u32 %v2741, 4294901760
    %3567 = vmatpush1.msra.mxu0 %v3566
    %3568 = vmatprep.subr.mxu0 0.0
    %v3569 = vand.u32 %v2740, 4294901760
    %3570 = vmatpush1.msra.mxu0 %v3569
    %3571 = vmatprep.subr.mxu0 0.0
    %v3572 = vand.u32 %v2739, 4294901760
    %3573 = vmatpush1.msra.mxu0 %v3572
    %3574 = vmatprep.subr.mxu0 0.0
    %v3575 = vand.u32 %v2738, 4294901760
    %3576 = vmatpush1.msra.mxu0 %v3575
    %3577 = vmatprep.subr.mxu0 0.0
    %v3578 = vand.u32 %v2737, 4294901760
    %3579 = vmatpush1.msra.mxu0 %v3578
    %3580 = vmatprep.subr.mxu0 0.0
    %v3581 = vand.u32 %v2736, 4294901760
    %3582 = vmatpush1.msra.mxu0 %v3581
    %3583 = vmatprep.subr.mxu0 0.0
    %v3584 = vand.u32 %v2735, 4294901760
    %3585 = vmatpush1.msra.mxu0 %v3584
    %3586 = vmatprep.subr.mxu0 0.0
    %3587 = vmatpush2.msra.mxu0 0.0
    %3588 = vmatprep.subr.mxu0 0.0
    %3589 = vmatpush2.msra.mxu0 0.0
    %3590 = vmatprep.subr.mxu0 0.0
    %3591 = vmatpush2.msra.mxu0 0.0
    %3592 = vmatprep.subr.mxu0 0.0
    %3593 = vmatpush2.msra.mxu0 0.0
    %3594 = vmatprep.subr.mxu0 0.0
    %3595 = vmatpush2.msra.mxu0 0.0
    %3596 = vmatprep.subr.mxu0 0.0
    %3597 = vmatpush2.msra.mxu0 0.0
    %3598 = vmatprep.subr.mxu0 0.0
    %3599 = vmatpush2.msra.mxu0 0.0
    %3600 = vmatprep.subr.mxu0 0.0
    %3601 = vmatpush2.msra.mxu0 0.0
    %3602 = vmatprep.subr.mxu0 0.0
    %3603 = vmatpush2.msra.mxu0 0.0
    %3604 = vmatprep.subr.mxu0 0.0
    %3605 = vmatpush2.msra.mxu0 0.0
    %3606 = vmatprep.subr.mxu0 0.0
    %3607 = vmatpush2.msra.mxu0 0.0
    %3608 = vmatprep.subr.mxu0 0.0
    %3609 = vmatpush2.msra.mxu0 0.0
    %3610 = vmatprep.subr.mxu0 0.0
    %3611 = vmatpush2.msra.mxu0 0.0
    %3612 = vmatprep.subr.mxu0 0.0
    %3613 = vmatpush2.msra.mxu0 0.0
    %3614 = vmatprep.subr.mxu0 0.0
    %3615 = vmatpush2.msra.mxu0 0.0
    %3616 = vmatprep.subr.mxu0 0.0
    %3617 = vmatpush2.msra.mxu0 0.0
    %3618 = vmatprep.mubr.f32.mxu0 0.0
    %v3619 = vand.u32 %v2088, 4294901760
    %v3620 = vsub.f32 %v2088, %v3619
    %v3621 = vand.u32 %v3620, 4294901760
    %v3622 = vsub.f32 %v3620, %v3621
    %v3623 = vand.u32 %v3622, 4294901760
    %3624 = vmatmul.mubr.f32.gmra.mxu0 %v3623
    %v3625 = vpop.f32.mrf.mxu0
    %v3626 = vadd.f32 %v3517, %v3625
    %v3627 = vpop.f32.mrf.mxu0
    %3628 = vmatprep.mubr.f32.mxu0 0.0
    %v3629 = vand.u32 %v2094, 4294901760
    %v3630 = vsub.f32 %v2094, %v3629
    %v3631 = vand.u32 %v3630, 4294901760
    %v3632 = vsub.f32 %v3630, %v3631
    %v3633 = vand.u32 %v3632, 4294901760
    %3634 = vmatmul.mubr.f32.gmra.mxu0 %v3633
    %v3635 = vpop.f32.mrf.mxu0
    %v3636 = vadd.f32 %v3523, %v3635
    %v3637 = vpop.f32.mrf.mxu0
    %3638 = vmatprep.mubr.f32.mxu0 0.0
    %v3639 = vand.u32 %v2100, 4294901760
    %v3640 = vsub.f32 %v2100, %v3639
    %v3641 = vand.u32 %v3640, 4294901760
    %v3642 = vsub.f32 %v3640, %v3641
    %v3643 = vand.u32 %v3642, 4294901760
    %3644 = vmatmul.mubr.f32.gmra.mxu0 %v3643
    %v3645 = vpop.f32.mrf.mxu0
    %v3646 = vadd.f32 %v3529, %v3645
    %v3647 = vpop.f32.mrf.mxu0
    %3648 = vmatprep.mubr.f32.mxu0 0.0
    %v3649 = vand.u32 %v2106, 4294901760
    %v3650 = vsub.f32 %v2106, %v3649
    %v3651 = vand.u32 %v3650, 4294901760
    %v3652 = vsub.f32 %v3650, %v3651
    %v3653 = vand.u32 %v3652, 4294901760
    %3654 = vmatmul.mubr.f32.gmra.mxu0 %v3653
    %v3655 = vpop.f32.mrf.mxu0
    %v3656 = vadd.f32 %v3535, %v3655
    %v3657 = vpop.f32.mrf.mxu0
    %3658 = vdwg.mxu0
    %3659 = vmatprep.subr.mxu0 0.0
    %v3660 = vand.u32 %v2750, 4294901760
    %v3661 = vsub.f32 %v2750, %v3660
    %v3662 = vand.u32 %v3661, 4294901760
    %v3663 = vsub.f32 %v3661, %v3662
    %v3664 = vand.u32 %v3663, 4294901760
    %3665 = vmatpush1.msra.mxu0 %v3664
    %3666 = vmatprep.subr.mxu0 0.0
    %v3667 = vand.u32 %v2749, 4294901760
    %v3668 = vsub.f32 %v2749, %v3667
    %v3669 = vand.u32 %v3668, 4294901760
    %v3670 = vsub.f32 %v3668, %v3669
    %v3671 = vand.u32 %v3670, 4294901760
    %3672 = vmatpush1.msra.mxu0 %v3671
    %3673 = vmatprep.subr.mxu0 0.0
    %v3674 = vand.u32 %v2748, 4294901760
    %v3675 = vsub.f32 %v2748, %v3674
    %v3676 = vand.u32 %v3675, 4294901760
    %v3677 = vsub.f32 %v3675, %v3676
    %v3678 = vand.u32 %v3677, 4294901760
    %3679 = vmatpush1.msra.mxu0 %v3678
    %3680 = vmatprep.subr.mxu0 0.0
    %v3681 = vand.u32 %v2747, 4294901760
    %v3682 = vsub.f32 %v2747, %v3681
    %v3683 = vand.u32 %v3682, 4294901760
    %v3684 = vsub.f32 %v3682, %v3683
    %v3685 = vand.u32 %v3684, 4294901760
    %3686 = vmatpush1.msra.mxu0 %v3685
    %3687 = vmatprep.subr.mxu0 0.0
    %v3688 = vand.u32 %v2746, 4294901760
    %v3689 = vsub.f32 %v2746, %v3688
    %v3690 = vand.u32 %v3689, 4294901760
    %v3691 = vsub.f32 %v3689, %v3690
    %v3692 = vand.u32 %v3691, 4294901760
    %3693 = vmatpush1.msra.mxu0 %v3692
    %3694 = vmatprep.subr.mxu0 0.0
    %v3695 = vand.u32 %v2745, 4294901760
    %v3696 = vsub.f32 %v2745, %v3695
    %v3697 = vand.u32 %v3696, 4294901760
    %v3698 = vsub.f32 %v3696, %v3697
    %v3699 = vand.u32 %v3698, 4294901760
    %3700 = vmatpush1.msra.mxu0 %v3699
    %3701 = vmatprep.subr.mxu0 0.0
    %v3702 = vand.u32 %v2744, 4294901760
    %v3703 = vsub.f32 %v2744, %v3702
    %v3704 = vand.u32 %v3703, 4294901760
    %v3705 = vsub.f32 %v3703, %v3704
    %v3706 = vand.u32 %v3705, 4294901760
    %3707 = vmatpush1.msra.mxu0 %v3706
    %3708 = vmatprep.subr.mxu0 0.0
    %v3709 = vand.u32 %v2743, 4294901760
    %v3710 = vsub.f32 %v2743, %v3709
    %v3711 = vand.u32 %v3710, 4294901760
    %v3712 = vsub.f32 %v3710, %v3711
    %v3713 = vand.u32 %v3712, 4294901760
    %3714 = vmatpush1.msra.mxu0 %v3713
    %3715 = vmatprep.subr.mxu0 0.0
    %v3716 = vand.u32 %v2742, 4294901760
    %v3717 = vsub.f32 %v2742, %v3716
    %v3718 = vand.u32 %v3717, 4294901760
    %v3719 = vsub.f32 %v3717, %v3718
    %v3720 = vand.u32 %v3719, 4294901760
    %3721 = vmatpush1.msra.mxu0 %v3720
    %3722 = vmatprep.subr.mxu0 0.0
    %v3723 = vand.u32 %v2741, 4294901760
    %v3724 = vsub.f32 %v2741, %v3723
    %v3725 = vand.u32 %v3724, 4294901760
    %v3726 = vsub.f32 %v3724, %v3725
    %v3727 = vand.u32 %v3726, 4294901760
    %3728 = vmatpush1.msra.mxu0 %v3727
    %3729 = vmatprep.subr.mxu0 0.0
    %v3730 = vand.u32 %v2740, 4294901760
    %v3731 = vsub.f32 %v2740, %v3730
    %v3732 = vand.u32 %v3731, 4294901760
    %v3733 = vsub.f32 %v3731, %v3732
    %v3734 = vand.u32 %v3733, 4294901760
    %3735 = vmatpush1.msra.mxu0 %v3734
    %3736 = vmatprep.subr.mxu0 0.0
    %v3737 = vand.u32 %v2739, 4294901760
    %v3738 = vsub.f32 %v2739, %v3737
    %v3739 = vand.u32 %v3738, 4294901760
    %v3740 = vsub.f32 %v3738, %v3739
    %v3741 = vand.u32 %v3740, 4294901760
    %3742 = vmatpush1.msra.mxu0 %v3741
    %3743 = vmatprep.subr.mxu0 0.0
    %v3744 = vand.u32 %v2738, 4294901760
    %v3745 = vsub.f32 %v2738, %v3744
    %v3746 = vand.u32 %v3745, 4294901760
    %v3747 = vsub.f32 %v3745, %v3746
    %v3748 = vand.u32 %v3747, 4294901760
    %3749 = vmatpush1.msra.mxu0 %v3748
    %3750 = vmatprep.subr.mxu0 0.0
    %v3751 = vand.u32 %v2737, 4294901760
    %v3752 = vsub.f32 %v2737, %v3751
    %v3753 = vand.u32 %v3752, 4294901760
    %v3754 = vsub.f32 %v3752, %v3753
    %v3755 = vand.u32 %v3754, 4294901760
    %3756 = vmatpush1.msra.mxu0 %v3755
    %3757 = vmatprep.subr.mxu0 0.0
    %v3758 = vand.u32 %v2736, 4294901760
    %v3759 = vsub.f32 %v2736, %v3758
    %v3760 = vand.u32 %v3759, 4294901760
    %v3761 = vsub.f32 %v3759, %v3760
    %v3762 = vand.u32 %v3761, 4294901760
    %3763 = vmatpush1.msra.mxu0 %v3762
    %3764 = vmatprep.subr.mxu0 0.0
    %v3765 = vand.u32 %v2735, 4294901760
    %v3766 = vsub.f32 %v2735, %v3765
    %v3767 = vand.u32 %v3766, 4294901760
    %v3768 = vsub.f32 %v3766, %v3767
    %v3769 = vand.u32 %v3768, 4294901760
    %3770 = vmatpush1.msra.mxu0 %v3769
    %3771 = vmatprep.subr.mxu0 0.0
    %3772 = vmatpush2.msra.mxu0 0.0
    %3773 = vmatprep.subr.mxu0 0.0
    %3774 = vmatpush2.msra.mxu0 0.0
    %3775 = vmatprep.subr.mxu0 0.0
    %3776 = vmatpush2.msra.mxu0 0.0
    %3777 = vmatprep.subr.mxu0 0.0
    %3778 = vmatpush2.msra.mxu0 0.0
    %3779 = vmatprep.subr.mxu0 0.0
    %3780 = vmatpush2.msra.mxu0 0.0
    %3781 = vmatprep.subr.mxu0 0.0
    %3782 = vmatpush2.msra.mxu0 0.0
    %3783 = vmatprep.subr.mxu0 0.0
    %3784 = vmatpush2.msra.mxu0 0.0
    %3785 = vmatprep.subr.mxu0 0.0
    %3786 = vmatpush2.msra.mxu0 0.0
    %3787 = vmatprep.subr.mxu0 0.0
    %3788 = vmatpush2.msra.mxu0 0.0
    %3789 = vmatprep.subr.mxu0 0.0
    %3790 = vmatpush2.msra.mxu0 0.0
    %3791 = vmatprep.subr.mxu0 0.0
    %3792 = vmatpush2.msra.mxu0 0.0
    %3793 = vmatprep.subr.mxu0 0.0
    %3794 = vmatpush2.msra.mxu0 0.0
    %3795 = vmatprep.subr.mxu0 0.0
    %3796 = vmatpush2.msra.mxu0 0.0
    %3797 = vmatprep.subr.mxu0 0.0
    %3798 = vmatpush2.msra.mxu0 0.0
    %3799 = vmatprep.subr.mxu0 0.0
    %3800 = vmatpush2.msra.mxu0 0.0
    %3801 = vmatprep.subr.mxu0 0.0
    %3802 = vmatpush2.msra.mxu0 0.0
    %3803 = vmatprep.mubr.f32.mxu0 0.0
    %v3804 = vand.u32 %v2088, 4294901760
    %3805 = vmatmul.mubr.f32.gmra.mxu0 %v3804
    %v3806 = vpop.f32.mrf.mxu0
    %v3807 = vadd.f32 %v3626, %v3806
    %v3808 = vpop.f32.mrf.mxu0
    %3809 = vmatprep.mubr.f32.mxu0 0.0
    %v3810 = vand.u32 %v2094, 4294901760
    %3811 = vmatmul.mubr.f32.gmra.mxu0 %v3810
    %v3812 = vpop.f32.mrf.mxu0
    %v3813 = vadd.f32 %v3636, %v3812
    %v3814 = vpop.f32.mrf.mxu0
    %3815 = vmatprep.mubr.f32.mxu0 0.0
    %v3816 = vand.u32 %v2100, 4294901760
    %3817 = vmatmul.mubr.f32.gmra.mxu0 %v3816
    %v3818 = vpop.f32.mrf.mxu0
    %v3819 = vadd.f32 %v3646, %v3818
    %v3820 = vpop.f32.mrf.mxu0
    %3821 = vmatprep.mubr.f32.mxu0 0.0
    %v3822 = vand.u32 %v2106, 4294901760
    %3823 = vmatmul.mubr.f32.gmra.mxu0 %v3822
    %v3824 = vpop.f32.mrf.mxu0
    %v3825 = vadd.f32 %v3656, %v3824
    %v3826 = vpop.f32.mrf.mxu0
    %3827 = vdwg.mxu0
    %3828 = vmatprep.subr.mxu0 0.0
    %v3829 = vand.u32 %v2750, 4294901760
    %v3830 = vsub.f32 %v2750, %v3829
    %3831 = vmatpush1.msra.mxu0 %v3830
    %3832 = vmatprep.subr.mxu0 0.0
    %v3833 = vand.u32 %v2749, 4294901760
    %v3834 = vsub.f32 %v2749, %v3833
    %3835 = vmatpush1.msra.mxu0 %v3834
    %3836 = vmatprep.subr.mxu0 0.0
    %v3837 = vand.u32 %v2748, 4294901760
    %v3838 = vsub.f32 %v2748, %v3837
    %3839 = vmatpush1.msra.mxu0 %v3838
    %3840 = vmatprep.subr.mxu0 0.0
    %v3841 = vand.u32 %v2747, 4294901760
    %v3842 = vsub.f32 %v2747, %v3841
    %3843 = vmatpush1.msra.mxu0 %v3842
    %3844 = vmatprep.subr.mxu0 0.0
    %v3845 = vand.u32 %v2746, 4294901760
    %v3846 = vsub.f32 %v2746, %v3845
    %3847 = vmatpush1.msra.mxu0 %v3846
    %3848 = vmatprep.subr.mxu0 0.0
    %v3849 = vand.u32 %v2745, 4294901760
    %v3850 = vsub.f32 %v2745, %v3849
    %3851 = vmatpush1.msra.mxu0 %v3850
    %3852 = vmatprep.subr.mxu0 0.0
    %v3853 = vand.u32 %v2744, 4294901760
    %v3854 = vsub.f32 %v2744, %v3853
    %3855 = vmatpush1.msra.mxu0 %v3854
    %3856 = vmatprep.subr.mxu0 0.0
    %v3857 = vand.u32 %v2743, 4294901760
    %v3858 = vsub.f32 %v2743, %v3857
    %3859 = vmatpush1.msra.mxu0 %v3858
    %3860 = vmatprep.subr.mxu0 0.0
    %v3861 = vand.u32 %v2742, 4294901760
    %v3862 = vsub.f32 %v2742, %v3861
    %3863 = vmatpush1.msra.mxu0 %v3862
    %3864 = vmatprep.subr.mxu0 0.0
    %v3865 = vand.u32 %v2741, 4294901760
    %v3866 = vsub.f32 %v2741, %v3865
    %3867 = vmatpush1.msra.mxu0 %v3866
    %3868 = vmatprep.subr.mxu0 0.0
    %v3869 = vand.u32 %v2740, 4294901760
    %v3870 = vsub.f32 %v2740, %v3869
    %3871 = vmatpush1.msra.mxu0 %v3870
    %3872 = vmatprep.subr.mxu0 0.0
    %v3873 = vand.u32 %v2739, 4294901760
    %v3874 = vsub.f32 %v2739, %v3873
    %3875 = vmatpush1.msra.mxu0 %v3874
    %3876 = vmatprep.subr.mxu0 0.0
    %v3877 = vand.u32 %v2738, 4294901760
    %v3878 = vsub.f32 %v2738, %v3877
    %3879 = vmatpush1.msra.mxu0 %v3878
    %3880 = vmatprep.subr.mxu0 0.0
    %v3881 = vand.u32 %v2737, 4294901760
    %v3882 = vsub.f32 %v2737, %v3881
    %3883 = vmatpush1.msra.mxu0 %v3882
    %3884 = vmatprep.subr.mxu0 0.0
    %v3885 = vand.u32 %v2736, 4294901760
    %v3886 = vsub.f32 %v2736, %v3885
    %3887 = vmatpush1.msra.mxu0 %v3886
    %3888 = vmatprep.subr.mxu0 0.0
    %v3889 = vand.u32 %v2735, 4294901760
    %v3890 = vsub.f32 %v2735, %v3889
    %3891 = vmatpush1.msra.mxu0 %v3890
    %3892 = vmatprep.subr.mxu0 0.0
    %3893 = vmatpush2.msra.mxu0 0.0
    %3894 = vmatprep.subr.mxu0 0.0
    %3895 = vmatpush2.msra.mxu0 0.0
    %3896 = vmatprep.subr.mxu0 0.0
    %3897 = vmatpush2.msra.mxu0 0.0
    %3898 = vmatprep.subr.mxu0 0.0
    %3899 = vmatpush2.msra.mxu0 0.0
    %3900 = vmatprep.subr.mxu0 0.0
    %3901 = vmatpush2.msra.mxu0 0.0
    %3902 = vmatprep.subr.mxu0 0.0
    %3903 = vmatpush2.msra.mxu0 0.0
    %3904 = vmatprep.subr.mxu0 0.0
    %3905 = vmatpush2.msra.mxu0 0.0
    %3906 = vmatprep.subr.mxu0 0.0
    %3907 = vmatpush2.msra.mxu0 0.0
    %3908 = vmatprep.subr.mxu0 0.0
    %3909 = vmatpush2.msra.mxu0 0.0
    %3910 = vmatprep.subr.mxu0 0.0
    %3911 = vmatpush2.msra.mxu0 0.0
    %3912 = vmatprep.subr.mxu0 0.0
    %3913 = vmatpush2.msra.mxu0 0.0
    %3914 = vmatprep.subr.mxu0 0.0
    %3915 = vmatpush2.msra.mxu0 0.0
    %3916 = vmatprep.subr.mxu0 0.0
    %3917 = vmatpush2.msra.mxu0 0.0
    %3918 = vmatprep.subr.mxu0 0.0
    %3919 = vmatpush2.msra.mxu0 0.0
    %3920 = vmatprep.subr.mxu0 0.0
    %3921 = vmatpush2.msra.mxu0 0.0
    %3922 = vmatprep.subr.mxu0 0.0
    %3923 = vmatpush2.msra.mxu0 0.0
    %3924 = vmatprep.mubr.f32.mxu0 0.0
    %v3925 = vand.u32 %v2088, 4294901760
    %v3926 = vsub.f32 %v2088, %v3925
    %3927 = vmatmul.mubr.f32.gmra.mxu0 %v3926
    %v3928 = vpop.f32.mrf.mxu0
    %v3929 = vadd.f32 %v3807, %v3928
    %v3930 = vpop.f32.mrf.mxu0
    %3931 = vmatprep.mubr.f32.mxu0 0.0
    %v3932 = vand.u32 %v2094, 4294901760
    %v3933 = vsub.f32 %v2094, %v3932
    %3934 = vmatmul.mubr.f32.gmra.mxu0 %v3933
    %v3935 = vpop.f32.mrf.mxu0
    %v3936 = vadd.f32 %v3813, %v3935
    %v3937 = vpop.f32.mrf.mxu0
    %3938 = vmatprep.mubr.f32.mxu0 0.0
    %v3939 = vand.u32 %v2100, 4294901760
    %v3940 = vsub.f32 %v2100, %v3939
    %3941 = vmatmul.mubr.f32.gmra.mxu0 %v3940
    %v3942 = vpop.f32.mrf.mxu0
    %v3943 = vadd.f32 %v3819, %v3942
    %v3944 = vpop.f32.mrf.mxu0
    %3945 = vmatprep.mubr.f32.mxu0 0.0
    %v3946 = vand.u32 %v2106, 4294901760
    %v3947 = vsub.f32 %v2106, %v3946
    %3948 = vmatmul.mubr.f32.gmra.mxu0 %v3947
    %v3949 = vpop.f32.mrf.mxu0
    %v3950 = vadd.f32 %v3825, %v3949
    %v3951 = vpop.f32.mrf.mxu0
    %3952 = vdwg.mxu0
    %3953 = vmatprep.subr.mxu0 0.0
    %v3954 = vand.u32 %v2750, 4294901760
    %3955 = vmatpush1.msra.mxu0 %v3954
    %3956 = vmatprep.subr.mxu0 0.0
    %v3957 = vand.u32 %v2749, 4294901760
    %3958 = vmatpush1.msra.mxu0 %v3957
    %3959 = vmatprep.subr.mxu0 0.0
    %v3960 = vand.u32 %v2748, 4294901760
    %3961 = vmatpush1.msra.mxu0 %v3960
    %3962 = vmatprep.subr.mxu0 0.0
    %v3963 = vand.u32 %v2747, 4294901760
    %3964 = vmatpush1.msra.mxu0 %v3963
    %3965 = vmatprep.subr.mxu0 0.0
    %v3966 = vand.u32 %v2746, 4294901760
    %3967 = vmatpush1.msra.mxu0 %v3966
    %3968 = vmatprep.subr.mxu0 0.0
    %v3969 = vand.u32 %v2745, 4294901760
    %3970 = vmatpush1.msra.mxu0 %v3969
    %3971 = vmatprep.subr.mxu0 0.0
    %v3972 = vand.u32 %v2744, 4294901760
    %3973 = vmatpush1.msra.mxu0 %v3972
    %3974 = vmatprep.subr.mxu0 0.0
    %v3975 = vand.u32 %v2743, 4294901760
    %3976 = vmatpush1.msra.mxu0 %v3975
    %3977 = vmatprep.subr.mxu0 0.0
    %v3978 = vand.u32 %v2742, 4294901760
    %3979 = vmatpush1.msra.mxu0 %v3978
    %3980 = vmatprep.subr.mxu0 0.0
    %v3981 = vand.u32 %v2741, 4294901760
    %3982 = vmatpush1.msra.mxu0 %v3981
    %3983 = vmatprep.subr.mxu0 0.0
    %v3984 = vand.u32 %v2740, 4294901760
    %3985 = vmatpush1.msra.mxu0 %v3984
    %3986 = vmatprep.subr.mxu0 0.0
    %v3987 = vand.u32 %v2739, 4294901760
    %3988 = vmatpush1.msra.mxu0 %v3987
    %3989 = vmatprep.subr.mxu0 0.0
    %v3990 = vand.u32 %v2738, 4294901760
    %3991 = vmatpush1.msra.mxu0 %v3990
    %3992 = vmatprep.subr.mxu0 0.0
    %v3993 = vand.u32 %v2737, 4294901760
    %3994 = vmatpush1.msra.mxu0 %v3993
    %3995 = vmatprep.subr.mxu0 0.0
    %v3996 = vand.u32 %v2736, 4294901760
    %3997 = vmatpush1.msra.mxu0 %v3996
    %3998 = vmatprep.subr.mxu0 0.0
    %v3999 = vand.u32 %v2735, 4294901760
    %4000 = vmatpush1.msra.mxu0 %v3999
    %4001 = vmatprep.subr.mxu0 0.0
    %4002 = vmatpush2.msra.mxu0 0.0
    %4003 = vmatprep.subr.mxu0 0.0
    %4004 = vmatpush2.msra.mxu0 0.0
    %4005 = vmatprep.subr.mxu0 0.0
    %4006 = vmatpush2.msra.mxu0 0.0
    %4007 = vmatprep.subr.mxu0 0.0
    %4008 = vmatpush2.msra.mxu0 0.0
    %4009 = vmatprep.subr.mxu0 0.0
    %4010 = vmatpush2.msra.mxu0 0.0
    %4011 = vmatprep.subr.mxu0 0.0
    %4012 = vmatpush2.msra.mxu0 0.0
    %4013 = vmatprep.subr.mxu0 0.0
    %4014 = vmatpush2.msra.mxu0 0.0
    %4015 = vmatprep.subr.mxu0 0.0
    %4016 = vmatpush2.msra.mxu0 0.0
    %4017 = vmatprep.subr.mxu0 0.0
    %4018 = vmatpush2.msra.mxu0 0.0
    %4019 = vmatprep.subr.mxu0 0.0
    %4020 = vmatpush2.msra.mxu0 0.0
    %4021 = vmatprep.subr.mxu0 0.0
    %4022 = vmatpush2.msra.mxu0 0.0
    %4023 = vmatprep.subr.mxu0 0.0
    %4024 = vmatpush2.msra.mxu0 0.0
    %4025 = vmatprep.subr.mxu0 0.0
    %4026 = vmatpush2.msra.mxu0 0.0
    %4027 = vmatprep.subr.mxu0 0.0
    %4028 = vmatpush2.msra.mxu0 0.0
    %4029 = vmatprep.subr.mxu0 0.0
    %4030 = vmatpush2.msra.mxu0 0.0
    %4031 = vmatprep.subr.mxu0 0.0
    %4032 = vmatpush2.msra.mxu0 0.0
    %4033 = vmatprep.mubr.f32.mxu0 0.0
    %v4034 = vand.u32 %v2088, 4294901760
    %v4035 = vsub.f32 %v2088, %v4034
    %v4036 = vand.u32 %v4035, 4294901760
    %4037 = vmatmul.mubr.f32.gmra.mxu0 %v4036
    %v4038 = vpop.f32.mrf.mxu0
    %v4039 = vadd.f32 %v3929, %v4038
    %v4040 = vpop.f32.mrf.mxu0
    %4041 = vmatprep.mubr.f32.mxu0 0.0
    %v4042 = vand.u32 %v2094, 4294901760
    %v4043 = vsub.f32 %v2094, %v4042
    %v4044 = vand.u32 %v4043, 4294901760
    %4045 = vmatmul.mubr.f32.gmra.mxu0 %v4044
    %v4046 = vpop.f32.mrf.mxu0
    %v4047 = vadd.f32 %v3936, %v4046
    %v4048 = vpop.f32.mrf.mxu0
    %4049 = vmatprep.mubr.f32.mxu0 0.0
    %v4050 = vand.u32 %v2100, 4294901760
    %v4051 = vsub.f32 %v2100, %v4050
    %v4052 = vand.u32 %v4051, 4294901760
    %4053 = vmatmul.mubr.f32.gmra.mxu0 %v4052
    %v4054 = vpop.f32.mrf.mxu0
    %v4055 = vadd.f32 %v3943, %v4054
    %v4056 = vpop.f32.mrf.mxu0
    %4057 = vmatprep.mubr.f32.mxu0 0.0
    %v4058 = vand.u32 %v2106, 4294901760
    %v4059 = vsub.f32 %v2106, %v4058
    %v4060 = vand.u32 %v4059, 4294901760
    %4061 = vmatmul.mubr.f32.gmra.mxu0 %v4060
    %v4062 = vpop.f32.mrf.mxu0
    %v4063 = vadd.f32 %v3950, %v4062
    %v4064 = vpop.f32.mrf.mxu0
    %4065 = vdwg.mxu0
    %4066 = vmatprep.subr.mxu0 0.0
    %v4067 = vand.u32 %v2750, 4294901760
    %v4068 = vsub.f32 %v2750, %v4067
    %v4069 = vand.u32 %v4068, 4294901760
    %4070 = vmatpush1.msra.mxu0 %v4069
    %4071 = vmatprep.subr.mxu0 0.0
    %v4072 = vand.u32 %v2749, 4294901760
    %v4073 = vsub.f32 %v2749, %v4072
    %v4074 = vand.u32 %v4073, 4294901760
    %4075 = vmatpush1.msra.mxu0 %v4074
    %4076 = vmatprep.subr.mxu0 0.0
    %v4077 = vand.u32 %v2748, 4294901760
    %v4078 = vsub.f32 %v2748, %v4077
    %v4079 = vand.u32 %v4078, 4294901760
    %4080 = vmatpush1.msra.mxu0 %v4079
    %4081 = vmatprep.subr.mxu0 0.0
    %v4082 = vand.u32 %v2747, 4294901760
    %v4083 = vsub.f32 %v2747, %v4082
    %v4084 = vand.u32 %v4083, 4294901760
    %4085 = vmatpush1.msra.mxu0 %v4084
    %4086 = vmatprep.subr.mxu0 0.0
    %v4087 = vand.u32 %v2746, 4294901760
    %v4088 = vsub.f32 %v2746, %v4087
    %v4089 = vand.u32 %v4088, 4294901760
    %4090 = vmatpush1.msra.mxu0 %v4089
    %4091 = vmatprep.subr.mxu0 0.0
    %v4092 = vand.u32 %v2745, 4294901760
    %v4093 = vsub.f32 %v2745, %v4092
    %v4094 = vand.u32 %v4093, 4294901760
    %4095 = vmatpush1.msra.mxu0 %v4094
    %4096 = vmatprep.subr.mxu0 0.0
    %v4097 = vand.u32 %v2744, 4294901760
    %v4098 = vsub.f32 %v2744, %v4097
    %v4099 = vand.u32 %v4098, 4294901760
    %4100 = vmatpush1.msra.mxu0 %v4099
    %4101 = vmatprep.subr.mxu0 0.0
    %v4102 = vand.u32 %v2743, 4294901760
    %v4103 = vsub.f32 %v2743, %v4102
    %v4104 = vand.u32 %v4103, 4294901760
    %4105 = vmatpush1.msra.mxu0 %v4104
    %4106 = vmatprep.subr.mxu0 0.0
    %v4107 = vand.u32 %v2742, 4294901760
    %v4108 = vsub.f32 %v2742, %v4107
    %v4109 = vand.u32 %v4108, 4294901760
    %4110 = vmatpush1.msra.mxu0 %v4109
    %4111 = vmatprep.subr.mxu0 0.0
    %v4112 = vand.u32 %v2741, 4294901760
    %v4113 = vsub.f32 %v2741, %v4112
    %v4114 = vand.u32 %v4113, 4294901760
    %4115 = vmatpush1.msra.mxu0 %v4114
    %4116 = vmatprep.subr.mxu0 0.0
    %v4117 = vand.u32 %v2740, 4294901760
    %v4118 = vsub.f32 %v2740, %v4117
    %v4119 = vand.u32 %v4118, 4294901760
    %4120 = vmatpush1.msra.mxu0 %v4119
    %4121 = vmatprep.subr.mxu0 0.0
    %v4122 = vand.u32 %v2739, 4294901760
    %v4123 = vsub.f32 %v2739, %v4122
    %v4124 = vand.u32 %v4123, 4294901760
    %4125 = vmatpush1.msra.mxu0 %v4124
    %4126 = vmatprep.subr.mxu0 0.0
    %v4127 = vand.u32 %v2738, 4294901760
    %v4128 = vsub.f32 %v2738, %v4127
    %v4129 = vand.u32 %v4128, 4294901760
    %4130 = vmatpush1.msra.mxu0 %v4129
    %4131 = vmatprep.subr.mxu0 0.0
    %v4132 = vand.u32 %v2737, 4294901760
    %v4133 = vsub.f32 %v2737, %v4132
    %v4134 = vand.u32 %v4133, 4294901760
    %4135 = vmatpush1.msra.mxu0 %v4134
    %4136 = vmatprep.subr.mxu0 0.0
    %v4137 = vand.u32 %v2736, 4294901760
    %v4138 = vsub.f32 %v2736, %v4137
    %v4139 = vand.u32 %v4138, 4294901760
    %4140 = vmatpush1.msra.mxu0 %v4139
    %4141 = vmatprep.subr.mxu0 0.0
    %v4142 = vand.u32 %v2735, 4294901760
    %v4143 = vsub.f32 %v2735, %v4142
    %v4144 = vand.u32 %v4143, 4294901760
    %4145 = vmatpush1.msra.mxu0 %v4144
    %4146 = vmatprep.subr.mxu0 0.0
    %4147 = vmatpush2.msra.mxu0 0.0
    %4148 = vmatprep.subr.mxu0 0.0
    %4149 = vmatpush2.msra.mxu0 0.0
    %4150 = vmatprep.subr.mxu0 0.0
    %4151 = vmatpush2.msra.mxu0 0.0
    %4152 = vmatprep.subr.mxu0 0.0
    %4153 = vmatpush2.msra.mxu0 0.0
    %4154 = vmatprep.subr.mxu0 0.0
    %4155 = vmatpush2.msra.mxu0 0.0
    %4156 = vmatprep.subr.mxu0 0.0
    %4157 = vmatpush2.msra.mxu0 0.0
    %4158 = vmatprep.subr.mxu0 0.0
    %4159 = vmatpush2.msra.mxu0 0.0
    %4160 = vmatprep.subr.mxu0 0.0
    %4161 = vmatpush2.msra.mxu0 0.0
    %4162 = vmatprep.subr.mxu0 0.0
    %4163 = vmatpush2.msra.mxu0 0.0
    %4164 = vmatprep.subr.mxu0 0.0
    %4165 = vmatpush2.msra.mxu0 0.0
    %4166 = vmatprep.subr.mxu0 0.0
    %4167 = vmatpush2.msra.mxu0 0.0
    %4168 = vmatprep.subr.mxu0 0.0
    %4169 = vmatpush2.msra.mxu0 0.0
    %4170 = vmatprep.subr.mxu0 0.0
    %4171 = vmatpush2.msra.mxu0 0.0
    %4172 = vmatprep.subr.mxu0 0.0
    %4173 = vmatpush2.msra.mxu0 0.0
    %4174 = vmatprep.subr.mxu0 0.0
    %4175 = vmatpush2.msra.mxu0 0.0
    %4176 = vmatprep.subr.mxu0 0.0
    %4177 = vmatpush2.msra.mxu0 0.0
    %4178 = vmatprep.mubr.f32.mxu0 0.0
    %v4179 = vand.u32 %v2088, 4294901760
    %4180 = vmatmul.mubr.f32.gmra.mxu0 %v4179
    %v4181 = vpop.f32.mrf.mxu0
    %v4182 = vadd.f32 %v4039, %v4181
    %v4183 = vpop.f32.mrf.mxu0
    %4184 = vmatprep.mubr.f32.mxu0 0.0
    %v4185 = vand.u32 %v2094, 4294901760
    %4186 = vmatmul.mubr.f32.gmra.mxu0 %v4185
    %v4187 = vpop.f32.mrf.mxu0
    %v4188 = vadd.f32 %v4047, %v4187
    %v4189 = vpop.f32.mrf.mxu0
    %4190 = vmatprep.mubr.f32.mxu0 0.0
    %v4191 = vand.u32 %v2100, 4294901760
    %4192 = vmatmul.mubr.f32.gmra.mxu0 %v4191
    %v4193 = vpop.f32.mrf.mxu0
    %v4194 = vadd.f32 %v4055, %v4193
    %v4195 = vpop.f32.mrf.mxu0
    %4196 = vmatprep.mubr.f32.mxu0 0.0
    %v4197 = vand.u32 %v2106, 4294901760
    %4198 = vmatmul.mubr.f32.gmra.mxu0 %v4197
    %v4199 = vpop.f32.mrf.mxu0
    %v4200 = vadd.f32 %v4063, %v4199
    %v4201 = vpop.f32.mrf.mxu0
    %4202 = vdwg.mxu0
    %4203 = vmatprep.subr.mxu0 0.0
    %v4204 = vand.u32 %v2750, 4294901760
    %4205 = vmatpush1.msra.mxu0 %v4204
    %4206 = vmatprep.subr.mxu0 0.0
    %v4207 = vand.u32 %v2749, 4294901760
    %4208 = vmatpush1.msra.mxu0 %v4207
    %4209 = vmatprep.subr.mxu0 0.0
    %v4210 = vand.u32 %v2748, 4294901760
    %4211 = vmatpush1.msra.mxu0 %v4210
    %4212 = vmatprep.subr.mxu0 0.0
    %v4213 = vand.u32 %v2747, 4294901760
    %4214 = vmatpush1.msra.mxu0 %v4213
    %4215 = vmatprep.subr.mxu0 0.0
    %v4216 = vand.u32 %v2746, 4294901760
    %4217 = vmatpush1.msra.mxu0 %v4216
    %4218 = vmatprep.subr.mxu0 0.0
    %v4219 = vand.u32 %v2745, 4294901760
    %4220 = vmatpush1.msra.mxu0 %v4219
    %4221 = vmatprep.subr.mxu0 0.0
    %v4222 = vand.u32 %v2744, 4294901760
    %4223 = vmatpush1.msra.mxu0 %v4222
    %4224 = vmatprep.subr.mxu0 0.0
    %v4225 = vand.u32 %v2743, 4294901760
    %4226 = vmatpush1.msra.mxu0 %v4225
    %4227 = vmatprep.subr.mxu0 0.0
    %v4228 = vand.u32 %v2742, 4294901760
    %4229 = vmatpush1.msra.mxu0 %v4228
    %4230 = vmatprep.subr.mxu0 0.0
    %v4231 = vand.u32 %v2741, 4294901760
    %4232 = vmatpush1.msra.mxu0 %v4231
    %4233 = vmatprep.subr.mxu0 0.0
    %v4234 = vand.u32 %v2740, 4294901760
    %4235 = vmatpush1.msra.mxu0 %v4234
    %4236 = vmatprep.subr.mxu0 0.0
    %v4237 = vand.u32 %v2739, 4294901760
    %4238 = vmatpush1.msra.mxu0 %v4237
    %4239 = vmatprep.subr.mxu0 0.0
    %v4240 = vand.u32 %v2738, 4294901760
    %4241 = vmatpush1.msra.mxu0 %v4240
    %4242 = vmatprep.subr.mxu0 0.0
    %v4243 = vand.u32 %v2737, 4294901760
    %4244 = vmatpush1.msra.mxu0 %v4243
    %4245 = vmatprep.subr.mxu0 0.0
    %v4246 = vand.u32 %v2736, 4294901760
    %4247 = vmatpush1.msra.mxu0 %v4246
    %4248 = vmatprep.subr.mxu0 0.0
    %v4249 = vand.u32 %v2735, 4294901760
    %4250 = vmatpush1.msra.mxu0 %v4249
    %4251 = vmatprep.subr.mxu0 0.0
    %4252 = vmatpush2.msra.mxu0 0.0
    %4253 = vmatprep.subr.mxu0 0.0
    %4254 = vmatpush2.msra.mxu0 0.0
    %4255 = vmatprep.subr.mxu0 0.0
    %4256 = vmatpush2.msra.mxu0 0.0
    %4257 = vmatprep.subr.mxu0 0.0
    %4258 = vmatpush2.msra.mxu0 0.0
    %4259 = vmatprep.subr.mxu0 0.0
    %4260 = vmatpush2.msra.mxu0 0.0
    %4261 = vmatprep.subr.mxu0 0.0
    %4262 = vmatpush2.msra.mxu0 0.0
    %4263 = vmatprep.subr.mxu0 0.0
    %4264 = vmatpush2.msra.mxu0 0.0
    %4265 = vmatprep.subr.mxu0 0.0
    %4266 = vmatpush2.msra.mxu0 0.0
    %4267 = vmatprep.subr.mxu0 0.0
    %4268 = vmatpush2.msra.mxu0 0.0
    %4269 = vmatprep.subr.mxu0 0.0
    %4270 = vmatpush2.msra.mxu0 0.0
    %4271 = vmatprep.subr.mxu0 0.0
    %4272 = vmatpush2.msra.mxu0 0.0
    %4273 = vmatprep.subr.mxu0 0.0
    %4274 = vmatpush2.msra.mxu0 0.0
    %4275 = vmatprep.subr.mxu0 0.0
    %4276 = vmatpush2.msra.mxu0 0.0
    %4277 = vmatprep.subr.mxu0 0.0
    %4278 = vmatpush2.msra.mxu0 0.0
    %4279 = vmatprep.subr.mxu0 0.0
    %4280 = vmatpush2.msra.mxu0 0.0
    %4281 = vmatprep.subr.mxu0 0.0
    %4282 = vmatpush2.msra.mxu0 0.0
    %4283 = vmatprep.mubr.f32.mxu0 0.0
    %v4284 = vand.u32 %v2088, 4294901760
    %4285 = vmatmul.mubr.f32.gmra.mxu0 %v4284
    %v4286 = vpop.f32.mrf.mxu0
    %v4287 = vadd.f32 %v4182, %v4286
    %v4288 = vpop.f32.mrf.mxu0
    %4289 = vmatprep.mubr.f32.mxu0 0.0
    %v4290 = vand.u32 %v2094, 4294901760
    %4291 = vmatmul.mubr.f32.gmra.mxu0 %v4290
    %v4292 = vpop.f32.mrf.mxu0
    %v4293 = vadd.f32 %v4188, %v4292
    %v4294 = vpop.f32.mrf.mxu0
    %4295 = vmatprep.mubr.f32.mxu0 0.0
    %v4296 = vand.u32 %v2100, 4294901760
    %4297 = vmatmul.mubr.f32.gmra.mxu0 %v4296
    %v4298 = vpop.f32.mrf.mxu0
    %v4299 = vadd.f32 %v4194, %v4298
    %v4300 = vpop.f32.mrf.mxu0
    %4301 = vmatprep.mubr.f32.mxu0 0.0
    %v4302 = vand.u32 %v2106, 4294901760
    %4303 = vmatmul.mubr.f32.gmra.mxu0 %v4302
    %v4304 = vpop.f32.mrf.mxu0
    %v4305 = vadd.f32 %v4200, %v4304
    %v4306 = vpop.f32.mrf.mxu0
    %4307 = vdwg.mxu0
    %s4308 = scalar_lea.vmem [#allocation5], 256
    %v4309 = vld [vmem:[%s4308] sm:$0xff]
    %v4310 = vld [vmem:[%s4308 + $0x8] sm:$0xff]
    %v4311 = vld [vmem:[%s4308 + $0x10] sm:$0xff]
    %v4312 = vld [vmem:[%s4308 + $0x18] sm:$0xff]
    %v4313 = vld [vmem:[%s4308 + $0x20] sm:$0xff]
    %v4314 = vld [vmem:[%s4308 + $0x28] sm:$0xff]
    %v4315 = vld [vmem:[%s4308 + $0x30] sm:$0xff]
    %v4316 = vld [vmem:[%s4308 + $0x38] sm:$0xff]
    %v4317 = vld [vmem:[%s4308 + $0x40] sm:$0xff]
    %v4318 = vld [vmem:[%s4308 + $0x48] sm:$0xff]
    %v4319 = vld [vmem:[%s4308 + $0x50] sm:$0xff]
    %v4320 = vld [vmem:[%s4308 + $0x58] sm:$0xff]
    %v4321 = vld [vmem:[%s4308 + $0x60] sm:$0xff]
    %v4322 = vld [vmem:[%s4308 + $0x68] sm:$0xff]
    %v4323 = vld [vmem:[%s4308 + $0x70] sm:$0xff]
    %v4324 = vld [vmem:[%s4308 + $0x78] sm:$0xff]
    %4325 = vmatprep.subr.mxu0 0.0
    %v4326 = vand.u32 %v4324, 4294901760
    %4327 = vmatpush1.msra.mxu0 %v4326
    %4328 = vmatprep.subr.mxu0 0.0
    %v4329 = vand.u32 %v4323, 4294901760
    %4330 = vmatpush1.msra.mxu0 %v4329
    %4331 = vmatprep.subr.mxu0 0.0
    %v4332 = vand.u32 %v4322, 4294901760
    %4333 = vmatpush1.msra.mxu0 %v4332
    %4334 = vmatprep.subr.mxu0 0.0
    %v4335 = vand.u32 %v4321, 4294901760
    %4336 = vmatpush1.msra.mxu0 %v4335
    %4337 = vmatprep.subr.mxu0 0.0
    %v4338 = vand.u32 %v4320, 4294901760
    %4339 = vmatpush1.msra.mxu0 %v4338
    %4340 = vmatprep.subr.mxu0 0.0
    %v4341 = vand.u32 %v4319, 4294901760
    %4342 = vmatpush1.msra.mxu0 %v4341
    %4343 = vmatprep.subr.mxu0 0.0
    %v4344 = vand.u32 %v4318, 4294901760
    %4345 = vmatpush1.msra.mxu0 %v4344
    %4346 = vmatprep.subr.mxu0 0.0
    %v4347 = vand.u32 %v4317, 4294901760
    %4348 = vmatpush1.msra.mxu0 %v4347
    %4349 = vmatprep.subr.mxu0 0.0
    %v4350 = vand.u32 %v4316, 4294901760
    %4351 = vmatpush1.msra.mxu0 %v4350
    %4352 = vmatprep.subr.mxu0 0.0
    %v4353 = vand.u32 %v4315, 4294901760
    %4354 = vmatpush1.msra.mxu0 %v4353
    %4355 = vmatprep.subr.mxu0 0.0
    %v4356 = vand.u32 %v4314, 4294901760
    %4357 = vmatpush1.msra.mxu0 %v4356
    %4358 = vmatprep.subr.mxu0 0.0
    %v4359 = vand.u32 %v4313, 4294901760
    %4360 = vmatpush1.msra.mxu0 %v4359
    %4361 = vmatprep.subr.mxu0 0.0
    %v4362 = vand.u32 %v4312, 4294901760
    %4363 = vmatpush1.msra.mxu0 %v4362
    %4364 = vmatprep.subr.mxu0 0.0
    %v4365 = vand.u32 %v4311, 4294901760
    %4366 = vmatpush1.msra.mxu0 %v4365
    %4367 = vmatprep.subr.mxu0 0.0
    %v4368 = vand.u32 %v4310, 4294901760
    %4369 = vmatpush1.msra.mxu0 %v4368
    %4370 = vmatprep.subr.mxu0 0.0
    %v4371 = vand.u32 %v4309, 4294901760
    %4372 = vmatpush1.msra.mxu0 %v4371
    %4373 = vmatprep.subr.mxu0 0.0
    %4374 = vmatpush2.msra.mxu0 0.0
    %4375 = vmatprep.subr.mxu0 0.0
    %4376 = vmatpush2.msra.mxu0 0.0
    %4377 = vmatprep.subr.mxu0 0.0
    %4378 = vmatpush2.msra.mxu0 0.0
    %4379 = vmatprep.subr.mxu0 0.0
    %4380 = vmatpush2.msra.mxu0 0.0
    %4381 = vmatprep.subr.mxu0 0.0
    %4382 = vmatpush2.msra.mxu0 0.0
    %4383 = vmatprep.subr.mxu0 0.0
    %4384 = vmatpush2.msra.mxu0 0.0
    %4385 = vmatprep.subr.mxu0 0.0
    %4386 = vmatpush2.msra.mxu0 0.0
    %4387 = vmatprep.subr.mxu0 0.0
    %4388 = vmatpush2.msra.mxu0 0.0
    %4389 = vmatprep.subr.mxu0 0.0
    %4390 = vmatpush2.msra.mxu0 0.0
    %4391 = vmatprep.subr.mxu0 0.0
    %4392 = vmatpush2.msra.mxu0 0.0
    %4393 = vmatprep.subr.mxu0 0.0
    %4394 = vmatpush2.msra.mxu0 0.0
    %4395 = vmatprep.subr.mxu0 0.0
    %4396 = vmatpush2.msra.mxu0 0.0
    %4397 = vmatprep.subr.mxu0 0.0
    %4398 = vmatpush2.msra.mxu0 0.0
    %4399 = vmatprep.subr.mxu0 0.0
    %4400 = vmatpush2.msra.mxu0 0.0
    %4401 = vmatprep.subr.mxu0 0.0
    %4402 = vmatpush2.msra.mxu0 0.0
    %4403 = vmatprep.subr.mxu0 0.0
    %4404 = vmatpush2.msra.mxu0 0.0
    %4405 = vmatprep.mubr.f32.mxu0 0.0
    %v4406 = vand.u32 %v2714, 4294901760
    %v4407 = vsub.f32 %v2714, %v4406
    %v4408 = vand.u32 %v4407, 4294901760
    %v4409 = vsub.f32 %v4407, %v4408
    %v4410 = vand.u32 %v4409, 4294901760
    %4411 = vmatmul.mubr.f32.gmra.mxu0 %v4410
    %v4412 = vpop.f32.mrf.mxu0
    %v4413 = vadd.f32 0.0, %v4412
    %v4414 = vpop.f32.mrf.mxu0
    %4415 = vmatprep.mubr.f32.mxu0 0.0
    %v4416 = vand.u32 %v2720, 4294901760
    %v4417 = vsub.f32 %v2720, %v4416
    %v4418 = vand.u32 %v4417, 4294901760
    %v4419 = vsub.f32 %v4417, %v4418
    %v4420 = vand.u32 %v4419, 4294901760
    %4421 = vmatmul.mubr.f32.gmra.mxu0 %v4420
    %v4422 = vpop.f32.mrf.mxu0
    %v4423 = vadd.f32 0.0, %v4422
    %v4424 = vpop.f32.mrf.mxu0
    %4425 = vmatprep.mubr.f32.mxu0 0.0
    %v4426 = vand.u32 %v2726, 4294901760
    %v4427 = vsub.f32 %v2726, %v4426
    %v4428 = vand.u32 %v4427, 4294901760
    %v4429 = vsub.f32 %v4427, %v4428
    %v4430 = vand.u32 %v4429, 4294901760
    %4431 = vmatmul.mubr.f32.gmra.mxu0 %v4430
    %v4432 = vpop.f32.mrf.mxu0
    %v4433 = vadd.f32 0.0, %v4432
    %v4434 = vpop.f32.mrf.mxu0
    %4435 = vmatprep.mubr.f32.mxu0 0.0
    %v4436 = vand.u32 %v2732, 4294901760
    %v4437 = vsub.f32 %v2732, %v4436
    %v4438 = vand.u32 %v4437, 4294901760
    %v4439 = vsub.f32 %v4437, %v4438
    %v4440 = vand.u32 %v4439, 4294901760
    %4441 = vmatmul.mubr.f32.gmra.mxu0 %v4440
    %v4442 = vpop.f32.mrf.mxu0
    %v4443 = vadd.f32 0.0, %v4442
    %v4444 = vpop.f32.mrf.mxu0
    %4445 = vdwg.mxu0
    %4446 = vmatprep.subr.mxu0 0.0
    %v4447 = vand.u32 %v4324, 4294901760
    %v4448 = vsub.f32 %v4324, %v4447
    %v4449 = vand.u32 %v4448, 4294901760
    %v4450 = vsub.f32 %v4448, %v4449
    %v4451 = vand.u32 %v4450, 4294901760
    %4452 = vmatpush1.msra.mxu0 %v4451
    %4453 = vmatprep.subr.mxu0 0.0
    %v4454 = vand.u32 %v4323, 4294901760
    %v4455 = vsub.f32 %v4323, %v4454
    %v4456 = vand.u32 %v4455, 4294901760
    %v4457 = vsub.f32 %v4455, %v4456
    %v4458 = vand.u32 %v4457, 4294901760
    %4459 = vmatpush1.msra.mxu0 %v4458
    %4460 = vmatprep.subr.mxu0 0.0
    %v4461 = vand.u32 %v4322, 4294901760
    %v4462 = vsub.f32 %v4322, %v4461
    %v4463 = vand.u32 %v4462, 4294901760
    %v4464 = vsub.f32 %v4462, %v4463
    %v4465 = vand.u32 %v4464, 4294901760
    %4466 = vmatpush1.msra.mxu0 %v4465
    %4467 = vmatprep.subr.mxu0 0.0
    %v4468 = vand.u32 %v4321, 4294901760
    %v4469 = vsub.f32 %v4321, %v4468
    %v4470 = vand.u32 %v4469, 4294901760
    %v4471 = vsub.f32 %v4469, %v4470
    %v4472 = vand.u32 %v4471, 4294901760
    %4473 = vmatpush1.msra.mxu0 %v4472
    %4474 = vmatprep.subr.mxu0 0.0
    %v4475 = vand.u32 %v4320, 4294901760
    %v4476 = vsub.f32 %v4320, %v4475
    %v4477 = vand.u32 %v4476, 4294901760
    %v4478 = vsub.f32 %v4476, %v4477
    %v4479 = vand.u32 %v4478, 4294901760
    %4480 = vmatpush1.msra.mxu0 %v4479
    %4481 = vmatprep.subr.mxu0 0.0
    %v4482 = vand.u32 %v4319, 4294901760
    %v4483 = vsub.f32 %v4319, %v4482
    %v4484 = vand.u32 %v4483, 4294901760
    %v4485 = vsub.f32 %v4483, %v4484
    %v4486 = vand.u32 %v4485, 4294901760
    %4487 = vmatpush1.msra.mxu0 %v4486
    %4488 = vmatprep.subr.mxu0 0.0
    %v4489 = vand.u32 %v4318, 4294901760
    %v4490 = vsub.f32 %v4318, %v4489
    %v4491 = vand.u32 %v4490, 4294901760
    %v4492 = vsub.f32 %v4490, %v4491
    %v4493 = vand.u32 %v4492, 4294901760
    %4494 = vmatpush1.msra.mxu0 %v4493
    %4495 = vmatprep.subr.mxu0 0.0
    %v4496 = vand.u32 %v4317, 4294901760
    %v4497 = vsub.f32 %v4317, %v4496
    %v4498 = vand.u32 %v4497, 4294901760
    %v4499 = vsub.f32 %v4497, %v4498
    %v4500 = vand.u32 %v4499, 4294901760
    %4501 = vmatpush1.msra.mxu0 %v4500
    %4502 = vmatprep.subr.mxu0 0.0
    %v4503 = vand.u32 %v4316, 4294901760
    %v4504 = vsub.f32 %v4316, %v4503
    %v4505 = vand.u32 %v4504, 4294901760
    %v4506 = vsub.f32 %v4504, %v4505
    %v4507 = vand.u32 %v4506, 4294901760
    %4508 = vmatpush1.msra.mxu0 %v4507
    %4509 = vmatprep.subr.mxu0 0.0
    %v4510 = vand.u32 %v4315, 4294901760
    %v4511 = vsub.f32 %v4315, %v4510
    %v4512 = vand.u32 %v4511, 4294901760
    %v4513 = vsub.f32 %v4511, %v4512
    %v4514 = vand.u32 %v4513, 4294901760
    %4515 = vmatpush1.msra.mxu0 %v4514
    %4516 = vmatprep.subr.mxu0 0.0
    %v4517 = vand.u32 %v4314, 4294901760
    %v4518 = vsub.f32 %v4314, %v4517
    %v4519 = vand.u32 %v4518, 4294901760
    %v4520 = vsub.f32 %v4518, %v4519
    %v4521 = vand.u32 %v4520, 4294901760
    %4522 = vmatpush1.msra.mxu0 %v4521
    %4523 = vmatprep.subr.mxu0 0.0
    %v4524 = vand.u32 %v4313, 4294901760
    %v4525 = vsub.f32 %v4313, %v4524
    %v4526 = vand.u32 %v4525, 4294901760
    %v4527 = vsub.f32 %v4525, %v4526
    %v4528 = vand.u32 %v4527, 4294901760
    %4529 = vmatpush1.msra.mxu0 %v4528
    %4530 = vmatprep.subr.mxu0 0.0
    %v4531 = vand.u32 %v4312, 4294901760
    %v4532 = vsub.f32 %v4312, %v4531
    %v4533 = vand.u32 %v4532, 4294901760
    %v4534 = vsub.f32 %v4532, %v4533
    %v4535 = vand.u32 %v4534, 4294901760
    %4536 = vmatpush1.msra.mxu0 %v4535
    %4537 = vmatprep.subr.mxu0 0.0
    %v4538 = vand.u32 %v4311, 4294901760
    %v4539 = vsub.f32 %v4311, %v4538
    %v4540 = vand.u32 %v4539, 4294901760
    %v4541 = vsub.f32 %v4539, %v4540
    %v4542 = vand.u32 %v4541, 4294901760
    %4543 = vmatpush1.msra.mxu0 %v4542
    %4544 = vmatprep.subr.mxu0 0.0
    %v4545 = vand.u32 %v4310, 4294901760
    %v4546 = vsub.f32 %v4310, %v4545
    %v4547 = vand.u32 %v4546, 4294901760
    %v4548 = vsub.f32 %v4546, %v4547
    %v4549 = vand.u32 %v4548, 4294901760
    %4550 = vmatpush1.msra.mxu0 %v4549
    %4551 = vmatprep.subr.mxu0 0.0
    %v4552 = vand.u32 %v4309, 4294901760
    %v4553 = vsub.f32 %v4309, %v4552
    %v4554 = vand.u32 %v4553, 4294901760
    %v4555 = vsub.f32 %v4553, %v4554
    %v4556 = vand.u32 %v4555, 4294901760
    %4557 = vmatpush1.msra.mxu0 %v4556
    %4558 = vmatprep.subr.mxu0 0.0
    %4559 = vmatpush2.msra.mxu0 0.0
    %4560 = vmatprep.subr.mxu0 0.0
    %4561 = vmatpush2.msra.mxu0 0.0
    %4562 = vmatprep.subr.mxu0 0.0
    %4563 = vmatpush2.msra.mxu0 0.0
    %4564 = vmatprep.subr.mxu0 0.0
    %4565 = vmatpush2.msra.mxu0 0.0
    %4566 = vmatprep.subr.mxu0 0.0
    %4567 = vmatpush2.msra.mxu0 0.0
    %4568 = vmatprep.subr.mxu0 0.0
    %4569 = vmatpush2.msra.mxu0 0.0
    %4570 = vmatprep.subr.mxu0 0.0
    %4571 = vmatpush2.msra.mxu0 0.0
    %4572 = vmatprep.subr.mxu0 0.0
    %4573 = vmatpush2.msra.mxu0 0.0
    %4574 = vmatprep.subr.mxu0 0.0
    %4575 = vmatpush2.msra.mxu0 0.0
    %4576 = vmatprep.subr.mxu0 0.0
    %4577 = vmatpush2.msra.mxu0 0.0
    %4578 = vmatprep.subr.mxu0 0.0
    %4579 = vmatpush2.msra.mxu0 0.0
    %4580 = vmatprep.subr.mxu0 0.0
    %4581 = vmatpush2.msra.mxu0 0.0
    %4582 = vmatprep.subr.mxu0 0.0
    %4583 = vmatpush2.msra.mxu0 0.0
    %4584 = vmatprep.subr.mxu0 0.0
    %4585 = vmatpush2.msra.mxu0 0.0
    %4586 = vmatprep.subr.mxu0 0.0
    %4587 = vmatpush2.msra.mxu0 0.0
    %4588 = vmatprep.subr.mxu0 0.0
    %4589 = vmatpush2.msra.mxu0 0.0
    %4590 = vmatprep.mubr.f32.mxu0 0.0
    %v4591 = vand.u32 %v2714, 4294901760
    %4592 = vmatmul.mubr.f32.gmra.mxu0 %v4591
    %v4593 = vpop.f32.mrf.mxu0
    %v4594 = vadd.f32 %v4413, %v4593
    %v4595 = vpop.f32.mrf.mxu0
    %4596 = vmatprep.mubr.f32.mxu0 0.0
    %v4597 = vand.u32 %v2720, 4294901760
    %4598 = vmatmul.mubr.f32.gmra.mxu0 %v4597
    %v4599 = vpop.f32.mrf.mxu0
    %v4600 = vadd.f32 %v4423, %v4599
    %v4601 = vpop.f32.mrf.mxu0
    %4602 = vmatprep.mubr.f32.mxu0 0.0
    %v4603 = vand.u32 %v2726, 4294901760
    %4604 = vmatmul.mubr.f32.gmra.mxu0 %v4603
    %v4605 = vpop.f32.mrf.mxu0
    %v4606 = vadd.f32 %v4433, %v4605
    %v4607 = vpop.f32.mrf.mxu0
    %4608 = vmatprep.mubr.f32.mxu0 0.0
    %v4609 = vand.u32 %v2732, 4294901760
    %4610 = vmatmul.mubr.f32.gmra.mxu0 %v4609
    %v4611 = vpop.f32.mrf.mxu0
    %v4612 = vadd.f32 %v4443, %v4611
    %v4613 = vpop.f32.mrf.mxu0
    %4614 = vdwg.mxu0
    %4615 = vmatprep.subr.mxu0 0.0
    %v4616 = vand.u32 %v4324, 4294901760
    %v4617 = vsub.f32 %v4324, %v4616
    %4618 = vmatpush1.msra.mxu0 %v4617
    %4619 = vmatprep.subr.mxu0 0.0
    %v4620 = vand.u32 %v4323, 4294901760
    %v4621 = vsub.f32 %v4323, %v4620
    %4622 = vmatpush1.msra.mxu0 %v4621
    %4623 = vmatprep.subr.mxu0 0.0
    %v4624 = vand.u32 %v4322, 4294901760
    %v4625 = vsub.f32 %v4322, %v4624
    %4626 = vmatpush1.msra.mxu0 %v4625
    %4627 = vmatprep.subr.mxu0 0.0
    %v4628 = vand.u32 %v4321, 4294901760
    %v4629 = vsub.f32 %v4321, %v4628
    %4630 = vmatpush1.msra.mxu0 %v4629
    %4631 = vmatprep.subr.mxu0 0.0
    %v4632 = vand.u32 %v4320, 4294901760
    %v4633 = vsub.f32 %v4320, %v4632
    %4634 = vmatpush1.msra.mxu0 %v4633
    %4635 = vmatprep.subr.mxu0 0.0
    %v4636 = vand.u32 %v4319, 4294901760
    %v4637 = vsub.f32 %v4319, %v4636
    %4638 = vmatpush1.msra.mxu0 %v4637
    %4639 = vmatprep.subr.mxu0 0.0
    %v4640 = vand.u32 %v4318, 4294901760
    %v4641 = vsub.f32 %v4318, %v4640
    %4642 = vmatpush1.msra.mxu0 %v4641
    %4643 = vmatprep.subr.mxu0 0.0
    %v4644 = vand.u32 %v4317, 4294901760
    %v4645 = vsub.f32 %v4317, %v4644
    %4646 = vmatpush1.msra.mxu0 %v4645
    %4647 = vmatprep.subr.mxu0 0.0
    %v4648 = vand.u32 %v4316, 4294901760
    %v4649 = vsub.f32 %v4316, %v4648
    %4650 = vmatpush1.msra.mxu0 %v4649
    %4651 = vmatprep.subr.mxu0 0.0
    %v4652 = vand.u32 %v4315, 4294901760
    %v4653 = vsub.f32 %v4315, %v4652
    %4654 = vmatpush1.msra.mxu0 %v4653
    %4655 = vmatprep.subr.mxu0 0.0
    %v4656 = vand.u32 %v4314, 4294901760
    %v4657 = vsub.f32 %v4314, %v4656
    %4658 = vmatpush1.msra.mxu0 %v4657
    %4659 = vmatprep.subr.mxu0 0.0
    %v4660 = vand.u32 %v4313, 4294901760
    %v4661 = vsub.f32 %v4313, %v4660
    %4662 = vmatpush1.msra.mxu0 %v4661
    %4663 = vmatprep.subr.mxu0 0.0
    %v4664 = vand.u32 %v4312, 4294901760
    %v4665 = vsub.f32 %v4312, %v4664
    %4666 = vmatpush1.msra.mxu0 %v4665
    %4667 = vmatprep.subr.mxu0 0.0
    %v4668 = vand.u32 %v4311, 4294901760
    %v4669 = vsub.f32 %v4311, %v4668
    %4670 = vmatpush1.msra.mxu0 %v4669
    %4671 = vmatprep.subr.mxu0 0.0
    %v4672 = vand.u32 %v4310, 4294901760
    %v4673 = vsub.f32 %v4310, %v4672
    %4674 = vmatpush1.msra.mxu0 %v4673
    %4675 = vmatprep.subr.mxu0 0.0
    %v4676 = vand.u32 %v4309, 4294901760
    %v4677 = vsub.f32 %v4309, %v4676
    %4678 = vmatpush1.msra.mxu0 %v4677
    %4679 = vmatprep.subr.mxu0 0.0
    %4680 = vmatpush2.msra.mxu0 0.0
    %4681 = vmatprep.subr.mxu0 0.0
    %4682 = vmatpush2.msra.mxu0 0.0
    %4683 = vmatprep.subr.mxu0 0.0
    %4684 = vmatpush2.msra.mxu0 0.0
    %4685 = vmatprep.subr.mxu0 0.0
    %4686 = vmatpush2.msra.mxu0 0.0
    %4687 = vmatprep.subr.mxu0 0.0
    %4688 = vmatpush2.msra.mxu0 0.0
    %4689 = vmatprep.subr.mxu0 0.0
    %4690 = vmatpush2.msra.mxu0 0.0
    %4691 = vmatprep.subr.mxu0 0.0
    %4692 = vmatpush2.msra.mxu0 0.0
    %4693 = vmatprep.subr.mxu0 0.0
    %4694 = vmatpush2.msra.mxu0 0.0
    %4695 = vmatprep.subr.mxu0 0.0
    %4696 = vmatpush2.msra.mxu0 0.0
    %4697 = vmatprep.subr.mxu0 0.0
    %4698 = vmatpush2.msra.mxu0 0.0
    %4699 = vmatprep.subr.mxu0 0.0
    %4700 = vmatpush2.msra.mxu0 0.0
    %4701 = vmatprep.subr.mxu0 0.0
    %4702 = vmatpush2.msra.mxu0 0.0
    %4703 = vmatprep.subr.mxu0 0.0
    %4704 = vmatpush2.msra.mxu0 0.0
    %4705 = vmatprep.subr.mxu0 0.0
    %4706 = vmatpush2.msra.mxu0 0.0
    %4707 = vmatprep.subr.mxu0 0.0
    %4708 = vmatpush2.msra.mxu0 0.0
    %4709 = vmatprep.subr.mxu0 0.0
    %4710 = vmatpush2.msra.mxu0 0.0
    %4711 = vmatprep.mubr.f32.mxu0 0.0
    %v4712 = vand.u32 %v2714, 4294901760
    %v4713 = vsub.f32 %v2714, %v4712
    %4714 = vmatmul.mubr.f32.gmra.mxu0 %v4713
    %v4715 = vpop.f32.mrf.mxu0
    %v4716 = vadd.f32 %v4594, %v4715
    %v4717 = vpop.f32.mrf.mxu0
    %4718 = vmatprep.mubr.f32.mxu0 0.0
    %v4719 = vand.u32 %v2720, 4294901760
    %v4720 = vsub.f32 %v2720, %v4719
    %4721 = vmatmul.mubr.f32.gmra.mxu0 %v4720
    %v4722 = vpop.f32.mrf.mxu0
    %v4723 = vadd.f32 %v4600, %v4722
    %v4724 = vpop.f32.mrf.mxu0
    %4725 = vmatprep.mubr.f32.mxu0 0.0
    %v4726 = vand.u32 %v2726, 4294901760
    %v4727 = vsub.f32 %v2726, %v4726
    %4728 = vmatmul.mubr.f32.gmra.mxu0 %v4727
    %v4729 = vpop.f32.mrf.mxu0
    %v4730 = vadd.f32 %v4606, %v4729
    %v4731 = vpop.f32.mrf.mxu0
    %4732 = vmatprep.mubr.f32.mxu0 0.0
    %v4733 = vand.u32 %v2732, 4294901760
    %v4734 = vsub.f32 %v2732, %v4733
    %4735 = vmatmul.mubr.f32.gmra.mxu0 %v4734
    %v4736 = vpop.f32.mrf.mxu0
    %v4737 = vadd.f32 %v4612, %v4736
    %v4738 = vpop.f32.mrf.mxu0
    %4739 = vdwg.mxu0
    %4740 = vmatprep.subr.mxu0 0.0
    %v4741 = vand.u32 %v4324, 4294901760
    %4742 = vmatpush1.msra.mxu0 %v4741
    %4743 = vmatprep.subr.mxu0 0.0
    %v4744 = vand.u32 %v4323, 4294901760
    %4745 = vmatpush1.msra.mxu0 %v4744
    %4746 = vmatprep.subr.mxu0 0.0
    %v4747 = vand.u32 %v4322, 4294901760
    %4748 = vmatpush1.msra.mxu0 %v4747
    %4749 = vmatprep.subr.mxu0 0.0
    %v4750 = vand.u32 %v4321, 4294901760
    %4751 = vmatpush1.msra.mxu0 %v4750
    %4752 = vmatprep.subr.mxu0 0.0
    %v4753 = vand.u32 %v4320, 4294901760
    %4754 = vmatpush1.msra.mxu0 %v4753
    %4755 = vmatprep.subr.mxu0 0.0
    %v4756 = vand.u32 %v4319, 4294901760
    %4757 = vmatpush1.msra.mxu0 %v4756
    %4758 = vmatprep.subr.mxu0 0.0
    %v4759 = vand.u32 %v4318, 4294901760
    %4760 = vmatpush1.msra.mxu0 %v4759
    %4761 = vmatprep.subr.mxu0 0.0
    %v4762 = vand.u32 %v4317, 4294901760
    %4763 = vmatpush1.msra.mxu0 %v4762
    %4764 = vmatprep.subr.mxu0 0.0
    %v4765 = vand.u32 %v4316, 4294901760
    %4766 = vmatpush1.msra.mxu0 %v4765
    %4767 = vmatprep.subr.mxu0 0.0
    %v4768 = vand.u32 %v4315, 4294901760
    %4769 = vmatpush1.msra.mxu0 %v4768
    %4770 = vmatprep.subr.mxu0 0.0
    %v4771 = vand.u32 %v4314, 4294901760
    %4772 = vmatpush1.msra.mxu0 %v4771
    %4773 = vmatprep.subr.mxu0 0.0
    %v4774 = vand.u32 %v4313, 4294901760
    %4775 = vmatpush1.msra.mxu0 %v4774
    %4776 = vmatprep.subr.mxu0 0.0
    %v4777 = vand.u32 %v4312, 4294901760
    %4778 = vmatpush1.msra.mxu0 %v4777
    %4779 = vmatprep.subr.mxu0 0.0
    %v4780 = vand.u32 %v4311, 4294901760
    %4781 = vmatpush1.msra.mxu0 %v4780
    %4782 = vmatprep.subr.mxu0 0.0
    %v4783 = vand.u32 %v4310, 4294901760
    %4784 = vmatpush1.msra.mxu0 %v4783
    %4785 = vmatprep.subr.mxu0 0.0
    %v4786 = vand.u32 %v4309, 4294901760
    %4787 = vmatpush1.msra.mxu0 %v4786
    %4788 = vmatprep.subr.mxu0 0.0
    %4789 = vmatpush2.msra.mxu0 0.0
    %4790 = vmatprep.subr.mxu0 0.0
    %4791 = vmatpush2.msra.mxu0 0.0
    %4792 = vmatprep.subr.mxu0 0.0
    %4793 = vmatpush2.msra.mxu0 0.0
    %4794 = vmatprep.subr.mxu0 0.0
    %4795 = vmatpush2.msra.mxu0 0.0
    %4796 = vmatprep.subr.mxu0 0.0
    %4797 = vmatpush2.msra.mxu0 0.0
    %4798 = vmatprep.subr.mxu0 0.0
    %4799 = vmatpush2.msra.mxu0 0.0
    %4800 = vmatprep.subr.mxu0 0.0
    %4801 = vmatpush2.msra.mxu0 0.0
    %4802 = vmatprep.subr.mxu0 0.0
    %4803 = vmatpush2.msra.mxu0 0.0
    %4804 = vmatprep.subr.mxu0 0.0
    %4805 = vmatpush2.msra.mxu0 0.0
    %4806 = vmatprep.subr.mxu0 0.0
    %4807 = vmatpush2.msra.mxu0 0.0
    %4808 = vmatprep.subr.mxu0 0.0
    %4809 = vmatpush2.msra.mxu0 0.0
    %4810 = vmatprep.subr.mxu0 0.0
    %4811 = vmatpush2.msra.mxu0 0.0
    %4812 = vmatprep.subr.mxu0 0.0
    %4813 = vmatpush2.msra.mxu0 0.0
    %4814 = vmatprep.subr.mxu0 0.0
    %4815 = vmatpush2.msra.mxu0 0.0
    %4816 = vmatprep.subr.mxu0 0.0
    %4817 = vmatpush2.msra.mxu0 0.0
    %4818 = vmatprep.subr.mxu0 0.0
    %4819 = vmatpush2.msra.mxu0 0.0
    %4820 = vmatprep.mubr.f32.mxu0 0.0
    %v4821 = vand.u32 %v2714, 4294901760
    %v4822 = vsub.f32 %v2714, %v4821
    %v4823 = vand.u32 %v4822, 4294901760
    %4824 = vmatmul.mubr.f32.gmra.mxu0 %v4823
    %v4825 = vpop.f32.mrf.mxu0
    %v4826 = vadd.f32 %v4716, %v4825
    %v4827 = vpop.f32.mrf.mxu0
    %4828 = vmatprep.mubr.f32.mxu0 0.0
    %v4829 = vand.u32 %v2720, 4294901760
    %v4830 = vsub.f32 %v2720, %v4829
    %v4831 = vand.u32 %v4830, 4294901760
    %4832 = vmatmul.mubr.f32.gmra.mxu0 %v4831
    %v4833 = vpop.f32.mrf.mxu0
    %v4834 = vadd.f32 %v4723, %v4833
    %v4835 = vpop.f32.mrf.mxu0
    %4836 = vmatprep.mubr.f32.mxu0 0.0
    %v4837 = vand.u32 %v2726, 4294901760
    %v4838 = vsub.f32 %v2726, %v4837
    %v4839 = vand.u32 %v4838, 4294901760
    %4840 = vmatmul.mubr.f32.gmra.mxu0 %v4839
    %v4841 = vpop.f32.mrf.mxu0
    %v4842 = vadd.f32 %v4730, %v4841
    %v4843 = vpop.f32.mrf.mxu0
    %4844 = vmatprep.mubr.f32.mxu0 0.0
    %v4845 = vand.u32 %v2732, 4294901760
    %v4846 = vsub.f32 %v2732, %v4845
    %v4847 = vand.u32 %v4846, 4294901760
    %4848 = vmatmul.mubr.f32.gmra.mxu0 %v4847
    %v4849 = vpop.f32.mrf.mxu0
    %v4850 = vadd.f32 %v4737, %v4849
    %v4851 = vpop.f32.mrf.mxu0
    %4852 = vdwg.mxu0
    %4853 = vmatprep.subr.mxu0 0.0
    %v4854 = vand.u32 %v4324, 4294901760
    %v4855 = vsub.f32 %v4324, %v4854
    %v4856 = vand.u32 %v4855, 4294901760
    %4857 = vmatpush1.msra.mxu0 %v4856
    %4858 = vmatprep.subr.mxu0 0.0
    %v4859 = vand.u32 %v4323, 4294901760
    %v4860 = vsub.f32 %v4323, %v4859
    %v4861 = vand.u32 %v4860, 4294901760
    %4862 = vmatpush1.msra.mxu0 %v4861
    %4863 = vmatprep.subr.mxu0 0.0
    %v4864 = vand.u32 %v4322, 4294901760
    %v4865 = vsub.f32 %v4322, %v4864
    %v4866 = vand.u32 %v4865, 4294901760
    %4867 = vmatpush1.msra.mxu0 %v4866
    %4868 = vmatprep.subr.mxu0 0.0
    %v4869 = vand.u32 %v4321, 4294901760
    %v4870 = vsub.f32 %v4321, %v4869
    %v4871 = vand.u32 %v4870, 4294901760
    %4872 = vmatpush1.msra.mxu0 %v4871
    %4873 = vmatprep.subr.mxu0 0.0
    %v4874 = vand.u32 %v4320, 4294901760
    %v4875 = vsub.f32 %v4320, %v4874
    %v4876 = vand.u32 %v4875, 4294901760
    %4877 = vmatpush1.msra.mxu0 %v4876
    %4878 = vmatprep.subr.mxu0 0.0
    %v4879 = vand.u32 %v4319, 4294901760
    %v4880 = vsub.f32 %v4319, %v4879
    %v4881 = vand.u32 %v4880, 4294901760
    %4882 = vmatpush1.msra.mxu0 %v4881
    %4883 = vmatprep.subr.mxu0 0.0
    %v4884 = vand.u32 %v4318, 4294901760
    %v4885 = vsub.f32 %v4318, %v4884
    %v4886 = vand.u32 %v4885, 4294901760
    %4887 = vmatpush1.msra.mxu0 %v4886
    %4888 = vmatprep.subr.mxu0 0.0
    %v4889 = vand.u32 %v4317, 4294901760
    %v4890 = vsub.f32 %v4317, %v4889
    %v4891 = vand.u32 %v4890, 4294901760
    %4892 = vmatpush1.msra.mxu0 %v4891
    %4893 = vmatprep.subr.mxu0 0.0
    %v4894 = vand.u32 %v4316, 4294901760
    %v4895 = vsub.f32 %v4316, %v4894
    %v4896 = vand.u32 %v4895, 4294901760
    %4897 = vmatpush1.msra.mxu0 %v4896
    %4898 = vmatprep.subr.mxu0 0.0
    %v4899 = vand.u32 %v4315, 4294901760
    %v4900 = vsub.f32 %v4315, %v4899
    %v4901 = vand.u32 %v4900, 4294901760
    %4902 = vmatpush1.msra.mxu0 %v4901
    %4903 = vmatprep.subr.mxu0 0.0
    %v4904 = vand.u32 %v4314, 4294901760
    %v4905 = vsub.f32 %v4314, %v4904
    %v4906 = vand.u32 %v4905, 4294901760
    %4907 = vmatpush1.msra.mxu0 %v4906
    %4908 = vmatprep.subr.mxu0 0.0
    %v4909 = vand.u32 %v4313, 4294901760
    %v4910 = vsub.f32 %v4313, %v4909
    %v4911 = vand.u32 %v4910, 4294901760
    %4912 = vmatpush1.msra.mxu0 %v4911
    %4913 = vmatprep.subr.mxu0 0.0
    %v4914 = vand.u32 %v4312, 4294901760
    %v4915 = vsub.f32 %v4312, %v4914
    %v4916 = vand.u32 %v4915, 4294901760
    %4917 = vmatpush1.msra.mxu0 %v4916
    %4918 = vmatprep.subr.mxu0 0.0
    %v4919 = vand.u32 %v4311, 4294901760
    %v4920 = vsub.f32 %v4311, %v4919
    %v4921 = vand.u32 %v4920, 4294901760
    %4922 = vmatpush1.msra.mxu0 %v4921
    %4923 = vmatprep.subr.mxu0 0.0
    %v4924 = vand.u32 %v4310, 4294901760
    %v4925 = vsub.f32 %v4310, %v4924
    %v4926 = vand.u32 %v4925, 4294901760
    %4927 = vmatpush1.msra.mxu0 %v4926
    %4928 = vmatprep.subr.mxu0 0.0
    %v4929 = vand.u32 %v4309, 4294901760
    %v4930 = vsub.f32 %v4309, %v4929
    %v4931 = vand.u32 %v4930, 4294901760
    %4932 = vmatpush1.msra.mxu0 %v4931
    %4933 = vmatprep.subr.mxu0 0.0
    %4934 = vmatpush2.msra.mxu0 0.0
    %4935 = vmatprep.subr.mxu0 0.0
    %4936 = vmatpush2.msra.mxu0 0.0
    %4937 = vmatprep.subr.mxu0 0.0
    %4938 = vmatpush2.msra.mxu0 0.0
    %4939 = vmatprep.subr.mxu0 0.0
    %4940 = vmatpush2.msra.mxu0 0.0
    %4941 = vmatprep.subr.mxu0 0.0
    %4942 = vmatpush2.msra.mxu0 0.0
    %4943 = vmatprep.subr.mxu0 0.0
    %4944 = vmatpush2.msra.mxu0 0.0
    %4945 = vmatprep.subr.mxu0 0.0
    %4946 = vmatpush2.msra.mxu0 0.0
    %4947 = vmatprep.subr.mxu0 0.0
    %4948 = vmatpush2.msra.mxu0 0.0
    %4949 = vmatprep.subr.mxu0 0.0
    %4950 = vmatpush2.msra.mxu0 0.0
    %4951 = vmatprep.subr.mxu0 0.0
    %4952 = vmatpush2.msra.mxu0 0.0
    %4953 = vmatprep.subr.mxu0 0.0
    %4954 = vmatpush2.msra.mxu0 0.0
    %4955 = vmatprep.subr.mxu0 0.0
    %4956 = vmatpush2.msra.mxu0 0.0
    %4957 = vmatprep.subr.mxu0 0.0
    %4958 = vmatpush2.msra.mxu0 0.0
    %4959 = vmatprep.subr.mxu0 0.0
    %4960 = vmatpush2.msra.mxu0 0.0
    %4961 = vmatprep.subr.mxu0 0.0
    %4962 = vmatpush2.msra.mxu0 0.0
    %4963 = vmatprep.subr.mxu0 0.0
    %4964 = vmatpush2.msra.mxu0 0.0
    %4965 = vmatprep.mubr.f32.mxu0 0.0
    %v4966 = vand.u32 %v2714, 4294901760
    %4967 = vmatmul.mubr.f32.gmra.mxu0 %v4966
    %v4968 = vpop.f32.mrf.mxu0
    %v4969 = vadd.f32 %v4826, %v4968
    %v4970 = vpop.f32.mrf.mxu0
    %4971 = vmatprep.mubr.f32.mxu0 0.0
    %v4972 = vand.u32 %v2720, 4294901760
    %4973 = vmatmul.mubr.f32.gmra.mxu0 %v4972
    %v4974 = vpop.f32.mrf.mxu0
    %v4975 = vadd.f32 %v4834, %v4974
    %v4976 = vpop.f32.mrf.mxu0
    %4977 = vmatprep.mubr.f32.mxu0 0.0
    %v4978 = vand.u32 %v2726, 4294901760
    %4979 = vmatmul.mubr.f32.gmra.mxu0 %v4978
    %v4980 = vpop.f32.mrf.mxu0
    %v4981 = vadd.f32 %v4842, %v4980
    %v4982 = vpop.f32.mrf.mxu0
    %4983 = vmatprep.mubr.f32.mxu0 0.0
    %v4984 = vand.u32 %v2732, 4294901760
    %4985 = vmatmul.mubr.f32.gmra.mxu0 %v4984
    %v4986 = vpop.f32.mrf.mxu0
    %v4987 = vadd.f32 %v4850, %v4986
    %v4988 = vpop.f32.mrf.mxu0
    %4989 = vdwg.mxu0
    %4990 = vmatprep.subr.mxu0 0.0
    %v4991 = vand.u32 %v4324, 4294901760
    %4992 = vmatpush1.msra.mxu0 %v4991
    %4993 = vmatprep.subr.mxu0 0.0
    %v4994 = vand.u32 %v4323, 4294901760
    %4995 = vmatpush1.msra.mxu0 %v4994
    %4996 = vmatprep.subr.mxu0 0.0
    %v4997 = vand.u32 %v4322, 4294901760
    %4998 = vmatpush1.msra.mxu0 %v4997
    %4999 = vmatprep.subr.mxu0 0.0
    %v5000 = vand.u32 %v4321, 4294901760
    %5001 = vmatpush1.msra.mxu0 %v5000
    %5002 = vmatprep.subr.mxu0 0.0
    %v5003 = vand.u32 %v4320, 4294901760
    %5004 = vmatpush1.msra.mxu0 %v5003
    %5005 = vmatprep.subr.mxu0 0.0
    %v5006 = vand.u32 %v4319, 4294901760
    %5007 = vmatpush1.msra.mxu0 %v5006
    %5008 = vmatprep.subr.mxu0 0.0
    %v5009 = vand.u32 %v4318, 4294901760
    %5010 = vmatpush1.msra.mxu0 %v5009
    %5011 = vmatprep.subr.mxu0 0.0
    %v5012 = vand.u32 %v4317, 4294901760
    %5013 = vmatpush1.msra.mxu0 %v5012
    %5014 = vmatprep.subr.mxu0 0.0
    %v5015 = vand.u32 %v4316, 4294901760
    %5016 = vmatpush1.msra.mxu0 %v5015
    %5017 = vmatprep.subr.mxu0 0.0
    %v5018 = vand.u32 %v4315, 4294901760
    %5019 = vmatpush1.msra.mxu0 %v5018
    %5020 = vmatprep.subr.mxu0 0.0
    %v5021 = vand.u32 %v4314, 4294901760
    %5022 = vmatpush1.msra.mxu0 %v5021
    %5023 = vmatprep.subr.mxu0 0.0
    %v5024 = vand.u32 %v4313, 4294901760
    %5025 = vmatpush1.msra.mxu0 %v5024
    %5026 = vmatprep.subr.mxu0 0.0
    %v5027 = vand.u32 %v4312, 4294901760
    %5028 = vmatpush1.msra.mxu0 %v5027
    %5029 = vmatprep.subr.mxu0 0.0
    %v5030 = vand.u32 %v4311, 4294901760
    %5031 = vmatpush1.msra.mxu0 %v5030
    %5032 = vmatprep.subr.mxu0 0.0
    %v5033 = vand.u32 %v4310, 4294901760
    %5034 = vmatpush1.msra.mxu0 %v5033
    %5035 = vmatprep.subr.mxu0 0.0
    %v5036 = vand.u32 %v4309, 4294901760
    %5037 = vmatpush1.msra.mxu0 %v5036
    %5038 = vmatprep.subr.mxu0 0.0
    %5039 = vmatpush2.msra.mxu0 0.0
    %5040 = vmatprep.subr.mxu0 0.0
    %5041 = vmatpush2.msra.mxu0 0.0
    %5042 = vmatprep.subr.mxu0 0.0
    %5043 = vmatpush2.msra.mxu0 0.0
    %5044 = vmatprep.subr.mxu0 0.0
    %5045 = vmatpush2.msra.mxu0 0.0
    %5046 = vmatprep.subr.mxu0 0.0
    %5047 = vmatpush2.msra.mxu0 0.0
    %5048 = vmatprep.subr.mxu0 0.0
    %5049 = vmatpush2.msra.mxu0 0.0
    %5050 = vmatprep.subr.mxu0 0.0
    %5051 = vmatpush2.msra.mxu0 0.0
    %5052 = vmatprep.subr.mxu0 0.0
    %5053 = vmatpush2.msra.mxu0 0.0
    %5054 = vmatprep.subr.mxu0 0.0
    %5055 = vmatpush2.msra.mxu0 0.0
    %5056 = vmatprep.subr.mxu0 0.0
    %5057 = vmatpush2.msra.mxu0 0.0
    %5058 = vmatprep.subr.mxu0 0.0
    %5059 = vmatpush2.msra.mxu0 0.0
    %5060 = vmatprep.subr.mxu0 0.0
    %5061 = vmatpush2.msra.mxu0 0.0
    %5062 = vmatprep.subr.mxu0 0.0
    %5063 = vmatpush2.msra.mxu0 0.0
    %5064 = vmatprep.subr.mxu0 0.0
    %5065 = vmatpush2.msra.mxu0 0.0
    %5066 = vmatprep.subr.mxu0 0.0
    %5067 = vmatpush2.msra.mxu0 0.0
    %5068 = vmatprep.subr.mxu0 0.0
    %5069 = vmatpush2.msra.mxu0 0.0
    %5070 = vmatprep.mubr.f32.mxu0 0.0
    %v5071 = vand.u32 %v2714, 4294901760
    %5072 = vmatmul.mubr.f32.gmra.mxu0 %v5071
    %v5073 = vpop.f32.mrf.mxu0
    %v5074 = vadd.f32 %v4969, %v5073
    %v5075 = vpop.f32.mrf.mxu0
    %5076 = vmatprep.mubr.f32.mxu0 0.0
    %v5077 = vand.u32 %v2720, 4294901760
    %5078 = vmatmul.mubr.f32.gmra.mxu0 %v5077
    %v5079 = vpop.f32.mrf.mxu0
    %v5080 = vadd.f32 %v4975, %v5079
    %v5081 = vpop.f32.mrf.mxu0
    %5082 = vmatprep.mubr.f32.mxu0 0.0
    %v5083 = vand.u32 %v2726, 4294901760
    %5084 = vmatmul.mubr.f32.gmra.mxu0 %v5083
    %v5085 = vpop.f32.mrf.mxu0
    %v5086 = vadd.f32 %v4981, %v5085
    %v5087 = vpop.f32.mrf.mxu0
    %5088 = vmatprep.mubr.f32.mxu0 0.0
    %v5089 = vand.u32 %v2732, 4294901760
    %5090 = vmatmul.mubr.f32.gmra.mxu0 %v5089
    %v5091 = vpop.f32.mrf.mxu0
    %v5092 = vadd.f32 %v4987, %v5091
    %v5093 = vpop.f32.mrf.mxu0
    %5094 = vdwg.mxu0
    %v5095 = vadd.f32 %v4287, %v5074
    %v5096 = vadd.f32 %v4293, %v5080
    %v5097 = vadd.f32 %v4299, %v5086
    %v5098 = vadd.f32 %v4305, %v5092
    %v5099 = vld [vmem:[%s4] sm:$0x1]
    %v5101 = vlaneseq
    %v5102 = vshrl.u32 %v5101, 7
    %v5103 = vsub.s32 0, %v5102
    %v5104 = vrot.slane %v5099, %v5103
    %v5106 = vadd.f32 %v5095, %v5104
    %v5107 = vadd.f32 %v5096, %v5104
    %v5108 = vadd.f32 %v5097, %v5104
    %v5109 = vadd.f32 %v5098, %v5104
    %v5110 = vadd.f32 %v5106, %v5107
    %v5111 = vadd.f32 %v5110, %v5108
    %v5112 = vadd.f32 %v5111, %v5109
    %v5113 = vrot.slane %v5112, 4
    %v5114 = vadd.f32 %v5112, %v5113
    %v5115 = vrot.slane %v5114, 2
    %v5116 = vadd.f32 %v5114, %v5115
    %v5117 = vrot.slane %v5116, 1
    %v5118 = vadd.f32 %v5116, %v5117
    %v5119 = vmul.f32 %v5106, %v5106
    %v5120 = vmul.f32 %v5107, %v5107
    %v5121 = vmul.f32 %v5108, %v5108
    %v5122 = vmul.f32 %v5109, %v5109
    %v5123 = vadd.f32 %v5119, %v5120
    %v5124 = vadd.f32 %v5123, %v5121
    %v5125 = vadd.f32 %v5124, %v5122
    %v5126 = vrot.slane %v5125, 4
    %v5127 = vadd.f32 %v5125, %v5126
    %v5128 = vrot.slane %v5127, 2
    %v5129 = vadd.f32 %v5127, %v5128
    %v5130 = vrot.slane %v5129, 1
    %v5131 = vadd.f32 %v5129, %v5130
    %5132 = vmatprep.subr.mxu0 0.0
    %v5133 = vand.u32 %v122, 4294901760
    %5134 = vmatpush1.msra.mxu0 %v5133
    %5135 = vmatprep.subr.mxu0 0.0
    %v5136 = vand.u32 %v121, 4294901760
    %5137 = vmatpush1.msra.mxu0 %v5136
    %5138 = vmatprep.subr.mxu0 0.0
    %v5139 = vand.u32 %v120, 4294901760
    %5140 = vmatpush1.msra.mxu0 %v5139
    %5141 = vmatprep.subr.mxu0 0.0
    %v5142 = vand.u32 %v119, 4294901760
    %5143 = vmatpush1.msra.mxu0 %v5142
    %5144 = vmatprep.subr.mxu0 0.0
    %v5145 = vand.u32 %v118, 4294901760
    %5146 = vmatpush1.msra.mxu0 %v5145
    %5147 = vmatprep.subr.mxu0 0.0
    %v5148 = vand.u32 %v117, 4294901760
    %5149 = vmatpush1.msra.mxu0 %v5148
    %5150 = vmatprep.subr.mxu0 0.0
    %v5151 = vand.u32 %v116, 4294901760
    %5152 = vmatpush1.msra.mxu0 %v5151
    %5153 = vmatprep.subr.mxu0 0.0
    %v5154 = vand.u32 %v115, 4294901760
    %5155 = vmatpush1.msra.mxu0 %v5154
    %5156 = vmatprep.subr.mxu0 0.0
    %v5157 = vand.u32 %v114, 4294901760
    %5158 = vmatpush1.msra.mxu0 %v5157
    %5159 = vmatprep.subr.mxu0 0.0
    %v5160 = vand.u32 %v113, 4294901760
    %5161 = vmatpush1.msra.mxu0 %v5160
    %5162 = vmatprep.subr.mxu0 0.0
    %v5163 = vand.u32 %v112, 4294901760
    %5164 = vmatpush1.msra.mxu0 %v5163
    %5165 = vmatprep.subr.mxu0 0.0
    %v5166 = vand.u32 %v111, 4294901760
    %5167 = vmatpush1.msra.mxu0 %v5166
    %5168 = vmatprep.subr.mxu0 0.0
    %v5169 = vand.u32 %v110, 4294901760
    %5170 = vmatpush1.msra.mxu0 %v5169
    %5171 = vmatprep.subr.mxu0 0.0
    %v5172 = vand.u32 %v109, 4294901760
    %5173 = vmatpush1.msra.mxu0 %v5172
    %5174 = vmatprep.subr.mxu0 0.0
    %v5175 = vand.u32 %v108, 4294901760
    %5176 = vmatpush1.msra.mxu0 %v5175
    %5177 = vmatprep.subr.mxu0 0.0
    %v5178 = vand.u32 %v107, 4294901760
    %5179 = vmatpush1.msra.mxu0 %v5178
    %5180 = vmatprep.subr.mxu0 0.0
    %5181 = vmatpush2.msra.mxu0 0.0
    %5182 = vmatprep.subr.mxu0 0.0
    %5183 = vmatpush2.msra.mxu0 0.0
    %5184 = vmatprep.subr.mxu0 0.0
    %5185 = vmatpush2.msra.mxu0 0.0
    %5186 = vmatprep.subr.mxu0 0.0
    %5187 = vmatpush2.msra.mxu0 0.0
    %5188 = vmatprep.subr.mxu0 0.0
    %5189 = vmatpush2.msra.mxu0 0.0
    %5190 = vmatprep.subr.mxu0 0.0
    %5191 = vmatpush2.msra.mxu0 0.0
    %5192 = vmatprep.subr.mxu0 0.0
    %5193 = vmatpush2.msra.mxu0 0.0
    %5194 = vmatprep.subr.mxu0 0.0
    %5195 = vmatpush2.msra.mxu0 0.0
    %5196 = vmatprep.subr.mxu0 0.0
    %5197 = vmatpush2.msra.mxu0 0.0
    %5198 = vmatprep.subr.mxu0 0.0
    %5199 = vmatpush2.msra.mxu0 0.0
    %5200 = vmatprep.subr.mxu0 0.0
    %5201 = vmatpush2.msra.mxu0 0.0
    %5202 = vmatprep.subr.mxu0 0.0
    %5203 = vmatpush2.msra.mxu0 0.0
    %5204 = vmatprep.subr.mxu0 0.0
    %5205 = vmatpush2.msra.mxu0 0.0
    %5206 = vmatprep.subr.mxu0 0.0
    %5207 = vmatpush2.msra.mxu0 0.0
    %5208 = vmatprep.subr.mxu0 0.0
    %5209 = vmatpush2.msra.mxu0 0.0
    %5210 = vmatprep.subr.mxu0 0.0
    %5211 = vmatpush2.msra.mxu0 0.0
    %5212 = vmatprep.mubr.f32.mxu0 0.0
    %v5213 = vand.u32 %v5118, 4294901760
    %v5214 = vsub.f32 %v5118, %v5213
    %v5215 = vand.u32 %v5214, 4294901760
    %v5216 = vsub.f32 %v5214, %v5215
    %v5217 = vand.u32 %v5216, 4294901760
    %5218 = vmatmul.mubr.f32.gmra.mxu0 %v5217
    %v5219 = vpop.f32.mrf.mxu0
    %v5220 = vadd.f32 0.0, %v5219
    %v5221 = vpop.f32.mrf.mxu0
    %5222 = vdwg.mxu0
    %5223 = vmatprep.subr.mxu0 0.0
    %v5224 = vand.u32 %v122, 4294901760
    %v5225 = vsub.f32 %v122, %v5224
    %v5226 = vand.u32 %v5225, 4294901760
    %v5227 = vsub.f32 %v5225, %v5226
    %v5228 = vand.u32 %v5227, 4294901760
    %5229 = vmatpush1.msra.mxu0 %v5228
    %5230 = vmatprep.subr.mxu0 0.0
    %v5231 = vand.u32 %v121, 4294901760
    %v5232 = vsub.f32 %v121, %v5231
    %v5233 = vand.u32 %v5232, 4294901760
    %v5234 = vsub.f32 %v5232, %v5233
    %v5235 = vand.u32 %v5234, 4294901760
    %5236 = vmatpush1.msra.mxu0 %v5235
    %5237 = vmatprep.subr.mxu0 0.0
    %v5238 = vand.u32 %v120, 4294901760
    %v5239 = vsub.f32 %v120, %v5238
    %v5240 = vand.u32 %v5239, 4294901760
    %v5241 = vsub.f32 %v5239, %v5240
    %v5242 = vand.u32 %v5241, 4294901760
    %5243 = vmatpush1.msra.mxu0 %v5242
    %5244 = vmatprep.subr.mxu0 0.0
    %v5245 = vand.u32 %v119, 4294901760
    %v5246 = vsub.f32 %v119, %v5245
    %v5247 = vand.u32 %v5246, 4294901760
    %v5248 = vsub.f32 %v5246, %v5247
    %v5249 = vand.u32 %v5248, 4294901760
    %5250 = vmatpush1.msra.mxu0 %v5249
    %5251 = vmatprep.subr.mxu0 0.0
    %v5252 = vand.u32 %v118, 4294901760
    %v5253 = vsub.f32 %v118, %v5252
    %v5254 = vand.u32 %v5253, 4294901760
    %v5255 = vsub.f32 %v5253, %v5254
    %v5256 = vand.u32 %v5255, 4294901760
    %5257 = vmatpush1.msra.mxu0 %v5256
    %5258 = vmatprep.subr.mxu0 0.0
    %v5259 = vand.u32 %v117, 4294901760
    %v5260 = vsub.f32 %v117, %v5259
    %v5261 = vand.u32 %v5260, 4294901760
    %v5262 = vsub.f32 %v5260, %v5261
    %v5263 = vand.u32 %v5262, 4294901760
    %5264 = vmatpush1.msra.mxu0 %v5263
    %5265 = vmatprep.subr.mxu0 0.0
    %v5266 = vand.u32 %v116, 4294901760
    %v5267 = vsub.f32 %v116, %v5266
    %v5268 = vand.u32 %v5267, 4294901760
    %v5269 = vsub.f32 %v5267, %v5268
    %v5270 = vand.u32 %v5269, 4294901760
    %5271 = vmatpush1.msra.mxu0 %v5270
    %5272 = vmatprep.subr.mxu0 0.0
    %v5273 = vand.u32 %v115, 4294901760
    %v5274 = vsub.f32 %v115, %v5273
    %v5275 = vand.u32 %v5274, 4294901760
    %v5276 = vsub.f32 %v5274, %v5275
    %v5277 = vand.u32 %v5276, 4294901760
    %5278 = vmatpush1.msra.mxu0 %v5277
    %5279 = vmatprep.subr.mxu0 0.0
    %v5280 = vand.u32 %v114, 4294901760
    %v5281 = vsub.f32 %v114, %v5280
    %v5282 = vand.u32 %v5281, 4294901760
    %v5283 = vsub.f32 %v5281, %v5282
    %v5284 = vand.u32 %v5283, 4294901760
    %5285 = vmatpush1.msra.mxu0 %v5284
    %5286 = vmatprep.subr.mxu0 0.0
    %v5287 = vand.u32 %v113, 4294901760
    %v5288 = vsub.f32 %v113, %v5287
    %v5289 = vand.u32 %v5288, 4294901760
    %v5290 = vsub.f32 %v5288, %v5289
    %v5291 = vand.u32 %v5290, 4294901760
    %5292 = vmatpush1.msra.mxu0 %v5291
    %5293 = vmatprep.subr.mxu0 0.0
    %v5294 = vand.u32 %v112, 4294901760
    %v5295 = vsub.f32 %v112, %v5294
    %v5296 = vand.u32 %v5295, 4294901760
    %v5297 = vsub.f32 %v5295, %v5296
    %v5298 = vand.u32 %v5297, 4294901760
    %5299 = vmatpush1.msra.mxu0 %v5298
    %5300 = vmatprep.subr.mxu0 0.0
    %v5301 = vand.u32 %v111, 4294901760
    %v5302 = vsub.f32 %v111, %v5301
    %v5303 = vand.u32 %v5302, 4294901760
    %v5304 = vsub.f32 %v5302, %v5303
    %v5305 = vand.u32 %v5304, 4294901760
    %5306 = vmatpush1.msra.mxu0 %v5305
    %5307 = vmatprep.subr.mxu0 0.0
    %v5308 = vand.u32 %v110, 4294901760
    %v5309 = vsub.f32 %v110, %v5308
    %v5310 = vand.u32 %v5309, 4294901760
    %v5311 = vsub.f32 %v5309, %v5310
    %v5312 = vand.u32 %v5311, 4294901760
    %5313 = vmatpush1.msra.mxu0 %v5312
    %5314 = vmatprep.subr.mxu0 0.0
    %v5315 = vand.u32 %v109, 4294901760
    %v5316 = vsub.f32 %v109, %v5315
    %v5317 = vand.u32 %v5316, 4294901760
    %v5318 = vsub.f32 %v5316, %v5317
    %v5319 = vand.u32 %v5318, 4294901760
    %5320 = vmatpush1.msra.mxu0 %v5319
    %5321 = vmatprep.subr.mxu0 0.0
    %v5322 = vand.u32 %v108, 4294901760
    %v5323 = vsub.f32 %v108, %v5322
    %v5324 = vand.u32 %v5323, 4294901760
    %v5325 = vsub.f32 %v5323, %v5324
    %v5326 = vand.u32 %v5325, 4294901760
    %5327 = vmatpush1.msra.mxu0 %v5326
    %5328 = vmatprep.subr.mxu0 0.0
    %v5329 = vand.u32 %v107, 4294901760
    %v5330 = vsub.f32 %v107, %v5329
    %v5331 = vand.u32 %v5330, 4294901760
    %v5332 = vsub.f32 %v5330, %v5331
    %v5333 = vand.u32 %v5332, 4294901760
    %5334 = vmatpush1.msra.mxu0 %v5333
    %5335 = vmatprep.subr.mxu0 0.0
    %5336 = vmatpush2.msra.mxu0 0.0
    %5337 = vmatprep.subr.mxu0 0.0
    %5338 = vmatpush2.msra.mxu0 0.0
    %5339 = vmatprep.subr.mxu0 0.0
    %5340 = vmatpush2.msra.mxu0 0.0
    %5341 = vmatprep.subr.mxu0 0.0
    %5342 = vmatpush2.msra.mxu0 0.0
    %5343 = vmatprep.subr.mxu0 0.0
    %5344 = vmatpush2.msra.mxu0 0.0
    %5345 = vmatprep.subr.mxu0 0.0
    %5346 = vmatpush2.msra.mxu0 0.0
    %5347 = vmatprep.subr.mxu0 0.0
    %5348 = vmatpush2.msra.mxu0 0.0
    %5349 = vmatprep.subr.mxu0 0.0
    %5350 = vmatpush2.msra.mxu0 0.0
    %5351 = vmatprep.subr.mxu0 0.0
    %5352 = vmatpush2.msra.mxu0 0.0
    %5353 = vmatprep.subr.mxu0 0.0
    %5354 = vmatpush2.msra.mxu0 0.0
    %5355 = vmatprep.subr.mxu0 0.0
    %5356 = vmatpush2.msra.mxu0 0.0
    %5357 = vmatprep.subr.mxu0 0.0
    %5358 = vmatpush2.msra.mxu0 0.0
    %5359 = vmatprep.subr.mxu0 0.0
    %5360 = vmatpush2.msra.mxu0 0.0
    %5361 = vmatprep.subr.mxu0 0.0
    %5362 = vmatpush2.msra.mxu0 0.0
    %5363 = vmatprep.subr.mxu0 0.0
    %5364 = vmatpush2.msra.mxu0 0.0
    %5365 = vmatprep.subr.mxu0 0.0
    %5366 = vmatpush2.msra.mxu0 0.0
    %5367 = vmatprep.mubr.f32.mxu0 0.0
    %v5368 = vand.u32 %v5118, 4294901760
    %5369 = vmatmul.mubr.f32.gmra.mxu0 %v5368
    %v5370 = vpop.f32.mrf.mxu0
    %v5371 = vadd.f32 %v5220, %v5370
    %v5372 = vpop.f32.mrf.mxu0
    %5373 = vdwg.mxu0
    %5374 = vmatprep.subr.mxu0 0.0
    %v5375 = vand.u32 %v122, 4294901760
    %v5376 = vsub.f32 %v122, %v5375
    %5377 = vmatpush1.msra.mxu0 %v5376
    %5378 = vmatprep.subr.mxu0 0.0
    %v5379 = vand.u32 %v121, 4294901760
    %v5380 = vsub.f32 %v121, %v5379
    %5381 = vmatpush1.msra.mxu0 %v5380
    %5382 = vmatprep.subr.mxu0 0.0
    %v5383 = vand.u32 %v120, 4294901760
    %v5384 = vsub.f32 %v120, %v5383
    %5385 = vmatpush1.msra.mxu0 %v5384
    %5386 = vmatprep.subr.mxu0 0.0
    %v5387 = vand.u32 %v119, 4294901760
    %v5388 = vsub.f32 %v119, %v5387
    %5389 = vmatpush1.msra.mxu0 %v5388
    %5390 = vmatprep.subr.mxu0 0.0
    %v5391 = vand.u32 %v118, 4294901760
    %v5392 = vsub.f32 %v118, %v5391
    %5393 = vmatpush1.msra.mxu0 %v5392
    %5394 = vmatprep.subr.mxu0 0.0
    %v5395 = vand.u32 %v117, 4294901760
    %v5396 = vsub.f32 %v117, %v5395
    %5397 = vmatpush1.msra.mxu0 %v5396
    %5398 = vmatprep.subr.mxu0 0.0
    %v5399 = vand.u32 %v116, 4294901760
    %v5400 = vsub.f32 %v116, %v5399
    %5401 = vmatpush1.msra.mxu0 %v5400
    %5402 = vmatprep.subr.mxu0 0.0
    %v5403 = vand.u32 %v115, 4294901760
    %v5404 = vsub.f32 %v115, %v5403
    %5405 = vmatpush1.msra.mxu0 %v5404
    %5406 = vmatprep.subr.mxu0 0.0
    %v5407 = vand.u32 %v114, 4294901760
    %v5408 = vsub.f32 %v114, %v5407
    %5409 = vmatpush1.msra.mxu0 %v5408
    %5410 = vmatprep.subr.mxu0 0.0
    %v5411 = vand.u32 %v113, 4294901760
    %v5412 = vsub.f32 %v113, %v5411
    %5413 = vmatpush1.msra.mxu0 %v5412
    %5414 = vmatprep.subr.mxu0 0.0
    %v5415 = vand.u32 %v112, 4294901760
    %v5416 = vsub.f32 %v112, %v5415
    %5417 = vmatpush1.msra.mxu0 %v5416
    %5418 = vmatprep.subr.mxu0 0.0
    %v5419 = vand.u32 %v111, 4294901760
    %v5420 = vsub.f32 %v111, %v5419
    %5421 = vmatpush1.msra.mxu0 %v5420
    %5422 = vmatprep.subr.mxu0 0.0
    %v5423 = vand.u32 %v110, 4294901760
    %v5424 = vsub.f32 %v110, %v5423
    %5425 = vmatpush1.msra.mxu0 %v5424
    %5426 = vmatprep.subr.mxu0 0.0
    %v5427 = vand.u32 %v109, 4294901760
    %v5428 = vsub.f32 %v109, %v5427
    %5429 = vmatpush1.msra.mxu0 %v5428
    %5430 = vmatprep.subr.mxu0 0.0
    %v5431 = vand.u32 %v108, 4294901760
    %v5432 = vsub.f32 %v108, %v5431
    %5433 = vmatpush1.msra.mxu0 %v5432
    %5434 = vmatprep.subr.mxu0 0.0
    %v5435 = vand.u32 %v107, 4294901760
    %v5436 = vsub.f32 %v107, %v5435
    %5437 = vmatpush1.msra.mxu0 %v5436
    %5438 = vmatprep.subr.mxu0 0.0
    %5439 = vmatpush2.msra.mxu0 0.0
    %5440 = vmatprep.subr.mxu0 0.0
    %5441 = vmatpush2.msra.mxu0 0.0
    %5442 = vmatprep.subr.mxu0 0.0
    %5443 = vmatpush2.msra.mxu0 0.0
    %5444 = vmatprep.subr.mxu0 0.0
    %5445 = vmatpush2.msra.mxu0 0.0
    %5446 = vmatprep.subr.mxu0 0.0
    %5447 = vmatpush2.msra.mxu0 0.0
    %5448 = vmatprep.subr.mxu0 0.0
    %5449 = vmatpush2.msra.mxu0 0.0
    %5450 = vmatprep.subr.mxu0 0.0
    %5451 = vmatpush2.msra.mxu0 0.0
    %5452 = vmatprep.subr.mxu0 0.0
    %5453 = vmatpush2.msra.mxu0 0.0
    %5454 = vmatprep.subr.mxu0 0.0
    %5455 = vmatpush2.msra.mxu0 0.0
    %5456 = vmatprep.subr.mxu0 0.0
    %5457 = vmatpush2.msra.mxu0 0.0
    %5458 = vmatprep.subr.mxu0 0.0
    %5459 = vmatpush2.msra.mxu0 0.0
    %5460 = vmatprep.subr.mxu0 0.0
    %5461 = vmatpush2.msra.mxu0 0.0
    %5462 = vmatprep.subr.mxu0 0.0
    %5463 = vmatpush2.msra.mxu0 0.0
    %5464 = vmatprep.subr.mxu0 0.0
    %5465 = vmatpush2.msra.mxu0 0.0
    %5466 = vmatprep.subr.mxu0 0.0
    %5467 = vmatpush2.msra.mxu0 0.0
    %5468 = vmatprep.subr.mxu0 0.0
    %5469 = vmatpush2.msra.mxu0 0.0
    %5470 = vmatprep.mubr.f32.mxu0 0.0
    %v5471 = vand.u32 %v5118, 4294901760
    %v5472 = vsub.f32 %v5118, %v5471
    %5473 = vmatmul.mubr.f32.gmra.mxu0 %v5472
    %v5474 = vpop.f32.mrf.mxu0
    %v5475 = vadd.f32 %v5371, %v5474
    %v5476 = vpop.f32.mrf.mxu0
    %5477 = vdwg.mxu0
    %5478 = vmatprep.subr.mxu0 0.0
    %v5479 = vand.u32 %v122, 4294901760
    %5480 = vmatpush1.msra.mxu0 %v5479
    %5481 = vmatprep.subr.mxu0 0.0
    %v5482 = vand.u32 %v121, 4294901760
    %5483 = vmatpush1.msra.mxu0 %v5482
    %5484 = vmatprep.subr.mxu0 0.0
    %v5485 = vand.u32 %v120, 4294901760
    %5486 = vmatpush1.msra.mxu0 %v5485
    %5487 = vmatprep.subr.mxu0 0.0
    %v5488 = vand.u32 %v119, 4294901760
    %5489 = vmatpush1.msra.mxu0 %v5488
    %5490 = vmatprep.subr.mxu0 0.0
    %v5491 = vand.u32 %v118, 4294901760
    %5492 = vmatpush1.msra.mxu0 %v5491
    %5493 = vmatprep.subr.mxu0 0.0
    %v5494 = vand.u32 %v117, 4294901760
    %5495 = vmatpush1.msra.mxu0 %v5494
    %5496 = vmatprep.subr.mxu0 0.0
    %v5497 = vand.u32 %v116, 4294901760
    %5498 = vmatpush1.msra.mxu0 %v5497
    %5499 = vmatprep.subr.mxu0 0.0
    %v5500 = vand.u32 %v115, 4294901760
    %5501 = vmatpush1.msra.mxu0 %v5500
    %5502 = vmatprep.subr.mxu0 0.0
    %v5503 = vand.u32 %v114, 4294901760
    %5504 = vmatpush1.msra.mxu0 %v5503
    %5505 = vmatprep.subr.mxu0 0.0
    %v5506 = vand.u32 %v113, 4294901760
    %5507 = vmatpush1.msra.mxu0 %v5506
    %5508 = vmatprep.subr.mxu0 0.0
    %v5509 = vand.u32 %v112, 4294901760
    %5510 = vmatpush1.msra.mxu0 %v5509
    %5511 = vmatprep.subr.mxu0 0.0
    %v5512 = vand.u32 %v111, 4294901760
    %5513 = vmatpush1.msra.mxu0 %v5512
    %5514 = vmatprep.subr.mxu0 0.0
    %v5515 = vand.u32 %v110, 4294901760
    %5516 = vmatpush1.msra.mxu0 %v5515
    %5517 = vmatprep.subr.mxu0 0.0
    %v5518 = vand.u32 %v109, 4294901760
    %5519 = vmatpush1.msra.mxu0 %v5518
    %5520 = vmatprep.subr.mxu0 0.0
    %v5521 = vand.u32 %v108, 4294901760
    %5522 = vmatpush1.msra.mxu0 %v5521
    %5523 = vmatprep.subr.mxu0 0.0
    %v5524 = vand.u32 %v107, 4294901760
    %5525 = vmatpush1.msra.mxu0 %v5524
    %5526 = vmatprep.subr.mxu0 0.0
    %5527 = vmatpush2.msra.mxu0 0.0
    %5528 = vmatprep.subr.mxu0 0.0
    %5529 = vmatpush2.msra.mxu0 0.0
    %5530 = vmatprep.subr.mxu0 0.0
    %5531 = vmatpush2.msra.mxu0 0.0
    %5532 = vmatprep.subr.mxu0 0.0
    %5533 = vmatpush2.msra.mxu0 0.0
    %5534 = vmatprep.subr.mxu0 0.0
    %5535 = vmatpush2.msra.mxu0 0.0
    %5536 = vmatprep.subr.mxu0 0.0
    %5537 = vmatpush2.msra.mxu0 0.0
    %5538 = vmatprep.subr.mxu0 0.0
    %5539 = vmatpush2.msra.mxu0 0.0
    %5540 = vmatprep.subr.mxu0 0.0
    %5541 = vmatpush2.msra.mxu0 0.0
    %5542 = vmatprep.subr.mxu0 0.0
    %5543 = vmatpush2.msra.mxu0 0.0
    %5544 = vmatprep.subr.mxu0 0.0
    %5545 = vmatpush2.msra.mxu0 0.0
    %5546 = vmatprep.subr.mxu0 0.0
    %5547 = vmatpush2.msra.mxu0 0.0
    %5548 = vmatprep.subr.mxu0 0.0
    %5549 = vmatpush2.msra.mxu0 0.0
    %5550 = vmatprep.subr.mxu0 0.0
    %5551 = vmatpush2.msra.mxu0 0.0
    %5552 = vmatprep.subr.mxu0 0.0
    %5553 = vmatpush2.msra.mxu0 0.0
    %5554 = vmatprep.subr.mxu0 0.0
    %5555 = vmatpush2.msra.mxu0 0.0
    %5556 = vmatprep.subr.mxu0 0.0
    %5557 = vmatpush2.msra.mxu0 0.0
    %5558 = vmatprep.mubr.f32.mxu0 0.0
    %v5559 = vand.u32 %v5118, 4294901760
    %v5560 = vsub.f32 %v5118, %v5559
    %v5561 = vand.u32 %v5560, 4294901760
    %5562 = vmatmul.mubr.f32.gmra.mxu0 %v5561
    %v5563 = vpop.f32.mrf.mxu0
    %v5564 = vadd.f32 %v5475, %v5563
    %v5565 = vpop.f32.mrf.mxu0
    %5566 = vdwg.mxu0
    %5567 = vmatprep.subr.mxu0 0.0
    %v5568 = vand.u32 %v122, 4294901760
    %v5569 = vsub.f32 %v122, %v5568
    %v5570 = vand.u32 %v5569, 4294901760
    %5571 = vmatpush1.msra.mxu0 %v5570
    %5572 = vmatprep.subr.mxu0 0.0
    %v5573 = vand.u32 %v121, 4294901760
    %v5574 = vsub.f32 %v121, %v5573
    %v5575 = vand.u32 %v5574, 4294901760
    %5576 = vmatpush1.msra.mxu0 %v5575
    %5577 = vmatprep.subr.mxu0 0.0
    %v5578 = vand.u32 %v120, 4294901760
    %v5579 = vsub.f32 %v120, %v5578
    %v5580 = vand.u32 %v5579, 4294901760
    %5581 = vmatpush1.msra.mxu0 %v5580
    %5582 = vmatprep.subr.mxu0 0.0
    %v5583 = vand.u32 %v119, 4294901760
    %v5584 = vsub.f32 %v119, %v5583
    %v5585 = vand.u32 %v5584, 4294901760
    %5586 = vmatpush1.msra.mxu0 %v5585
    %5587 = vmatprep.subr.mxu0 0.0
    %v5588 = vand.u32 %v118, 4294901760
    %v5589 = vsub.f32 %v118, %v5588
    %v5590 = vand.u32 %v5589, 4294901760
    %5591 = vmatpush1.msra.mxu0 %v5590
    %5592 = vmatprep.subr.mxu0 0.0
    %v5593 = vand.u32 %v117, 4294901760
    %v5594 = vsub.f32 %v117, %v5593
    %v5595 = vand.u32 %v5594, 4294901760
    %5596 = vmatpush1.msra.mxu0 %v5595
    %5597 = vmatprep.subr.mxu0 0.0
    %v5598 = vand.u32 %v116, 4294901760
    %v5599 = vsub.f32 %v116, %v5598
    %v5600 = vand.u32 %v5599, 4294901760
    %5601 = vmatpush1.msra.mxu0 %v5600
    %5602 = vmatprep.subr.mxu0 0.0
    %v5603 = vand.u32 %v115, 4294901760
    %v5604 = vsub.f32 %v115, %v5603
    %v5605 = vand.u32 %v5604, 4294901760
    %5606 = vmatpush1.msra.mxu0 %v5605
    %5607 = vmatprep.subr.mxu0 0.0
    %v5608 = vand.u32 %v114, 4294901760
    %v5609 = vsub.f32 %v114, %v5608
    %v5610 = vand.u32 %v5609, 4294901760
    %5611 = vmatpush1.msra.mxu0 %v5610
    %5612 = vmatprep.subr.mxu0 0.0
    %v5613 = vand.u32 %v113, 4294901760
    %v5614 = vsub.f32 %v113, %v5613
    %v5615 = vand.u32 %v5614, 4294901760
    %5616 = vmatpush1.msra.mxu0 %v5615
    %5617 = vmatprep.subr.mxu0 0.0
    %v5618 = vand.u32 %v112, 4294901760
    %v5619 = vsub.f32 %v112, %v5618
    %v5620 = vand.u32 %v5619, 4294901760
    %5621 = vmatpush1.msra.mxu0 %v5620
    %5622 = vmatprep.subr.mxu0 0.0
    %v5623 = vand.u32 %v111, 4294901760
    %v5624 = vsub.f32 %v111, %v5623
    %v5625 = vand.u32 %v5624, 4294901760
    %5626 = vmatpush1.msra.mxu0 %v5625
    %5627 = vmatprep.subr.mxu0 0.0
    %v5628 = vand.u32 %v110, 4294901760
    %v5629 = vsub.f32 %v110, %v5628
    %v5630 = vand.u32 %v5629, 4294901760
    %5631 = vmatpush1.msra.mxu0 %v5630
    %5632 = vmatprep.subr.mxu0 0.0
    %v5633 = vand.u32 %v109, 4294901760
    %v5634 = vsub.f32 %v109, %v5633
    %v5635 = vand.u32 %v5634, 4294901760
    %5636 = vmatpush1.msra.mxu0 %v5635
    %5637 = vmatprep.subr.mxu0 0.0
    %v5638 = vand.u32 %v108, 4294901760
    %v5639 = vsub.f32 %v108, %v5638
    %v5640 = vand.u32 %v5639, 4294901760
    %5641 = vmatpush1.msra.mxu0 %v5640
    %5642 = vmatprep.subr.mxu0 0.0
    %v5643 = vand.u32 %v107, 4294901760
    %v5644 = vsub.f32 %v107, %v5643
    %v5645 = vand.u32 %v5644, 4294901760
    %5646 = vmatpush1.msra.mxu0 %v5645
    %5647 = vmatprep.subr.mxu0 0.0
    %5648 = vmatpush2.msra.mxu0 0.0
    %5649 = vmatprep.subr.mxu0 0.0
    %5650 = vmatpush2.msra.mxu0 0.0
    %5651 = vmatprep.subr.mxu0 0.0
    %5652 = vmatpush2.msra.mxu0 0.0
    %5653 = vmatprep.subr.mxu0 0.0
    %5654 = vmatpush2.msra.mxu0 0.0
    %5655 = vmatprep.subr.mxu0 0.0
    %5656 = vmatpush2.msra.mxu0 0.0
    %5657 = vmatprep.subr.mxu0 0.0
    %5658 = vmatpush2.msra.mxu0 0.0
    %5659 = vmatprep.subr.mxu0 0.0
    %5660 = vmatpush2.msra.mxu0 0.0
    %5661 = vmatprep.subr.mxu0 0.0
    %5662 = vmatpush2.msra.mxu0 0.0
    %5663 = vmatprep.subr.mxu0 0.0
    %5664 = vmatpush2.msra.mxu0 0.0
    %5665 = vmatprep.subr.mxu0 0.0
    %5666 = vmatpush2.msra.mxu0 0.0
    %5667 = vmatprep.subr.mxu0 0.0
    %5668 = vmatpush2.msra.mxu0 0.0
    %5669 = vmatprep.subr.mxu0 0.0
    %5670 = vmatpush2.msra.mxu0 0.0
    %5671 = vmatprep.subr.mxu0 0.0
    %5672 = vmatpush2.msra.mxu0 0.0
    %5673 = vmatprep.subr.mxu0 0.0
    %5674 = vmatpush2.msra.mxu0 0.0
    %5675 = vmatprep.subr.mxu0 0.0
    %5676 = vmatpush2.msra.mxu0 0.0
    %5677 = vmatprep.subr.mxu0 0.0
    %5678 = vmatpush2.msra.mxu0 0.0
    %5679 = vmatprep.mubr.f32.mxu0 0.0
    %v5680 = vand.u32 %v5118, 4294901760
    %5681 = vmatmul.mubr.f32.gmra.mxu0 %v5680
    %v5682 = vpop.f32.mrf.mxu0
    %v5683 = vadd.f32 %v5564, %v5682
    %v5684 = vpop.f32.mrf.mxu0
    %5685 = vdwg.mxu0
    %5686 = vmatprep.subr.mxu0 0.0
    %v5687 = vand.u32 %v122, 4294901760
    %5688 = vmatpush1.msra.mxu0 %v5687
    %5689 = vmatprep.subr.mxu0 0.0
    %v5690 = vand.u32 %v121, 4294901760
    %5691 = vmatpush1.msra.mxu0 %v5690
    %5692 = vmatprep.subr.mxu0 0.0
    %v5693 = vand.u32 %v120, 4294901760
    %5694 = vmatpush1.msra.mxu0 %v5693
    %5695 = vmatprep.subr.mxu0 0.0
    %v5696 = vand.u32 %v119, 4294901760
    %5697 = vmatpush1.msra.mxu0 %v5696
    %5698 = vmatprep.subr.mxu0 0.0
    %v5699 = vand.u32 %v118, 4294901760
    %5700 = vmatpush1.msra.mxu0 %v5699
    %5701 = vmatprep.subr.mxu0 0.0
    %v5702 = vand.u32 %v117, 4294901760
    %5703 = vmatpush1.msra.mxu0 %v5702
    %5704 = vmatprep.subr.mxu0 0.0
    %v5705 = vand.u32 %v116, 4294901760
    %5706 = vmatpush1.msra.mxu0 %v5705
    %5707 = vmatprep.subr.mxu0 0.0
    %v5708 = vand.u32 %v115, 4294901760
    %5709 = vmatpush1.msra.mxu0 %v5708
    %5710 = vmatprep.subr.mxu0 0.0
    %v5711 = vand.u32 %v114, 4294901760
    %5712 = vmatpush1.msra.mxu0 %v5711
    %5713 = vmatprep.subr.mxu0 0.0
    %v5714 = vand.u32 %v113, 4294901760
    %5715 = vmatpush1.msra.mxu0 %v5714
    %5716 = vmatprep.subr.mxu0 0.0
    %v5717 = vand.u32 %v112, 4294901760
    %5718 = vmatpush1.msra.mxu0 %v5717
    %5719 = vmatprep.subr.mxu0 0.0
    %v5720 = vand.u32 %v111, 4294901760
    %5721 = vmatpush1.msra.mxu0 %v5720
    %5722 = vmatprep.subr.mxu0 0.0
    %v5723 = vand.u32 %v110, 4294901760
    %5724 = vmatpush1.msra.mxu0 %v5723
    %5725 = vmatprep.subr.mxu0 0.0
    %v5726 = vand.u32 %v109, 4294901760
    %5727 = vmatpush1.msra.mxu0 %v5726
    %5728 = vmatprep.subr.mxu0 0.0
    %v5729 = vand.u32 %v108, 4294901760
    %5730 = vmatpush1.msra.mxu0 %v5729
    %5731 = vmatprep.subr.mxu0 0.0
    %v5732 = vand.u32 %v107, 4294901760
    %5733 = vmatpush1.msra.mxu0 %v5732
    %5734 = vmatprep.subr.mxu0 0.0
    %5735 = vmatpush2.msra.mxu0 0.0
    %5736 = vmatprep.subr.mxu0 0.0
    %5737 = vmatpush2.msra.mxu0 0.0
    %5738 = vmatprep.subr.mxu0 0.0
    %5739 = vmatpush2.msra.mxu0 0.0
    %5740 = vmatprep.subr.mxu0 0.0
    %5741 = vmatpush2.msra.mxu0 0.0
    %5742 = vmatprep.subr.mxu0 0.0
    %5743 = vmatpush2.msra.mxu0 0.0
    %5744 = vmatprep.subr.mxu0 0.0
    %5745 = vmatpush2.msra.mxu0 0.0
    %5746 = vmatprep.subr.mxu0 0.0
    %5747 = vmatpush2.msra.mxu0 0.0
    %5748 = vmatprep.subr.mxu0 0.0
    %5749 = vmatpush2.msra.mxu0 0.0
    %5750 = vmatprep.subr.mxu0 0.0
    %5751 = vmatpush2.msra.mxu0 0.0
    %5752 = vmatprep.subr.mxu0 0.0
    %5753 = vmatpush2.msra.mxu0 0.0
    %5754 = vmatprep.subr.mxu0 0.0
    %5755 = vmatpush2.msra.mxu0 0.0
    %5756 = vmatprep.subr.mxu0 0.0
    %5757 = vmatpush2.msra.mxu0 0.0
    %5758 = vmatprep.subr.mxu0 0.0
    %5759 = vmatpush2.msra.mxu0 0.0
    %5760 = vmatprep.subr.mxu0 0.0
    %5761 = vmatpush2.msra.mxu0 0.0
    %5762 = vmatprep.subr.mxu0 0.0
    %5763 = vmatpush2.msra.mxu0 0.0
    %5764 = vmatprep.subr.mxu0 0.0
    %5765 = vmatpush2.msra.mxu0 0.0
    %5766 = vmatprep.mubr.f32.mxu0 0.0
    %v5767 = vand.u32 %v5118, 4294901760
    %5768 = vmatmul.mubr.f32.gmra.mxu0 %v5767
    %v5769 = vpop.f32.mrf.mxu0
    %v5770 = vadd.f32 %v5683, %v5769
    %v5771 = vpop.f32.mrf.mxu0
    %5772 = vdwg.mxu0
    %v5773 = vmul.f32 %v5770, 0.001953125
    %5774 = vmatprep.subr.mxu0 0.0
    %v5775 = vand.u32 %v122, 4294901760
    %5776 = vmatpush1.msra.mxu0 %v5775
    %5777 = vmatprep.subr.mxu0 0.0
    %v5778 = vand.u32 %v121, 4294901760
    %5779 = vmatpush1.msra.mxu0 %v5778
    %5780 = vmatprep.subr.mxu0 0.0
    %v5781 = vand.u32 %v120, 4294901760
    %5782 = vmatpush1.msra.mxu0 %v5781
    %5783 = vmatprep.subr.mxu0 0.0
    %v5784 = vand.u32 %v119, 4294901760
    %5785 = vmatpush1.msra.mxu0 %v5784
    %5786 = vmatprep.subr.mxu0 0.0
    %v5787 = vand.u32 %v118, 4294901760
    %5788 = vmatpush1.msra.mxu0 %v5787
    %5789 = vmatprep.subr.mxu0 0.0
    %v5790 = vand.u32 %v117, 4294901760
    %5791 = vmatpush1.msra.mxu0 %v5790
    %5792 = vmatprep.subr.mxu0 0.0
    %v5793 = vand.u32 %v116, 4294901760
    %5794 = vmatpush1.msra.mxu0 %v5793
    %5795 = vmatprep.subr.mxu0 0.0
    %v5796 = vand.u32 %v115, 4294901760
    %5797 = vmatpush1.msra.mxu0 %v5796
    %5798 = vmatprep.subr.mxu0 0.0
    %v5799 = vand.u32 %v114, 4294901760
    %5800 = vmatpush1.msra.mxu0 %v5799
    %5801 = vmatprep.subr.mxu0 0.0
    %v5802 = vand.u32 %v113, 4294901760
    %5803 = vmatpush1.msra.mxu0 %v5802
    %5804 = vmatprep.subr.mxu0 0.0
    %v5805 = vand.u32 %v112, 4294901760
    %5806 = vmatpush1.msra.mxu0 %v5805
    %5807 = vmatprep.subr.mxu0 0.0
    %v5808 = vand.u32 %v111, 4294901760
    %5809 = vmatpush1.msra.mxu0 %v5808
    %5810 = vmatprep.subr.mxu0 0.0
    %v5811 = vand.u32 %v110, 4294901760
    %5812 = vmatpush1.msra.mxu0 %v5811
    %5813 = vmatprep.subr.mxu0 0.0
    %v5814 = vand.u32 %v109, 4294901760
    %5815 = vmatpush1.msra.mxu0 %v5814
    %5816 = vmatprep.subr.mxu0 0.0
    %v5817 = vand.u32 %v108, 4294901760
    %5818 = vmatpush1.msra.mxu0 %v5817
    %5819 = vmatprep.subr.mxu0 0.0
    %v5820 = vand.u32 %v107, 4294901760
    %5821 = vmatpush1.msra.mxu0 %v5820
    %5822 = vmatprep.subr.mxu0 0.0
    %5823 = vmatpush2.msra.mxu0 0.0
    %5824 = vmatprep.subr.mxu0 0.0
    %5825 = vmatpush2.msra.mxu0 0.0
    %5826 = vmatprep.subr.mxu0 0.0
    %5827 = vmatpush2.msra.mxu0 0.0
    %5828 = vmatprep.subr.mxu0 0.0
    %5829 = vmatpush2.msra.mxu0 0.0
    %5830 = vmatprep.subr.mxu0 0.0
    %5831 = vmatpush2.msra.mxu0 0.0
    %5832 = vmatprep.subr.mxu0 0.0
    %5833 = vmatpush2.msra.mxu0 0.0
    %5834 = vmatprep.subr.mxu0 0.0
    %5835 = vmatpush2.msra.mxu0 0.0
    %5836 = vmatprep.subr.mxu0 0.0
    %5837 = vmatpush2.msra.mxu0 0.0
    %5838 = vmatprep.subr.mxu0 0.0
    %5839 = vmatpush2.msra.mxu0 0.0
    %5840 = vmatprep.subr.mxu0 0.0
    %5841 = vmatpush2.msra.mxu0 0.0
    %5842 = vmatprep.subr.mxu0 0.0
    %5843 = vmatpush2.msra.mxu0 0.0
    %5844 = vmatprep.subr.mxu0 0.0
    %5845 = vmatpush2.msra.mxu0 0.0
    %5846 = vmatprep.subr.mxu0 0.0
    %5847 = vmatpush2.msra.mxu0 0.0
    %5848 = vmatprep.subr.mxu0 0.0
    %5849 = vmatpush2.msra.mxu0 0.0
    %5850 = vmatprep.subr.mxu0 0.0
    %5851 = vmatpush2.msra.mxu0 0.0
    %5852 = vmatprep.subr.mxu0 0.0
    %5853 = vmatpush2.msra.mxu0 0.0
    %5854 = vmatprep.mubr.f32.mxu0 0.0
    %v5855 = vand.u32 %v5131, 4294901760
    %v5856 = vsub.f32 %v5131, %v5855
    %v5857 = vand.u32 %v5856, 4294901760
    %v5858 = vsub.f32 %v5856, %v5857
    %v5859 = vand.u32 %v5858, 4294901760
    %5860 = vmatmul.mubr.f32.gmra.mxu0 %v5859
    %v5861 = vpop.f32.mrf.mxu0
    %v5862 = vadd.f32 0.0, %v5861
    %v5863 = vpop.f32.mrf.mxu0
    %5864 = vdwg.mxu0
    %5865 = vmatprep.subr.mxu0 0.0
    %v5866 = vand.u32 %v122, 4294901760
    %v5867 = vsub.f32 %v122, %v5866
    %v5868 = vand.u32 %v5867, 4294901760
    %v5869 = vsub.f32 %v5867, %v5868
    %v5870 = vand.u32 %v5869, 4294901760
    %5871 = vmatpush1.msra.mxu0 %v5870
    %5872 = vmatprep.subr.mxu0 0.0
    %v5873 = vand.u32 %v121, 4294901760
    %v5874 = vsub.f32 %v121, %v5873
    %v5875 = vand.u32 %v5874, 4294901760
    %v5876 = vsub.f32 %v5874, %v5875
    %v5877 = vand.u32 %v5876, 4294901760
    %5878 = vmatpush1.msra.mxu0 %v5877
    %5879 = vmatprep.subr.mxu0 0.0
    %v5880 = vand.u32 %v120, 4294901760
    %v5881 = vsub.f32 %v120, %v5880
    %v5882 = vand.u32 %v5881, 4294901760
    %v5883 = vsub.f32 %v5881, %v5882
    %v5884 = vand.u32 %v5883, 4294901760
    %5885 = vmatpush1.msra.mxu0 %v5884
    %5886 = vmatprep.subr.mxu0 0.0
    %v5887 = vand.u32 %v119, 4294901760
    %v5888 = vsub.f32 %v119, %v5887
    %v5889 = vand.u32 %v5888, 4294901760
    %v5890 = vsub.f32 %v5888, %v5889
    %v5891 = vand.u32 %v5890, 4294901760
    %5892 = vmatpush1.msra.mxu0 %v5891
    %5893 = vmatprep.subr.mxu0 0.0
    %v5894 = vand.u32 %v118, 4294901760
    %v5895 = vsub.f32 %v118, %v5894
    %v5896 = vand.u32 %v5895, 4294901760
    %v5897 = vsub.f32 %v5895, %v5896
    %v5898 = vand.u32 %v5897, 4294901760
    %5899 = vmatpush1.msra.mxu0 %v5898
    %5900 = vmatprep.subr.mxu0 0.0
    %v5901 = vand.u32 %v117, 4294901760
    %v5902 = vsub.f32 %v117, %v5901
    %v5903 = vand.u32 %v5902, 4294901760
    %v5904 = vsub.f32 %v5902, %v5903
    %v5905 = vand.u32 %v5904, 4294901760
    %5906 = vmatpush1.msra.mxu0 %v5905
    %5907 = vmatprep.subr.mxu0 0.0
    %v5908 = vand.u32 %v116, 4294901760
    %v5909 = vsub.f32 %v116, %v5908
    %v5910 = vand.u32 %v5909, 4294901760
    %v5911 = vsub.f32 %v5909, %v5910
    %v5912 = vand.u32 %v5911, 4294901760
    %5913 = vmatpush1.msra.mxu0 %v5912
    %5914 = vmatprep.subr.mxu0 0.0
    %v5915 = vand.u32 %v115, 4294901760
    %v5916 = vsub.f32 %v115, %v5915
    %v5917 = vand.u32 %v5916, 4294901760
    %v5918 = vsub.f32 %v5916, %v5917
    %v5919 = vand.u32 %v5918, 4294901760
    %5920 = vmatpush1.msra.mxu0 %v5919
    %5921 = vmatprep.subr.mxu0 0.0
    %v5922 = vand.u32 %v114, 4294901760
    %v5923 = vsub.f32 %v114, %v5922
    %v5924 = vand.u32 %v5923, 4294901760
    %v5925 = vsub.f32 %v5923, %v5924
    %v5926 = vand.u32 %v5925, 4294901760
    %5927 = vmatpush1.msra.mxu0 %v5926
    %5928 = vmatprep.subr.mxu0 0.0
    %v5929 = vand.u32 %v113, 4294901760
    %v5930 = vsub.f32 %v113, %v5929
    %v5931 = vand.u32 %v5930, 4294901760
    %v5932 = vsub.f32 %v5930, %v5931
    %v5933 = vand.u32 %v5932, 4294901760
    %5934 = vmatpush1.msra.mxu0 %v5933
    %5935 = vmatprep.subr.mxu0 0.0
    %v5936 = vand.u32 %v112, 4294901760
    %v5937 = vsub.f32 %v112, %v5936
    %v5938 = vand.u32 %v5937, 4294901760
    %v5939 = vsub.f32 %v5937, %v5938
    %v5940 = vand.u32 %v5939, 4294901760
    %5941 = vmatpush1.msra.mxu0 %v5940
    %5942 = vmatprep.subr.mxu0 0.0
    %v5943 = vand.u32 %v111, 4294901760
    %v5944 = vsub.f32 %v111, %v5943
    %v5945 = vand.u32 %v5944, 4294901760
    %v5946 = vsub.f32 %v5944, %v5945
    %v5947 = vand.u32 %v5946, 4294901760
    %5948 = vmatpush1.msra.mxu0 %v5947
    %5949 = vmatprep.subr.mxu0 0.0
    %v5950 = vand.u32 %v110, 4294901760
    %v5951 = vsub.f32 %v110, %v5950
    %v5952 = vand.u32 %v5951, 4294901760
    %v5953 = vsub.f32 %v5951, %v5952
    %v5954 = vand.u32 %v5953, 4294901760
    %5955 = vmatpush1.msra.mxu0 %v5954
    %5956 = vmatprep.subr.mxu0 0.0
    %v5957 = vand.u32 %v109, 4294901760
    %v5958 = vsub.f32 %v109, %v5957
    %v5959 = vand.u32 %v5958, 4294901760
    %v5960 = vsub.f32 %v5958, %v5959
    %v5961 = vand.u32 %v5960, 4294901760
    %5962 = vmatpush1.msra.mxu0 %v5961
    %5963 = vmatprep.subr.mxu0 0.0
    %v5964 = vand.u32 %v108, 4294901760
    %v5965 = vsub.f32 %v108, %v5964
    %v5966 = vand.u32 %v5965, 4294901760
    %v5967 = vsub.f32 %v5965, %v5966
    %v5968 = vand.u32 %v5967, 4294901760
    %5969 = vmatpush1.msra.mxu0 %v5968
    %5970 = vmatprep.subr.mxu0 0.0
    %v5971 = vand.u32 %v107, 4294901760
    %v5972 = vsub.f32 %v107, %v5971
    %v5973 = vand.u32 %v5972, 4294901760
    %v5974 = vsub.f32 %v5972, %v5973
    %v5975 = vand.u32 %v5974, 4294901760
    %5976 = vmatpush1.msra.mxu0 %v5975
    %5977 = vmatprep.subr.mxu0 0.0
    %5978 = vmatpush2.msra.mxu0 0.0
    %5979 = vmatprep.subr.mxu0 0.0
    %5980 = vmatpush2.msra.mxu0 0.0
    %5981 = vmatprep.subr.mxu0 0.0
    %5982 = vmatpush2.msra.mxu0 0.0
    %5983 = vmatprep.subr.mxu0 0.0
    %5984 = vmatpush2.msra.mxu0 0.0
    %5985 = vmatprep.subr.mxu0 0.0
    %5986 = vmatpush2.msra.mxu0 0.0
    %5987 = vmatprep.subr.mxu0 0.0
    %5988 = vmatpush2.msra.mxu0 0.0
    %5989 = vmatprep.subr.mxu0 0.0
    %5990 = vmatpush2.msra.mxu0 0.0
    %5991 = vmatprep.subr.mxu0 0.0
    %5992 = vmatpush2.msra.mxu0 0.0
    %5993 = vmatprep.subr.mxu0 0.0
    %5994 = vmatpush2.msra.mxu0 0.0
    %5995 = vmatprep.subr.mxu0 0.0
    %5996 = vmatpush2.msra.mxu0 0.0
    %5997 = vmatprep.subr.mxu0 0.0
    %5998 = vmatpush2.msra.mxu0 0.0
    %5999 = vmatprep.subr.mxu0 0.0
    %6000 = vmatpush2.msra.mxu0 0.0
    %6001 = vmatprep.subr.mxu0 0.0
    %6002 = vmatpush2.msra.mxu0 0.0
    %6003 = vmatprep.subr.mxu0 0.0
    %6004 = vmatpush2.msra.mxu0 0.0
    %6005 = vmatprep.subr.mxu0 0.0
    %6006 = vmatpush2.msra.mxu0 0.0
    %6007 = vmatprep.subr.mxu0 0.0
    %6008 = vmatpush2.msra.mxu0 0.0
    %6009 = vmatprep.mubr.f32.mxu0 0.0
    %v6010 = vand.u32 %v5131, 4294901760
    %6011 = vmatmul.mubr.f32.gmra.mxu0 %v6010
    %v6012 = vpop.f32.mrf.mxu0
    %v6013 = vadd.f32 %v5862, %v6012
    %v6014 = vpop.f32.mrf.mxu0
    %6015 = vdwg.mxu0
    %6016 = vmatprep.subr.mxu0 0.0
    %v6017 = vand.u32 %v122, 4294901760
    %v6018 = vsub.f32 %v122, %v6017
    %6019 = vmatpush1.msra.mxu0 %v6018
    %6020 = vmatprep.subr.mxu0 0.0
    %v6021 = vand.u32 %v121, 4294901760
    %v6022 = vsub.f32 %v121, %v6021
    %6023 = vmatpush1.msra.mxu0 %v6022
    %6024 = vmatprep.subr.mxu0 0.0
    %v6025 = vand.u32 %v120, 4294901760
    %v6026 = vsub.f32 %v120, %v6025
    %6027 = vmatpush1.msra.mxu0 %v6026
    %6028 = vmatprep.subr.mxu0 0.0
    %v6029 = vand.u32 %v119, 4294901760
    %v6030 = vsub.f32 %v119, %v6029
    %6031 = vmatpush1.msra.mxu0 %v6030
    %6032 = vmatprep.subr.mxu0 0.0
    %v6033 = vand.u32 %v118, 4294901760
    %v6034 = vsub.f32 %v118, %v6033
    %6035 = vmatpush1.msra.mxu0 %v6034
    %6036 = vmatprep.subr.mxu0 0.0
    %v6037 = vand.u32 %v117, 4294901760
    %v6038 = vsub.f32 %v117, %v6037
    %6039 = vmatpush1.msra.mxu0 %v6038
    %6040 = vmatprep.subr.mxu0 0.0
    %v6041 = vand.u32 %v116, 4294901760
    %v6042 = vsub.f32 %v116, %v6041
    %6043 = vmatpush1.msra.mxu0 %v6042
    %6044 = vmatprep.subr.mxu0 0.0
    %v6045 = vand.u32 %v115, 4294901760
    %v6046 = vsub.f32 %v115, %v6045
    %6047 = vmatpush1.msra.mxu0 %v6046
    %6048 = vmatprep.subr.mxu0 0.0
    %v6049 = vand.u32 %v114, 4294901760
    %v6050 = vsub.f32 %v114, %v6049
    %6051 = vmatpush1.msra.mxu0 %v6050
    %6052 = vmatprep.subr.mxu0 0.0
    %v6053 = vand.u32 %v113, 4294901760
    %v6054 = vsub.f32 %v113, %v6053
    %6055 = vmatpush1.msra.mxu0 %v6054
    %6056 = vmatprep.subr.mxu0 0.0
    %v6057 = vand.u32 %v112, 4294901760
    %v6058 = vsub.f32 %v112, %v6057
    %6059 = vmatpush1.msra.mxu0 %v6058
    %6060 = vmatprep.subr.mxu0 0.0
    %v6061 = vand.u32 %v111, 4294901760
    %v6062 = vsub.f32 %v111, %v6061
    %6063 = vmatpush1.msra.mxu0 %v6062
    %6064 = vmatprep.subr.mxu0 0.0
    %v6065 = vand.u32 %v110, 4294901760
    %v6066 = vsub.f32 %v110, %v6065
    %6067 = vmatpush1.msra.mxu0 %v6066
    %6068 = vmatprep.subr.mxu0 0.0
    %v6069 = vand.u32 %v109, 4294901760
    %v6070 = vsub.f32 %v109, %v6069
    %6071 = vmatpush1.msra.mxu0 %v6070
    %6072 = vmatprep.subr.mxu0 0.0
    %v6073 = vand.u32 %v108, 4294901760
    %v6074 = vsub.f32 %v108, %v6073
    %6075 = vmatpush1.msra.mxu0 %v6074
    %6076 = vmatprep.subr.mxu0 0.0
    %v6077 = vand.u32 %v107, 4294901760
    %v6078 = vsub.f32 %v107, %v6077
    %6079 = vmatpush1.msra.mxu0 %v6078
    %6080 = vmatprep.subr.mxu0 0.0
    %6081 = vmatpush2.msra.mxu0 0.0
    %6082 = vmatprep.subr.mxu0 0.0
    %6083 = vmatpush2.msra.mxu0 0.0
    %6084 = vmatprep.subr.mxu0 0.0
    %6085 = vmatpush2.msra.mxu0 0.0
    %6086 = vmatprep.subr.mxu0 0.0
    %6087 = vmatpush2.msra.mxu0 0.0
    %6088 = vmatprep.subr.mxu0 0.0
    %6089 = vmatpush2.msra.mxu0 0.0
    %6090 = vmatprep.subr.mxu0 0.0
    %6091 = vmatpush2.msra.mxu0 0.0
    %6092 = vmatprep.subr.mxu0 0.0
    %6093 = vmatpush2.msra.mxu0 0.0
    %6094 = vmatprep.subr.mxu0 0.0
    %6095 = vmatpush2.msra.mxu0 0.0
    %6096 = vmatprep.subr.mxu0 0.0
    %6097 = vmatpush2.msra.mxu0 0.0
    %6098 = vmatprep.subr.mxu0 0.0
    %6099 = vmatpush2.msra.mxu0 0.0
    %6100 = vmatprep.subr.mxu0 0.0
    %6101 = vmatpush2.msra.mxu0 0.0
    %6102 = vmatprep.subr.mxu0 0.0
    %6103 = vmatpush2.msra.mxu0 0.0
    %6104 = vmatprep.subr.mxu0 0.0
    %6105 = vmatpush2.msra.mxu0 0.0
    %6106 = vmatprep.subr.mxu0 0.0
    %6107 = vmatpush2.msra.mxu0 0.0
    %6108 = vmatprep.subr.mxu0 0.0
    %6109 = vmatpush2.msra.mxu0 0.0
    %6110 = vmatprep.subr.mxu0 0.0
    %6111 = vmatpush2.msra.mxu0 0.0
    %6112 = vmatprep.mubr.f32.mxu0 0.0
    %v6113 = vand.u32 %v5131, 4294901760
    %v6114 = vsub.f32 %v5131, %v6113
    %6115 = vmatmul.mubr.f32.gmra.mxu0 %v6114
    %v6116 = vpop.f32.mrf.mxu0
    %v6117 = vadd.f32 %v6013, %v6116
    %v6118 = vpop.f32.mrf.mxu0
    %6119 = vdwg.mxu0
    %6120 = vmatprep.subr.mxu0 0.0
    %v6121 = vand.u32 %v122, 4294901760
    %6122 = vmatpush1.msra.mxu0 %v6121
    %6123 = vmatprep.subr.mxu0 0.0
    %v6124 = vand.u32 %v121, 4294901760
    %6125 = vmatpush1.msra.mxu0 %v6124
    %6126 = vmatprep.subr.mxu0 0.0
    %v6127 = vand.u32 %v120, 4294901760
    %6128 = vmatpush1.msra.mxu0 %v6127
    %6129 = vmatprep.subr.mxu0 0.0
    %v6130 = vand.u32 %v119, 4294901760
    %6131 = vmatpush1.msra.mxu0 %v6130
    %6132 = vmatprep.subr.mxu0 0.0
    %v6133 = vand.u32 %v118, 4294901760
    %6134 = vmatpush1.msra.mxu0 %v6133
    %6135 = vmatprep.subr.mxu0 0.0
    %v6136 = vand.u32 %v117, 4294901760
    %6137 = vmatpush1.msra.mxu0 %v6136
    %6138 = vmatprep.subr.mxu0 0.0
    %v6139 = vand.u32 %v116, 4294901760
    %6140 = vmatpush1.msra.mxu0 %v6139
    %6141 = vmatprep.subr.mxu0 0.0
    %v6142 = vand.u32 %v115, 4294901760
    %6143 = vmatpush1.msra.mxu0 %v6142
    %6144 = vmatprep.subr.mxu0 0.0
    %v6145 = vand.u32 %v114, 4294901760
    %6146 = vmatpush1.msra.mxu0 %v6145
    %6147 = vmatprep.subr.mxu0 0.0
    %v6148 = vand.u32 %v113, 4294901760
    %6149 = vmatpush1.msra.mxu0 %v6148
    %6150 = vmatprep.subr.mxu0 0.0
    %v6151 = vand.u32 %v112, 4294901760
    %6152 = vmatpush1.msra.mxu0 %v6151
    %6153 = vmatprep.subr.mxu0 0.0
    %v6154 = vand.u32 %v111, 4294901760
    %6155 = vmatpush1.msra.mxu0 %v6154
    %6156 = vmatprep.subr.mxu0 0.0
    %v6157 = vand.u32 %v110, 4294901760
    %6158 = vmatpush1.msra.mxu0 %v6157
    %6159 = vmatprep.subr.mxu0 0.0
    %v6160 = vand.u32 %v109, 4294901760
    %6161 = vmatpush1.msra.mxu0 %v6160
    %6162 = vmatprep.subr.mxu0 0.0
    %v6163 = vand.u32 %v108, 4294901760
    %6164 = vmatpush1.msra.mxu0 %v6163
    %6165 = vmatprep.subr.mxu0 0.0
    %v6166 = vand.u32 %v107, 4294901760
    %6167 = vmatpush1.msra.mxu0 %v6166
    %6168 = vmatprep.subr.mxu0 0.0
    %6169 = vmatpush2.msra.mxu0 0.0
    %6170 = vmatprep.subr.mxu0 0.0
    %6171 = vmatpush2.msra.mxu0 0.0
    %6172 = vmatprep.subr.mxu0 0.0
    %6173 = vmatpush2.msra.mxu0 0.0
    %6174 = vmatprep.subr.mxu0 0.0
    %6175 = vmatpush2.msra.mxu0 0.0
    %6176 = vmatprep.subr.mxu0 0.0
    %6177 = vmatpush2.msra.mxu0 0.0
    %6178 = vmatprep.subr.mxu0 0.0
    %6179 = vmatpush2.msra.mxu0 0.0
    %6180 = vmatprep.subr.mxu0 0.0
    %6181 = vmatpush2.msra.mxu0 0.0
    %6182 = vmatprep.subr.mxu0 0.0
    %6183 = vmatpush2.msra.mxu0 0.0
    %6184 = vmatprep.subr.mxu0 0.0
    %6185 = vmatpush2.msra.mxu0 0.0
    %6186 = vmatprep.subr.mxu0 0.0
    %6187 = vmatpush2.msra.mxu0 0.0
    %6188 = vmatprep.subr.mxu0 0.0
    %6189 = vmatpush2.msra.mxu0 0.0
    %6190 = vmatprep.subr.mxu0 0.0
    %6191 = vmatpush2.msra.mxu0 0.0
    %6192 = vmatprep.subr.mxu0 0.0
    %6193 = vmatpush2.msra.mxu0 0.0
    %6194 = vmatprep.subr.mxu0 0.0
    %6195 = vmatpush2.msra.mxu0 0.0
    %6196 = vmatprep.subr.mxu0 0.0
    %6197 = vmatpush2.msra.mxu0 0.0
    %6198 = vmatprep.subr.mxu0 0.0
    %6199 = vmatpush2.msra.mxu0 0.0
    %6200 = vmatprep.mubr.f32.mxu0 0.0
    %v6201 = vand.u32 %v5131, 4294901760
    %v6202 = vsub.f32 %v5131, %v6201
    %v6203 = vand.u32 %v6202, 4294901760
    %6204 = vmatmul.mubr.f32.gmra.mxu0 %v6203
    %v6205 = vpop.f32.mrf.mxu0
    %v6206 = vadd.f32 %v6117, %v6205
    %v6207 = vpop.f32.mrf.mxu0
    %6208 = vdwg.mxu0
    %6209 = vmatprep.subr.mxu0 0.0
    %v6210 = vand.u32 %v122, 4294901760
    %v6211 = vsub.f32 %v122, %v6210
    %v6212 = vand.u32 %v6211, 4294901760
    %6213 = vmatpush1.msra.mxu0 %v6212
    %6214 = vmatprep.subr.mxu0 0.0
    %v6215 = vand.u32 %v121, 4294901760
    %v6216 = vsub.f32 %v121, %v6215
    %v6217 = vand.u32 %v6216, 4294901760
    %6218 = vmatpush1.msra.mxu0 %v6217
    %6219 = vmatprep.subr.mxu0 0.0
    %v6220 = vand.u32 %v120, 4294901760
    %v6221 = vsub.f32 %v120, %v6220
    %v6222 = vand.u32 %v6221, 4294901760
    %6223 = vmatpush1.msra.mxu0 %v6222
    %6224 = vmatprep.subr.mxu0 0.0
    %v6225 = vand.u32 %v119, 4294901760
    %v6226 = vsub.f32 %v119, %v6225
    %v6227 = vand.u32 %v6226, 4294901760
    %6228 = vmatpush1.msra.mxu0 %v6227
    %6229 = vmatprep.subr.mxu0 0.0
    %v6230 = vand.u32 %v118, 4294901760
    %v6231 = vsub.f32 %v118, %v6230
    %v6232 = vand.u32 %v6231, 4294901760
    %6233 = vmatpush1.msra.mxu0 %v6232
    %6234 = vmatprep.subr.mxu0 0.0
    %v6235 = vand.u32 %v117, 4294901760
    %v6236 = vsub.f32 %v117, %v6235
    %v6237 = vand.u32 %v6236, 4294901760
    %6238 = vmatpush1.msra.mxu0 %v6237
    %6239 = vmatprep.subr.mxu0 0.0
    %v6240 = vand.u32 %v116, 4294901760
    %v6241 = vsub.f32 %v116, %v6240
    %v6242 = vand.u32 %v6241, 4294901760
    %6243 = vmatpush1.msra.mxu0 %v6242
    %6244 = vmatprep.subr.mxu0 0.0
    %v6245 = vand.u32 %v115, 4294901760
    %v6246 = vsub.f32 %v115, %v6245
    %v6247 = vand.u32 %v6246, 4294901760
    %6248 = vmatpush1.msra.mxu0 %v6247
    %6249 = vmatprep.subr.mxu0 0.0
    %v6250 = vand.u32 %v114, 4294901760
    %v6251 = vsub.f32 %v114, %v6250
    %v6252 = vand.u32 %v6251, 4294901760
    %6253 = vmatpush1.msra.mxu0 %v6252
    %6254 = vmatprep.subr.mxu0 0.0
    %v6255 = vand.u32 %v113, 4294901760
    %v6256 = vsub.f32 %v113, %v6255
    %v6257 = vand.u32 %v6256, 4294901760
    %6258 = vmatpush1.msra.mxu0 %v6257
    %6259 = vmatprep.subr.mxu0 0.0
    %v6260 = vand.u32 %v112, 4294901760
    %v6261 = vsub.f32 %v112, %v6260
    %v6262 = vand.u32 %v6261, 4294901760
    %6263 = vmatpush1.msra.mxu0 %v6262
    %6264 = vmatprep.subr.mxu0 0.0
    %v6265 = vand.u32 %v111, 4294901760
    %v6266 = vsub.f32 %v111, %v6265
    %v6267 = vand.u32 %v6266, 4294901760
    %6268 = vmatpush1.msra.mxu0 %v6267
    %6269 = vmatprep.subr.mxu0 0.0
    %v6270 = vand.u32 %v110, 4294901760
    %v6271 = vsub.f32 %v110, %v6270
    %v6272 = vand.u32 %v6271, 4294901760
    %6273 = vmatpush1.msra.mxu0 %v6272
    %6274 = vmatprep.subr.mxu0 0.0
    %v6275 = vand.u32 %v109, 4294901760
    %v6276 = vsub.f32 %v109, %v6275
    %v6277 = vand.u32 %v6276, 4294901760
    %6278 = vmatpush1.msra.mxu0 %v6277
    %6279 = vmatprep.subr.mxu0 0.0
    %v6280 = vand.u32 %v108, 4294901760
    %v6281 = vsub.f32 %v108, %v6280
    %v6282 = vand.u32 %v6281, 4294901760
    %6283 = vmatpush1.msra.mxu0 %v6282
    %6284 = vmatprep.subr.mxu0 0.0
    %v6285 = vand.u32 %v107, 4294901760
    %v6286 = vsub.f32 %v107, %v6285
    %v6287 = vand.u32 %v6286, 4294901760
    %6288 = vmatpush1.msra.mxu0 %v6287
    %6289 = vmatprep.subr.mxu0 0.0
    %6290 = vmatpush2.msra.mxu0 0.0
    %6291 = vmatprep.subr.mxu0 0.0
    %6292 = vmatpush2.msra.mxu0 0.0
    %6293 = vmatprep.subr.mxu0 0.0
    %6294 = vmatpush2.msra.mxu0 0.0
    %6295 = vmatprep.subr.mxu0 0.0
    %6296 = vmatpush2.msra.mxu0 0.0
    %6297 = vmatprep.subr.mxu0 0.0
    %6298 = vmatpush2.msra.mxu0 0.0
    %6299 = vmatprep.subr.mxu0 0.0
    %6300 = vmatpush2.msra.mxu0 0.0
    %6301 = vmatprep.subr.mxu0 0.0
    %6302 = vmatpush2.msra.mxu0 0.0
    %6303 = vmatprep.subr.mxu0 0.0
    %6304 = vmatpush2.msra.mxu0 0.0
    %6305 = vmatprep.subr.mxu0 0.0
    %6306 = vmatpush2.msra.mxu0 0.0
    %6307 = vmatprep.subr.mxu0 0.0
    %6308 = vmatpush2.msra.mxu0 0.0
    %6309 = vmatprep.subr.mxu0 0.0
    %6310 = vmatpush2.msra.mxu0 0.0
    %6311 = vmatprep.subr.mxu0 0.0
    %6312 = vmatpush2.msra.mxu0 0.0
    %6313 = vmatprep.subr.mxu0 0.0
    %6314 = vmatpush2.msra.mxu0 0.0
    %6315 = vmatprep.subr.mxu0 0.0
    %6316 = vmatpush2.msra.mxu0 0.0
    %6317 = vmatprep.subr.mxu0 0.0
    %6318 = vmatpush2.msra.mxu0 0.0
    %6319 = vmatprep.subr.mxu0 0.0
    %6320 = vmatpush2.msra.mxu0 0.0
    %6321 = vmatprep.mubr.f32.mxu0 0.0
    %v6322 = vand.u32 %v5131, 4294901760
    %6323 = vmatmul.mubr.f32.gmra.mxu0 %v6322
    %v6324 = vpop.f32.mrf.mxu0
    %v6325 = vadd.f32 %v6206, %v6324
    %v6326 = vpop.f32.mrf.mxu0
    %6327 = vdwg.mxu0
    %6328 = vmatprep.subr.mxu0 0.0
    %v6329 = vand.u32 %v122, 4294901760
    %6330 = vmatpush1.msra.mxu0 %v6329
    %6331 = vmatprep.subr.mxu0 0.0
    %v6332 = vand.u32 %v121, 4294901760
    %6333 = vmatpush1.msra.mxu0 %v6332
    %6334 = vmatprep.subr.mxu0 0.0
    %v6335 = vand.u32 %v120, 4294901760
    %6336 = vmatpush1.msra.mxu0 %v6335
    %6337 = vmatprep.subr.mxu0 0.0
    %v6338 = vand.u32 %v119, 4294901760
    %6339 = vmatpush1.msra.mxu0 %v6338
    %6340 = vmatprep.subr.mxu0 0.0
    %v6341 = vand.u32 %v118, 4294901760
    %6342 = vmatpush1.msra.mxu0 %v6341
    %6343 = vmatprep.subr.mxu0 0.0
    %v6344 = vand.u32 %v117, 4294901760
    %6345 = vmatpush1.msra.mxu0 %v6344
    %6346 = vmatprep.subr.mxu0 0.0
    %v6347 = vand.u32 %v116, 4294901760
    %6348 = vmatpush1.msra.mxu0 %v6347
    %6349 = vmatprep.subr.mxu0 0.0
    %v6350 = vand.u32 %v115, 4294901760
    %6351 = vmatpush1.msra.mxu0 %v6350
    %6352 = vmatprep.subr.mxu0 0.0
    %v6353 = vand.u32 %v114, 4294901760
    %6354 = vmatpush1.msra.mxu0 %v6353
    %6355 = vmatprep.subr.mxu0 0.0
    %v6356 = vand.u32 %v113, 4294901760
    %6357 = vmatpush1.msra.mxu0 %v6356
    %6358 = vmatprep.subr.mxu0 0.0
    %v6359 = vand.u32 %v112, 4294901760
    %6360 = vmatpush1.msra.mxu0 %v6359
    %6361 = vmatprep.subr.mxu0 0.0
    %v6362 = vand.u32 %v111, 4294901760
    %6363 = vmatpush1.msra.mxu0 %v6362
    %6364 = vmatprep.subr.mxu0 0.0
    %v6365 = vand.u32 %v110, 4294901760
    %6366 = vmatpush1.msra.mxu0 %v6365
    %6367 = vmatprep.subr.mxu0 0.0
    %v6368 = vand.u32 %v109, 4294901760
    %6369 = vmatpush1.msra.mxu0 %v6368
    %6370 = vmatprep.subr.mxu0 0.0
    %v6371 = vand.u32 %v108, 4294901760
    %6372 = vmatpush1.msra.mxu0 %v6371
    %6373 = vmatprep.subr.mxu0 0.0
    %v6374 = vand.u32 %v107, 4294901760
    %6375 = vmatpush1.msra.mxu0 %v6374
    %6376 = vmatprep.subr.mxu0 0.0
    %6377 = vmatpush2.msra.mxu0 0.0
    %6378 = vmatprep.subr.mxu0 0.0
    %6379 = vmatpush2.msra.mxu0 0.0
    %6380 = vmatprep.subr.mxu0 0.0
    %6381 = vmatpush2.msra.mxu0 0.0
    %6382 = vmatprep.subr.mxu0 0.0
    %6383 = vmatpush2.msra.mxu0 0.0
    %6384 = vmatprep.subr.mxu0 0.0
    %6385 = vmatpush2.msra.mxu0 0.0
    %6386 = vmatprep.subr.mxu0 0.0
    %6387 = vmatpush2.msra.mxu0 0.0
    %6388 = vmatprep.subr.mxu0 0.0
    %6389 = vmatpush2.msra.mxu0 0.0
    %6390 = vmatprep.subr.mxu0 0.0
    %6391 = vmatpush2.msra.mxu0 0.0
    %6392 = vmatprep.subr.mxu0 0.0
    %6393 = vmatpush2.msra.mxu0 0.0
    %6394 = vmatprep.subr.mxu0 0.0
    %6395 = vmatpush2.msra.mxu0 0.0
    %6396 = vmatprep.subr.mxu0 0.0
    %6397 = vmatpush2.msra.mxu0 0.0
    %6398 = vmatprep.subr.mxu0 0.0
    %6399 = vmatpush2.msra.mxu0 0.0
    %6400 = vmatprep.subr.mxu0 0.0
    %6401 = vmatpush2.msra.mxu0 0.0
    %6402 = vmatprep.subr.mxu0 0.0
    %6403 = vmatpush2.msra.mxu0 0.0
    %6404 = vmatprep.subr.mxu0 0.0
    %6405 = vmatpush2.msra.mxu0 0.0
    %6406 = vmatprep.subr.mxu0 0.0
    %6407 = vmatpush2.msra.mxu0 0.0
    %6408 = vmatprep.mubr.f32.mxu0 0.0
    %v6409 = vand.u32 %v5131, 4294901760
    %6410 = vmatmul.mubr.f32.gmra.mxu0 %v6409
    %v6411 = vpop.f32.mrf.mxu0
    %v6412 = vadd.f32 %v6325, %v6411
    %v6413 = vpop.f32.mrf.mxu0
    %6414 = vdwg.mxu0
    %v6415 = vmul.f32 %v6412, 0.001953125
    %v6416 = vmul.f32 %v5773, %v5773
    %v6417 = vsub.f32 %v6415, %v6416
    %v6418 = vlaneseq
    %v6419 = vshrl.u32 %v6418, 7
    %v6420 = vsub.s32 0, %v6419
    %v6421 = vrot.slane %v5773, %v6420
    %v6422 = vsub.f32 %v5106, %v6421
    %v6423 = vsub.f32 %v5107, %v6421
    %v6424 = vsub.f32 %v5108, %v6421
    %v6425 = vsub.f32 %v5109, %v6421
    %v6426 = vadd.f32 %v6417, 1e-05
    %v6427 = vrsqrt.pop %v6426
    %v6428 = vlaneseq
    %v6429 = vshrl.u32 %v6428, 7
    %v6430 = vsub.s32 0, %v6429
    %v6431 = vrot.slane %v6427, %v6430
    %v6432 = vmul.f32 %v6422, %v6431
    %v6433 = vmul.f32 %v6423, %v6431
    %v6434 = vmul.f32 %v6424, %v6431
    %v6435 = vmul.f32 %v6425, %v6431
    %v6436 = vmul.f32 %v6432, %v1462
    %v6437 = vmul.f32 %v6433, %v1462
    %v6438 = vmul.f32 %v6434, %v1462
    %v6439 = vmul.f32 %v6435, %v1462
    %v6440 = vadd.f32 %v6436, %v1472
    %v6441 = vadd.f32 %v6437, %v1472
    %v6442 = vadd.f32 %v6438, %v1472
    %v6443 = vadd.f32 %v6439, %v1472
    %6444 = vmatprep.subr.mxu0 0.0
    %6445 = vmatpush1.msra.mxu0 0.0
    %6446 = vmatprep.subr.mxu0 0.0
    %6447 = vmatpush1.msra.mxu0 0.0
    %6448 = vmatprep.subr.mxu0 0.0
    %6449 = vmatpush1.msra.mxu0 0.0
    %6450 = vmatprep.subr.mxu0 0.0
    %6451 = vmatpush1.msra.mxu0 0.0
    %6452 = vmatprep.subr.mxu0 0.0
    %6453 = vmatpush1.msra.mxu0 0.0
    %6454 = vmatprep.subr.mxu0 0.0
    %6455 = vmatpush1.msra.mxu0 0.0
    %6456 = vmatprep.subr.mxu0 0.0
    %6457 = vmatpush1.msra.mxu0 0.0
    %6458 = vmatprep.subr.mxu0 0.0
    %6459 = vmatpush1.msra.mxu0 0.0
    %6460 = vmatprep.subr.mxu0 0.0
    %6461 = vmatpush1.msra.mxu0 0.0
    %6462 = vmatprep.subr.mxu0 0.0
    %6463 = vmatpush1.msra.mxu0 0.0
    %6464 = vmatprep.subr.mxu0 0.0
    %6465 = vmatpush1.msra.mxu0 0.0
    %6466 = vmatprep.subr.mxu0 0.0
    %6467 = vmatpush1.msra.mxu0 0.0
    %6468 = vmatprep.subr.mxu0 0.0
    %v6469 = vand.u32 %v6443, 4294901760
    %6470 = vmatpush1.msra.mxu0 %v6469
    %6471 = vmatprep.subr.mxu0 0.0
    %v6472 = vand.u32 %v6442, 4294901760
    %6473 = vmatpush1.msra.mxu0 %v6472
    %6474 = vmatprep.subr.mxu0 0.0
    %v6475 = vand.u32 %v6441, 4294901760
    %6476 = vmatpush1.msra.mxu0 %v6475
    %6477 = vmatprep.subr.mxu0 0.0
    %v6478 = vand.u32 %v6440, 4294901760
    %6479 = vmatpush1.msra.mxu0 %v6478
    %6480 = vmatprep.subr.mxu0 0.0
    %6481 = vmatpush2.msra.mxu0 0.0
    %6482 = vmatprep.subr.mxu0 0.0
    %6483 = vmatpush2.msra.mxu0 0.0
    %6484 = vmatprep.subr.mxu0 0.0
    %6485 = vmatpush2.msra.mxu0 0.0
    %6486 = vmatprep.subr.mxu0 0.0
    %6487 = vmatpush2.msra.mxu0 0.0
    %6488 = vmatprep.subr.mxu0 0.0
    %6489 = vmatpush2.msra.mxu0 0.0
    %6490 = vmatprep.subr.mxu0 0.0
    %6491 = vmatpush2.msra.mxu0 0.0
    %6492 = vmatprep.subr.mxu0 0.0
    %6493 = vmatpush2.msra.mxu0 0.0
    %6494 = vmatprep.subr.mxu0 0.0
    %6495 = vmatpush2.msra.mxu0 0.0
    %6496 = vmatprep.subr.mxu0 0.0
    %6497 = vmatpush2.msra.mxu0 0.0
    %6498 = vmatprep.subr.mxu0 0.0
    %6499 = vmatpush2.msra.mxu0 0.0
    %6500 = vmatprep.subr.mxu0 0.0
    %6501 = vmatpush2.msra.mxu0 0.0
    %6502 = vmatprep.subr.mxu0 0.0
    %6503 = vmatpush2.msra.mxu0 0.0
    %6504 = vmatprep.subr.mxu0 0.0
    %6505 = vmatpush2.msra.mxu0 0.0
    %6506 = vmatprep.subr.mxu0 0.0
    %6507 = vmatpush2.msra.mxu0 0.0
    %6508 = vmatprep.subr.mxu0 0.0
    %6509 = vmatpush2.msra.mxu0 0.0
    %6510 = vmatprep.subr.mxu0 0.0
    %6511 = vmatpush2.msra.mxu0 0.0
    %6512 = vmatprep.mubr.f32.mxu0 0.0
    %v6513 = vand.u32 %v1484, 4294901760
    %v6514 = vsub.f32 %v1484, %v6513
    %v6515 = vand.u32 %v6514, 4294901760
    %v6516 = vsub.f32 %v6514, %v6515
    %v6517 = vand.u32 %v6516, 4294901760
    %6518 = vmatmul.mubr.f32.gmra.mxu0 %v6517
    %v6519 = vpop.f32.mrf.mxu0
    %v6520 = vadd.f32 0.0, %v6519
    %v6521 = vpop.f32.mrf.mxu0
    %6522 = vmatprep.mubr.f32.mxu0 0.0
    %v6523 = vand.u32 %v1487, 4294901760
    %v6524 = vsub.f32 %v1487, %v6523
    %v6525 = vand.u32 %v6524, 4294901760
    %v6526 = vsub.f32 %v6524, %v6525
    %v6527 = vand.u32 %v6526, 4294901760
    %6528 = vmatmul.mubr.f32.gmra.mxu0 %v6527
    %v6529 = vpop.f32.mrf.mxu0
    %v6530 = vadd.f32 0.0, %v6529
    %v6531 = vpop.f32.mrf.mxu0
    %6532 = vmatprep.mubr.f32.mxu0 0.0
    %v6533 = vand.u32 %v1490, 4294901760
    %v6534 = vsub.f32 %v1490, %v6533
    %v6535 = vand.u32 %v6534, 4294901760
    %v6536 = vsub.f32 %v6534, %v6535
    %v6537 = vand.u32 %v6536, 4294901760
    %6538 = vmatmul.mubr.f32.gmra.mxu0 %v6537
    %v6539 = vpop.f32.mrf.mxu0
    %v6540 = vadd.f32 0.0, %v6539
    %v6541 = vpop.f32.mrf.mxu0
    %6542 = vmatprep.mubr.f32.mxu0 0.0
    %v6543 = vand.u32 %v1493, 4294901760
    %v6544 = vsub.f32 %v1493, %v6543
    %v6545 = vand.u32 %v6544, 4294901760
    %v6546 = vsub.f32 %v6544, %v6545
    %v6547 = vand.u32 %v6546, 4294901760
    %6548 = vmatmul.mubr.f32.gmra.mxu0 %v6547
    %v6549 = vpop.f32.mrf.mxu0
    %v6550 = vadd.f32 0.0, %v6549
    %v6551 = vpop.f32.mrf.mxu0
    %6552 = vdwg.mxu0
    %6553 = vmatprep.subr.mxu0 0.0
    %6554 = vmatpush1.msra.mxu0 0.0
    %6555 = vmatprep.subr.mxu0 0.0
    %6556 = vmatpush1.msra.mxu0 0.0
    %6557 = vmatprep.subr.mxu0 0.0
    %6558 = vmatpush1.msra.mxu0 0.0
    %6559 = vmatprep.subr.mxu0 0.0
    %6560 = vmatpush1.msra.mxu0 0.0
    %6561 = vmatprep.subr.mxu0 0.0
    %6562 = vmatpush1.msra.mxu0 0.0
    %6563 = vmatprep.subr.mxu0 0.0
    %6564 = vmatpush1.msra.mxu0 0.0
    %6565 = vmatprep.subr.mxu0 0.0
    %6566 = vmatpush1.msra.mxu0 0.0
    %6567 = vmatprep.subr.mxu0 0.0
    %6568 = vmatpush1.msra.mxu0 0.0
    %6569 = vmatprep.subr.mxu0 0.0
    %6570 = vmatpush1.msra.mxu0 0.0
    %6571 = vmatprep.subr.mxu0 0.0
    %6572 = vmatpush1.msra.mxu0 0.0
    %6573 = vmatprep.subr.mxu0 0.0
    %6574 = vmatpush1.msra.mxu0 0.0
    %6575 = vmatprep.subr.mxu0 0.0
    %6576 = vmatpush1.msra.mxu0 0.0
    %6577 = vmatprep.subr.mxu0 0.0
    %v6578 = vand.u32 %v6443, 4294901760
    %v6579 = vsub.f32 %v6443, %v6578
    %v6580 = vand.u32 %v6579, 4294901760
    %v6581 = vsub.f32 %v6579, %v6580
    %v6582 = vand.u32 %v6581, 4294901760
    %6583 = vmatpush1.msra.mxu0 %v6582
    %6584 = vmatprep.subr.mxu0 0.0
    %v6585 = vand.u32 %v6442, 4294901760
    %v6586 = vsub.f32 %v6442, %v6585
    %v6587 = vand.u32 %v6586, 4294901760
    %v6588 = vsub.f32 %v6586, %v6587
    %v6589 = vand.u32 %v6588, 4294901760
    %6590 = vmatpush1.msra.mxu0 %v6589
    %6591 = vmatprep.subr.mxu0 0.0
    %v6592 = vand.u32 %v6441, 4294901760
    %v6593 = vsub.f32 %v6441, %v6592
    %v6594 = vand.u32 %v6593, 4294901760
    %v6595 = vsub.f32 %v6593, %v6594
    %v6596 = vand.u32 %v6595, 4294901760
    %6597 = vmatpush1.msra.mxu0 %v6596
    %6598 = vmatprep.subr.mxu0 0.0
    %v6599 = vand.u32 %v6440, 4294901760
    %v6600 = vsub.f32 %v6440, %v6599
    %v6601 = vand.u32 %v6600, 4294901760
    %v6602 = vsub.f32 %v6600, %v6601
    %v6603 = vand.u32 %v6602, 4294901760
    %6604 = vmatpush1.msra.mxu0 %v6603
    %6605 = vmatprep.subr.mxu0 0.0
    %6606 = vmatpush2.msra.mxu0 0.0
    %6607 = vmatprep.subr.mxu0 0.0
    %6608 = vmatpush2.msra.mxu0 0.0
    %6609 = vmatprep.subr.mxu0 0.0
    %6610 = vmatpush2.msra.mxu0 0.0
    %6611 = vmatprep.subr.mxu0 0.0
    %6612 = vmatpush2.msra.mxu0 0.0
    %6613 = vmatprep.subr.mxu0 0.0
    %6614 = vmatpush2.msra.mxu0 0.0
    %6615 = vmatprep.subr.mxu0 0.0
    %6616 = vmatpush2.msra.mxu0 0.0
    %6617 = vmatprep.subr.mxu0 0.0
    %6618 = vmatpush2.msra.mxu0 0.0
    %6619 = vmatprep.subr.mxu0 0.0
    %6620 = vmatpush2.msra.mxu0 0.0
    %6621 = vmatprep.subr.mxu0 0.0
    %6622 = vmatpush2.msra.mxu0 0.0
    %6623 = vmatprep.subr.mxu0 0.0
    %6624 = vmatpush2.msra.mxu0 0.0
    %6625 = vmatprep.subr.mxu0 0.0
    %6626 = vmatpush2.msra.mxu0 0.0
    %6627 = vmatprep.subr.mxu0 0.0
    %6628 = vmatpush2.msra.mxu0 0.0
    %6629 = vmatprep.subr.mxu0 0.0
    %6630 = vmatpush2.msra.mxu0 0.0
    %6631 = vmatprep.subr.mxu0 0.0
    %6632 = vmatpush2.msra.mxu0 0.0
    %6633 = vmatprep.subr.mxu0 0.0
    %6634 = vmatpush2.msra.mxu0 0.0
    %6635 = vmatprep.subr.mxu0 0.0
    %6636 = vmatpush2.msra.mxu0 0.0
    %6637 = vmatprep.mubr.f32.mxu0 0.0
    %v6638 = vand.u32 %v1484, 4294901760
    %6639 = vmatmul.mubr.f32.gmra.mxu0 %v6638
    %v6640 = vpop.f32.mrf.mxu0
    %v6641 = vadd.f32 %v6520, %v6640
    %v6642 = vpop.f32.mrf.mxu0
    %6643 = vmatprep.mubr.f32.mxu0 0.0
    %v6644 = vand.u32 %v1487, 4294901760
    %6645 = vmatmul.mubr.f32.gmra.mxu0 %v6644
    %v6646 = vpop.f32.mrf.mxu0
    %v6647 = vadd.f32 %v6530, %v6646
    %v6648 = vpop.f32.mrf.mxu0
    %6649 = vmatprep.mubr.f32.mxu0 0.0
    %v6650 = vand.u32 %v1490, 4294901760
    %6651 = vmatmul.mubr.f32.gmra.mxu0 %v6650
    %v6652 = vpop.f32.mrf.mxu0
    %v6653 = vadd.f32 %v6540, %v6652
    %v6654 = vpop.f32.mrf.mxu0
    %6655 = vmatprep.mubr.f32.mxu0 0.0
    %v6656 = vand.u32 %v1493, 4294901760
    %6657 = vmatmul.mubr.f32.gmra.mxu0 %v6656
    %v6658 = vpop.f32.mrf.mxu0
    %v6659 = vadd.f32 %v6550, %v6658
    %v6660 = vpop.f32.mrf.mxu0
    %6661 = vdwg.mxu0
    %6662 = vmatprep.subr.mxu0 0.0
    %6663 = vmatpush1.msra.mxu0 0.0
    %6664 = vmatprep.subr.mxu0 0.0
    %6665 = vmatpush1.msra.mxu0 0.0
    %6666 = vmatprep.subr.mxu0 0.0
    %6667 = vmatpush1.msra.mxu0 0.0
    %6668 = vmatprep.subr.mxu0 0.0
    %6669 = vmatpush1.msra.mxu0 0.0
    %6670 = vmatprep.subr.mxu0 0.0
    %6671 = vmatpush1.msra.mxu0 0.0
    %6672 = vmatprep.subr.mxu0 0.0
    %6673 = vmatpush1.msra.mxu0 0.0
    %6674 = vmatprep.subr.mxu0 0.0
    %6675 = vmatpush1.msra.mxu0 0.0
    %6676 = vmatprep.subr.mxu0 0.0
    %6677 = vmatpush1.msra.mxu0 0.0
    %6678 = vmatprep.subr.mxu0 0.0
    %6679 = vmatpush1.msra.mxu0 0.0
    %6680 = vmatprep.subr.mxu0 0.0
    %6681 = vmatpush1.msra.mxu0 0.0
    %6682 = vmatprep.subr.mxu0 0.0
    %6683 = vmatpush1.msra.mxu0 0.0
    %6684 = vmatprep.subr.mxu0 0.0
    %6685 = vmatpush1.msra.mxu0 0.0
    %6686 = vmatprep.subr.mxu0 0.0
    %v6687 = vand.u32 %v6443, 4294901760
    %v6688 = vsub.f32 %v6443, %v6687
    %6689 = vmatpush1.msra.mxu0 %v6688
    %6690 = vmatprep.subr.mxu0 0.0
    %v6691 = vand.u32 %v6442, 4294901760
    %v6692 = vsub.f32 %v6442, %v6691
    %6693 = vmatpush1.msra.mxu0 %v6692
    %6694 = vmatprep.subr.mxu0 0.0
    %v6695 = vand.u32 %v6441, 4294901760
    %v6696 = vsub.f32 %v6441, %v6695
    %6697 = vmatpush1.msra.mxu0 %v6696
    %6698 = vmatprep.subr.mxu0 0.0
    %v6699 = vand.u32 %v6440, 4294901760
    %v6700 = vsub.f32 %v6440, %v6699
    %6701 = vmatpush1.msra.mxu0 %v6700
    %6702 = vmatprep.subr.mxu0 0.0
    %6703 = vmatpush2.msra.mxu0 0.0
    %6704 = vmatprep.subr.mxu0 0.0
    %6705 = vmatpush2.msra.mxu0 0.0
    %6706 = vmatprep.subr.mxu0 0.0
    %6707 = vmatpush2.msra.mxu0 0.0
    %6708 = vmatprep.subr.mxu0 0.0
    %6709 = vmatpush2.msra.mxu0 0.0
    %6710 = vmatprep.subr.mxu0 0.0
    %6711 = vmatpush2.msra.mxu0 0.0
    %6712 = vmatprep.subr.mxu0 0.0
    %6713 = vmatpush2.msra.mxu0 0.0
    %6714 = vmatprep.subr.mxu0 0.0
    %6715 = vmatpush2.msra.mxu0 0.0
    %6716 = vmatprep.subr.mxu0 0.0
    %6717 = vmatpush2.msra.mxu0 0.0
    %6718 = vmatprep.subr.mxu0 0.0
    %6719 = vmatpush2.msra.mxu0 0.0
    %6720 = vmatprep.subr.mxu0 0.0
    %6721 = vmatpush2.msra.mxu0 0.0
    %6722 = vmatprep.subr.mxu0 0.0
    %6723 = vmatpush2.msra.mxu0 0.0
    %6724 = vmatprep.subr.mxu0 0.0
    %6725 = vmatpush2.msra.mxu0 0.0
    %6726 = vmatprep.subr.mxu0 0.0
    %6727 = vmatpush2.msra.mxu0 0.0
    %6728 = vmatprep.subr.mxu0 0.0
    %6729 = vmatpush2.msra.mxu0 0.0
    %6730 = vmatprep.subr.mxu0 0.0
    %6731 = vmatpush2.msra.mxu0 0.0
    %6732 = vmatprep.subr.mxu0 0.0
    %6733 = vmatpush2.msra.mxu0 0.0
    %6734 = vmatprep.mubr.f32.mxu0 0.0
    %v6735 = vand.u32 %v1484, 4294901760
    %v6736 = vsub.f32 %v1484, %v6735
    %6737 = vmatmul.mubr.f32.gmra.mxu0 %v6736
    %v6738 = vpop.f32.mrf.mxu0
    %v6739 = vadd.f32 %v6641, %v6738
    %v6740 = vpop.f32.mrf.mxu0
    %6741 = vmatprep.mubr.f32.mxu0 0.0
    %v6742 = vand.u32 %v1487, 4294901760
    %v6743 = vsub.f32 %v1487, %v6742
    %6744 = vmatmul.mubr.f32.gmra.mxu0 %v6743
    %v6745 = vpop.f32.mrf.mxu0
    %v6746 = vadd.f32 %v6647, %v6745
    %v6747 = vpop.f32.mrf.mxu0
    %6748 = vmatprep.mubr.f32.mxu0 0.0
    %v6749 = vand.u32 %v1490, 4294901760
    %v6750 = vsub.f32 %v1490, %v6749
    %6751 = vmatmul.mubr.f32.gmra.mxu0 %v6750
    %v6752 = vpop.f32.mrf.mxu0
    %v6753 = vadd.f32 %v6653, %v6752
    %v6754 = vpop.f32.mrf.mxu0
    %6755 = vmatprep.mubr.f32.mxu0 0.0
    %v6756 = vand.u32 %v1493, 4294901760
    %v6757 = vsub.f32 %v1493, %v6756
    %6758 = vmatmul.mubr.f32.gmra.mxu0 %v6757
    %v6759 = vpop.f32.mrf.mxu0
    %v6760 = vadd.f32 %v6659, %v6759
    %v6761 = vpop.f32.mrf.mxu0
    %6762 = vdwg.mxu0
    %6763 = vmatprep.subr.mxu0 0.0
    %6764 = vmatpush1.msra.mxu0 0.0
    %6765 = vmatprep.subr.mxu0 0.0
    %6766 = vmatpush1.msra.mxu0 0.0
    %6767 = vmatprep.subr.mxu0 0.0
    %6768 = vmatpush1.msra.mxu0 0.0
    %6769 = vmatprep.subr.mxu0 0.0
    %6770 = vmatpush1.msra.mxu0 0.0
    %6771 = vmatprep.subr.mxu0 0.0
    %6772 = vmatpush1.msra.mxu0 0.0
    %6773 = vmatprep.subr.mxu0 0.0
    %6774 = vmatpush1.msra.mxu0 0.0
    %6775 = vmatprep.subr.mxu0 0.0
    %6776 = vmatpush1.msra.mxu0 0.0
    %6777 = vmatprep.subr.mxu0 0.0
    %6778 = vmatpush1.msra.mxu0 0.0
    %6779 = vmatprep.subr.mxu0 0.0
    %6780 = vmatpush1.msra.mxu0 0.0
    %6781 = vmatprep.subr.mxu0 0.0
    %6782 = vmatpush1.msra.mxu0 0.0
    %6783 = vmatprep.subr.mxu0 0.0
    %6784 = vmatpush1.msra.mxu0 0.0
    %6785 = vmatprep.subr.mxu0 0.0
    %6786 = vmatpush1.msra.mxu0 0.0
    %6787 = vmatprep.subr.mxu0 0.0
    %v6788 = vand.u32 %v6443, 4294901760
    %6789 = vmatpush1.msra.mxu0 %v6788
    %6790 = vmatprep.subr.mxu0 0.0
    %v6791 = vand.u32 %v6442, 4294901760
    %6792 = vmatpush1.msra.mxu0 %v6791
    %6793 = vmatprep.subr.mxu0 0.0
    %v6794 = vand.u32 %v6441, 4294901760
    %6795 = vmatpush1.msra.mxu0 %v6794
    %6796 = vmatprep.subr.mxu0 0.0
    %v6797 = vand.u32 %v6440, 4294901760
    %6798 = vmatpush1.msra.mxu0 %v6797
    %6799 = vmatprep.subr.mxu0 0.0
    %6800 = vmatpush2.msra.mxu0 0.0
    %6801 = vmatprep.subr.mxu0 0.0
    %6802 = vmatpush2.msra.mxu0 0.0
    %6803 = vmatprep.subr.mxu0 0.0
    %6804 = vmatpush2.msra.mxu0 0.0
    %6805 = vmatprep.subr.mxu0 0.0
    %6806 = vmatpush2.msra.mxu0 0.0
    %6807 = vmatprep.subr.mxu0 0.0
    %6808 = vmatpush2.msra.mxu0 0.0
    %6809 = vmatprep.subr.mxu0 0.0
    %6810 = vmatpush2.msra.mxu0 0.0
    %6811 = vmatprep.subr.mxu0 0.0
    %6812 = vmatpush2.msra.mxu0 0.0
    %6813 = vmatprep.subr.mxu0 0.0
    %6814 = vmatpush2.msra.mxu0 0.0
    %6815 = vmatprep.subr.mxu0 0.0
    %6816 = vmatpush2.msra.mxu0 0.0
    %6817 = vmatprep.subr.mxu0 0.0
    %6818 = vmatpush2.msra.mxu0 0.0
    %6819 = vmatprep.subr.mxu0 0.0
    %6820 = vmatpush2.msra.mxu0 0.0
    %6821 = vmatprep.subr.mxu0 0.0
    %6822 = vmatpush2.msra.mxu0 0.0
    %6823 = vmatprep.subr.mxu0 0.0
    %6824 = vmatpush2.msra.mxu0 0.0
    %6825 = vmatprep.subr.mxu0 0.0
    %6826 = vmatpush2.msra.mxu0 0.0
    %6827 = vmatprep.subr.mxu0 0.0
    %6828 = vmatpush2.msra.mxu0 0.0
    %6829 = vmatprep.subr.mxu0 0.0
    %6830 = vmatpush2.msra.mxu0 0.0
    %6831 = vmatprep.mubr.f32.mxu0 0.0
    %v6832 = vand.u32 %v1484, 4294901760
    %v6833 = vsub.f32 %v1484, %v6832
    %v6834 = vand.u32 %v6833, 4294901760
    %6835 = vmatmul.mubr.f32.gmra.mxu0 %v6834
    %v6836 = vpop.f32.mrf.mxu0
    %v6837 = vadd.f32 %v6739, %v6836
    %v6838 = vpop.f32.mrf.mxu0
    %6839 = vmatprep.mubr.f32.mxu0 0.0
    %v6840 = vand.u32 %v1487, 4294901760
    %v6841 = vsub.f32 %v1487, %v6840
    %v6842 = vand.u32 %v6841, 4294901760
    %6843 = vmatmul.mubr.f32.gmra.mxu0 %v6842
    %v6844 = vpop.f32.mrf.mxu0
    %v6845 = vadd.f32 %v6746, %v6844
    %v6846 = vpop.f32.mrf.mxu0
    %6847 = vmatprep.mubr.f32.mxu0 0.0
    %v6848 = vand.u32 %v1490, 4294901760
    %v6849 = vsub.f32 %v1490, %v6848
    %v6850 = vand.u32 %v6849, 4294901760
    %6851 = vmatmul.mubr.f32.gmra.mxu0 %v6850
    %v6852 = vpop.f32.mrf.mxu0
    %v6853 = vadd.f32 %v6753, %v6852
    %v6854 = vpop.f32.mrf.mxu0
    %6855 = vmatprep.mubr.f32.mxu0 0.0
    %v6856 = vand.u32 %v1493, 4294901760
    %v6857 = vsub.f32 %v1493, %v6856
    %v6858 = vand.u32 %v6857, 4294901760
    %6859 = vmatmul.mubr.f32.gmra.mxu0 %v6858
    %v6860 = vpop.f32.mrf.mxu0
    %v6861 = vadd.f32 %v6760, %v6860
    %v6862 = vpop.f32.mrf.mxu0
    %6863 = vdwg.mxu0
    %6864 = vmatprep.subr.mxu0 0.0
    %6865 = vmatpush1.msra.mxu0 0.0
    %6866 = vmatprep.subr.mxu0 0.0
    %6867 = vmatpush1.msra.mxu0 0.0
    %6868 = vmatprep.subr.mxu0 0.0
    %6869 = vmatpush1.msra.mxu0 0.0
    %6870 = vmatprep.subr.mxu0 0.0
    %6871 = vmatpush1.msra.mxu0 0.0
    %6872 = vmatprep.subr.mxu0 0.0
    %6873 = vmatpush1.msra.mxu0 0.0
    %6874 = vmatprep.subr.mxu0 0.0
    %6875 = vmatpush1.msra.mxu0 0.0
    %6876 = vmatprep.subr.mxu0 0.0
    %6877 = vmatpush1.msra.mxu0 0.0
    %6878 = vmatprep.subr.mxu0 0.0
    %6879 = vmatpush1.msra.mxu0 0.0
    %6880 = vmatprep.subr.mxu0 0.0
    %6881 = vmatpush1.msra.mxu0 0.0
    %6882 = vmatprep.subr.mxu0 0.0
    %6883 = vmatpush1.msra.mxu0 0.0
    %6884 = vmatprep.subr.mxu0 0.0
    %6885 = vmatpush1.msra.mxu0 0.0
    %6886 = vmatprep.subr.mxu0 0.0
    %6887 = vmatpush1.msra.mxu0 0.0
    %6888 = vmatprep.subr.mxu0 0.0
    %v6889 = vand.u32 %v6443, 4294901760
    %v6890 = vsub.f32 %v6443, %v6889
    %v6891 = vand.u32 %v6890, 4294901760
    %6892 = vmatpush1.msra.mxu0 %v6891
    %6893 = vmatprep.subr.mxu0 0.0
    %v6894 = vand.u32 %v6442, 4294901760
    %v6895 = vsub.f32 %v6442, %v6894
    %v6896 = vand.u32 %v6895, 4294901760
    %6897 = vmatpush1.msra.mxu0 %v6896
    %6898 = vmatprep.subr.mxu0 0.0
    %v6899 = vand.u32 %v6441, 4294901760
    %v6900 = vsub.f32 %v6441, %v6899
    %v6901 = vand.u32 %v6900, 4294901760
    %6902 = vmatpush1.msra.mxu0 %v6901
    %6903 = vmatprep.subr.mxu0 0.0
    %v6904 = vand.u32 %v6440, 4294901760
    %v6905 = vsub.f32 %v6440, %v6904
    %v6906 = vand.u32 %v6905, 4294901760
    %6907 = vmatpush1.msra.mxu0 %v6906
    %6908 = vmatprep.subr.mxu0 0.0
    %6909 = vmatpush2.msra.mxu0 0.0
    %6910 = vmatprep.subr.mxu0 0.0
    %6911 = vmatpush2.msra.mxu0 0.0
    %6912 = vmatprep.subr.mxu0 0.0
    %6913 = vmatpush2.msra.mxu0 0.0
    %6914 = vmatprep.subr.mxu0 0.0
    %6915 = vmatpush2.msra.mxu0 0.0
    %6916 = vmatprep.subr.mxu0 0.0
    %6917 = vmatpush2.msra.mxu0 0.0
    %6918 = vmatprep.subr.mxu0 0.0
    %6919 = vmatpush2.msra.mxu0 0.0
    %6920 = vmatprep.subr.mxu0 0.0
    %6921 = vmatpush2.msra.mxu0 0.0
    %6922 = vmatprep.subr.mxu0 0.0
    %6923 = vmatpush2.msra.mxu0 0.0
    %6924 = vmatprep.subr.mxu0 0.0
    %6925 = vmatpush2.msra.mxu0 0.0
    %6926 = vmatprep.subr.mxu0 0.0
    %6927 = vmatpush2.msra.mxu0 0.0
    %6928 = vmatprep.subr.mxu0 0.0
    %6929 = vmatpush2.msra.mxu0 0.0
    %6930 = vmatprep.subr.mxu0 0.0
    %6931 = vmatpush2.msra.mxu0 0.0
    %6932 = vmatprep.subr.mxu0 0.0
    %6933 = vmatpush2.msra.mxu0 0.0
    %6934 = vmatprep.subr.mxu0 0.0
    %6935 = vmatpush2.msra.mxu0 0.0
    %6936 = vmatprep.subr.mxu0 0.0
    %6937 = vmatpush2.msra.mxu0 0.0
    %6938 = vmatprep.subr.mxu0 0.0
    %6939 = vmatpush2.msra.mxu0 0.0
    %6940 = vmatprep.mubr.f32.mxu0 0.0
    %v6941 = vand.u32 %v1484, 4294901760
    %6942 = vmatmul.mubr.f32.gmra.mxu0 %v6941
    %v6943 = vpop.f32.mrf.mxu0
    %v6944 = vadd.f32 %v6837, %v6943
    %v6945 = vpop.f32.mrf.mxu0
    %6946 = vmatprep.mubr.f32.mxu0 0.0
    %v6947 = vand.u32 %v1487, 4294901760
    %6948 = vmatmul.mubr.f32.gmra.mxu0 %v6947
    %v6949 = vpop.f32.mrf.mxu0
    %v6950 = vadd.f32 %v6845, %v6949
    %v6951 = vpop.f32.mrf.mxu0
    %6952 = vmatprep.mubr.f32.mxu0 0.0
    %v6953 = vand.u32 %v1490, 4294901760
    %6954 = vmatmul.mubr.f32.gmra.mxu0 %v6953
    %v6955 = vpop.f32.mrf.mxu0
    %v6956 = vadd.f32 %v6853, %v6955
    %v6957 = vpop.f32.mrf.mxu0
    %6958 = vmatprep.mubr.f32.mxu0 0.0
    %v6959 = vand.u32 %v1493, 4294901760
    %6960 = vmatmul.mubr.f32.gmra.mxu0 %v6959
    %v6961 = vpop.f32.mrf.mxu0
    %v6962 = vadd.f32 %v6861, %v6961
    %v6963 = vpop.f32.mrf.mxu0
    %6964 = vdwg.mxu0
    %6965 = vmatprep.subr.mxu0 0.0
    %6966 = vmatpush1.msra.mxu0 0.0
    %6967 = vmatprep.subr.mxu0 0.0
    %6968 = vmatpush1.msra.mxu0 0.0
    %6969 = vmatprep.subr.mxu0 0.0
    %6970 = vmatpush1.msra.mxu0 0.0
    %6971 = vmatprep.subr.mxu0 0.0
    %6972 = vmatpush1.msra.mxu0 0.0
    %6973 = vmatprep.subr.mxu0 0.0
    %6974 = vmatpush1.msra.mxu0 0.0
    %6975 = vmatprep.subr.mxu0 0.0
    %6976 = vmatpush1.msra.mxu0 0.0
    %6977 = vmatprep.subr.mxu0 0.0
    %6978 = vmatpush1.msra.mxu0 0.0
    %6979 = vmatprep.subr.mxu0 0.0
    %6980 = vmatpush1.msra.mxu0 0.0
    %6981 = vmatprep.subr.mxu0 0.0
    %6982 = vmatpush1.msra.mxu0 0.0
    %6983 = vmatprep.subr.mxu0 0.0
    %6984 = vmatpush1.msra.mxu0 0.0
    %6985 = vmatprep.subr.mxu0 0.0
    %6986 = vmatpush1.msra.mxu0 0.0
    %6987 = vmatprep.subr.mxu0 0.0
    %6988 = vmatpush1.msra.mxu0 0.0
    %6989 = vmatprep.subr.mxu0 0.0
    %v6990 = vand.u32 %v6443, 4294901760
    %6991 = vmatpush1.msra.mxu0 %v6990
    %6992 = vmatprep.subr.mxu0 0.0
    %v6993 = vand.u32 %v6442, 4294901760
    %6994 = vmatpush1.msra.mxu0 %v6993
    %6995 = vmatprep.subr.mxu0 0.0
    %v6996 = vand.u32 %v6441, 4294901760
    %6997 = vmatpush1.msra.mxu0 %v6996
    %6998 = vmatprep.subr.mxu0 0.0
    %v6999 = vand.u32 %v6440, 4294901760
    %7000 = vmatpush1.msra.mxu0 %v6999
    %7001 = vmatprep.subr.mxu0 0.0
    %7002 = vmatpush2.msra.mxu0 0.0
    %7003 = vmatprep.subr.mxu0 0.0
    %7004 = vmatpush2.msra.mxu0 0.0
    %7005 = vmatprep.subr.mxu0 0.0
    %7006 = vmatpush2.msra.mxu0 0.0
    %7007 = vmatprep.subr.mxu0 0.0
    %7008 = vmatpush2.msra.mxu0 0.0
    %7009 = vmatprep.subr.mxu0 0.0
    %7010 = vmatpush2.msra.mxu0 0.0
    %7011 = vmatprep.subr.mxu0 0.0
    %7012 = vmatpush2.msra.mxu0 0.0
    %7013 = vmatprep.subr.mxu0 0.0
    %7014 = vmatpush2.msra.mxu0 0.0
    %7015 = vmatprep.subr.mxu0 0.0
    %7016 = vmatpush2.msra.mxu0 0.0
    %7017 = vmatprep.subr.mxu0 0.0
    %7018 = vmatpush2.msra.mxu0 0.0
    %7019 = vmatprep.subr.mxu0 0.0
    %7020 = vmatpush2.msra.mxu0 0.0
    %7021 = vmatprep.subr.mxu0 0.0
    %7022 = vmatpush2.msra.mxu0 0.0
    %7023 = vmatprep.subr.mxu0 0.0
    %7024 = vmatpush2.msra.mxu0 0.0
    %7025 = vmatprep.subr.mxu0 0.0
    %7026 = vmatpush2.msra.mxu0 0.0
    %7027 = vmatprep.subr.mxu0 0.0
    %7028 = vmatpush2.msra.mxu0 0.0
    %7029 = vmatprep.subr.mxu0 0.0
    %7030 = vmatpush2.msra.mxu0 0.0
    %7031 = vmatprep.subr.mxu0 0.0
    %7032 = vmatpush2.msra.mxu0 0.0
    %7033 = vmatprep.mubr.f32.mxu0 0.0
    %v7034 = vand.u32 %v1484, 4294901760
    %7035 = vmatmul.mubr.f32.gmra.mxu0 %v7034
    %v7036 = vpop.f32.mrf.mxu0
    %v7037 = vadd.f32 %v6944, %v7036
    %v7038 = vpop.f32.mrf.mxu0
    %7039 = vmatprep.mubr.f32.mxu0 0.0
    %v7040 = vand.u32 %v1487, 4294901760
    %7041 = vmatmul.mubr.f32.gmra.mxu0 %v7040
    %v7042 = vpop.f32.mrf.mxu0
    %v7043 = vadd.f32 %v6950, %v7042
    %v7044 = vpop.f32.mrf.mxu0
    %7045 = vmatprep.mubr.f32.mxu0 0.0
    %v7046 = vand.u32 %v1490, 4294901760
    %7047 = vmatmul.mubr.f32.gmra.mxu0 %v7046
    %v7048 = vpop.f32.mrf.mxu0
    %v7049 = vadd.f32 %v6956, %v7048
    %v7050 = vpop.f32.mrf.mxu0
    %7051 = vmatprep.mubr.f32.mxu0 0.0
    %v7052 = vand.u32 %v1493, 4294901760
    %7053 = vmatmul.mubr.f32.gmra.mxu0 %v7052
    %v7054 = vpop.f32.mrf.mxu0
    %v7055 = vadd.f32 %v6962, %v7054
    %v7056 = vpop.f32.mrf.mxu0
    %7057 = vdwg.mxu0
    %7058 = vmatprep.subr.mxu0 0.0
    %7059 = vmatpush1.msra.mxu0 0.0
    %7060 = vmatprep.subr.mxu0 0.0
    %7061 = vmatpush1.msra.mxu0 0.0
    %7062 = vmatprep.subr.mxu0 0.0
    %7063 = vmatpush1.msra.mxu0 0.0
    %7064 = vmatprep.subr.mxu0 0.0
    %7065 = vmatpush1.msra.mxu0 0.0
    %7066 = vmatprep.subr.mxu0 0.0
    %7067 = vmatpush1.msra.mxu0 0.0
    %7068 = vmatprep.subr.mxu0 0.0
    %7069 = vmatpush1.msra.mxu0 0.0
    %7070 = vmatprep.subr.mxu0 0.0
    %7071 = vmatpush1.msra.mxu0 0.0
    %7072 = vmatprep.subr.mxu0 0.0
    %7073 = vmatpush1.msra.mxu0 0.0
    %7074 = vmatprep.subr.mxu0 0.0
    %7075 = vmatpush1.msra.mxu0 0.0
    %7076 = vmatprep.subr.mxu0 0.0
    %7077 = vmatpush1.msra.mxu0 0.0
    %7078 = vmatprep.subr.mxu0 0.0
    %7079 = vmatpush1.msra.mxu0 0.0
    %7080 = vmatprep.subr.mxu0 0.0
    %7081 = vmatpush1.msra.mxu0 0.0
    %7082 = vmatprep.subr.mxu0 0.0
    %v7083 = vand.u32 %v6443, 4294901760
    %7084 = vmatpush1.msra.mxu0 %v7083
    %7085 = vmatprep.subr.mxu0 0.0
    %v7086 = vand.u32 %v6442, 4294901760
    %7087 = vmatpush1.msra.mxu0 %v7086
    %7088 = vmatprep.subr.mxu0 0.0
    %v7089 = vand.u32 %v6441, 4294901760
    %7090 = vmatpush1.msra.mxu0 %v7089
    %7091 = vmatprep.subr.mxu0 0.0
    %v7092 = vand.u32 %v6440, 4294901760
    %7093 = vmatpush1.msra.mxu0 %v7092
    %7094 = vmatprep.subr.mxu0 0.0
    %7095 = vmatpush2.msra.mxu0 0.0
    %7096 = vmatprep.subr.mxu0 0.0
    %7097 = vmatpush2.msra.mxu0 0.0
    %7098 = vmatprep.subr.mxu0 0.0
    %7099 = vmatpush2.msra.mxu0 0.0
    %7100 = vmatprep.subr.mxu0 0.0
    %7101 = vmatpush2.msra.mxu0 0.0
    %7102 = vmatprep.subr.mxu0 0.0
    %7103 = vmatpush2.msra.mxu0 0.0
    %7104 = vmatprep.subr.mxu0 0.0
    %7105 = vmatpush2.msra.mxu0 0.0
    %7106 = vmatprep.subr.mxu0 0.0
    %7107 = vmatpush2.msra.mxu0 0.0
    %7108 = vmatprep.subr.mxu0 0.0
    %7109 = vmatpush2.msra.mxu0 0.0
    %7110 = vmatprep.subr.mxu0 0.0
    %7111 = vmatpush2.msra.mxu0 0.0
    %7112 = vmatprep.subr.mxu0 0.0
    %7113 = vmatpush2.msra.mxu0 0.0
    %7114 = vmatprep.subr.mxu0 0.0
    %7115 = vmatpush2.msra.mxu0 0.0
    %7116 = vmatprep.subr.mxu0 0.0
    %7117 = vmatpush2.msra.mxu0 0.0
    %7118 = vmatprep.subr.mxu0 0.0
    %7119 = vmatpush2.msra.mxu0 0.0
    %7120 = vmatprep.subr.mxu0 0.0
    %7121 = vmatpush2.msra.mxu0 0.0
    %7122 = vmatprep.subr.mxu0 0.0
    %7123 = vmatpush2.msra.mxu0 0.0
    %7124 = vmatprep.subr.mxu0 0.0
    %7125 = vmatpush2.msra.mxu0 0.0
    %7126 = vmatprep.mubr.f32.mxu0 0.0
    %v7127 = vand.u32 %v2110, 4294901760
    %v7128 = vsub.f32 %v2110, %v7127
    %v7129 = vand.u32 %v7128, 4294901760
    %v7130 = vsub.f32 %v7128, %v7129
    %v7131 = vand.u32 %v7130, 4294901760
    %7132 = vmatmul.mubr.f32.gmra.mxu0 %v7131
    %v7133 = vpop.f32.mrf.mxu0
    %v7134 = vadd.f32 0.0, %v7133
    %v7135 = vpop.f32.mrf.mxu0
    %7136 = vmatprep.mubr.f32.mxu0 0.0
    %v7137 = vand.u32 %v2113, 4294901760
    %v7138 = vsub.f32 %v2113, %v7137
    %v7139 = vand.u32 %v7138, 4294901760
    %v7140 = vsub.f32 %v7138, %v7139
    %v7141 = vand.u32 %v7140, 4294901760
    %7142 = vmatmul.mubr.f32.gmra.mxu0 %v7141
    %v7143 = vpop.f32.mrf.mxu0
    %v7144 = vadd.f32 0.0, %v7143
    %v7145 = vpop.f32.mrf.mxu0
    %7146 = vmatprep.mubr.f32.mxu0 0.0
    %v7147 = vand.u32 %v2116, 4294901760
    %v7148 = vsub.f32 %v2116, %v7147
    %v7149 = vand.u32 %v7148, 4294901760
    %v7150 = vsub.f32 %v7148, %v7149
    %v7151 = vand.u32 %v7150, 4294901760
    %7152 = vmatmul.mubr.f32.gmra.mxu0 %v7151
    %v7153 = vpop.f32.mrf.mxu0
    %v7154 = vadd.f32 0.0, %v7153
    %v7155 = vpop.f32.mrf.mxu0
    %7156 = vmatprep.mubr.f32.mxu0 0.0
    %v7157 = vand.u32 %v2119, 4294901760
    %v7158 = vsub.f32 %v2119, %v7157
    %v7159 = vand.u32 %v7158, 4294901760
    %v7160 = vsub.f32 %v7158, %v7159
    %v7161 = vand.u32 %v7160, 4294901760
    %7162 = vmatmul.mubr.f32.gmra.mxu0 %v7161
    %v7163 = vpop.f32.mrf.mxu0
    %v7164 = vadd.f32 0.0, %v7163
    %v7165 = vpop.f32.mrf.mxu0
    %7166 = vdwg.mxu0
    %7167 = vmatprep.subr.mxu0 0.0
    %7168 = vmatpush1.msra.mxu0 0.0
    %7169 = vmatprep.subr.mxu0 0.0
    %7170 = vmatpush1.msra.mxu0 0.0
    %7171 = vmatprep.subr.mxu0 0.0
    %7172 = vmatpush1.msra.mxu0 0.0
    %7173 = vmatprep.subr.mxu0 0.0
    %7174 = vmatpush1.msra.mxu0 0.0
    %7175 = vmatprep.subr.mxu0 0.0
    %7176 = vmatpush1.msra.mxu0 0.0
    %7177 = vmatprep.subr.mxu0 0.0
    %7178 = vmatpush1.msra.mxu0 0.0
    %7179 = vmatprep.subr.mxu0 0.0
    %7180 = vmatpush1.msra.mxu0 0.0
    %7181 = vmatprep.subr.mxu0 0.0
    %7182 = vmatpush1.msra.mxu0 0.0
    %7183 = vmatprep.subr.mxu0 0.0
    %7184 = vmatpush1.msra.mxu0 0.0
    %7185 = vmatprep.subr.mxu0 0.0
    %7186 = vmatpush1.msra.mxu0 0.0
    %7187 = vmatprep.subr.mxu0 0.0
    %7188 = vmatpush1.msra.mxu0 0.0
    %7189 = vmatprep.subr.mxu0 0.0
    %7190 = vmatpush1.msra.mxu0 0.0
    %7191 = vmatprep.subr.mxu0 0.0
    %v7192 = vand.u32 %v6443, 4294901760
    %v7193 = vsub.f32 %v6443, %v7192
    %v7194 = vand.u32 %v7193, 4294901760
    %v7195 = vsub.f32 %v7193, %v7194
    %v7196 = vand.u32 %v7195, 4294901760
    %7197 = vmatpush1.msra.mxu0 %v7196
    %7198 = vmatprep.subr.mxu0 0.0
    %v7199 = vand.u32 %v6442, 4294901760
    %v7200 = vsub.f32 %v6442, %v7199
    %v7201 = vand.u32 %v7200, 4294901760
    %v7202 = vsub.f32 %v7200, %v7201
    %v7203 = vand.u32 %v7202, 4294901760
    %7204 = vmatpush1.msra.mxu0 %v7203
    %7205 = vmatprep.subr.mxu0 0.0
    %v7206 = vand.u32 %v6441, 4294901760
    %v7207 = vsub.f32 %v6441, %v7206
    %v7208 = vand.u32 %v7207, 4294901760
    %v7209 = vsub.f32 %v7207, %v7208
    %v7210 = vand.u32 %v7209, 4294901760
    %7211 = vmatpush1.msra.mxu0 %v7210
    %7212 = vmatprep.subr.mxu0 0.0
    %v7213 = vand.u32 %v6440, 4294901760
    %v7214 = vsub.f32 %v6440, %v7213
    %v7215 = vand.u32 %v7214, 4294901760
    %v7216 = vsub.f32 %v7214, %v7215
    %v7217 = vand.u32 %v7216, 4294901760
    %7218 = vmatpush1.msra.mxu0 %v7217
    %7219 = vmatprep.subr.mxu0 0.0
    %7220 = vmatpush2.msra.mxu0 0.0
    %7221 = vmatprep.subr.mxu0 0.0
    %7222 = vmatpush2.msra.mxu0 0.0
    %7223 = vmatprep.subr.mxu0 0.0
    %7224 = vmatpush2.msra.mxu0 0.0
    %7225 = vmatprep.subr.mxu0 0.0
    %7226 = vmatpush2.msra.mxu0 0.0
    %7227 = vmatprep.subr.mxu0 0.0
    %7228 = vmatpush2.msra.mxu0 0.0
    %7229 = vmatprep.subr.mxu0 0.0
    %7230 = vmatpush2.msra.mxu0 0.0
    %7231 = vmatprep.subr.mxu0 0.0
    %7232 = vmatpush2.msra.mxu0 0.0
    %7233 = vmatprep.subr.mxu0 0.0
    %7234 = vmatpush2.msra.mxu0 0.0
    %7235 = vmatprep.subr.mxu0 0.0
    %7236 = vmatpush2.msra.mxu0 0.0
    %7237 = vmatprep.subr.mxu0 0.0
    %7238 = vmatpush2.msra.mxu0 0.0
    %7239 = vmatprep.subr.mxu0 0.0
    %7240 = vmatpush2.msra.mxu0 0.0
    %7241 = vmatprep.subr.mxu0 0.0
    %7242 = vmatpush2.msra.mxu0 0.0
    %7243 = vmatprep.subr.mxu0 0.0
    %7244 = vmatpush2.msra.mxu0 0.0
    %7245 = vmatprep.subr.mxu0 0.0
    %7246 = vmatpush2.msra.mxu0 0.0
    %7247 = vmatprep.subr.mxu0 0.0
    %7248 = vmatpush2.msra.mxu0 0.0
    %7249 = vmatprep.subr.mxu0 0.0
    %7250 = vmatpush2.msra.mxu0 0.0
    %7251 = vmatprep.mubr.f32.mxu0 0.0
    %v7252 = vand.u32 %v2110, 4294901760
    %7253 = vmatmul.mubr.f32.gmra.mxu0 %v7252
    %v7254 = vpop.f32.mrf.mxu0
    %v7255 = vadd.f32 %v7134, %v7254
    %v7256 = vpop.f32.mrf.mxu0
    %7257 = vmatprep.mubr.f32.mxu0 0.0
    %v7258 = vand.u32 %v2113, 4294901760
    %7259 = vmatmul.mubr.f32.gmra.mxu0 %v7258
    %v7260 = vpop.f32.mrf.mxu0
    %v7261 = vadd.f32 %v7144, %v7260
    %v7262 = vpop.f32.mrf.mxu0
    %7263 = vmatprep.mubr.f32.mxu0 0.0
    %v7264 = vand.u32 %v2116, 4294901760
    %7265 = vmatmul.mubr.f32.gmra.mxu0 %v7264
    %v7266 = vpop.f32.mrf.mxu0
    %v7267 = vadd.f32 %v7154, %v7266
    %v7268 = vpop.f32.mrf.mxu0
    %7269 = vmatprep.mubr.f32.mxu0 0.0
    %v7270 = vand.u32 %v2119, 4294901760
    %7271 = vmatmul.mubr.f32.gmra.mxu0 %v7270
    %v7272 = vpop.f32.mrf.mxu0
    %v7273 = vadd.f32 %v7164, %v7272
    %v7274 = vpop.f32.mrf.mxu0
    %7275 = vdwg.mxu0
    %7276 = vmatprep.subr.mxu0 0.0
    %7277 = vmatpush1.msra.mxu0 0.0
    %7278 = vmatprep.subr.mxu0 0.0
    %7279 = vmatpush1.msra.mxu0 0.0
    %7280 = vmatprep.subr.mxu0 0.0
    %7281 = vmatpush1.msra.mxu0 0.0
    %7282 = vmatprep.subr.mxu0 0.0
    %7283 = vmatpush1.msra.mxu0 0.0
    %7284 = vmatprep.subr.mxu0 0.0
    %7285 = vmatpush1.msra.mxu0 0.0
    %7286 = vmatprep.subr.mxu0 0.0
    %7287 = vmatpush1.msra.mxu0 0.0
    %7288 = vmatprep.subr.mxu0 0.0
    %7289 = vmatpush1.msra.mxu0 0.0
    %7290 = vmatprep.subr.mxu0 0.0
    %7291 = vmatpush1.msra.mxu0 0.0
    %7292 = vmatprep.subr.mxu0 0.0
    %7293 = vmatpush1.msra.mxu0 0.0
    %7294 = vmatprep.subr.mxu0 0.0
    %7295 = vmatpush1.msra.mxu0 0.0
    %7296 = vmatprep.subr.mxu0 0.0
    %7297 = vmatpush1.msra.mxu0 0.0
    %7298 = vmatprep.subr.mxu0 0.0
    %7299 = vmatpush1.msra.mxu0 0.0
    %7300 = vmatprep.subr.mxu0 0.0
    %v7301 = vand.u32 %v6443, 4294901760
    %v7302 = vsub.f32 %v6443, %v7301
    %7303 = vmatpush1.msra.mxu0 %v7302
    %7304 = vmatprep.subr.mxu0 0.0
    %v7305 = vand.u32 %v6442, 4294901760
    %v7306 = vsub.f32 %v6442, %v7305
    %7307 = vmatpush1.msra.mxu0 %v7306
    %7308 = vmatprep.subr.mxu0 0.0
    %v7309 = vand.u32 %v6441, 4294901760
    %v7310 = vsub.f32 %v6441, %v7309
    %7311 = vmatpush1.msra.mxu0 %v7310
    %7312 = vmatprep.subr.mxu0 0.0
    %v7313 = vand.u32 %v6440, 4294901760
    %v7314 = vsub.f32 %v6440, %v7313
    %7315 = vmatpush1.msra.mxu0 %v7314
    %7316 = vmatprep.subr.mxu0 0.0
    %7317 = vmatpush2.msra.mxu0 0.0
    %7318 = vmatprep.subr.mxu0 0.0
    %7319 = vmatpush2.msra.mxu0 0.0
    %7320 = vmatprep.subr.mxu0 0.0
    %7321 = vmatpush2.msra.mxu0 0.0
    %7322 = vmatprep.subr.mxu0 0.0
    %7323 = vmatpush2.msra.mxu0 0.0
    %7324 = vmatprep.subr.mxu0 0.0
    %7325 = vmatpush2.msra.mxu0 0.0
    %7326 = vmatprep.subr.mxu0 0.0
    %7327 = vmatpush2.msra.mxu0 0.0
    %7328 = vmatprep.subr.mxu0 0.0
    %7329 = vmatpush2.msra.mxu0 0.0
    %7330 = vmatprep.subr.mxu0 0.0
    %7331 = vmatpush2.msra.mxu0 0.0
    %7332 = vmatprep.subr.mxu0 0.0
    %7333 = vmatpush2.msra.mxu0 0.0
    %7334 = vmatprep.subr.mxu0 0.0
    %7335 = vmatpush2.msra.mxu0 0.0
    %7336 = vmatprep.subr.mxu0 0.0
    %7337 = vmatpush2.msra.mxu0 0.0
    %7338 = vmatprep.subr.mxu0 0.0
    %7339 = vmatpush2.msra.mxu0 0.0
    %7340 = vmatprep.subr.mxu0 0.0
    %7341 = vmatpush2.msra.mxu0 0.0
    %7342 = vmatprep.subr.mxu0 0.0
    %7343 = vmatpush2.msra.mxu0 0.0
    %7344 = vmatprep.subr.mxu0 0.0
    %7345 = vmatpush2.msra.mxu0 0.0
    %7346 = vmatprep.subr.mxu0 0.0
    %7347 = vmatpush2.msra.mxu0 0.0
    %7348 = vmatprep.mubr.f32.mxu0 0.0
    %v7349 = vand.u32 %v2110, 4294901760
    %v7350 = vsub.f32 %v2110, %v7349
    %7351 = vmatmul.mubr.f32.gmra.mxu0 %v7350
    %v7352 = vpop.f32.mrf.mxu0
    %v7353 = vadd.f32 %v7255, %v7352
    %v7354 = vpop.f32.mrf.mxu0
    %7355 = vmatprep.mubr.f32.mxu0 0.0
    %v7356 = vand.u32 %v2113, 4294901760
    %v7357 = vsub.f32 %v2113, %v7356
    %7358 = vmatmul.mubr.f32.gmra.mxu0 %v7357
    %v7359 = vpop.f32.mrf.mxu0
    %v7360 = vadd.f32 %v7261, %v7359
    %v7361 = vpop.f32.mrf.mxu0
    %7362 = vmatprep.mubr.f32.mxu0 0.0
    %v7363 = vand.u32 %v2116, 4294901760
    %v7364 = vsub.f32 %v2116, %v7363
    %7365 = vmatmul.mubr.f32.gmra.mxu0 %v7364
    %v7366 = vpop.f32.mrf.mxu0
    %v7367 = vadd.f32 %v7267, %v7366
    %v7368 = vpop.f32.mrf.mxu0
    %7369 = vmatprep.mubr.f32.mxu0 0.0
    %v7370 = vand.u32 %v2119, 4294901760
    %v7371 = vsub.f32 %v2119, %v7370
    %7372 = vmatmul.mubr.f32.gmra.mxu0 %v7371
    %v7373 = vpop.f32.mrf.mxu0
    %v7374 = vadd.f32 %v7273, %v7373
    %v7375 = vpop.f32.mrf.mxu0
    %7376 = vdwg.mxu0
    %7377 = vmatprep.subr.mxu0 0.0
    %7378 = vmatpush1.msra.mxu0 0.0
    %7379 = vmatprep.subr.mxu0 0.0
    %7380 = vmatpush1.msra.mxu0 0.0
    %7381 = vmatprep.subr.mxu0 0.0
    %7382 = vmatpush1.msra.mxu0 0.0
    %7383 = vmatprep.subr.mxu0 0.0
    %7384 = vmatpush1.msra.mxu0 0.0
    %7385 = vmatprep.subr.mxu0 0.0
    %7386 = vmatpush1.msra.mxu0 0.0
    %7387 = vmatprep.subr.mxu0 0.0
    %7388 = vmatpush1.msra.mxu0 0.0
    %7389 = vmatprep.subr.mxu0 0.0
    %7390 = vmatpush1.msra.mxu0 0.0
    %7391 = vmatprep.subr.mxu0 0.0
    %7392 = vmatpush1.msra.mxu0 0.0
    %7393 = vmatprep.subr.mxu0 0.0
    %7394 = vmatpush1.msra.mxu0 0.0
    %7395 = vmatprep.subr.mxu0 0.0
    %7396 = vmatpush1.msra.mxu0 0.0
    %7397 = vmatprep.subr.mxu0 0.0
    %7398 = vmatpush1.msra.mxu0 0.0
    %7399 = vmatprep.subr.mxu0 0.0
    %7400 = vmatpush1.msra.mxu0 0.0
    %7401 = vmatprep.subr.mxu0 0.0
    %v7402 = vand.u32 %v6443, 4294901760
    %7403 = vmatpush1.msra.mxu0 %v7402
    %7404 = vmatprep.subr.mxu0 0.0
    %v7405 = vand.u32 %v6442, 4294901760
    %7406 = vmatpush1.msra.mxu0 %v7405
    %7407 = vmatprep.subr.mxu0 0.0
    %v7408 = vand.u32 %v6441, 4294901760
    %7409 = vmatpush1.msra.mxu0 %v7408
    %7410 = vmatprep.subr.mxu0 0.0
    %v7411 = vand.u32 %v6440, 4294901760
    %7412 = vmatpush1.msra.mxu0 %v7411
    %7413 = vmatprep.subr.mxu0 0.0
    %7414 = vmatpush2.msra.mxu0 0.0
    %7415 = vmatprep.subr.mxu0 0.0
    %7416 = vmatpush2.msra.mxu0 0.0
    %7417 = vmatprep.subr.mxu0 0.0
    %7418 = vmatpush2.msra.mxu0 0.0
    %7419 = vmatprep.subr.mxu0 0.0
    %7420 = vmatpush2.msra.mxu0 0.0
    %7421 = vmatprep.subr.mxu0 0.0
    %7422 = vmatpush2.msra.mxu0 0.0
    %7423 = vmatprep.subr.mxu0 0.0
    %7424 = vmatpush2.msra.mxu0 0.0
    %7425 = vmatprep.subr.mxu0 0.0
    %7426 = vmatpush2.msra.mxu0 0.0
    %7427 = vmatprep.subr.mxu0 0.0
    %7428 = vmatpush2.msra.mxu0 0.0
    %7429 = vmatprep.subr.mxu0 0.0
    %7430 = vmatpush2.msra.mxu0 0.0
    %7431 = vmatprep.subr.mxu0 0.0
    %7432 = vmatpush2.msra.mxu0 0.0
    %7433 = vmatprep.subr.mxu0 0.0
    %7434 = vmatpush2.msra.mxu0 0.0
    %7435 = vmatprep.subr.mxu0 0.0
    %7436 = vmatpush2.msra.mxu0 0.0
    %7437 = vmatprep.subr.mxu0 0.0
    %7438 = vmatpush2.msra.mxu0 0.0
    %7439 = vmatprep.subr.mxu0 0.0
    %7440 = vmatpush2.msra.mxu0 0.0
    %7441 = vmatprep.subr.mxu0 0.0
    %7442 = vmatpush2.msra.mxu0 0.0
    %7443 = vmatprep.subr.mxu0 0.0
    %7444 = vmatpush2.msra.mxu0 0.0
    %7445 = vmatprep.mubr.f32.mxu0 0.0
    %v7446 = vand.u32 %v2110, 4294901760
    %v7447 = vsub.f32 %v2110, %v7446
    %v7448 = vand.u32 %v7447, 4294901760
    %7449 = vmatmul.mubr.f32.gmra.mxu0 %v7448
    %v7450 = vpop.f32.mrf.mxu0
    %v7451 = vadd.f32 %v7353, %v7450
    %v7452 = vpop.f32.mrf.mxu0
    %7453 = vmatprep.mubr.f32.mxu0 0.0
    %v7454 = vand.u32 %v2113, 4294901760
    %v7455 = vsub.f32 %v2113, %v7454
    %v7456 = vand.u32 %v7455, 4294901760
    %7457 = vmatmul.mubr.f32.gmra.mxu0 %v7456
    %v7458 = vpop.f32.mrf.mxu0
    %v7459 = vadd.f32 %v7360, %v7458
    %v7460 = vpop.f32.mrf.mxu0
    %7461 = vmatprep.mubr.f32.mxu0 0.0
    %v7462 = vand.u32 %v2116, 4294901760
    %v7463 = vsub.f32 %v2116, %v7462
    %v7464 = vand.u32 %v7463, 4294901760
    %7465 = vmatmul.mubr.f32.gmra.mxu0 %v7464
    %v7466 = vpop.f32.mrf.mxu0
    %v7467 = vadd.f32 %v7367, %v7466
    %v7468 = vpop.f32.mrf.mxu0
    %7469 = vmatprep.mubr.f32.mxu0 0.0
    %v7470 = vand.u32 %v2119, 4294901760
    %v7471 = vsub.f32 %v2119, %v7470
    %v7472 = vand.u32 %v7471, 4294901760
    %7473 = vmatmul.mubr.f32.gmra.mxu0 %v7472
    %v7474 = vpop.f32.mrf.mxu0
    %v7475 = vadd.f32 %v7374, %v7474
    %v7476 = vpop.f32.mrf.mxu0
    %7477 = vdwg.mxu0
    %7478 = vmatprep.subr.mxu0 0.0
    %7479 = vmatpush1.msra.mxu0 0.0
    %7480 = vmatprep.subr.mxu0 0.0
    %7481 = vmatpush1.msra.mxu0 0.0
    %7482 = vmatprep.subr.mxu0 0.0
    %7483 = vmatpush1.msra.mxu0 0.0
    %7484 = vmatprep.subr.mxu0 0.0
    %7485 = vmatpush1.msra.mxu0 0.0
    %7486 = vmatprep.subr.mxu0 0.0
    %7487 = vmatpush1.msra.mxu0 0.0
    %7488 = vmatprep.subr.mxu0 0.0
    %7489 = vmatpush1.msra.mxu0 0.0
    %7490 = vmatprep.subr.mxu0 0.0
    %7491 = vmatpush1.msra.mxu0 0.0
    %7492 = vmatprep.subr.mxu0 0.0
    %7493 = vmatpush1.msra.mxu0 0.0
    %7494 = vmatprep.subr.mxu0 0.0
    %7495 = vmatpush1.msra.mxu0 0.0
    %7496 = vmatprep.subr.mxu0 0.0
    %7497 = vmatpush1.msra.mxu0 0.0
    %7498 = vmatprep.subr.mxu0 0.0
    %7499 = vmatpush1.msra.mxu0 0.0
    %7500 = vmatprep.subr.mxu0 0.0
    %7501 = vmatpush1.msra.mxu0 0.0
    %7502 = vmatprep.subr.mxu0 0.0
    %v7503 = vand.u32 %v6443, 4294901760
    %v7504 = vsub.f32 %v6443, %v7503
    %v7505 = vand.u32 %v7504, 4294901760
    %7506 = vmatpush1.msra.mxu0 %v7505
    %7507 = vmatprep.subr.mxu0 0.0
    %v7508 = vand.u32 %v6442, 4294901760
    %v7509 = vsub.f32 %v6442, %v7508
    %v7510 = vand.u32 %v7509, 4294901760
    %7511 = vmatpush1.msra.mxu0 %v7510
    %7512 = vmatprep.subr.mxu0 0.0
    %v7513 = vand.u32 %v6441, 4294901760
    %v7514 = vsub.f32 %v6441, %v7513
    %v7515 = vand.u32 %v7514, 4294901760
    %7516 = vmatpush1.msra.mxu0 %v7515
    %7517 = vmatprep.subr.mxu0 0.0
    %v7518 = vand.u32 %v6440, 4294901760
    %v7519 = vsub.f32 %v6440, %v7518
    %v7520 = vand.u32 %v7519, 4294901760
    %7521 = vmatpush1.msra.mxu0 %v7520
    %7522 = vmatprep.subr.mxu0 0.0
    %7523 = vmatpush2.msra.mxu0 0.0
    %7524 = vmatprep.subr.mxu0 0.0
    %7525 = vmatpush2.msra.mxu0 0.0
    %7526 = vmatprep.subr.mxu0 0.0
    %7527 = vmatpush2.msra.mxu0 0.0
    %7528 = vmatprep.subr.mxu0 0.0
    %7529 = vmatpush2.msra.mxu0 0.0
    %7530 = vmatprep.subr.mxu0 0.0
    %7531 = vmatpush2.msra.mxu0 0.0
    %7532 = vmatprep.subr.mxu0 0.0
    %7533 = vmatpush2.msra.mxu0 0.0
    %7534 = vmatprep.subr.mxu0 0.0
    %7535 = vmatpush2.msra.mxu0 0.0
    %7536 = vmatprep.subr.mxu0 0.0
    %7537 = vmatpush2.msra.mxu0 0.0
    %7538 = vmatprep.subr.mxu0 0.0
    %7539 = vmatpush2.msra.mxu0 0.0
    %7540 = vmatprep.subr.mxu0 0.0
    %7541 = vmatpush2.msra.mxu0 0.0
    %7542 = vmatprep.subr.mxu0 0.0
    %7543 = vmatpush2.msra.mxu0 0.0
    %7544 = vmatprep.subr.mxu0 0.0
    %7545 = vmatpush2.msra.mxu0 0.0
    %7546 = vmatprep.subr.mxu0 0.0
    %7547 = vmatpush2.msra.mxu0 0.0
    %7548 = vmatprep.subr.mxu0 0.0
    %7549 = vmatpush2.msra.mxu0 0.0
    %7550 = vmatprep.subr.mxu0 0.0
    %7551 = vmatpush2.msra.mxu0 0.0
    %7552 = vmatprep.subr.mxu0 0.0
    %7553 = vmatpush2.msra.mxu0 0.0
    %7554 = vmatprep.mubr.f32.mxu0 0.0
    %v7555 = vand.u32 %v2110, 4294901760
    %7556 = vmatmul.mubr.f32.gmra.mxu0 %v7555
    %v7557 = vpop.f32.mrf.mxu0
    %v7558 = vadd.f32 %v7451, %v7557
    %v7559 = vpop.f32.mrf.mxu0
    %7560 = vmatprep.mubr.f32.mxu0 0.0
    %v7561 = vand.u32 %v2113, 4294901760
    %7562 = vmatmul.mubr.f32.gmra.mxu0 %v7561
    %v7563 = vpop.f32.mrf.mxu0
    %v7564 = vadd.f32 %v7459, %v7563
    %v7565 = vpop.f32.mrf.mxu0
    %7566 = vmatprep.mubr.f32.mxu0 0.0
    %v7567 = vand.u32 %v2116, 4294901760
    %7568 = vmatmul.mubr.f32.gmra.mxu0 %v7567
    %v7569 = vpop.f32.mrf.mxu0
    %v7570 = vadd.f32 %v7467, %v7569
    %v7571 = vpop.f32.mrf.mxu0
    %7572 = vmatprep.mubr.f32.mxu0 0.0
    %v7573 = vand.u32 %v2119, 4294901760
    %7574 = vmatmul.mubr.f32.gmra.mxu0 %v7573
    %v7575 = vpop.f32.mrf.mxu0
    %v7576 = vadd.f32 %v7475, %v7575
    %v7577 = vpop.f32.mrf.mxu0
    %7578 = vdwg.mxu0
    %7579 = vmatprep.subr.mxu0 0.0
    %7580 = vmatpush1.msra.mxu0 0.0
    %7581 = vmatprep.subr.mxu0 0.0
    %7582 = vmatpush1.msra.mxu0 0.0
    %7583 = vmatprep.subr.mxu0 0.0
    %7584 = vmatpush1.msra.mxu0 0.0
    %7585 = vmatprep.subr.mxu0 0.0
    %7586 = vmatpush1.msra.mxu0 0.0
    %7587 = vmatprep.subr.mxu0 0.0
    %7588 = vmatpush1.msra.mxu0 0.0
    %7589 = vmatprep.subr.mxu0 0.0
    %7590 = vmatpush1.msra.mxu0 0.0
    %7591 = vmatprep.subr.mxu0 0.0
    %7592 = vmatpush1.msra.mxu0 0.0
    %7593 = vmatprep.subr.mxu0 0.0
    %7594 = vmatpush1.msra.mxu0 0.0
    %7595 = vmatprep.subr.mxu0 0.0
    %7596 = vmatpush1.msra.mxu0 0.0
    %7597 = vmatprep.subr.mxu0 0.0
    %7598 = vmatpush1.msra.mxu0 0.0
    %7599 = vmatprep.subr.mxu0 0.0
    %7600 = vmatpush1.msra.mxu0 0.0
    %7601 = vmatprep.subr.mxu0 0.0
    %7602 = vmatpush1.msra.mxu0 0.0
    %7603 = vmatprep.subr.mxu0 0.0
    %v7604 = vand.u32 %v6443, 4294901760
    %7605 = vmatpush1.msra.mxu0 %v7604
    %7606 = vmatprep.subr.mxu0 0.0
    %v7607 = vand.u32 %v6442, 4294901760
    %7608 = vmatpush1.msra.mxu0 %v7607
    %7609 = vmatprep.subr.mxu0 0.0
    %v7610 = vand.u32 %v6441, 4294901760
    %7611 = vmatpush1.msra.mxu0 %v7610
    %7612 = vmatprep.subr.mxu0 0.0
    %v7613 = vand.u32 %v6440, 4294901760
    %7614 = vmatpush1.msra.mxu0 %v7613
    %7615 = vmatprep.subr.mxu0 0.0
    %7616 = vmatpush2.msra.mxu0 0.0
    %7617 = vmatprep.subr.mxu0 0.0
    %7618 = vmatpush2.msra.mxu0 0.0
    %7619 = vmatprep.subr.mxu0 0.0
    %7620 = vmatpush2.msra.mxu0 0.0
    %7621 = vmatprep.subr.mxu0 0.0
    %7622 = vmatpush2.msra.mxu0 0.0
    %7623 = vmatprep.subr.mxu0 0.0
    %7624 = vmatpush2.msra.mxu0 0.0
    %7625 = vmatprep.subr.mxu0 0.0
    %7626 = vmatpush2.msra.mxu0 0.0
    %7627 = vmatprep.subr.mxu0 0.0
    %7628 = vmatpush2.msra.mxu0 0.0
    %7629 = vmatprep.subr.mxu0 0.0
    %7630 = vmatpush2.msra.mxu0 0.0
    %7631 = vmatprep.subr.mxu0 0.0
    %7632 = vmatpush2.msra.mxu0 0.0
    %7633 = vmatprep.subr.mxu0 0.0
    %7634 = vmatpush2.msra.mxu0 0.0
    %7635 = vmatprep.subr.mxu0 0.0
    %7636 = vmatpush2.msra.mxu0 0.0
    %7637 = vmatprep.subr.mxu0 0.0
    %7638 = vmatpush2.msra.mxu0 0.0
    %7639 = vmatprep.subr.mxu0 0.0
    %7640 = vmatpush2.msra.mxu0 0.0
    %7641 = vmatprep.subr.mxu0 0.0
    %7642 = vmatpush2.msra.mxu0 0.0
    %7643 = vmatprep.subr.mxu0 0.0
    %7644 = vmatpush2.msra.mxu0 0.0
    %7645 = vmatprep.subr.mxu0 0.0
    %7646 = vmatpush2.msra.mxu0 0.0
    %7647 = vmatprep.mubr.f32.mxu0 0.0
    %v7648 = vand.u32 %v2110, 4294901760
    %7649 = vmatmul.mubr.f32.gmra.mxu0 %v7648
    %v7650 = vpop.f32.mrf.mxu0
    %v7651 = vadd.f32 %v7558, %v7650
    %v7652 = vpop.f32.mrf.mxu0
    %7653 = vmatprep.mubr.f32.mxu0 0.0
    %v7654 = vand.u32 %v2113, 4294901760
    %7655 = vmatmul.mubr.f32.gmra.mxu0 %v7654
    %v7656 = vpop.f32.mrf.mxu0
    %v7657 = vadd.f32 %v7564, %v7656
    %v7658 = vpop.f32.mrf.mxu0
    %7659 = vmatprep.mubr.f32.mxu0 0.0
    %v7660 = vand.u32 %v2116, 4294901760
    %7661 = vmatmul.mubr.f32.gmra.mxu0 %v7660
    %v7662 = vpop.f32.mrf.mxu0
    %v7663 = vadd.f32 %v7570, %v7662
    %v7664 = vpop.f32.mrf.mxu0
    %7665 = vmatprep.mubr.f32.mxu0 0.0
    %v7666 = vand.u32 %v2119, 4294901760
    %7667 = vmatmul.mubr.f32.gmra.mxu0 %v7666
    %v7668 = vpop.f32.mrf.mxu0
    %v7669 = vadd.f32 %v7576, %v7668
    %v7670 = vpop.f32.mrf.mxu0
    %7671 = vdwg.mxu0
    %v7672 = vld [vmem:[#allocation7] sm:$0xff]
    %v7673 = vld [vmem:[#allocation7 + $0x8] sm:$0xff]
    %v7674 = vld [vmem:[#allocation7 + $0x10] sm:$0xff]
    %v7675 = vld [vmem:[#allocation7 + $0x18] sm:$0xff]
    %v7676 = vld [vmem:[#allocation7 + $0x20] sm:$0xff]
    %v7677 = vld [vmem:[#allocation7 + $0x28] sm:$0xff]
    %v7678 = vld [vmem:[#allocation7 + $0x30] sm:$0xff]
    %v7679 = vld [vmem:[#allocation7 + $0x38] sm:$0xff]
    %v7680 = vld [vmem:[#allocation7 + $0x40] sm:$0xff]
    %v7681 = vld [vmem:[#allocation7 + $0x48] sm:$0xff]
    %v7682 = vld [vmem:[#allocation7 + $0x50] sm:$0xff]
    %v7683 = vld [vmem:[#allocation7 + $0x58] sm:$0xff]
    %v7684 = vld [vmem:[#allocation7 + $0x60] sm:$0xff]
    %v7685 = vld [vmem:[#allocation7 + $0x68] sm:$0xff]
    %v7686 = vld [vmem:[#allocation7 + $0x70] sm:$0xff]
    %v7687 = vld [vmem:[#allocation7 + $0x78] sm:$0xff]
    %s7688 = scalar_lea.vmem [#allocation7], 128
    %v7689 = vld [vmem:[%s7688] sm:$0xff]
    %v7690 = vld [vmem:[%s7688 + $0x8] sm:$0xff]
    %v7691 = vld [vmem:[%s7688 + $0x10] sm:$0xff]
    %v7692 = vld [vmem:[%s7688 + $0x18] sm:$0xff]
    %v7693 = vld [vmem:[%s7688 + $0x20] sm:$0xff]
    %v7694 = vld [vmem:[%s7688 + $0x28] sm:$0xff]
    %v7695 = vld [vmem:[%s7688 + $0x30] sm:$0xff]
    %v7696 = vld [vmem:[%s7688 + $0x38] sm:$0xff]
    %v7697 = vld [vmem:[%s7688 + $0x40] sm:$0xff]
    %v7698 = vld [vmem:[%s7688 + $0x48] sm:$0xff]
    %v7699 = vld [vmem:[%s7688 + $0x50] sm:$0xff]
    %v7700 = vld [vmem:[%s7688 + $0x58] sm:$0xff]
    %v7701 = vld [vmem:[%s7688 + $0x60] sm:$0xff]
    %v7702 = vld [vmem:[%s7688 + $0x68] sm:$0xff]
    %v7703 = vld [vmem:[%s7688 + $0x70] sm:$0xff]
    %v7704 = vld [vmem:[%s7688 + $0x78] sm:$0xff]
    %7705 = vmatprep.subr.mxu0 0.0
    %v7706 = vand.u32 %v7704, 4294901760
    %7707 = vmatpush1.msra.mxu0 %v7706
    %7708 = vmatprep.subr.mxu0 0.0
    %v7709 = vand.u32 %v7703, 4294901760
    %7710 = vmatpush1.msra.mxu0 %v7709
    %7711 = vmatprep.subr.mxu0 0.0
    %v7712 = vand.u32 %v7702, 4294901760
    %7713 = vmatpush1.msra.mxu0 %v7712
    %7714 = vmatprep.subr.mxu0 0.0
    %v7715 = vand.u32 %v7701, 4294901760
    %7716 = vmatpush1.msra.mxu0 %v7715
    %7717 = vmatprep.subr.mxu0 0.0
    %v7718 = vand.u32 %v7700, 4294901760
    %7719 = vmatpush1.msra.mxu0 %v7718
    %7720 = vmatprep.subr.mxu0 0.0
    %v7721 = vand.u32 %v7699, 4294901760
    %7722 = vmatpush1.msra.mxu0 %v7721
    %7723 = vmatprep.subr.mxu0 0.0
    %v7724 = vand.u32 %v7698, 4294901760
    %7725 = vmatpush1.msra.mxu0 %v7724
    %7726 = vmatprep.subr.mxu0 0.0
    %v7727 = vand.u32 %v7697, 4294901760
    %7728 = vmatpush1.msra.mxu0 %v7727
    %7729 = vmatprep.subr.mxu0 0.0
    %v7730 = vand.u32 %v7696, 4294901760
    %7731 = vmatpush1.msra.mxu0 %v7730
    %7732 = vmatprep.subr.mxu0 0.0
    %v7733 = vand.u32 %v7695, 4294901760
    %7734 = vmatpush1.msra.mxu0 %v7733
    %7735 = vmatprep.subr.mxu0 0.0
    %v7736 = vand.u32 %v7694, 4294901760
    %7737 = vmatpush1.msra.mxu0 %v7736
    %7738 = vmatprep.subr.mxu0 0.0
    %v7739 = vand.u32 %v7693, 4294901760
    %7740 = vmatpush1.msra.mxu0 %v7739
    %7741 = vmatprep.subr.mxu0 0.0
    %v7742 = vand.u32 %v7692, 4294901760
    %7743 = vmatpush1.msra.mxu0 %v7742
    %7744 = vmatprep.subr.mxu0 0.0
    %v7745 = vand.u32 %v7691, 4294901760
    %7746 = vmatpush1.msra.mxu0 %v7745
    %7747 = vmatprep.subr.mxu0 0.0
    %v7748 = vand.u32 %v7690, 4294901760
    %7749 = vmatpush1.msra.mxu0 %v7748
    %7750 = vmatprep.subr.mxu0 0.0
    %v7751 = vand.u32 %v7689, 4294901760
    %7752 = vmatpush1.msra.mxu0 %v7751
    %7753 = vmatprep.subr.mxu0 0.0
    %7754 = vmatpush2.msra.mxu0 0.0
    %7755 = vmatprep.subr.mxu0 0.0
    %7756 = vmatpush2.msra.mxu0 0.0
    %7757 = vmatprep.subr.mxu0 0.0
    %7758 = vmatpush2.msra.mxu0 0.0
    %7759 = vmatprep.subr.mxu0 0.0
    %7760 = vmatpush2.msra.mxu0 0.0
    %7761 = vmatprep.subr.mxu0 0.0
    %7762 = vmatpush2.msra.mxu0 0.0
    %7763 = vmatprep.subr.mxu0 0.0
    %7764 = vmatpush2.msra.mxu0 0.0
    %7765 = vmatprep.subr.mxu0 0.0
    %7766 = vmatpush2.msra.mxu0 0.0
    %7767 = vmatprep.subr.mxu0 0.0
    %7768 = vmatpush2.msra.mxu0 0.0
    %7769 = vmatprep.subr.mxu0 0.0
    %7770 = vmatpush2.msra.mxu0 0.0
    %7771 = vmatprep.subr.mxu0 0.0
    %7772 = vmatpush2.msra.mxu0 0.0
    %7773 = vmatprep.subr.mxu0 0.0
    %7774 = vmatpush2.msra.mxu0 0.0
    %7775 = vmatprep.subr.mxu0 0.0
    %7776 = vmatpush2.msra.mxu0 0.0
    %7777 = vmatprep.subr.mxu0 0.0
    %7778 = vmatpush2.msra.mxu0 0.0
    %7779 = vmatprep.subr.mxu0 0.0
    %7780 = vmatpush2.msra.mxu0 0.0
    %7781 = vmatprep.subr.mxu0 0.0
    %7782 = vmatpush2.msra.mxu0 0.0
    %7783 = vmatprep.subr.mxu0 0.0
    %7784 = vmatpush2.msra.mxu0 0.0
    %7785 = vmatprep.mubr.f32.mxu0 0.0
    %v7786 = vand.u32 %v6440, 4294901760
    %v7787 = vsub.f32 %v6440, %v7786
    %v7788 = vand.u32 %v7787, 4294901760
    %v7789 = vsub.f32 %v7787, %v7788
    %v7790 = vand.u32 %v7789, 4294901760
    %7791 = vmatmul.mubr.f32.gmra.mxu0 %v7790
    %v7792 = vpop.f32.mrf.mxu0
    %v7793 = vadd.f32 0.0, %v7792
    %v7794 = vpop.f32.mrf.mxu0
    %7795 = vmatprep.mubr.f32.mxu0 0.0
    %v7796 = vand.u32 %v6441, 4294901760
    %v7797 = vsub.f32 %v6441, %v7796
    %v7798 = vand.u32 %v7797, 4294901760
    %v7799 = vsub.f32 %v7797, %v7798
    %v7800 = vand.u32 %v7799, 4294901760
    %7801 = vmatmul.mubr.f32.gmra.mxu0 %v7800
    %v7802 = vpop.f32.mrf.mxu0
    %v7803 = vadd.f32 0.0, %v7802
    %v7804 = vpop.f32.mrf.mxu0
    %7805 = vmatprep.mubr.f32.mxu0 0.0
    %v7806 = vand.u32 %v6442, 4294901760
    %v7807 = vsub.f32 %v6442, %v7806
    %v7808 = vand.u32 %v7807, 4294901760
    %v7809 = vsub.f32 %v7807, %v7808
    %v7810 = vand.u32 %v7809, 4294901760
    %7811 = vmatmul.mubr.f32.gmra.mxu0 %v7810
    %v7812 = vpop.f32.mrf.mxu0
    %v7813 = vadd.f32 0.0, %v7812
    %v7814 = vpop.f32.mrf.mxu0
    %7815 = vmatprep.mubr.f32.mxu0 0.0
    %v7816 = vand.u32 %v6443, 4294901760
    %v7817 = vsub.f32 %v6443, %v7816
    %v7818 = vand.u32 %v7817, 4294901760
    %v7819 = vsub.f32 %v7817, %v7818
    %v7820 = vand.u32 %v7819, 4294901760
    %7821 = vmatmul.mubr.f32.gmra.mxu0 %v7820
    %v7822 = vpop.f32.mrf.mxu0
    %v7823 = vadd.f32 0.0, %v7822
    %v7824 = vpop.f32.mrf.mxu0
    %7825 = vdwg.mxu0
    %7826 = vmatprep.subr.mxu0 0.0
    %v7827 = vand.u32 %v7704, 4294901760
    %v7828 = vsub.f32 %v7704, %v7827
    %v7829 = vand.u32 %v7828, 4294901760
    %v7830 = vsub.f32 %v7828, %v7829
    %v7831 = vand.u32 %v7830, 4294901760
    %7832 = vmatpush1.msra.mxu0 %v7831
    %7833 = vmatprep.subr.mxu0 0.0
    %v7834 = vand.u32 %v7703, 4294901760
    %v7835 = vsub.f32 %v7703, %v7834
    %v7836 = vand.u32 %v7835, 4294901760
    %v7837 = vsub.f32 %v7835, %v7836
    %v7838 = vand.u32 %v7837, 4294901760
    %7839 = vmatpush1.msra.mxu0 %v7838
    %7840 = vmatprep.subr.mxu0 0.0
    %v7841 = vand.u32 %v7702, 4294901760
    %v7842 = vsub.f32 %v7702, %v7841
    %v7843 = vand.u32 %v7842, 4294901760
    %v7844 = vsub.f32 %v7842, %v7843
    %v7845 = vand.u32 %v7844, 4294901760
    %7846 = vmatpush1.msra.mxu0 %v7845
    %7847 = vmatprep.subr.mxu0 0.0
    %v7848 = vand.u32 %v7701, 4294901760
    %v7849 = vsub.f32 %v7701, %v7848
    %v7850 = vand.u32 %v7849, 4294901760
    %v7851 = vsub.f32 %v7849, %v7850
    %v7852 = vand.u32 %v7851, 4294901760
    %7853 = vmatpush1.msra.mxu0 %v7852
    %7854 = vmatprep.subr.mxu0 0.0
    %v7855 = vand.u32 %v7700, 4294901760
    %v7856 = vsub.f32 %v7700, %v7855
    %v7857 = vand.u32 %v7856, 4294901760
    %v7858 = vsub.f32 %v7856, %v7857
    %v7859 = vand.u32 %v7858, 4294901760
    %7860 = vmatpush1.msra.mxu0 %v7859
    %7861 = vmatprep.subr.mxu0 0.0
    %v7862 = vand.u32 %v7699, 4294901760
    %v7863 = vsub.f32 %v7699, %v7862
    %v7864 = vand.u32 %v7863, 4294901760
    %v7865 = vsub.f32 %v7863, %v7864
    %v7866 = vand.u32 %v7865, 4294901760
    %7867 = vmatpush1.msra.mxu0 %v7866
    %7868 = vmatprep.subr.mxu0 0.0
    %v7869 = vand.u32 %v7698, 4294901760
    %v7870 = vsub.f32 %v7698, %v7869
    %v7871 = vand.u32 %v7870, 4294901760
    %v7872 = vsub.f32 %v7870, %v7871
    %v7873 = vand.u32 %v7872, 4294901760
    %7874 = vmatpush1.msra.mxu0 %v7873
    %7875 = vmatprep.subr.mxu0 0.0
    %v7876 = vand.u32 %v7697, 4294901760
    %v7877 = vsub.f32 %v7697, %v7876
    %v7878 = vand.u32 %v7877, 4294901760
    %v7879 = vsub.f32 %v7877, %v7878
    %v7880 = vand.u32 %v7879, 4294901760
    %7881 = vmatpush1.msra.mxu0 %v7880
    %7882 = vmatprep.subr.mxu0 0.0
    %v7883 = vand.u32 %v7696, 4294901760
    %v7884 = vsub.f32 %v7696, %v7883
    %v7885 = vand.u32 %v7884, 4294901760
    %v7886 = vsub.f32 %v7884, %v7885
    %v7887 = vand.u32 %v7886, 4294901760
    %7888 = vmatpush1.msra.mxu0 %v7887
    %7889 = vmatprep.subr.mxu0 0.0
    %v7890 = vand.u32 %v7695, 4294901760
    %v7891 = vsub.f32 %v7695, %v7890
    %v7892 = vand.u32 %v7891, 4294901760
    %v7893 = vsub.f32 %v7891, %v7892
    %v7894 = vand.u32 %v7893, 4294901760
    %7895 = vmatpush1.msra.mxu0 %v7894
    %7896 = vmatprep.subr.mxu0 0.0
    %v7897 = vand.u32 %v7694, 4294901760
    %v7898 = vsub.f32 %v7694, %v7897
    %v7899 = vand.u32 %v7898, 4294901760
    %v7900 = vsub.f32 %v7898, %v7899
    %v7901 = vand.u32 %v7900, 4294901760
    %7902 = vmatpush1.msra.mxu0 %v7901
    %7903 = vmatprep.subr.mxu0 0.0
    %v7904 = vand.u32 %v7693, 4294901760
    %v7905 = vsub.f32 %v7693, %v7904
    %v7906 = vand.u32 %v7905, 4294901760
    %v7907 = vsub.f32 %v7905, %v7906
    %v7908 = vand.u32 %v7907, 4294901760
    %7909 = vmatpush1.msra.mxu0 %v7908
    %7910 = vmatprep.subr.mxu0 0.0
    %v7911 = vand.u32 %v7692, 4294901760
    %v7912 = vsub.f32 %v7692, %v7911
    %v7913 = vand.u32 %v7912, 4294901760
    %v7914 = vsub.f32 %v7912, %v7913
    %v7915 = vand.u32 %v7914, 4294901760
    %7916 = vmatpush1.msra.mxu0 %v7915
    %7917 = vmatprep.subr.mxu0 0.0
    %v7918 = vand.u32 %v7691, 4294901760
    %v7919 = vsub.f32 %v7691, %v7918
    %v7920 = vand.u32 %v7919, 4294901760
    %v7921 = vsub.f32 %v7919, %v7920
    %v7922 = vand.u32 %v7921, 4294901760
    %7923 = vmatpush1.msra.mxu0 %v7922
    %7924 = vmatprep.subr.mxu0 0.0
    %v7925 = vand.u32 %v7690, 4294901760
    %v7926 = vsub.f32 %v7690, %v7925
    %v7927 = vand.u32 %v7926, 4294901760
    %v7928 = vsub.f32 %v7926, %v7927
    %v7929 = vand.u32 %v7928, 4294901760
    %7930 = vmatpush1.msra.mxu0 %v7929
    %7931 = vmatprep.subr.mxu0 0.0
    %v7932 = vand.u32 %v7689, 4294901760
    %v7933 = vsub.f32 %v7689, %v7932
    %v7934 = vand.u32 %v7933, 4294901760
    %v7935 = vsub.f32 %v7933, %v7934
    %v7936 = vand.u32 %v7935, 4294901760
    %7937 = vmatpush1.msra.mxu0 %v7936
    %7938 = vmatprep.subr.mxu0 0.0
    %7939 = vmatpush2.msra.mxu0 0.0
    %7940 = vmatprep.subr.mxu0 0.0
    %7941 = vmatpush2.msra.mxu0 0.0
    %7942 = vmatprep.subr.mxu0 0.0
    %7943 = vmatpush2.msra.mxu0 0.0
    %7944 = vmatprep.subr.mxu0 0.0
    %7945 = vmatpush2.msra.mxu0 0.0
    %7946 = vmatprep.subr.mxu0 0.0
    %7947 = vmatpush2.msra.mxu0 0.0
    %7948 = vmatprep.subr.mxu0 0.0
    %7949 = vmatpush2.msra.mxu0 0.0
    %7950 = vmatprep.subr.mxu0 0.0
    %7951 = vmatpush2.msra.mxu0 0.0
    %7952 = vmatprep.subr.mxu0 0.0
    %7953 = vmatpush2.msra.mxu0 0.0
    %7954 = vmatprep.subr.mxu0 0.0
    %7955 = vmatpush2.msra.mxu0 0.0
    %7956 = vmatprep.subr.mxu0 0.0
    %7957 = vmatpush2.msra.mxu0 0.0
    %7958 = vmatprep.subr.mxu0 0.0
    %7959 = vmatpush2.msra.mxu0 0.0
    %7960 = vmatprep.subr.mxu0 0.0
    %7961 = vmatpush2.msra.mxu0 0.0
    %7962 = vmatprep.subr.mxu0 0.0
    %7963 = vmatpush2.msra.mxu0 0.0
    %7964 = vmatprep.subr.mxu0 0.0
    %7965 = vmatpush2.msra.mxu0 0.0
    %7966 = vmatprep.subr.mxu0 0.0
    %7967 = vmatpush2.msra.mxu0 0.0
    %7968 = vmatprep.subr.mxu0 0.0
    %7969 = vmatpush2.msra.mxu0 0.0
    %7970 = vmatprep.mubr.f32.mxu0 0.0
    %v7971 = vand.u32 %v6440, 4294901760
    %7972 = vmatmul.mubr.f32.gmra.mxu0 %v7971
    %v7973 = vpop.f32.mrf.mxu0
    %v7974 = vadd.f32 %v7793, %v7973
    %v7975 = vpop.f32.mrf.mxu0
    %7976 = vmatprep.mubr.f32.mxu0 0.0
    %v7977 = vand.u32 %v6441, 4294901760
    %7978 = vmatmul.mubr.f32.gmra.mxu0 %v7977
    %v7979 = vpop.f32.mrf.mxu0
    %v7980 = vadd.f32 %v7803, %v7979
    %v7981 = vpop.f32.mrf.mxu0
    %7982 = vmatprep.mubr.f32.mxu0 0.0
    %v7983 = vand.u32 %v6442, 4294901760
    %7984 = vmatmul.mubr.f32.gmra.mxu0 %v7983
    %v7985 = vpop.f32.mrf.mxu0
    %v7986 = vadd.f32 %v7813, %v7985
    %v7987 = vpop.f32.mrf.mxu0
    %7988 = vmatprep.mubr.f32.mxu0 0.0
    %v7989 = vand.u32 %v6443, 4294901760
    %7990 = vmatmul.mubr.f32.gmra.mxu0 %v7989
    %v7991 = vpop.f32.mrf.mxu0
    %v7992 = vadd.f32 %v7823, %v7991
    %v7993 = vpop.f32.mrf.mxu0
    %7994 = vdwg.mxu0
    %7995 = vmatprep.subr.mxu0 0.0
    %v7996 = vand.u32 %v7704, 4294901760
    %v7997 = vsub.f32 %v7704, %v7996
    %7998 = vmatpush1.msra.mxu0 %v7997
    %7999 = vmatprep.subr.mxu0 0.0
    %v8000 = vand.u32 %v7703, 4294901760
    %v8001 = vsub.f32 %v7703, %v8000
    %8002 = vmatpush1.msra.mxu0 %v8001
    %8003 = vmatprep.subr.mxu0 0.0
    %v8004 = vand.u32 %v7702, 4294901760
    %v8005 = vsub.f32 %v7702, %v8004
    %8006 = vmatpush1.msra.mxu0 %v8005
    %8007 = vmatprep.subr.mxu0 0.0
    %v8008 = vand.u32 %v7701, 4294901760
    %v8009 = vsub.f32 %v7701, %v8008
    %8010 = vmatpush1.msra.mxu0 %v8009
    %8011 = vmatprep.subr.mxu0 0.0
    %v8012 = vand.u32 %v7700, 4294901760
    %v8013 = vsub.f32 %v7700, %v8012
    %8014 = vmatpush1.msra.mxu0 %v8013
    %8015 = vmatprep.subr.mxu0 0.0
    %v8016 = vand.u32 %v7699, 4294901760
    %v8017 = vsub.f32 %v7699, %v8016
    %8018 = vmatpush1.msra.mxu0 %v8017
    %8019 = vmatprep.subr.mxu0 0.0
    %v8020 = vand.u32 %v7698, 4294901760
    %v8021 = vsub.f32 %v7698, %v8020
    %8022 = vmatpush1.msra.mxu0 %v8021
    %8023 = vmatprep.subr.mxu0 0.0
    %v8024 = vand.u32 %v7697, 4294901760
    %v8025 = vsub.f32 %v7697, %v8024
    %8026 = vmatpush1.msra.mxu0 %v8025
    %8027 = vmatprep.subr.mxu0 0.0
    %v8028 = vand.u32 %v7696, 4294901760
    %v8029 = vsub.f32 %v7696, %v8028
    %8030 = vmatpush1.msra.mxu0 %v8029
    %8031 = vmatprep.subr.mxu0 0.0
    %v8032 = vand.u32 %v7695, 4294901760
    %v8033 = vsub.f32 %v7695, %v8032
    %8034 = vmatpush1.msra.mxu0 %v8033
    %8035 = vmatprep.subr.mxu0 0.0
    %v8036 = vand.u32 %v7694, 4294901760
    %v8037 = vsub.f32 %v7694, %v8036
    %8038 = vmatpush1.msra.mxu0 %v8037
    %8039 = vmatprep.subr.mxu0 0.0
    %v8040 = vand.u32 %v7693, 4294901760
    %v8041 = vsub.f32 %v7693, %v8040
    %8042 = vmatpush1.msra.mxu0 %v8041
    %8043 = vmatprep.subr.mxu0 0.0
    %v8044 = vand.u32 %v7692, 4294901760
    %v8045 = vsub.f32 %v7692, %v8044
    %8046 = vmatpush1.msra.mxu0 %v8045
    %8047 = vmatprep.subr.mxu0 0.0
    %v8048 = vand.u32 %v7691, 4294901760
    %v8049 = vsub.f32 %v7691, %v8048
    %8050 = vmatpush1.msra.mxu0 %v8049
    %8051 = vmatprep.subr.mxu0 0.0
    %v8052 = vand.u32 %v7690, 4294901760
    %v8053 = vsub.f32 %v7690, %v8052
    %8054 = vmatpush1.msra.mxu0 %v8053
    %8055 = vmatprep.subr.mxu0 0.0
    %v8056 = vand.u32 %v7689, 4294901760
    %v8057 = vsub.f32 %v7689, %v8056
    %8058 = vmatpush1.msra.mxu0 %v8057
    %8059 = vmatprep.subr.mxu0 0.0
    %8060 = vmatpush2.msra.mxu0 0.0
    %8061 = vmatprep.subr.mxu0 0.0
    %8062 = vmatpush2.msra.mxu0 0.0
    %8063 = vmatprep.subr.mxu0 0.0
    %8064 = vmatpush2.msra.mxu0 0.0
    %8065 = vmatprep.subr.mxu0 0.0
    %8066 = vmatpush2.msra.mxu0 0.0
    %8067 = vmatprep.subr.mxu0 0.0
    %8068 = vmatpush2.msra.mxu0 0.0
    %8069 = vmatprep.subr.mxu0 0.0
    %8070 = vmatpush2.msra.mxu0 0.0
    %8071 = vmatprep.subr.mxu0 0.0
    %8072 = vmatpush2.msra.mxu0 0.0
    %8073 = vmatprep.subr.mxu0 0.0
    %8074 = vmatpush2.msra.mxu0 0.0
    %8075 = vmatprep.subr.mxu0 0.0
    %8076 = vmatpush2.msra.mxu0 0.0
    %8077 = vmatprep.subr.mxu0 0.0
    %8078 = vmatpush2.msra.mxu0 0.0
    %8079 = vmatprep.subr.mxu0 0.0
    %8080 = vmatpush2.msra.mxu0 0.0
    %8081 = vmatprep.subr.mxu0 0.0
    %8082 = vmatpush2.msra.mxu0 0.0
    %8083 = vmatprep.subr.mxu0 0.0
    %8084 = vmatpush2.msra.mxu0 0.0
    %8085 = vmatprep.subr.mxu0 0.0
    %8086 = vmatpush2.msra.mxu0 0.0
    %8087 = vmatprep.subr.mxu0 0.0
    %8088 = vmatpush2.msra.mxu0 0.0
    %8089 = vmatprep.subr.mxu0 0.0
    %8090 = vmatpush2.msra.mxu0 0.0
    %8091 = vmatprep.mubr.f32.mxu0 0.0
    %v8092 = vand.u32 %v6440, 4294901760
    %v8093 = vsub.f32 %v6440, %v8092
    %8094 = vmatmul.mubr.f32.gmra.mxu0 %v8093
    %v8095 = vpop.f32.mrf.mxu0
    %v8096 = vadd.f32 %v7974, %v8095
    %v8097 = vpop.f32.mrf.mxu0
    %8098 = vmatprep.mubr.f32.mxu0 0.0
    %v8099 = vand.u32 %v6441, 4294901760
    %v8100 = vsub.f32 %v6441, %v8099
    %8101 = vmatmul.mubr.f32.gmra.mxu0 %v8100
    %v8102 = vpop.f32.mrf.mxu0
    %v8103 = vadd.f32 %v7980, %v8102
    %v8104 = vpop.f32.mrf.mxu0
    %8105 = vmatprep.mubr.f32.mxu0 0.0
    %v8106 = vand.u32 %v6442, 4294901760
    %v8107 = vsub.f32 %v6442, %v8106
    %8108 = vmatmul.mubr.f32.gmra.mxu0 %v8107
    %v8109 = vpop.f32.mrf.mxu0
    %v8110 = vadd.f32 %v7986, %v8109
    %v8111 = vpop.f32.mrf.mxu0
    %8112 = vmatprep.mubr.f32.mxu0 0.0
    %v8113 = vand.u32 %v6443, 4294901760
    %v8114 = vsub.f32 %v6443, %v8113
    %8115 = vmatmul.mubr.f32.gmra.mxu0 %v8114
    %v8116 = vpop.f32.mrf.mxu0
    %v8117 = vadd.f32 %v7992, %v8116
    %v8118 = vpop.f32.mrf.mxu0
    %8119 = vdwg.mxu0
    %8120 = vmatprep.subr.mxu0 0.0
    %v8121 = vand.u32 %v7704, 4294901760
    %8122 = vmatpush1.msra.mxu0 %v8121
    %8123 = vmatprep.subr.mxu0 0.0
    %v8124 = vand.u32 %v7703, 4294901760
    %8125 = vmatpush1.msra.mxu0 %v8124
    %8126 = vmatprep.subr.mxu0 0.0
    %v8127 = vand.u32 %v7702, 4294901760
    %8128 = vmatpush1.msra.mxu0 %v8127
    %8129 = vmatprep.subr.mxu0 0.0
    %v8130 = vand.u32 %v7701, 4294901760
    %8131 = vmatpush1.msra.mxu0 %v8130
    %8132 = vmatprep.subr.mxu0 0.0
    %v8133 = vand.u32 %v7700, 4294901760
    %8134 = vmatpush1.msra.mxu0 %v8133
    %8135 = vmatprep.subr.mxu0 0.0
    %v8136 = vand.u32 %v7699, 4294901760
    %8137 = vmatpush1.msra.mxu0 %v8136
    %8138 = vmatprep.subr.mxu0 0.0
    %v8139 = vand.u32 %v7698, 4294901760
    %8140 = vmatpush1.msra.mxu0 %v8139
    %8141 = vmatprep.subr.mxu0 0.0
    %v8142 = vand.u32 %v7697, 4294901760
    %8143 = vmatpush1.msra.mxu0 %v8142
    %8144 = vmatprep.subr.mxu0 0.0
    %v8145 = vand.u32 %v7696, 4294901760
    %8146 = vmatpush1.msra.mxu0 %v8145
    %8147 = vmatprep.subr.mxu0 0.0
    %v8148 = vand.u32 %v7695, 4294901760
    %8149 = vmatpush1.msra.mxu0 %v8148
    %8150 = vmatprep.subr.mxu0 0.0
    %v8151 = vand.u32 %v7694, 4294901760
    %8152 = vmatpush1.msra.mxu0 %v8151
    %8153 = vmatprep.subr.mxu0 0.0
    %v8154 = vand.u32 %v7693, 4294901760
    %8155 = vmatpush1.msra.mxu0 %v8154
    %8156 = vmatprep.subr.mxu0 0.0
    %v8157 = vand.u32 %v7692, 4294901760
    %8158 = vmatpush1.msra.mxu0 %v8157
    %8159 = vmatprep.subr.mxu0 0.0
    %v8160 = vand.u32 %v7691, 4294901760
    %8161 = vmatpush1.msra.mxu0 %v8160
    %8162 = vmatprep.subr.mxu0 0.0
    %v8163 = vand.u32 %v7690, 4294901760
    %8164 = vmatpush1.msra.mxu0 %v8163
    %8165 = vmatprep.subr.mxu0 0.0
    %v8166 = vand.u32 %v7689, 4294901760
    %8167 = vmatpush1.msra.mxu0 %v8166
    %8168 = vmatprep.subr.mxu0 0.0
    %8169 = vmatpush2.msra.mxu0 0.0
    %8170 = vmatprep.subr.mxu0 0.0
    %8171 = vmatpush2.msra.mxu0 0.0
    %8172 = vmatprep.subr.mxu0 0.0
    %8173 = vmatpush2.msra.mxu0 0.0
    %8174 = vmatprep.subr.mxu0 0.0
    %8175 = vmatpush2.msra.mxu0 0.0
    %8176 = vmatprep.subr.mxu0 0.0
    %8177 = vmatpush2.msra.mxu0 0.0
    %8178 = vmatprep.subr.mxu0 0.0
    %8179 = vmatpush2.msra.mxu0 0.0
    %8180 = vmatprep.subr.mxu0 0.0
    %8181 = vmatpush2.msra.mxu0 0.0
    %8182 = vmatprep.subr.mxu0 0.0
    %8183 = vmatpush2.msra.mxu0 0.0
    %8184 = vmatprep.subr.mxu0 0.0
    %8185 = vmatpush2.msra.mxu0 0.0
    %8186 = vmatprep.subr.mxu0 0.0
    %8187 = vmatpush2.msra.mxu0 0.0
    %8188 = vmatprep.subr.mxu0 0.0
    %8189 = vmatpush2.msra.mxu0 0.0
    %8190 = vmatprep.subr.mxu0 0.0
    %8191 = vmatpush2.msra.mxu0 0.0
    %8192 = vmatprep.subr.mxu0 0.0
    %8193 = vmatpush2.msra.mxu0 0.0
    %8194 = vmatprep.subr.mxu0 0.0
    %8195 = vmatpush2.msra.mxu0 0.0
    %8196 = vmatprep.subr.mxu0 0.0
    %8197 = vmatpush2.msra.mxu0 0.0
    %8198 = vmatprep.subr.mxu0 0.0
    %8199 = vmatpush2.msra.mxu0 0.0
    %8200 = vmatprep.mubr.f32.mxu0 0.0
    %v8201 = vand.u32 %v6440, 4294901760
    %v8202 = vsub.f32 %v6440, %v8201
    %v8203 = vand.u32 %v8202, 4294901760
    %8204 = vmatmul.mubr.f32.gmra.mxu0 %v8203
    %v8205 = vpop.f32.mrf.mxu0
    %v8206 = vadd.f32 %v8096, %v8205
    %v8207 = vpop.f32.mrf.mxu0
    %8208 = vmatprep.mubr.f32.mxu0 0.0
    %v8209 = vand.u32 %v6441, 4294901760
    %v8210 = vsub.f32 %v6441, %v8209
    %v8211 = vand.u32 %v8210, 4294901760
    %8212 = vmatmul.mubr.f32.gmra.mxu0 %v8211
    %v8213 = vpop.f32.mrf.mxu0
    %v8214 = vadd.f32 %v8103, %v8213
    %v8215 = vpop.f32.mrf.mxu0
    %8216 = vmatprep.mubr.f32.mxu0 0.0
    %v8217 = vand.u32 %v6442, 4294901760
    %v8218 = vsub.f32 %v6442, %v8217
    %v8219 = vand.u32 %v8218, 4294901760
    %8220 = vmatmul.mubr.f32.gmra.mxu0 %v8219
    %v8221 = vpop.f32.mrf.mxu0
    %v8222 = vadd.f32 %v8110, %v8221
    %v8223 = vpop.f32.mrf.mxu0
    %8224 = vmatprep.mubr.f32.mxu0 0.0
    %v8225 = vand.u32 %v6443, 4294901760
    %v8226 = vsub.f32 %v6443, %v8225
    %v8227 = vand.u32 %v8226, 4294901760
    %8228 = vmatmul.mubr.f32.gmra.mxu0 %v8227
    %v8229 = vpop.f32.mrf.mxu0
    %v8230 = vadd.f32 %v8117, %v8229
    %v8231 = vpop.f32.mrf.mxu0
    %8232 = vdwg.mxu0
    %8233 = vmatprep.subr.mxu0 0.0
    %v8234 = vand.u32 %v7704, 4294901760
    %v8235 = vsub.f32 %v7704, %v8234
    %v8236 = vand.u32 %v8235, 4294901760
    %8237 = vmatpush1.msra.mxu0 %v8236
    %8238 = vmatprep.subr.mxu0 0.0
    %v8239 = vand.u32 %v7703, 4294901760
    %v8240 = vsub.f32 %v7703, %v8239
    %v8241 = vand.u32 %v8240, 4294901760
    %8242 = vmatpush1.msra.mxu0 %v8241
    %8243 = vmatprep.subr.mxu0 0.0
    %v8244 = vand.u32 %v7702, 4294901760
    %v8245 = vsub.f32 %v7702, %v8244
    %v8246 = vand.u32 %v8245, 4294901760
    %8247 = vmatpush1.msra.mxu0 %v8246
    %8248 = vmatprep.subr.mxu0 0.0
    %v8249 = vand.u32 %v7701, 4294901760
    %v8250 = vsub.f32 %v7701, %v8249
    %v8251 = vand.u32 %v8250, 4294901760
    %8252 = vmatpush1.msra.mxu0 %v8251
    %8253 = vmatprep.subr.mxu0 0.0
    %v8254 = vand.u32 %v7700, 4294901760
    %v8255 = vsub.f32 %v7700, %v8254
    %v8256 = vand.u32 %v8255, 4294901760
    %8257 = vmatpush1.msra.mxu0 %v8256
    %8258 = vmatprep.subr.mxu0 0.0
    %v8259 = vand.u32 %v7699, 4294901760
    %v8260 = vsub.f32 %v7699, %v8259
    %v8261 = vand.u32 %v8260, 4294901760
    %8262 = vmatpush1.msra.mxu0 %v8261
    %8263 = vmatprep.subr.mxu0 0.0
    %v8264 = vand.u32 %v7698, 4294901760
    %v8265 = vsub.f32 %v7698, %v8264
    %v8266 = vand.u32 %v8265, 4294901760
    %8267 = vmatpush1.msra.mxu0 %v8266
    %8268 = vmatprep.subr.mxu0 0.0
    %v8269 = vand.u32 %v7697, 4294901760
    %v8270 = vsub.f32 %v7697, %v8269
    %v8271 = vand.u32 %v8270, 4294901760
    %8272 = vmatpush1.msra.mxu0 %v8271
    %8273 = vmatprep.subr.mxu0 0.0
    %v8274 = vand.u32 %v7696, 4294901760
    %v8275 = vsub.f32 %v7696, %v8274
    %v8276 = vand.u32 %v8275, 4294901760
    %8277 = vmatpush1.msra.mxu0 %v8276
    %8278 = vmatprep.subr.mxu0 0.0
    %v8279 = vand.u32 %v7695, 4294901760
    %v8280 = vsub.f32 %v7695, %v8279
    %v8281 = vand.u32 %v8280, 4294901760
    %8282 = vmatpush1.msra.mxu0 %v8281
    %8283 = vmatprep.subr.mxu0 0.0
    %v8284 = vand.u32 %v7694, 4294901760
    %v8285 = vsub.f32 %v7694, %v8284
    %v8286 = vand.u32 %v8285, 4294901760
    %8287 = vmatpush1.msra.mxu0 %v8286
    %8288 = vmatprep.subr.mxu0 0.0
    %v8289 = vand.u32 %v7693, 4294901760
    %v8290 = vsub.f32 %v7693, %v8289
    %v8291 = vand.u32 %v8290, 4294901760
    %8292 = vmatpush1.msra.mxu0 %v8291
    %8293 = vmatprep.subr.mxu0 0.0
    %v8294 = vand.u32 %v7692, 4294901760
    %v8295 = vsub.f32 %v7692, %v8294
    %v8296 = vand.u32 %v8295, 4294901760
    %8297 = vmatpush1.msra.mxu0 %v8296
    %8298 = vmatprep.subr.mxu0 0.0
    %v8299 = vand.u32 %v7691, 4294901760
    %v8300 = vsub.f32 %v7691, %v8299
    %v8301 = vand.u32 %v8300, 4294901760
    %8302 = vmatpush1.msra.mxu0 %v8301
    %8303 = vmatprep.subr.mxu0 0.0
    %v8304 = vand.u32 %v7690, 4294901760
    %v8305 = vsub.f32 %v7690, %v8304
    %v8306 = vand.u32 %v8305, 4294901760
    %8307 = vmatpush1.msra.mxu0 %v8306
    %8308 = vmatprep.subr.mxu0 0.0
    %v8309 = vand.u32 %v7689, 4294901760
    %v8310 = vsub.f32 %v7689, %v8309
    %v8311 = vand.u32 %v8310, 4294901760
    %8312 = vmatpush1.msra.mxu0 %v8311
    %8313 = vmatprep.subr.mxu0 0.0
    %8314 = vmatpush2.msra.mxu0 0.0
    %8315 = vmatprep.subr.mxu0 0.0
    %8316 = vmatpush2.msra.mxu0 0.0
    %8317 = vmatprep.subr.mxu0 0.0
    %8318 = vmatpush2.msra.mxu0 0.0
    %8319 = vmatprep.subr.mxu0 0.0
    %8320 = vmatpush2.msra.mxu0 0.0
    %8321 = vmatprep.subr.mxu0 0.0
    %8322 = vmatpush2.msra.mxu0 0.0
    %8323 = vmatprep.subr.mxu0 0.0
    %8324 = vmatpush2.msra.mxu0 0.0
    %8325 = vmatprep.subr.mxu0 0.0
    %8326 = vmatpush2.msra.mxu0 0.0
    %8327 = vmatprep.subr.mxu0 0.0
    %8328 = vmatpush2.msra.mxu0 0.0
    %8329 = vmatprep.subr.mxu0 0.0
    %8330 = vmatpush2.msra.mxu0 0.0
    %8331 = vmatprep.subr.mxu0 0.0
    %8332 = vmatpush2.msra.mxu0 0.0
    %8333 = vmatprep.subr.mxu0 0.0
    %8334 = vmatpush2.msra.mxu0 0.0
    %8335 = vmatprep.subr.mxu0 0.0
    %8336 = vmatpush2.msra.mxu0 0.0
    %8337 = vmatprep.subr.mxu0 0.0
    %8338 = vmatpush2.msra.mxu0 0.0
    %8339 = vmatprep.subr.mxu0 0.0
    %8340 = vmatpush2.msra.mxu0 0.0
    %8341 = vmatprep.subr.mxu0 0.0
    %8342 = vmatpush2.msra.mxu0 0.0
    %8343 = vmatprep.subr.mxu0 0.0
    %8344 = vmatpush2.msra.mxu0 0.0
    %8345 = vmatprep.mubr.f32.mxu0 0.0
    %v8346 = vand.u32 %v6440, 4294901760
    %8347 = vmatmul.mubr.f32.gmra.mxu0 %v8346
    %v8348 = vpop.f32.mrf.mxu0
    %v8349 = vadd.f32 %v8206, %v8348
    %v8350 = vpop.f32.mrf.mxu0
    %8351 = vmatprep.mubr.f32.mxu0 0.0
    %v8352 = vand.u32 %v6441, 4294901760
    %8353 = vmatmul.mubr.f32.gmra.mxu0 %v8352
    %v8354 = vpop.f32.mrf.mxu0
    %v8355 = vadd.f32 %v8214, %v8354
    %v8356 = vpop.f32.mrf.mxu0
    %8357 = vmatprep.mubr.f32.mxu0 0.0
    %v8358 = vand.u32 %v6442, 4294901760
    %8359 = vmatmul.mubr.f32.gmra.mxu0 %v8358
    %v8360 = vpop.f32.mrf.mxu0
    %v8361 = vadd.f32 %v8222, %v8360
    %v8362 = vpop.f32.mrf.mxu0
    %8363 = vmatprep.mubr.f32.mxu0 0.0
    %v8364 = vand.u32 %v6443, 4294901760
    %8365 = vmatmul.mubr.f32.gmra.mxu0 %v8364
    %v8366 = vpop.f32.mrf.mxu0
    %v8367 = vadd.f32 %v8230, %v8366
    %v8368 = vpop.f32.mrf.mxu0
    %8369 = vdwg.mxu0
    %8370 = vmatprep.subr.mxu0 0.0
    %v8371 = vand.u32 %v7704, 4294901760
    %8372 = vmatpush1.msra.mxu0 %v8371
    %8373 = vmatprep.subr.mxu0 0.0
    %v8374 = vand.u32 %v7703, 4294901760
    %8375 = vmatpush1.msra.mxu0 %v8374
    %8376 = vmatprep.subr.mxu0 0.0
    %v8377 = vand.u32 %v7702, 4294901760
    %8378 = vmatpush1.msra.mxu0 %v8377
    %8379 = vmatprep.subr.mxu0 0.0
    %v8380 = vand.u32 %v7701, 4294901760
    %8381 = vmatpush1.msra.mxu0 %v8380
    %8382 = vmatprep.subr.mxu0 0.0
    %v8383 = vand.u32 %v7700, 4294901760
    %8384 = vmatpush1.msra.mxu0 %v8383
    %8385 = vmatprep.subr.mxu0 0.0
    %v8386 = vand.u32 %v7699, 4294901760
    %8387 = vmatpush1.msra.mxu0 %v8386
    %8388 = vmatprep.subr.mxu0 0.0
    %v8389 = vand.u32 %v7698, 4294901760
    %8390 = vmatpush1.msra.mxu0 %v8389
    %8391 = vmatprep.subr.mxu0 0.0
    %v8392 = vand.u32 %v7697, 4294901760
    %8393 = vmatpush1.msra.mxu0 %v8392
    %8394 = vmatprep.subr.mxu0 0.0
    %v8395 = vand.u32 %v7696, 4294901760
    %8396 = vmatpush1.msra.mxu0 %v8395
    %8397 = vmatprep.subr.mxu0 0.0
    %v8398 = vand.u32 %v7695, 4294901760
    %8399 = vmatpush1.msra.mxu0 %v8398
    %8400 = vmatprep.subr.mxu0 0.0
    %v8401 = vand.u32 %v7694, 4294901760
    %8402 = vmatpush1.msra.mxu0 %v8401
    %8403 = vmatprep.subr.mxu0 0.0
    %v8404 = vand.u32 %v7693, 4294901760
    %8405 = vmatpush1.msra.mxu0 %v8404
    %8406 = vmatprep.subr.mxu0 0.0
    %v8407 = vand.u32 %v7692, 4294901760
    %8408 = vmatpush1.msra.mxu0 %v8407
    %8409 = vmatprep.subr.mxu0 0.0
    %v8410 = vand.u32 %v7691, 4294901760
    %8411 = vmatpush1.msra.mxu0 %v8410
    %8412 = vmatprep.subr.mxu0 0.0
    %v8413 = vand.u32 %v7690, 4294901760
    %8414 = vmatpush1.msra.mxu0 %v8413
    %8415 = vmatprep.subr.mxu0 0.0
    %v8416 = vand.u32 %v7689, 4294901760
    %8417 = vmatpush1.msra.mxu0 %v8416
    %8418 = vmatprep.subr.mxu0 0.0
    %8419 = vmatpush2.msra.mxu0 0.0
    %8420 = vmatprep.subr.mxu0 0.0
    %8421 = vmatpush2.msra.mxu0 0.0
    %8422 = vmatprep.subr.mxu0 0.0
    %8423 = vmatpush2.msra.mxu0 0.0
    %8424 = vmatprep.subr.mxu0 0.0
    %8425 = vmatpush2.msra.mxu0 0.0
    %8426 = vmatprep.subr.mxu0 0.0
    %8427 = vmatpush2.msra.mxu0 0.0
    %8428 = vmatprep.subr.mxu0 0.0
    %8429 = vmatpush2.msra.mxu0 0.0
    %8430 = vmatprep.subr.mxu0 0.0
    %8431 = vmatpush2.msra.mxu0 0.0
    %8432 = vmatprep.subr.mxu0 0.0
    %8433 = vmatpush2.msra.mxu0 0.0
    %8434 = vmatprep.subr.mxu0 0.0
    %8435 = vmatpush2.msra.mxu0 0.0
    %8436 = vmatprep.subr.mxu0 0.0
    %8437 = vmatpush2.msra.mxu0 0.0
    %8438 = vmatprep.subr.mxu0 0.0
    %8439 = vmatpush2.msra.mxu0 0.0
    %8440 = vmatprep.subr.mxu0 0.0
    %8441 = vmatpush2.msra.mxu0 0.0
    %8442 = vmatprep.subr.mxu0 0.0
    %8443 = vmatpush2.msra.mxu0 0.0
    %8444 = vmatprep.subr.mxu0 0.0
    %8445 = vmatpush2.msra.mxu0 0.0
    %8446 = vmatprep.subr.mxu0 0.0
    %8447 = vmatpush2.msra.mxu0 0.0
    %8448 = vmatprep.subr.mxu0 0.0
    %8449 = vmatpush2.msra.mxu0 0.0
    %8450 = vmatprep.mubr.f32.mxu0 0.0
    %v8451 = vand.u32 %v6440, 4294901760
    %8452 = vmatmul.mubr.f32.gmra.mxu0 %v8451
    %v8453 = vpop.f32.mrf.mxu0
    %v8454 = vadd.f32 %v8349, %v8453
    %v8455 = vpop.f32.mrf.mxu0
    %8456 = vmatprep.mubr.f32.mxu0 0.0
    %v8457 = vand.u32 %v6441, 4294901760
    %8458 = vmatmul.mubr.f32.gmra.mxu0 %v8457
    %v8459 = vpop.f32.mrf.mxu0
    %v8460 = vadd.f32 %v8355, %v8459
    %v8461 = vpop.f32.mrf.mxu0
    %8462 = vmatprep.mubr.f32.mxu0 0.0
    %v8463 = vand.u32 %v6442, 4294901760
    %8464 = vmatmul.mubr.f32.gmra.mxu0 %v8463
    %v8465 = vpop.f32.mrf.mxu0
    %v8466 = vadd.f32 %v8361, %v8465
    %v8467 = vpop.f32.mrf.mxu0
    %8468 = vmatprep.mubr.f32.mxu0 0.0
    %v8469 = vand.u32 %v6443, 4294901760
    %8470 = vmatmul.mubr.f32.gmra.mxu0 %v8469
    %v8471 = vpop.f32.mrf.mxu0
    %v8472 = vadd.f32 %v8367, %v8471
    %v8473 = vpop.f32.mrf.mxu0
    %8474 = vdwg.mxu0
    %8475 = vmatprep.subr.mxu0 0.0
    %v8476 = vand.u32 %v7687, 4294901760
    %8477 = vmatpush1.msra.mxu0 %v8476
    %8478 = vmatprep.subr.mxu0 0.0
    %v8479 = vand.u32 %v7686, 4294901760
    %8480 = vmatpush1.msra.mxu0 %v8479
    %8481 = vmatprep.subr.mxu0 0.0
    %v8482 = vand.u32 %v7685, 4294901760
    %8483 = vmatpush1.msra.mxu0 %v8482
    %8484 = vmatprep.subr.mxu0 0.0
    %v8485 = vand.u32 %v7684, 4294901760
    %8486 = vmatpush1.msra.mxu0 %v8485
    %8487 = vmatprep.subr.mxu0 0.0
    %v8488 = vand.u32 %v7683, 4294901760
    %8489 = vmatpush1.msra.mxu0 %v8488
    %8490 = vmatprep.subr.mxu0 0.0
    %v8491 = vand.u32 %v7682, 4294901760
    %8492 = vmatpush1.msra.mxu0 %v8491
    %8493 = vmatprep.subr.mxu0 0.0
    %v8494 = vand.u32 %v7681, 4294901760
    %8495 = vmatpush1.msra.mxu0 %v8494
    %8496 = vmatprep.subr.mxu0 0.0
    %v8497 = vand.u32 %v7680, 4294901760
    %8498 = vmatpush1.msra.mxu0 %v8497
    %8499 = vmatprep.subr.mxu0 0.0
    %v8500 = vand.u32 %v7679, 4294901760
    %8501 = vmatpush1.msra.mxu0 %v8500
    %8502 = vmatprep.subr.mxu0 0.0
    %v8503 = vand.u32 %v7678, 4294901760
    %8504 = vmatpush1.msra.mxu0 %v8503
    %8505 = vmatprep.subr.mxu0 0.0
    %v8506 = vand.u32 %v7677, 4294901760
    %8507 = vmatpush1.msra.mxu0 %v8506
    %8508 = vmatprep.subr.mxu0 0.0
    %v8509 = vand.u32 %v7676, 4294901760
    %8510 = vmatpush1.msra.mxu0 %v8509
    %8511 = vmatprep.subr.mxu0 0.0
    %v8512 = vand.u32 %v7675, 4294901760
    %8513 = vmatpush1.msra.mxu0 %v8512
    %8514 = vmatprep.subr.mxu0 0.0
    %v8515 = vand.u32 %v7674, 4294901760
    %8516 = vmatpush1.msra.mxu0 %v8515
    %8517 = vmatprep.subr.mxu0 0.0
    %v8518 = vand.u32 %v7673, 4294901760
    %8519 = vmatpush1.msra.mxu0 %v8518
    %8520 = vmatprep.subr.mxu0 0.0
    %v8521 = vand.u32 %v7672, 4294901760
    %8522 = vmatpush1.msra.mxu0 %v8521
    %8523 = vmatprep.subr.mxu0 0.0
    %8524 = vmatpush2.msra.mxu0 0.0
    %8525 = vmatprep.subr.mxu0 0.0
    %8526 = vmatpush2.msra.mxu0 0.0
    %8527 = vmatprep.subr.mxu0 0.0
    %8528 = vmatpush2.msra.mxu0 0.0
    %8529 = vmatprep.subr.mxu0 0.0
    %8530 = vmatpush2.msra.mxu0 0.0
    %8531 = vmatprep.subr.mxu0 0.0
    %8532 = vmatpush2.msra.mxu0 0.0
    %8533 = vmatprep.subr.mxu0 0.0
    %8534 = vmatpush2.msra.mxu0 0.0
    %8535 = vmatprep.subr.mxu0 0.0
    %8536 = vmatpush2.msra.mxu0 0.0
    %8537 = vmatprep.subr.mxu0 0.0
    %8538 = vmatpush2.msra.mxu0 0.0
    %8539 = vmatprep.subr.mxu0 0.0
    %8540 = vmatpush2.msra.mxu0 0.0
    %8541 = vmatprep.subr.mxu0 0.0
    %8542 = vmatpush2.msra.mxu0 0.0
    %8543 = vmatprep.subr.mxu0 0.0
    %8544 = vmatpush2.msra.mxu0 0.0
    %8545 = vmatprep.subr.mxu0 0.0
    %8546 = vmatpush2.msra.mxu0 0.0
    %8547 = vmatprep.subr.mxu0 0.0
    %8548 = vmatpush2.msra.mxu0 0.0
    %8549 = vmatprep.subr.mxu0 0.0
    %8550 = vmatpush2.msra.mxu0 0.0
    %8551 = vmatprep.subr.mxu0 0.0
    %8552 = vmatpush2.msra.mxu0 0.0
    %8553 = vmatprep.subr.mxu0 0.0
    %8554 = vmatpush2.msra.mxu0 0.0
    %8555 = vmatprep.mubr.f32.mxu0 0.0
    %v8556 = vand.u32 %v7037, 4294901760
    %v8557 = vsub.f32 %v7037, %v8556
    %v8558 = vand.u32 %v8557, 4294901760
    %v8559 = vsub.f32 %v8557, %v8558
    %v8560 = vand.u32 %v8559, 4294901760
    %8561 = vmatmul.mubr.f32.gmra.mxu0 %v8560
    %v8562 = vpop.f32.mrf.mxu0
    %v8563 = vadd.f32 %v8454, %v8562
    %v8564 = vpop.f32.mrf.mxu0
    %8565 = vmatprep.mubr.f32.mxu0 0.0
    %v8566 = vand.u32 %v7043, 4294901760
    %v8567 = vsub.f32 %v7043, %v8566
    %v8568 = vand.u32 %v8567, 4294901760
    %v8569 = vsub.f32 %v8567, %v8568
    %v8570 = vand.u32 %v8569, 4294901760
    %8571 = vmatmul.mubr.f32.gmra.mxu0 %v8570
    %v8572 = vpop.f32.mrf.mxu0
    %v8573 = vadd.f32 %v8460, %v8572
    %v8574 = vpop.f32.mrf.mxu0
    %8575 = vmatprep.mubr.f32.mxu0 0.0
    %v8576 = vand.u32 %v7049, 4294901760
    %v8577 = vsub.f32 %v7049, %v8576
    %v8578 = vand.u32 %v8577, 4294901760
    %v8579 = vsub.f32 %v8577, %v8578
    %v8580 = vand.u32 %v8579, 4294901760
    %8581 = vmatmul.mubr.f32.gmra.mxu0 %v8580
    %v8582 = vpop.f32.mrf.mxu0
    %v8583 = vadd.f32 %v8466, %v8582
    %v8584 = vpop.f32.mrf.mxu0
    %8585 = vmatprep.mubr.f32.mxu0 0.0
    %v8586 = vand.u32 %v7055, 4294901760
    %v8587 = vsub.f32 %v7055, %v8586
    %v8588 = vand.u32 %v8587, 4294901760
    %v8589 = vsub.f32 %v8587, %v8588
    %v8590 = vand.u32 %v8589, 4294901760
    %8591 = vmatmul.mubr.f32.gmra.mxu0 %v8590
    %v8592 = vpop.f32.mrf.mxu0
    %v8593 = vadd.f32 %v8472, %v8592
    %v8594 = vpop.f32.mrf.mxu0
    %8595 = vdwg.mxu0
    %8596 = vmatprep.subr.mxu0 0.0
    %v8597 = vand.u32 %v7687, 4294901760
    %v8598 = vsub.f32 %v7687, %v8597
    %v8599 = vand.u32 %v8598, 4294901760
    %v8600 = vsub.f32 %v8598, %v8599
    %v8601 = vand.u32 %v8600, 4294901760
    %8602 = vmatpush1.msra.mxu0 %v8601
    %8603 = vmatprep.subr.mxu0 0.0
    %v8604 = vand.u32 %v7686, 4294901760
    %v8605 = vsub.f32 %v7686, %v8604
    %v8606 = vand.u32 %v8605, 4294901760
    %v8607 = vsub.f32 %v8605, %v8606
    %v8608 = vand.u32 %v8607, 4294901760
    %8609 = vmatpush1.msra.mxu0 %v8608
    %8610 = vmatprep.subr.mxu0 0.0
    %v8611 = vand.u32 %v7685, 4294901760
    %v8612 = vsub.f32 %v7685, %v8611
    %v8613 = vand.u32 %v8612, 4294901760
    %v8614 = vsub.f32 %v8612, %v8613
    %v8615 = vand.u32 %v8614, 4294901760
    %8616 = vmatpush1.msra.mxu0 %v8615
    %8617 = vmatprep.subr.mxu0 0.0
    %v8618 = vand.u32 %v7684, 4294901760
    %v8619 = vsub.f32 %v7684, %v8618
    %v8620 = vand.u32 %v8619, 4294901760
    %v8621 = vsub.f32 %v8619, %v8620
    %v8622 = vand.u32 %v8621, 4294901760
    %8623 = vmatpush1.msra.mxu0 %v8622
    %8624 = vmatprep.subr.mxu0 0.0
    %v8625 = vand.u32 %v7683, 4294901760
    %v8626 = vsub.f32 %v7683, %v8625
    %v8627 = vand.u32 %v8626, 4294901760
    %v8628 = vsub.f32 %v8626, %v8627
    %v8629 = vand.u32 %v8628, 4294901760
    %8630 = vmatpush1.msra.mxu0 %v8629
    %8631 = vmatprep.subr.mxu0 0.0
    %v8632 = vand.u32 %v7682, 4294901760
    %v8633 = vsub.f32 %v7682, %v8632
    %v8634 = vand.u32 %v8633, 4294901760
    %v8635 = vsub.f32 %v8633, %v8634
    %v8636 = vand.u32 %v8635, 4294901760
    %8637 = vmatpush1.msra.mxu0 %v8636
    %8638 = vmatprep.subr.mxu0 0.0
    %v8639 = vand.u32 %v7681, 4294901760
    %v8640 = vsub.f32 %v7681, %v8639
    %v8641 = vand.u32 %v8640, 4294901760
    %v8642 = vsub.f32 %v8640, %v8641
    %v8643 = vand.u32 %v8642, 4294901760
    %8644 = vmatpush1.msra.mxu0 %v8643
    %8645 = vmatprep.subr.mxu0 0.0
    %v8646 = vand.u32 %v7680, 4294901760
    %v8647 = vsub.f32 %v7680, %v8646
    %v8648 = vand.u32 %v8647, 4294901760
    %v8649 = vsub.f32 %v8647, %v8648
    %v8650 = vand.u32 %v8649, 4294901760
    %8651 = vmatpush1.msra.mxu0 %v8650
    %8652 = vmatprep.subr.mxu0 0.0
    %v8653 = vand.u32 %v7679, 4294901760
    %v8654 = vsub.f32 %v7679, %v8653
    %v8655 = vand.u32 %v8654, 4294901760
    %v8656 = vsub.f32 %v8654, %v8655
    %v8657 = vand.u32 %v8656, 4294901760
    %8658 = vmatpush1.msra.mxu0 %v8657
    %8659 = vmatprep.subr.mxu0 0.0
    %v8660 = vand.u32 %v7678, 4294901760
    %v8661 = vsub.f32 %v7678, %v8660
    %v8662 = vand.u32 %v8661, 4294901760
    %v8663 = vsub.f32 %v8661, %v8662
    %v8664 = vand.u32 %v8663, 4294901760
    %8665 = vmatpush1.msra.mxu0 %v8664
    %8666 = vmatprep.subr.mxu0 0.0
    %v8667 = vand.u32 %v7677, 4294901760
    %v8668 = vsub.f32 %v7677, %v8667
    %v8669 = vand.u32 %v8668, 4294901760
    %v8670 = vsub.f32 %v8668, %v8669
    %v8671 = vand.u32 %v8670, 4294901760
    %8672 = vmatpush1.msra.mxu0 %v8671
    %8673 = vmatprep.subr.mxu0 0.0
    %v8674 = vand.u32 %v7676, 4294901760
    %v8675 = vsub.f32 %v7676, %v8674
    %v8676 = vand.u32 %v8675, 4294901760
    %v8677 = vsub.f32 %v8675, %v8676
    %v8678 = vand.u32 %v8677, 4294901760
    %8679 = vmatpush1.msra.mxu0 %v8678
    %8680 = vmatprep.subr.mxu0 0.0
    %v8681 = vand.u32 %v7675, 4294901760
    %v8682 = vsub.f32 %v7675, %v8681
    %v8683 = vand.u32 %v8682, 4294901760
    %v8684 = vsub.f32 %v8682, %v8683
    %v8685 = vand.u32 %v8684, 4294901760
    %8686 = vmatpush1.msra.mxu0 %v8685
    %8687 = vmatprep.subr.mxu0 0.0
    %v8688 = vand.u32 %v7674, 4294901760
    %v8689 = vsub.f32 %v7674, %v8688
    %v8690 = vand.u32 %v8689, 4294901760
    %v8691 = vsub.f32 %v8689, %v8690
    %v8692 = vand.u32 %v8691, 4294901760
    %8693 = vmatpush1.msra.mxu0 %v8692
    %8694 = vmatprep.subr.mxu0 0.0
    %v8695 = vand.u32 %v7673, 4294901760
    %v8696 = vsub.f32 %v7673, %v8695
    %v8697 = vand.u32 %v8696, 4294901760
    %v8698 = vsub.f32 %v8696, %v8697
    %v8699 = vand.u32 %v8698, 4294901760
    %8700 = vmatpush1.msra.mxu0 %v8699
    %8701 = vmatprep.subr.mxu0 0.0
    %v8702 = vand.u32 %v7672, 4294901760
    %v8703 = vsub.f32 %v7672, %v8702
    %v8704 = vand.u32 %v8703, 4294901760
    %v8705 = vsub.f32 %v8703, %v8704
    %v8706 = vand.u32 %v8705, 4294901760
    %8707 = vmatpush1.msra.mxu0 %v8706
    %8708 = vmatprep.subr.mxu0 0.0
    %8709 = vmatpush2.msra.mxu0 0.0
    %8710 = vmatprep.subr.mxu0 0.0
    %8711 = vmatpush2.msra.mxu0 0.0
    %8712 = vmatprep.subr.mxu0 0.0
    %8713 = vmatpush2.msra.mxu0 0.0
    %8714 = vmatprep.subr.mxu0 0.0
    %8715 = vmatpush2.msra.mxu0 0.0
    %8716 = vmatprep.subr.mxu0 0.0
    %8717 = vmatpush2.msra.mxu0 0.0
    %8718 = vmatprep.subr.mxu0 0.0
    %8719 = vmatpush2.msra.mxu0 0.0
    %8720 = vmatprep.subr.mxu0 0.0
    %8721 = vmatpush2.msra.mxu0 0.0
    %8722 = vmatprep.subr.mxu0 0.0
    %8723 = vmatpush2.msra.mxu0 0.0
    %8724 = vmatprep.subr.mxu0 0.0
    %8725 = vmatpush2.msra.mxu0 0.0
    %8726 = vmatprep.subr.mxu0 0.0
    %8727 = vmatpush2.msra.mxu0 0.0
    %8728 = vmatprep.subr.mxu0 0.0
    %8729 = vmatpush2.msra.mxu0 0.0
    %8730 = vmatprep.subr.mxu0 0.0
    %8731 = vmatpush2.msra.mxu0 0.0
    %8732 = vmatprep.subr.mxu0 0.0
    %8733 = vmatpush2.msra.mxu0 0.0
    %8734 = vmatprep.subr.mxu0 0.0
    %8735 = vmatpush2.msra.mxu0 0.0
    %8736 = vmatprep.subr.mxu0 0.0
    %8737 = vmatpush2.msra.mxu0 0.0
    %8738 = vmatprep.subr.mxu0 0.0
    %8739 = vmatpush2.msra.mxu0 0.0
    %8740 = vmatprep.mubr.f32.mxu0 0.0
    %v8741 = vand.u32 %v7037, 4294901760
    %8742 = vmatmul.mubr.f32.gmra.mxu0 %v8741
    %v8743 = vpop.f32.mrf.mxu0
    %v8744 = vadd.f32 %v8563, %v8743
    %v8745 = vpop.f32.mrf.mxu0
    %8746 = vmatprep.mubr.f32.mxu0 0.0
    %v8747 = vand.u32 %v7043, 4294901760
    %8748 = vmatmul.mubr.f32.gmra.mxu0 %v8747
    %v8749 = vpop.f32.mrf.mxu0
    %v8750 = vadd.f32 %v8573, %v8749
    %v8751 = vpop.f32.mrf.mxu0
    %8752 = vmatprep.mubr.f32.mxu0 0.0
    %v8753 = vand.u32 %v7049, 4294901760
    %8754 = vmatmul.mubr.f32.gmra.mxu0 %v8753
    %v8755 = vpop.f32.mrf.mxu0
    %v8756 = vadd.f32 %v8583, %v8755
    %v8757 = vpop.f32.mrf.mxu0
    %8758 = vmatprep.mubr.f32.mxu0 0.0
    %v8759 = vand.u32 %v7055, 4294901760
    %8760 = vmatmul.mubr.f32.gmra.mxu0 %v8759
    %v8761 = vpop.f32.mrf.mxu0
    %v8762 = vadd.f32 %v8593, %v8761
    %v8763 = vpop.f32.mrf.mxu0
    %8764 = vdwg.mxu0
    %8765 = vmatprep.subr.mxu0 0.0
    %v8766 = vand.u32 %v7687, 4294901760
    %v8767 = vsub.f32 %v7687, %v8766
    %8768 = vmatpush1.msra.mxu0 %v8767
    %8769 = vmatprep.subr.mxu0 0.0
    %v8770 = vand.u32 %v7686, 4294901760
    %v8771 = vsub.f32 %v7686, %v8770
    %8772 = vmatpush1.msra.mxu0 %v8771
    %8773 = vmatprep.subr.mxu0 0.0
    %v8774 = vand.u32 %v7685, 4294901760
    %v8775 = vsub.f32 %v7685, %v8774
    %8776 = vmatpush1.msra.mxu0 %v8775
    %8777 = vmatprep.subr.mxu0 0.0
    %v8778 = vand.u32 %v7684, 4294901760
    %v8779 = vsub.f32 %v7684, %v8778
    %8780 = vmatpush1.msra.mxu0 %v8779
    %8781 = vmatprep.subr.mxu0 0.0
    %v8782 = vand.u32 %v7683, 4294901760
    %v8783 = vsub.f32 %v7683, %v8782
    %8784 = vmatpush1.msra.mxu0 %v8783
    %8785 = vmatprep.subr.mxu0 0.0
    %v8786 = vand.u32 %v7682, 4294901760
    %v8787 = vsub.f32 %v7682, %v8786
    %8788 = vmatpush1.msra.mxu0 %v8787
    %8789 = vmatprep.subr.mxu0 0.0
    %v8790 = vand.u32 %v7681, 4294901760
    %v8791 = vsub.f32 %v7681, %v8790
    %8792 = vmatpush1.msra.mxu0 %v8791
    %8793 = vmatprep.subr.mxu0 0.0
    %v8794 = vand.u32 %v7680, 4294901760
    %v8795 = vsub.f32 %v7680, %v8794
    %8796 = vmatpush1.msra.mxu0 %v8795
    %8797 = vmatprep.subr.mxu0 0.0
    %v8798 = vand.u32 %v7679, 4294901760
    %v8799 = vsub.f32 %v7679, %v8798
    %8800 = vmatpush1.msra.mxu0 %v8799
    %8801 = vmatprep.subr.mxu0 0.0
    %v8802 = vand.u32 %v7678, 4294901760
    %v8803 = vsub.f32 %v7678, %v8802
    %8804 = vmatpush1.msra.mxu0 %v8803
    %8805 = vmatprep.subr.mxu0 0.0
    %v8806 = vand.u32 %v7677, 4294901760
    %v8807 = vsub.f32 %v7677, %v8806
    %8808 = vmatpush1.msra.mxu0 %v8807
    %8809 = vmatprep.subr.mxu0 0.0
    %v8810 = vand.u32 %v7676, 4294901760
    %v8811 = vsub.f32 %v7676, %v8810
    %8812 = vmatpush1.msra.mxu0 %v8811
    %8813 = vmatprep.subr.mxu0 0.0
    %v8814 = vand.u32 %v7675, 4294901760
    %v8815 = vsub.f32 %v7675, %v8814
    %8816 = vmatpush1.msra.mxu0 %v8815
    %8817 = vmatprep.subr.mxu0 0.0
    %v8818 = vand.u32 %v7674, 4294901760
    %v8819 = vsub.f32 %v7674, %v8818
    %8820 = vmatpush1.msra.mxu0 %v8819
    %8821 = vmatprep.subr.mxu0 0.0
    %v8822 = vand.u32 %v7673, 4294901760
    %v8823 = vsub.f32 %v7673, %v8822
    %8824 = vmatpush1.msra.mxu0 %v8823
    %8825 = vmatprep.subr.mxu0 0.0
    %v8826 = vand.u32 %v7672, 4294901760
    %v8827 = vsub.f32 %v7672, %v8826
    %8828 = vmatpush1.msra.mxu0 %v8827
    %8829 = vmatprep.subr.mxu0 0.0
    %8830 = vmatpush2.msra.mxu0 0.0
    %8831 = vmatprep.subr.mxu0 0.0
    %8832 = vmatpush2.msra.mxu0 0.0
    %8833 = vmatprep.subr.mxu0 0.0
    %8834 = vmatpush2.msra.mxu0 0.0
    %8835 = vmatprep.subr.mxu0 0.0
    %8836 = vmatpush2.msra.mxu0 0.0
    %8837 = vmatprep.subr.mxu0 0.0
    %8838 = vmatpush2.msra.mxu0 0.0
    %8839 = vmatprep.subr.mxu0 0.0
    %8840 = vmatpush2.msra.mxu0 0.0
    %8841 = vmatprep.subr.mxu0 0.0
    %8842 = vmatpush2.msra.mxu0 0.0
    %8843 = vmatprep.subr.mxu0 0.0
    %8844 = vmatpush2.msra.mxu0 0.0
    %8845 = vmatprep.subr.mxu0 0.0
    %8846 = vmatpush2.msra.mxu0 0.0
    %8847 = vmatprep.subr.mxu0 0.0
    %8848 = vmatpush2.msra.mxu0 0.0
    %8849 = vmatprep.subr.mxu0 0.0
    %8850 = vmatpush2.msra.mxu0 0.0
    %8851 = vmatprep.subr.mxu0 0.0
    %8852 = vmatpush2.msra.mxu0 0.0
    %8853 = vmatprep.subr.mxu0 0.0
    %8854 = vmatpush2.msra.mxu0 0.0
    %8855 = vmatprep.subr.mxu0 0.0
    %8856 = vmatpush2.msra.mxu0 0.0
    %8857 = vmatprep.subr.mxu0 0.0
    %8858 = vmatpush2.msra.mxu0 0.0
    %8859 = vmatprep.subr.mxu0 0.0
    %8860 = vmatpush2.msra.mxu0 0.0
    %8861 = vmatprep.mubr.f32.mxu0 0.0
    %v8862 = vand.u32 %v7037, 4294901760
    %v8863 = vsub.f32 %v7037, %v8862
    %8864 = vmatmul.mubr.f32.gmra.mxu0 %v8863
    %v8865 = vpop.f32.mrf.mxu0
    %v8866 = vadd.f32 %v8744, %v8865
    %v8867 = vpop.f32.mrf.mxu0
    %8868 = vmatprep.mubr.f32.mxu0 0.0
    %v8869 = vand.u32 %v7043, 4294901760
    %v8870 = vsub.f32 %v7043, %v8869
    %8871 = vmatmul.mubr.f32.gmra.mxu0 %v8870
    %v8872 = vpop.f32.mrf.mxu0
    %v8873 = vadd.f32 %v8750, %v8872
    %v8874 = vpop.f32.mrf.mxu0
    %8875 = vmatprep.mubr.f32.mxu0 0.0
    %v8876 = vand.u32 %v7049, 4294901760
    %v8877 = vsub.f32 %v7049, %v8876
    %8878 = vmatmul.mubr.f32.gmra.mxu0 %v8877
    %v8879 = vpop.f32.mrf.mxu0
    %v8880 = vadd.f32 %v8756, %v8879
    %v8881 = vpop.f32.mrf.mxu0
    %8882 = vmatprep.mubr.f32.mxu0 0.0
    %v8883 = vand.u32 %v7055, 4294901760
    %v8884 = vsub.f32 %v7055, %v8883
    %8885 = vmatmul.mubr.f32.gmra.mxu0 %v8884
    %v8886 = vpop.f32.mrf.mxu0
    %v8887 = vadd.f32 %v8762, %v8886
    %v8888 = vpop.f32.mrf.mxu0
    %8889 = vdwg.mxu0
    %8890 = vmatprep.subr.mxu0 0.0
    %v8891 = vand.u32 %v7687, 4294901760
    %8892 = vmatpush1.msra.mxu0 %v8891
    %8893 = vmatprep.subr.mxu0 0.0
    %v8894 = vand.u32 %v7686, 4294901760
    %8895 = vmatpush1.msra.mxu0 %v8894
    %8896 = vmatprep.subr.mxu0 0.0
    %v8897 = vand.u32 %v7685, 4294901760
    %8898 = vmatpush1.msra.mxu0 %v8897
    %8899 = vmatprep.subr.mxu0 0.0
    %v8900 = vand.u32 %v7684, 4294901760
    %8901 = vmatpush1.msra.mxu0 %v8900
    %8902 = vmatprep.subr.mxu0 0.0
    %v8903 = vand.u32 %v7683, 4294901760
    %8904 = vmatpush1.msra.mxu0 %v8903
    %8905 = vmatprep.subr.mxu0 0.0
    %v8906 = vand.u32 %v7682, 4294901760
    %8907 = vmatpush1.msra.mxu0 %v8906
    %8908 = vmatprep.subr.mxu0 0.0
    %v8909 = vand.u32 %v7681, 4294901760
    %8910 = vmatpush1.msra.mxu0 %v8909
    %8911 = vmatprep.subr.mxu0 0.0
    %v8912 = vand.u32 %v7680, 4294901760
    %8913 = vmatpush1.msra.mxu0 %v8912
    %8914 = vmatprep.subr.mxu0 0.0
    %v8915 = vand.u32 %v7679, 4294901760
    %8916 = vmatpush1.msra.mxu0 %v8915
    %8917 = vmatprep.subr.mxu0 0.0
    %v8918 = vand.u32 %v7678, 4294901760
    %8919 = vmatpush1.msra.mxu0 %v8918
    %8920 = vmatprep.subr.mxu0 0.0
    %v8921 = vand.u32 %v7677, 4294901760
    %8922 = vmatpush1.msra.mxu0 %v8921
    %8923 = vmatprep.subr.mxu0 0.0
    %v8924 = vand.u32 %v7676, 4294901760
    %8925 = vmatpush1.msra.mxu0 %v8924
    %8926 = vmatprep.subr.mxu0 0.0
    %v8927 = vand.u32 %v7675, 4294901760
    %8928 = vmatpush1.msra.mxu0 %v8927
    %8929 = vmatprep.subr.mxu0 0.0
    %v8930 = vand.u32 %v7674, 4294901760
    %8931 = vmatpush1.msra.mxu0 %v8930
    %8932 = vmatprep.subr.mxu0 0.0
    %v8933 = vand.u32 %v7673, 4294901760
    %8934 = vmatpush1.msra.mxu0 %v8933
    %8935 = vmatprep.subr.mxu0 0.0
    %v8936 = vand.u32 %v7672, 4294901760
    %8937 = vmatpush1.msra.mxu0 %v8936
    %8938 = vmatprep.subr.mxu0 0.0
    %8939 = vmatpush2.msra.mxu0 0.0
    %8940 = vmatprep.subr.mxu0 0.0
    %8941 = vmatpush2.msra.mxu0 0.0
    %8942 = vmatprep.subr.mxu0 0.0
    %8943 = vmatpush2.msra.mxu0 0.0
    %8944 = vmatprep.subr.mxu0 0.0
    %8945 = vmatpush2.msra.mxu0 0.0
    %8946 = vmatprep.subr.mxu0 0.0
    %8947 = vmatpush2.msra.mxu0 0.0
    %8948 = vmatprep.subr.mxu0 0.0
    %8949 = vmatpush2.msra.mxu0 0.0
    %8950 = vmatprep.subr.mxu0 0.0
    %8951 = vmatpush2.msra.mxu0 0.0
    %8952 = vmatprep.subr.mxu0 0.0
    %8953 = vmatpush2.msra.mxu0 0.0
    %8954 = vmatprep.subr.mxu0 0.0
    %8955 = vmatpush2.msra.mxu0 0.0
    %8956 = vmatprep.subr.mxu0 0.0
    %8957 = vmatpush2.msra.mxu0 0.0
    %8958 = vmatprep.subr.mxu0 0.0
    %8959 = vmatpush2.msra.mxu0 0.0
    %8960 = vmatprep.subr.mxu0 0.0
    %8961 = vmatpush2.msra.mxu0 0.0
    %8962 = vmatprep.subr.mxu0 0.0
    %8963 = vmatpush2.msra.mxu0 0.0
    %8964 = vmatprep.subr.mxu0 0.0
    %8965 = vmatpush2.msra.mxu0 0.0
    %8966 = vmatprep.subr.mxu0 0.0
    %8967 = vmatpush2.msra.mxu0 0.0
    %8968 = vmatprep.subr.mxu0 0.0
    %8969 = vmatpush2.msra.mxu0 0.0
    %8970 = vmatprep.mubr.f32.mxu0 0.0
    %v8971 = vand.u32 %v7037, 4294901760
    %v8972 = vsub.f32 %v7037, %v8971
    %v8973 = vand.u32 %v8972, 4294901760
    %8974 = vmatmul.mubr.f32.gmra.mxu0 %v8973
    %v8975 = vpop.f32.mrf.mxu0
    %v8976 = vadd.f32 %v8866, %v8975
    %v8977 = vpop.f32.mrf.mxu0
    %8978 = vmatprep.mubr.f32.mxu0 0.0
    %v8979 = vand.u32 %v7043, 4294901760
    %v8980 = vsub.f32 %v7043, %v8979
    %v8981 = vand.u32 %v8980, 4294901760
    %8982 = vmatmul.mubr.f32.gmra.mxu0 %v8981
    %v8983 = vpop.f32.mrf.mxu0
    %v8984 = vadd.f32 %v8873, %v8983
    %v8985 = vpop.f32.mrf.mxu0
    %8986 = vmatprep.mubr.f32.mxu0 0.0
    %v8987 = vand.u32 %v7049, 4294901760
    %v8988 = vsub.f32 %v7049, %v8987
    %v8989 = vand.u32 %v8988, 4294901760
    %8990 = vmatmul.mubr.f32.gmra.mxu0 %v8989
    %v8991 = vpop.f32.mrf.mxu0
    %v8992 = vadd.f32 %v8880, %v8991
    %v8993 = vpop.f32.mrf.mxu0
    %8994 = vmatprep.mubr.f32.mxu0 0.0
    %v8995 = vand.u32 %v7055, 4294901760
    %v8996 = vsub.f32 %v7055, %v8995
    %v8997 = vand.u32 %v8996, 4294901760
    %8998 = vmatmul.mubr.f32.gmra.mxu0 %v8997
    %v8999 = vpop.f32.mrf.mxu0
    %v9000 = vadd.f32 %v8887, %v8999
    %v9001 = vpop.f32.mrf.mxu0
    %9002 = vdwg.mxu0
    %9003 = vmatprep.subr.mxu0 0.0
    %v9004 = vand.u32 %v7687, 4294901760
    %v9005 = vsub.f32 %v7687, %v9004
    %v9006 = vand.u32 %v9005, 4294901760
    %9007 = vmatpush1.msra.mxu0 %v9006
    %9008 = vmatprep.subr.mxu0 0.0
    %v9009 = vand.u32 %v7686, 4294901760
    %v9010 = vsub.f32 %v7686, %v9009
    %v9011 = vand.u32 %v9010, 4294901760
    %9012 = vmatpush1.msra.mxu0 %v9011
    %9013 = vmatprep.subr.mxu0 0.0
    %v9014 = vand.u32 %v7685, 4294901760
    %v9015 = vsub.f32 %v7685, %v9014
    %v9016 = vand.u32 %v9015, 4294901760
    %9017 = vmatpush1.msra.mxu0 %v9016
    %9018 = vmatprep.subr.mxu0 0.0
    %v9019 = vand.u32 %v7684, 4294901760
    %v9020 = vsub.f32 %v7684, %v9019
    %v9021 = vand.u32 %v9020, 4294901760
    %9022 = vmatpush1.msra.mxu0 %v9021
    %9023 = vmatprep.subr.mxu0 0.0
    %v9024 = vand.u32 %v7683, 4294901760
    %v9025 = vsub.f32 %v7683, %v9024
    %v9026 = vand.u32 %v9025, 4294901760
    %9027 = vmatpush1.msra.mxu0 %v9026
    %9028 = vmatprep.subr.mxu0 0.0
    %v9029 = vand.u32 %v7682, 4294901760
    %v9030 = vsub.f32 %v7682, %v9029
    %v9031 = vand.u32 %v9030, 4294901760
    %9032 = vmatpush1.msra.mxu0 %v9031
    %9033 = vmatprep.subr.mxu0 0.0
    %v9034 = vand.u32 %v7681, 4294901760
    %v9035 = vsub.f32 %v7681, %v9034
    %v9036 = vand.u32 %v9035, 4294901760
    %9037 = vmatpush1.msra.mxu0 %v9036
    %9038 = vmatprep.subr.mxu0 0.0
    %v9039 = vand.u32 %v7680, 4294901760
    %v9040 = vsub.f32 %v7680, %v9039
    %v9041 = vand.u32 %v9040, 4294901760
    %9042 = vmatpush1.msra.mxu0 %v9041
    %9043 = vmatprep.subr.mxu0 0.0
    %v9044 = vand.u32 %v7679, 4294901760
    %v9045 = vsub.f32 %v7679, %v9044
    %v9046 = vand.u32 %v9045, 4294901760
    %9047 = vmatpush1.msra.mxu0 %v9046
    %9048 = vmatprep.subr.mxu0 0.0
    %v9049 = vand.u32 %v7678, 4294901760
    %v9050 = vsub.f32 %v7678, %v9049
    %v9051 = vand.u32 %v9050, 4294901760
    %9052 = vmatpush1.msra.mxu0 %v9051
    %9053 = vmatprep.subr.mxu0 0.0
    %v9054 = vand.u32 %v7677, 4294901760
    %v9055 = vsub.f32 %v7677, %v9054
    %v9056 = vand.u32 %v9055, 4294901760
    %9057 = vmatpush1.msra.mxu0 %v9056
    %9058 = vmatprep.subr.mxu0 0.0
    %v9059 = vand.u32 %v7676, 4294901760
    %v9060 = vsub.f32 %v7676, %v9059
    %v9061 = vand.u32 %v9060, 4294901760
    %9062 = vmatpush1.msra.mxu0 %v9061
    %9063 = vmatprep.subr.mxu0 0.0
    %v9064 = vand.u32 %v7675, 4294901760
    %v9065 = vsub.f32 %v7675, %v9064
    %v9066 = vand.u32 %v9065, 4294901760
    %9067 = vmatpush1.msra.mxu0 %v9066
    %9068 = vmatprep.subr.mxu0 0.0
    %v9069 = vand.u32 %v7674, 4294901760
    %v9070 = vsub.f32 %v7674, %v9069
    %v9071 = vand.u32 %v9070, 4294901760
    %9072 = vmatpush1.msra.mxu0 %v9071
    %9073 = vmatprep.subr.mxu0 0.0
    %v9074 = vand.u32 %v7673, 4294901760
    %v9075 = vsub.f32 %v7673, %v9074
    %v9076 = vand.u32 %v9075, 4294901760
    %9077 = vmatpush1.msra.mxu0 %v9076
    %9078 = vmatprep.subr.mxu0 0.0
    %v9079 = vand.u32 %v7672, 4294901760
    %v9080 = vsub.f32 %v7672, %v9079
    %v9081 = vand.u32 %v9080, 4294901760
    %9082 = vmatpush1.msra.mxu0 %v9081
    %9083 = vmatprep.subr.mxu0 0.0
    %9084 = vmatpush2.msra.mxu0 0.0
    %9085 = vmatprep.subr.mxu0 0.0
    %9086 = vmatpush2.msra.mxu0 0.0
    %9087 = vmatprep.subr.mxu0 0.0
    %9088 = vmatpush2.msra.mxu0 0.0
    %9089 = vmatprep.subr.mxu0 0.0
    %9090 = vmatpush2.msra.mxu0 0.0
    %9091 = vmatprep.subr.mxu0 0.0
    %9092 = vmatpush2.msra.mxu0 0.0
    %9093 = vmatprep.subr.mxu0 0.0
    %9094 = vmatpush2.msra.mxu0 0.0
    %9095 = vmatprep.subr.mxu0 0.0
    %9096 = vmatpush2.msra.mxu0 0.0
    %9097 = vmatprep.subr.mxu0 0.0
    %9098 = vmatpush2.msra.mxu0 0.0
    %9099 = vmatprep.subr.mxu0 0.0
    %9100 = vmatpush2.msra.mxu0 0.0
    %9101 = vmatprep.subr.mxu0 0.0
    %9102 = vmatpush2.msra.mxu0 0.0
    %9103 = vmatprep.subr.mxu0 0.0
    %9104 = vmatpush2.msra.mxu0 0.0
    %9105 = vmatprep.subr.mxu0 0.0
    %9106 = vmatpush2.msra.mxu0 0.0
    %9107 = vmatprep.subr.mxu0 0.0
    %9108 = vmatpush2.msra.mxu0 0.0
    %9109 = vmatprep.subr.mxu0 0.0
    %9110 = vmatpush2.msra.mxu0 0.0
    %9111 = vmatprep.subr.mxu0 0.0
    %9112 = vmatpush2.msra.mxu0 0.0
    %9113 = vmatprep.subr.mxu0 0.0
    %9114 = vmatpush2.msra.mxu0 0.0
    %9115 = vmatprep.mubr.f32.mxu0 0.0
    %v9116 = vand.u32 %v7037, 4294901760
    %9117 = vmatmul.mubr.f32.gmra.mxu0 %v9116
    %v9118 = vpop.f32.mrf.mxu0
    %v9119 = vadd.f32 %v8976, %v9118
    %v9120 = vpop.f32.mrf.mxu0
    %9121 = vmatprep.mubr.f32.mxu0 0.0
    %v9122 = vand.u32 %v7043, 4294901760
    %9123 = vmatmul.mubr.f32.gmra.mxu0 %v9122
    %v9124 = vpop.f32.mrf.mxu0
    %v9125 = vadd.f32 %v8984, %v9124
    %v9126 = vpop.f32.mrf.mxu0
    %9127 = vmatprep.mubr.f32.mxu0 0.0
    %v9128 = vand.u32 %v7049, 4294901760
    %9129 = vmatmul.mubr.f32.gmra.mxu0 %v9128
    %v9130 = vpop.f32.mrf.mxu0
    %v9131 = vadd.f32 %v8992, %v9130
    %v9132 = vpop.f32.mrf.mxu0
    %9133 = vmatprep.mubr.f32.mxu0 0.0
    %v9134 = vand.u32 %v7055, 4294901760
    %9135 = vmatmul.mubr.f32.gmra.mxu0 %v9134
    %v9136 = vpop.f32.mrf.mxu0
    %v9137 = vadd.f32 %v9000, %v9136
    %v9138 = vpop.f32.mrf.mxu0
    %9139 = vdwg.mxu0
    %9140 = vmatprep.subr.mxu0 0.0
    %v9141 = vand.u32 %v7687, 4294901760
    %9142 = vmatpush1.msra.mxu0 %v9141
    %9143 = vmatprep.subr.mxu0 0.0
    %v9144 = vand.u32 %v7686, 4294901760
    %9145 = vmatpush1.msra.mxu0 %v9144
    %9146 = vmatprep.subr.mxu0 0.0
    %v9147 = vand.u32 %v7685, 4294901760
    %9148 = vmatpush1.msra.mxu0 %v9147
    %9149 = vmatprep.subr.mxu0 0.0
    %v9150 = vand.u32 %v7684, 4294901760
    %9151 = vmatpush1.msra.mxu0 %v9150
    %9152 = vmatprep.subr.mxu0 0.0
    %v9153 = vand.u32 %v7683, 4294901760
    %9154 = vmatpush1.msra.mxu0 %v9153
    %9155 = vmatprep.subr.mxu0 0.0
    %v9156 = vand.u32 %v7682, 4294901760
    %9157 = vmatpush1.msra.mxu0 %v9156
    %9158 = vmatprep.subr.mxu0 0.0
    %v9159 = vand.u32 %v7681, 4294901760
    %9160 = vmatpush1.msra.mxu0 %v9159
    %9161 = vmatprep.subr.mxu0 0.0
    %v9162 = vand.u32 %v7680, 4294901760
    %9163 = vmatpush1.msra.mxu0 %v9162
    %9164 = vmatprep.subr.mxu0 0.0
    %v9165 = vand.u32 %v7679, 4294901760
    %9166 = vmatpush1.msra.mxu0 %v9165
    %9167 = vmatprep.subr.mxu0 0.0
    %v9168 = vand.u32 %v7678, 4294901760
    %9169 = vmatpush1.msra.mxu0 %v9168
    %9170 = vmatprep.subr.mxu0 0.0
    %v9171 = vand.u32 %v7677, 4294901760
    %9172 = vmatpush1.msra.mxu0 %v9171
    %9173 = vmatprep.subr.mxu0 0.0
    %v9174 = vand.u32 %v7676, 4294901760
    %9175 = vmatpush1.msra.mxu0 %v9174
    %9176 = vmatprep.subr.mxu0 0.0
    %v9177 = vand.u32 %v7675, 4294901760
    %9178 = vmatpush1.msra.mxu0 %v9177
    %9179 = vmatprep.subr.mxu0 0.0
    %v9180 = vand.u32 %v7674, 4294901760
    %9181 = vmatpush1.msra.mxu0 %v9180
    %9182 = vmatprep.subr.mxu0 0.0
    %v9183 = vand.u32 %v7673, 4294901760
    %9184 = vmatpush1.msra.mxu0 %v9183
    %9185 = vmatprep.subr.mxu0 0.0
    %v9186 = vand.u32 %v7672, 4294901760
    %9187 = vmatpush1.msra.mxu0 %v9186
    %9188 = vmatprep.subr.mxu0 0.0
    %9189 = vmatpush2.msra.mxu0 0.0
    %9190 = vmatprep.subr.mxu0 0.0
    %9191 = vmatpush2.msra.mxu0 0.0
    %9192 = vmatprep.subr.mxu0 0.0
    %9193 = vmatpush2.msra.mxu0 0.0
    %9194 = vmatprep.subr.mxu0 0.0
    %9195 = vmatpush2.msra.mxu0 0.0
    %9196 = vmatprep.subr.mxu0 0.0
    %9197 = vmatpush2.msra.mxu0 0.0
    %9198 = vmatprep.subr.mxu0 0.0
    %9199 = vmatpush2.msra.mxu0 0.0
    %9200 = vmatprep.subr.mxu0 0.0
    %9201 = vmatpush2.msra.mxu0 0.0
    %9202 = vmatprep.subr.mxu0 0.0
    %9203 = vmatpush2.msra.mxu0 0.0
    %9204 = vmatprep.subr.mxu0 0.0
    %9205 = vmatpush2.msra.mxu0 0.0
    %9206 = vmatprep.subr.mxu0 0.0
    %9207 = vmatpush2.msra.mxu0 0.0
    %9208 = vmatprep.subr.mxu0 0.0
    %9209 = vmatpush2.msra.mxu0 0.0
    %9210 = vmatprep.subr.mxu0 0.0
    %9211 = vmatpush2.msra.mxu0 0.0
    %9212 = vmatprep.subr.mxu0 0.0
    %9213 = vmatpush2.msra.mxu0 0.0
    %9214 = vmatprep.subr.mxu0 0.0
    %9215 = vmatpush2.msra.mxu0 0.0
    %9216 = vmatprep.subr.mxu0 0.0
    %9217 = vmatpush2.msra.mxu0 0.0
    %9218 = vmatprep.subr.mxu0 0.0
    %9219 = vmatpush2.msra.mxu0 0.0
    %9220 = vmatprep.mubr.f32.mxu0 0.0
    %v9221 = vand.u32 %v7037, 4294901760
    %9222 = vmatmul.mubr.f32.gmra.mxu0 %v9221
    %v9223 = vpop.f32.mrf.mxu0
    %v9224 = vadd.f32 %v9119, %v9223
    %v9225 = vpop.f32.mrf.mxu0
    %9226 = vmatprep.mubr.f32.mxu0 0.0
    %v9227 = vand.u32 %v7043, 4294901760
    %9228 = vmatmul.mubr.f32.gmra.mxu0 %v9227
    %v9229 = vpop.f32.mrf.mxu0
    %v9230 = vadd.f32 %v9125, %v9229
    %v9231 = vpop.f32.mrf.mxu0
    %9232 = vmatprep.mubr.f32.mxu0 0.0
    %v9233 = vand.u32 %v7049, 4294901760
    %9234 = vmatmul.mubr.f32.gmra.mxu0 %v9233
    %v9235 = vpop.f32.mrf.mxu0
    %v9236 = vadd.f32 %v9131, %v9235
    %v9237 = vpop.f32.mrf.mxu0
    %9238 = vmatprep.mubr.f32.mxu0 0.0
    %v9239 = vand.u32 %v7055, 4294901760
    %9240 = vmatmul.mubr.f32.gmra.mxu0 %v9239
    %v9241 = vpop.f32.mrf.mxu0
    %v9242 = vadd.f32 %v9137, %v9241
    %v9243 = vpop.f32.mrf.mxu0
    %9244 = vdwg.mxu0
    %s9245 = scalar_lea.vmem [#allocation7], 256
    %v9246 = vld [vmem:[%s9245] sm:$0xff]
    %v9247 = vld [vmem:[%s9245 + $0x8] sm:$0xff]
    %v9248 = vld [vmem:[%s9245 + $0x10] sm:$0xff]
    %v9249 = vld [vmem:[%s9245 + $0x18] sm:$0xff]
    %v9250 = vld [vmem:[%s9245 + $0x20] sm:$0xff]
    %v9251 = vld [vmem:[%s9245 + $0x28] sm:$0xff]
    %v9252 = vld [vmem:[%s9245 + $0x30] sm:$0xff]
    %v9253 = vld [vmem:[%s9245 + $0x38] sm:$0xff]
    %v9254 = vld [vmem:[%s9245 + $0x40] sm:$0xff]
    %v9255 = vld [vmem:[%s9245 + $0x48] sm:$0xff]
    %v9256 = vld [vmem:[%s9245 + $0x50] sm:$0xff]
    %v9257 = vld [vmem:[%s9245 + $0x58] sm:$0xff]
    %v9258 = vld [vmem:[%s9245 + $0x60] sm:$0xff]
    %v9259 = vld [vmem:[%s9245 + $0x68] sm:$0xff]
    %v9260 = vld [vmem:[%s9245 + $0x70] sm:$0xff]
    %v9261 = vld [vmem:[%s9245 + $0x78] sm:$0xff]
    %9262 = vmatprep.subr.mxu0 0.0
    %v9263 = vand.u32 %v9261, 4294901760
    %9264 = vmatpush1.msra.mxu0 %v9263
    %9265 = vmatprep.subr.mxu0 0.0
    %v9266 = vand.u32 %v9260, 4294901760
    %9267 = vmatpush1.msra.mxu0 %v9266
    %9268 = vmatprep.subr.mxu0 0.0
    %v9269 = vand.u32 %v9259, 4294901760
    %9270 = vmatpush1.msra.mxu0 %v9269
    %9271 = vmatprep.subr.mxu0 0.0
    %v9272 = vand.u32 %v9258, 4294901760
    %9273 = vmatpush1.msra.mxu0 %v9272
    %9274 = vmatprep.subr.mxu0 0.0
    %v9275 = vand.u32 %v9257, 4294901760
    %9276 = vmatpush1.msra.mxu0 %v9275
    %9277 = vmatprep.subr.mxu0 0.0
    %v9278 = vand.u32 %v9256, 4294901760
    %9279 = vmatpush1.msra.mxu0 %v9278
    %9280 = vmatprep.subr.mxu0 0.0
    %v9281 = vand.u32 %v9255, 4294901760
    %9282 = vmatpush1.msra.mxu0 %v9281
    %9283 = vmatprep.subr.mxu0 0.0
    %v9284 = vand.u32 %v9254, 4294901760
    %9285 = vmatpush1.msra.mxu0 %v9284
    %9286 = vmatprep.subr.mxu0 0.0
    %v9287 = vand.u32 %v9253, 4294901760
    %9288 = vmatpush1.msra.mxu0 %v9287
    %9289 = vmatprep.subr.mxu0 0.0
    %v9290 = vand.u32 %v9252, 4294901760
    %9291 = vmatpush1.msra.mxu0 %v9290
    %9292 = vmatprep.subr.mxu0 0.0
    %v9293 = vand.u32 %v9251, 4294901760
    %9294 = vmatpush1.msra.mxu0 %v9293
    %9295 = vmatprep.subr.mxu0 0.0
    %v9296 = vand.u32 %v9250, 4294901760
    %9297 = vmatpush1.msra.mxu0 %v9296
    %9298 = vmatprep.subr.mxu0 0.0
    %v9299 = vand.u32 %v9249, 4294901760
    %9300 = vmatpush1.msra.mxu0 %v9299
    %9301 = vmatprep.subr.mxu0 0.0
    %v9302 = vand.u32 %v9248, 4294901760
    %9303 = vmatpush1.msra.mxu0 %v9302
    %9304 = vmatprep.subr.mxu0 0.0
    %v9305 = vand.u32 %v9247, 4294901760
    %9306 = vmatpush1.msra.mxu0 %v9305
    %9307 = vmatprep.subr.mxu0 0.0
    %v9308 = vand.u32 %v9246, 4294901760
    %9309 = vmatpush1.msra.mxu0 %v9308
    %9310 = vmatprep.subr.mxu0 0.0
    %9311 = vmatpush2.msra.mxu0 0.0
    %9312 = vmatprep.subr.mxu0 0.0
    %9313 = vmatpush2.msra.mxu0 0.0
    %9314 = vmatprep.subr.mxu0 0.0
    %9315 = vmatpush2.msra.mxu0 0.0
    %9316 = vmatprep.subr.mxu0 0.0
    %9317 = vmatpush2.msra.mxu0 0.0
    %9318 = vmatprep.subr.mxu0 0.0
    %9319 = vmatpush2.msra.mxu0 0.0
    %9320 = vmatprep.subr.mxu0 0.0
    %9321 = vmatpush2.msra.mxu0 0.0
    %9322 = vmatprep.subr.mxu0 0.0
    %9323 = vmatpush2.msra.mxu0 0.0
    %9324 = vmatprep.subr.mxu0 0.0
    %9325 = vmatpush2.msra.mxu0 0.0
    %9326 = vmatprep.subr.mxu0 0.0
    %9327 = vmatpush2.msra.mxu0 0.0
    %9328 = vmatprep.subr.mxu0 0.0
    %9329 = vmatpush2.msra.mxu0 0.0
    %9330 = vmatprep.subr.mxu0 0.0
    %9331 = vmatpush2.msra.mxu0 0.0
    %9332 = vmatprep.subr.mxu0 0.0
    %9333 = vmatpush2.msra.mxu0 0.0
    %9334 = vmatprep.subr.mxu0 0.0
    %9335 = vmatpush2.msra.mxu0 0.0
    %9336 = vmatprep.subr.mxu0 0.0
    %9337 = vmatpush2.msra.mxu0 0.0
    %9338 = vmatprep.subr.mxu0 0.0
    %9339 = vmatpush2.msra.mxu0 0.0
    %9340 = vmatprep.subr.mxu0 0.0
    %9341 = vmatpush2.msra.mxu0 0.0
    %9342 = vmatprep.mubr.f32.mxu0 0.0
    %v9343 = vand.u32 %v7651, 4294901760
    %v9344 = vsub.f32 %v7651, %v9343
    %v9345 = vand.u32 %v9344, 4294901760
    %v9346 = vsub.f32 %v9344, %v9345
    %v9347 = vand.u32 %v9346, 4294901760
    %9348 = vmatmul.mubr.f32.gmra.mxu0 %v9347
    %v9349 = vpop.f32.mrf.mxu0
    %v9350 = vadd.f32 0.0, %v9349
    %v9351 = vpop.f32.mrf.mxu0
    %9352 = vmatprep.mubr.f32.mxu0 0.0
    %v9353 = vand.u32 %v7657, 4294901760
    %v9354 = vsub.f32 %v7657, %v9353
    %v9355 = vand.u32 %v9354, 4294901760
    %v9356 = vsub.f32 %v9354, %v9355
    %v9357 = vand.u32 %v9356, 4294901760
    %9358 = vmatmul.mubr.f32.gmra.mxu0 %v9357
    %v9359 = vpop.f32.mrf.mxu0
    %v9360 = vadd.f32 0.0, %v9359
    %v9361 = vpop.f32.mrf.mxu0
    %9362 = vmatprep.mubr.f32.mxu0 0.0
    %v9363 = vand.u32 %v7663, 4294901760
    %v9364 = vsub.f32 %v7663, %v9363
    %v9365 = vand.u32 %v9364, 4294901760
    %v9366 = vsub.f32 %v9364, %v9365
    %v9367 = vand.u32 %v9366, 4294901760
    %9368 = vmatmul.mubr.f32.gmra.mxu0 %v9367
    %v9369 = vpop.f32.mrf.mxu0
    %v9370 = vadd.f32 0.0, %v9369
    %v9371 = vpop.f32.mrf.mxu0
    %9372 = vmatprep.mubr.f32.mxu0 0.0
    %v9373 = vand.u32 %v7669, 4294901760
    %v9374 = vsub.f32 %v7669, %v9373
    %v9375 = vand.u32 %v9374, 4294901760
    %v9376 = vsub.f32 %v9374, %v9375
    %v9377 = vand.u32 %v9376, 4294901760
    %9378 = vmatmul.mubr.f32.gmra.mxu0 %v9377
    %v9379 = vpop.f32.mrf.mxu0
    %v9380 = vadd.f32 0.0, %v9379
    %v9381 = vpop.f32.mrf.mxu0
    %9382 = vdwg.mxu0
    %9383 = vmatprep.subr.mxu0 0.0
    %v9384 = vand.u32 %v9261, 4294901760
    %v9385 = vsub.f32 %v9261, %v9384
    %v9386 = vand.u32 %v9385, 4294901760
    %v9387 = vsub.f32 %v9385, %v9386
    %v9388 = vand.u32 %v9387, 4294901760
    %9389 = vmatpush1.msra.mxu0 %v9388
    %9390 = vmatprep.subr.mxu0 0.0
    %v9391 = vand.u32 %v9260, 4294901760
    %v9392 = vsub.f32 %v9260, %v9391
    %v9393 = vand.u32 %v9392, 4294901760
    %v9394 = vsub.f32 %v9392, %v9393
    %v9395 = vand.u32 %v9394, 4294901760
    %9396 = vmatpush1.msra.mxu0 %v9395
    %9397 = vmatprep.subr.mxu0 0.0
    %v9398 = vand.u32 %v9259, 4294901760
    %v9399 = vsub.f32 %v9259, %v9398
    %v9400 = vand.u32 %v9399, 4294901760
    %v9401 = vsub.f32 %v9399, %v9400
    %v9402 = vand.u32 %v9401, 4294901760
    %9403 = vmatpush1.msra.mxu0 %v9402
    %9404 = vmatprep.subr.mxu0 0.0
    %v9405 = vand.u32 %v9258, 4294901760
    %v9406 = vsub.f32 %v9258, %v9405
    %v9407 = vand.u32 %v9406, 4294901760
    %v9408 = vsub.f32 %v9406, %v9407
    %v9409 = vand.u32 %v9408, 4294901760
    %9410 = vmatpush1.msra.mxu0 %v9409
    %9411 = vmatprep.subr.mxu0 0.0
    %v9412 = vand.u32 %v9257, 4294901760
    %v9413 = vsub.f32 %v9257, %v9412
    %v9414 = vand.u32 %v9413, 4294901760
    %v9415 = vsub.f32 %v9413, %v9414
    %v9416 = vand.u32 %v9415, 4294901760
    %9417 = vmatpush1.msra.mxu0 %v9416
    %9418 = vmatprep.subr.mxu0 0.0
    %v9419 = vand.u32 %v9256, 4294901760
    %v9420 = vsub.f32 %v9256, %v9419
    %v9421 = vand.u32 %v9420, 4294901760
    %v9422 = vsub.f32 %v9420, %v9421
    %v9423 = vand.u32 %v9422, 4294901760
    %9424 = vmatpush1.msra.mxu0 %v9423
    %9425 = vmatprep.subr.mxu0 0.0
    %v9426 = vand.u32 %v9255, 4294901760
    %v9427 = vsub.f32 %v9255, %v9426
    %v9428 = vand.u32 %v9427, 4294901760
    %v9429 = vsub.f32 %v9427, %v9428
    %v9430 = vand.u32 %v9429, 4294901760
    %9431 = vmatpush1.msra.mxu0 %v9430
    %9432 = vmatprep.subr.mxu0 0.0
    %v9433 = vand.u32 %v9254, 4294901760
    %v9434 = vsub.f32 %v9254, %v9433
    %v9435 = vand.u32 %v9434, 4294901760
    %v9436 = vsub.f32 %v9434, %v9435
    %v9437 = vand.u32 %v9436, 4294901760
    %9438 = vmatpush1.msra.mxu0 %v9437
    %9439 = vmatprep.subr.mxu0 0.0
    %v9440 = vand.u32 %v9253, 4294901760
    %v9441 = vsub.f32 %v9253, %v9440
    %v9442 = vand.u32 %v9441, 4294901760
    %v9443 = vsub.f32 %v9441, %v9442
    %v9444 = vand.u32 %v9443, 4294901760
    %9445 = vmatpush1.msra.mxu0 %v9444
    %9446 = vmatprep.subr.mxu0 0.0
    %v9447 = vand.u32 %v9252, 4294901760
    %v9448 = vsub.f32 %v9252, %v9447
    %v9449 = vand.u32 %v9448, 4294901760
    %v9450 = vsub.f32 %v9448, %v9449
    %v9451 = vand.u32 %v9450, 4294901760
    %9452 = vmatpush1.msra.mxu0 %v9451
    %9453 = vmatprep.subr.mxu0 0.0
    %v9454 = vand.u32 %v9251, 4294901760
    %v9455 = vsub.f32 %v9251, %v9454
    %v9456 = vand.u32 %v9455, 4294901760
    %v9457 = vsub.f32 %v9455, %v9456
    %v9458 = vand.u32 %v9457, 4294901760
    %9459 = vmatpush1.msra.mxu0 %v9458
    %9460 = vmatprep.subr.mxu0 0.0
    %v9461 = vand.u32 %v9250, 4294901760
    %v9462 = vsub.f32 %v9250, %v9461
    %v9463 = vand.u32 %v9462, 4294901760
    %v9464 = vsub.f32 %v9462, %v9463
    %v9465 = vand.u32 %v9464, 4294901760
    %9466 = vmatpush1.msra.mxu0 %v9465
    %9467 = vmatprep.subr.mxu0 0.0
    %v9468 = vand.u32 %v9249, 4294901760
    %v9469 = vsub.f32 %v9249, %v9468
    %v9470 = vand.u32 %v9469, 4294901760
    %v9471 = vsub.f32 %v9469, %v9470
    %v9472 = vand.u32 %v9471, 4294901760
    %9473 = vmatpush1.msra.mxu0 %v9472
    %9474 = vmatprep.subr.mxu0 0.0
    %v9475 = vand.u32 %v9248, 4294901760
    %v9476 = vsub.f32 %v9248, %v9475
    %v9477 = vand.u32 %v9476, 4294901760
    %v9478 = vsub.f32 %v9476, %v9477
    %v9479 = vand.u32 %v9478, 4294901760
    %9480 = vmatpush1.msra.mxu0 %v9479
    %9481 = vmatprep.subr.mxu0 0.0
    %v9482 = vand.u32 %v9247, 4294901760
    %v9483 = vsub.f32 %v9247, %v9482
    %v9484 = vand.u32 %v9483, 4294901760
    %v9485 = vsub.f32 %v9483, %v9484
    %v9486 = vand.u32 %v9485, 4294901760
    %9487 = vmatpush1.msra.mxu0 %v9486
    %9488 = vmatprep.subr.mxu0 0.0
    %v9489 = vand.u32 %v9246, 4294901760
    %v9490 = vsub.f32 %v9246, %v9489
    %v9491 = vand.u32 %v9490, 4294901760
    %v9492 = vsub.f32 %v9490, %v9491
    %v9493 = vand.u32 %v9492, 4294901760
    %9494 = vmatpush1.msra.mxu0 %v9493
    %9495 = vmatprep.subr.mxu0 0.0
    %9496 = vmatpush2.msra.mxu0 0.0
    %9497 = vmatprep.subr.mxu0 0.0
    %9498 = vmatpush2.msra.mxu0 0.0
    %9499 = vmatprep.subr.mxu0 0.0
    %9500 = vmatpush2.msra.mxu0 0.0
    %9501 = vmatprep.subr.mxu0 0.0
    %9502 = vmatpush2.msra.mxu0 0.0
    %9503 = vmatprep.subr.mxu0 0.0
    %9504 = vmatpush2.msra.mxu0 0.0
    %9505 = vmatprep.subr.mxu0 0.0
    %9506 = vmatpush2.msra.mxu0 0.0
    %9507 = vmatprep.subr.mxu0 0.0
    %9508 = vmatpush2.msra.mxu0 0.0
    %9509 = vmatprep.subr.mxu0 0.0
    %9510 = vmatpush2.msra.mxu0 0.0
    %9511 = vmatprep.subr.mxu0 0.0
    %9512 = vmatpush2.msra.mxu0 0.0
    %9513 = vmatprep.subr.mxu0 0.0
    %9514 = vmatpush2.msra.mxu0 0.0
    %9515 = vmatprep.subr.mxu0 0.0
    %9516 = vmatpush2.msra.mxu0 0.0
    %9517 = vmatprep.subr.mxu0 0.0
    %9518 = vmatpush2.msra.mxu0 0.0
    %9519 = vmatprep.subr.mxu0 0.0
    %9520 = vmatpush2.msra.mxu0 0.0
    %9521 = vmatprep.subr.mxu0 0.0
    %9522 = vmatpush2.msra.mxu0 0.0
    %9523 = vmatprep.subr.mxu0 0.0
    %9524 = vmatpush2.msra.mxu0 0.0
    %9525 = vmatprep.subr.mxu0 0.0
    %9526 = vmatpush2.msra.mxu0 0.0
    %9527 = vmatprep.mubr.f32.mxu0 0.0
    %v9528 = vand.u32 %v7651, 4294901760
    %9529 = vmatmul.mubr.f32.gmra.mxu0 %v9528
    %v9530 = vpop.f32.mrf.mxu0
    %v9531 = vadd.f32 %v9350, %v9530
    %v9532 = vpop.f32.mrf.mxu0
    %9533 = vmatprep.mubr.f32.mxu0 0.0
    %v9534 = vand.u32 %v7657, 4294901760
    %9535 = vmatmul.mubr.f32.gmra.mxu0 %v9534
    %v9536 = vpop.f32.mrf.mxu0
    %v9537 = vadd.f32 %v9360, %v9536
    %v9538 = vpop.f32.mrf.mxu0
    %9539 = vmatprep.mubr.f32.mxu0 0.0
    %v9540 = vand.u32 %v7663, 4294901760
    %9541 = vmatmul.mubr.f32.gmra.mxu0 %v9540
    %v9542 = vpop.f32.mrf.mxu0
    %v9543 = vadd.f32 %v9370, %v9542
    %v9544 = vpop.f32.mrf.mxu0
    %9545 = vmatprep.mubr.f32.mxu0 0.0
    %v9546 = vand.u32 %v7669, 4294901760
    %9547 = vmatmul.mubr.f32.gmra.mxu0 %v9546
    %v9548 = vpop.f32.mrf.mxu0
    %v9549 = vadd.f32 %v9380, %v9548
    %v9550 = vpop.f32.mrf.mxu0
    %9551 = vdwg.mxu0
    %9552 = vmatprep.subr.mxu0 0.0
    %v9553 = vand.u32 %v9261, 4294901760
    %v9554 = vsub.f32 %v9261, %v9553
    %9555 = vmatpush1.msra.mxu0 %v9554
    %9556 = vmatprep.subr.mxu0 0.0
    %v9557 = vand.u32 %v9260, 4294901760
    %v9558 = vsub.f32 %v9260, %v9557
    %9559 = vmatpush1.msra.mxu0 %v9558
    %9560 = vmatprep.subr.mxu0 0.0
    %v9561 = vand.u32 %v9259, 4294901760
    %v9562 = vsub.f32 %v9259, %v9561
    %9563 = vmatpush1.msra.mxu0 %v9562
    %9564 = vmatprep.subr.mxu0 0.0
    %v9565 = vand.u32 %v9258, 4294901760
    %v9566 = vsub.f32 %v9258, %v9565
    %9567 = vmatpush1.msra.mxu0 %v9566
    %9568 = vmatprep.subr.mxu0 0.0
    %v9569 = vand.u32 %v9257, 4294901760
    %v9570 = vsub.f32 %v9257, %v9569
    %9571 = vmatpush1.msra.mxu0 %v9570
    %9572 = vmatprep.subr.mxu0 0.0
    %v9573 = vand.u32 %v9256, 4294901760
    %v9574 = vsub.f32 %v9256, %v9573
    %9575 = vmatpush1.msra.mxu0 %v9574
    %9576 = vmatprep.subr.mxu0 0.0
    %v9577 = vand.u32 %v9255, 4294901760
    %v9578 = vsub.f32 %v9255, %v9577
    %9579 = vmatpush1.msra.mxu0 %v9578
    %9580 = vmatprep.subr.mxu0 0.0
    %v9581 = vand.u32 %v9254, 4294901760
    %v9582 = vsub.f32 %v9254, %v9581
    %9583 = vmatpush1.msra.mxu0 %v9582
    %9584 = vmatprep.subr.mxu0 0.0
    %v9585 = vand.u32 %v9253, 4294901760
    %v9586 = vsub.f32 %v9253, %v9585
    %9587 = vmatpush1.msra.mxu0 %v9586
    %9588 = vmatprep.subr.mxu0 0.0
    %v9589 = vand.u32 %v9252, 4294901760
    %v9590 = vsub.f32 %v9252, %v9589
    %9591 = vmatpush1.msra.mxu0 %v9590
    %9592 = vmatprep.subr.mxu0 0.0
    %v9593 = vand.u32 %v9251, 4294901760
    %v9594 = vsub.f32 %v9251, %v9593
    %9595 = vmatpush1.msra.mxu0 %v9594
    %9596 = vmatprep.subr.mxu0 0.0
    %v9597 = vand.u32 %v9250, 4294901760
    %v9598 = vsub.f32 %v9250, %v9597
    %9599 = vmatpush1.msra.mxu0 %v9598
    %9600 = vmatprep.subr.mxu0 0.0
    %v9601 = vand.u32 %v9249, 4294901760
    %v9602 = vsub.f32 %v9249, %v9601
    %9603 = vmatpush1.msra.mxu0 %v9602
    %9604 = vmatprep.subr.mxu0 0.0
    %v9605 = vand.u32 %v9248, 4294901760
    %v9606 = vsub.f32 %v9248, %v9605
    %9607 = vmatpush1.msra.mxu0 %v9606
    %9608 = vmatprep.subr.mxu0 0.0
    %v9609 = vand.u32 %v9247, 4294901760
    %v9610 = vsub.f32 %v9247, %v9609
    %9611 = vmatpush1.msra.mxu0 %v9610
    %9612 = vmatprep.subr.mxu0 0.0
    %v9613 = vand.u32 %v9246, 4294901760
    %v9614 = vsub.f32 %v9246, %v9613
    %9615 = vmatpush1.msra.mxu0 %v9614
    %9616 = vmatprep.subr.mxu0 0.0
    %9617 = vmatpush2.msra.mxu0 0.0
    %9618 = vmatprep.subr.mxu0 0.0
    %9619 = vmatpush2.msra.mxu0 0.0
    %9620 = vmatprep.subr.mxu0 0.0
    %9621 = vmatpush2.msra.mxu0 0.0
    %9622 = vmatprep.subr.mxu0 0.0
    %9623 = vmatpush2.msra.mxu0 0.0
    %9624 = vmatprep.subr.mxu0 0.0
    %9625 = vmatpush2.msra.mxu0 0.0
    %9626 = vmatprep.subr.mxu0 0.0
    %9627 = vmatpush2.msra.mxu0 0.0
    %9628 = vmatprep.subr.mxu0 0.0
    %9629 = vmatpush2.msra.mxu0 0.0
    %9630 = vmatprep.subr.mxu0 0.0
    %9631 = vmatpush2.msra.mxu0 0.0
    %9632 = vmatprep.subr.mxu0 0.0
    %9633 = vmatpush2.msra.mxu0 0.0
    %9634 = vmatprep.subr.mxu0 0.0
    %9635 = vmatpush2.msra.mxu0 0.0
    %9636 = vmatprep.subr.mxu0 0.0
    %9637 = vmatpush2.msra.mxu0 0.0
    %9638 = vmatprep.subr.mxu0 0.0
    %9639 = vmatpush2.msra.mxu0 0.0
    %9640 = vmatprep.subr.mxu0 0.0
    %9641 = vmatpush2.msra.mxu0 0.0
    %9642 = vmatprep.subr.mxu0 0.0
    %9643 = vmatpush2.msra.mxu0 0.0
    %9644 = vmatprep.subr.mxu0 0.0
    %9645 = vmatpush2.msra.mxu0 0.0
    %9646 = vmatprep.subr.mxu0 0.0
    %9647 = vmatpush2.msra.mxu0 0.0
    %9648 = vmatprep.mubr.f32.mxu0 0.0
    %v9649 = vand.u32 %v7651, 4294901760
    %v9650 = vsub.f32 %v7651, %v9649
    %9651 = vmatmul.mubr.f32.gmra.mxu0 %v9650
    %v9652 = vpop.f32.mrf.mxu0
    %v9653 = vadd.f32 %v9531, %v9652
    %v9654 = vpop.f32.mrf.mxu0
    %9655 = vmatprep.mubr.f32.mxu0 0.0
    %v9656 = vand.u32 %v7657, 4294901760
    %v9657 = vsub.f32 %v7657, %v9656
    %9658 = vmatmul.mubr.f32.gmra.mxu0 %v9657
    %v9659 = vpop.f32.mrf.mxu0
    %v9660 = vadd.f32 %v9537, %v9659
    %v9661 = vpop.f32.mrf.mxu0
    %9662 = vmatprep.mubr.f32.mxu0 0.0
    %v9663 = vand.u32 %v7663, 4294901760
    %v9664 = vsub.f32 %v7663, %v9663
    %9665 = vmatmul.mubr.f32.gmra.mxu0 %v9664
    %v9666 = vpop.f32.mrf.mxu0
    %v9667 = vadd.f32 %v9543, %v9666
    %v9668 = vpop.f32.mrf.mxu0
    %9669 = vmatprep.mubr.f32.mxu0 0.0
    %v9670 = vand.u32 %v7669, 4294901760
    %v9671 = vsub.f32 %v7669, %v9670
    %9672 = vmatmul.mubr.f32.gmra.mxu0 %v9671
    %v9673 = vpop.f32.mrf.mxu0
    %v9674 = vadd.f32 %v9549, %v9673
    %v9675 = vpop.f32.mrf.mxu0
    %9676 = vdwg.mxu0
    %9677 = vmatprep.subr.mxu0 0.0
    %v9678 = vand.u32 %v9261, 4294901760
    %9679 = vmatpush1.msra.mxu0 %v9678
    %9680 = vmatprep.subr.mxu0 0.0
    %v9681 = vand.u32 %v9260, 4294901760
    %9682 = vmatpush1.msra.mxu0 %v9681
    %9683 = vmatprep.subr.mxu0 0.0
    %v9684 = vand.u32 %v9259, 4294901760
    %9685 = vmatpush1.msra.mxu0 %v9684
    %9686 = vmatprep.subr.mxu0 0.0
    %v9687 = vand.u32 %v9258, 4294901760
    %9688 = vmatpush1.msra.mxu0 %v9687
    %9689 = vmatprep.subr.mxu0 0.0
    %v9690 = vand.u32 %v9257, 4294901760
    %9691 = vmatpush1.msra.mxu0 %v9690
    %9692 = vmatprep.subr.mxu0 0.0
    %v9693 = vand.u32 %v9256, 4294901760
    %9694 = vmatpush1.msra.mxu0 %v9693
    %9695 = vmatprep.subr.mxu0 0.0
    %v9696 = vand.u32 %v9255, 4294901760
    %9697 = vmatpush1.msra.mxu0 %v9696
    %9698 = vmatprep.subr.mxu0 0.0
    %v9699 = vand.u32 %v9254, 4294901760
    %9700 = vmatpush1.msra.mxu0 %v9699
    %9701 = vmatprep.subr.mxu0 0.0
    %v9702 = vand.u32 %v9253, 4294901760
    %9703 = vmatpush1.msra.mxu0 %v9702
    %9704 = vmatprep.subr.mxu0 0.0
    %v9705 = vand.u32 %v9252, 4294901760
    %9706 = vmatpush1.msra.mxu0 %v9705
    %9707 = vmatprep.subr.mxu0 0.0
    %v9708 = vand.u32 %v9251, 4294901760
    %9709 = vmatpush1.msra.mxu0 %v9708
    %9710 = vmatprep.subr.mxu0 0.0
    %v9711 = vand.u32 %v9250, 4294901760
    %9712 = vmatpush1.msra.mxu0 %v9711
    %9713 = vmatprep.subr.mxu0 0.0
    %v9714 = vand.u32 %v9249, 4294901760
    %9715 = vmatpush1.msra.mxu0 %v9714
    %9716 = vmatprep.subr.mxu0 0.0
    %v9717 = vand.u32 %v9248, 4294901760
    %9718 = vmatpush1.msra.mxu0 %v9717
    %9719 = vmatprep.subr.mxu0 0.0
    %v9720 = vand.u32 %v9247, 4294901760
    %9721 = vmatpush1.msra.mxu0 %v9720
    %9722 = vmatprep.subr.mxu0 0.0
    %v9723 = vand.u32 %v9246, 4294901760
    %9724 = vmatpush1.msra.mxu0 %v9723
    %9725 = vmatprep.subr.mxu0 0.0
    %9726 = vmatpush2.msra.mxu0 0.0
    %9727 = vmatprep.subr.mxu0 0.0
    %9728 = vmatpush2.msra.mxu0 0.0
    %9729 = vmatprep.subr.mxu0 0.0
    %9730 = vmatpush2.msra.mxu0 0.0
    %9731 = vmatprep.subr.mxu0 0.0
    %9732 = vmatpush2.msra.mxu0 0.0
    %9733 = vmatprep.subr.mxu0 0.0
    %9734 = vmatpush2.msra.mxu0 0.0
    %9735 = vmatprep.subr.mxu0 0.0
    %9736 = vmatpush2.msra.mxu0 0.0
    %9737 = vmatprep.subr.mxu0 0.0
    %9738 = vmatpush2.msra.mxu0 0.0
    %9739 = vmatprep.subr.mxu0 0.0
    %9740 = vmatpush2.msra.mxu0 0.0
    %9741 = vmatprep.subr.mxu0 0.0
    %9742 = vmatpush2.msra.mxu0 0.0
    %9743 = vmatprep.subr.mxu0 0.0
    %9744 = vmatpush2.msra.mxu0 0.0
    %9745 = vmatprep.subr.mxu0 0.0
    %9746 = vmatpush2.msra.mxu0 0.0
    %9747 = vmatprep.subr.mxu0 0.0
    %9748 = vmatpush2.msra.mxu0 0.0
    %9749 = vmatprep.subr.mxu0 0.0
    %9750 = vmatpush2.msra.mxu0 0.0
    %9751 = vmatprep.subr.mxu0 0.0
    %9752 = vmatpush2.msra.mxu0 0.0
    %9753 = vmatprep.subr.mxu0 0.0
    %9754 = vmatpush2.msra.mxu0 0.0
    %9755 = vmatprep.subr.mxu0 0.0
    %9756 = vmatpush2.msra.mxu0 0.0
    %9757 = vmatprep.mubr.f32.mxu0 0.0
    %v9758 = vand.u32 %v7651, 4294901760
    %v9759 = vsub.f32 %v7651, %v9758
    %v9760 = vand.u32 %v9759, 4294901760
    %9761 = vmatmul.mubr.f32.gmra.mxu0 %v9760
    %v9762 = vpop.f32.mrf.mxu0
    %v9763 = vadd.f32 %v9653, %v9762
    %v9764 = vpop.f32.mrf.mxu0
    %9765 = vmatprep.mubr.f32.mxu0 0.0
    %v9766 = vand.u32 %v7657, 4294901760
    %v9767 = vsub.f32 %v7657, %v9766
    %v9768 = vand.u32 %v9767, 4294901760
    %9769 = vmatmul.mubr.f32.gmra.mxu0 %v9768
    %v9770 = vpop.f32.mrf.mxu0
    %v9771 = vadd.f32 %v9660, %v9770
    %v9772 = vpop.f32.mrf.mxu0
    %9773 = vmatprep.mubr.f32.mxu0 0.0
    %v9774 = vand.u32 %v7663, 4294901760
    %v9775 = vsub.f32 %v7663, %v9774
    %v9776 = vand.u32 %v9775, 4294901760
    %9777 = vmatmul.mubr.f32.gmra.mxu0 %v9776
    %v9778 = vpop.f32.mrf.mxu0
    %v9779 = vadd.f32 %v9667, %v9778
    %v9780 = vpop.f32.mrf.mxu0
    %9781 = vmatprep.mubr.f32.mxu0 0.0
    %v9782 = vand.u32 %v7669, 4294901760
    %v9783 = vsub.f32 %v7669, %v9782
    %v9784 = vand.u32 %v9783, 4294901760
    %9785 = vmatmul.mubr.f32.gmra.mxu0 %v9784
    %v9786 = vpop.f32.mrf.mxu0
    %v9787 = vadd.f32 %v9674, %v9786
    %v9788 = vpop.f32.mrf.mxu0
    %9789 = vdwg.mxu0
    %9790 = vmatprep.subr.mxu0 0.0
    %v9791 = vand.u32 %v9261, 4294901760
    %v9792 = vsub.f32 %v9261, %v9791
    %v9793 = vand.u32 %v9792, 4294901760
    %9794 = vmatpush1.msra.mxu0 %v9793
    %9795 = vmatprep.subr.mxu0 0.0
    %v9796 = vand.u32 %v9260, 4294901760
    %v9797 = vsub.f32 %v9260, %v9796
    %v9798 = vand.u32 %v9797, 4294901760
    %9799 = vmatpush1.msra.mxu0 %v9798
    %9800 = vmatprep.subr.mxu0 0.0
    %v9801 = vand.u32 %v9259, 4294901760
    %v9802 = vsub.f32 %v9259, %v9801
    %v9803 = vand.u32 %v9802, 4294901760
    %9804 = vmatpush1.msra.mxu0 %v9803
    %9805 = vmatprep.subr.mxu0 0.0
    %v9806 = vand.u32 %v9258, 4294901760
    %v9807 = vsub.f32 %v9258, %v9806
    %v9808 = vand.u32 %v9807, 4294901760
    %9809 = vmatpush1.msra.mxu0 %v9808
    %9810 = vmatprep.subr.mxu0 0.0
    %v9811 = vand.u32 %v9257, 4294901760
    %v9812 = vsub.f32 %v9257, %v9811
    %v9813 = vand.u32 %v9812, 4294901760
    %9814 = vmatpush1.msra.mxu0 %v9813
    %9815 = vmatprep.subr.mxu0 0.0
    %v9816 = vand.u32 %v9256, 4294901760
    %v9817 = vsub.f32 %v9256, %v9816
    %v9818 = vand.u32 %v9817, 4294901760
    %9819 = vmatpush1.msra.mxu0 %v9818
    %9820 = vmatprep.subr.mxu0 0.0
    %v9821 = vand.u32 %v9255, 4294901760
    %v9822 = vsub.f32 %v9255, %v9821
    %v9823 = vand.u32 %v9822, 4294901760
    %9824 = vmatpush1.msra.mxu0 %v9823
    %9825 = vmatprep.subr.mxu0 0.0
    %v9826 = vand.u32 %v9254, 4294901760
    %v9827 = vsub.f32 %v9254, %v9826
    %v9828 = vand.u32 %v9827, 4294901760
    %9829 = vmatpush1.msra.mxu0 %v9828
    %9830 = vmatprep.subr.mxu0 0.0
    %v9831 = vand.u32 %v9253, 4294901760
    %v9832 = vsub.f32 %v9253, %v9831
    %v9833 = vand.u32 %v9832, 4294901760
    %9834 = vmatpush1.msra.mxu0 %v9833
    %9835 = vmatprep.subr.mxu0 0.0
    %v9836 = vand.u32 %v9252, 4294901760
    %v9837 = vsub.f32 %v9252, %v9836
    %v9838 = vand.u32 %v9837, 4294901760
    %9839 = vmatpush1.msra.mxu0 %v9838
    %9840 = vmatprep.subr.mxu0 0.0
    %v9841 = vand.u32 %v9251, 4294901760
    %v9842 = vsub.f32 %v9251, %v9841
    %v9843 = vand.u32 %v9842, 4294901760
    %9844 = vmatpush1.msra.mxu0 %v9843
    %9845 = vmatprep.subr.mxu0 0.0
    %v9846 = vand.u32 %v9250, 4294901760
    %v9847 = vsub.f32 %v9250, %v9846
    %v9848 = vand.u32 %v9847, 4294901760
    %9849 = vmatpush1.msra.mxu0 %v9848
    %9850 = vmatprep.subr.mxu0 0.0
    %v9851 = vand.u32 %v9249, 4294901760
    %v9852 = vsub.f32 %v9249, %v9851
    %v9853 = vand.u32 %v9852, 4294901760
    %9854 = vmatpush1.msra.mxu0 %v9853
    %9855 = vmatprep.subr.mxu0 0.0
    %v9856 = vand.u32 %v9248, 4294901760
    %v9857 = vsub.f32 %v9248, %v9856
    %v9858 = vand.u32 %v9857, 4294901760
    %9859 = vmatpush1.msra.mxu0 %v9858
    %9860 = vmatprep.subr.mxu0 0.0
    %v9861 = vand.u32 %v9247, 4294901760
    %v9862 = vsub.f32 %v9247, %v9861
    %v9863 = vand.u32 %v9862, 4294901760
    %9864 = vmatpush1.msra.mxu0 %v9863
    %9865 = vmatprep.subr.mxu0 0.0
    %v9866 = vand.u32 %v9246, 4294901760
    %v9867 = vsub.f32 %v9246, %v9866
    %v9868 = vand.u32 %v9867, 4294901760
    %9869 = vmatpush1.msra.mxu0 %v9868
    %9870 = vmatprep.subr.mxu0 0.0
    %9871 = vmatpush2.msra.mxu0 0.0
    %9872 = vmatprep.subr.mxu0 0.0
    %9873 = vmatpush2.msra.mxu0 0.0
    %9874 = vmatprep.subr.mxu0 0.0
    %9875 = vmatpush2.msra.mxu0 0.0
    %9876 = vmatprep.subr.mxu0 0.0
    %9877 = vmatpush2.msra.mxu0 0.0
    %9878 = vmatprep.subr.mxu0 0.0
    %9879 = vmatpush2.msra.mxu0 0.0
    %9880 = vmatprep.subr.mxu0 0.0
    %9881 = vmatpush2.msra.mxu0 0.0
    %9882 = vmatprep.subr.mxu0 0.0
    %9883 = vmatpush2.msra.mxu0 0.0
    %9884 = vmatprep.subr.mxu0 0.0
    %9885 = vmatpush2.msra.mxu0 0.0
    %9886 = vmatprep.subr.mxu0 0.0
    %9887 = vmatpush2.msra.mxu0 0.0
    %9888 = vmatprep.subr.mxu0 0.0
    %9889 = vmatpush2.msra.mxu0 0.0
    %9890 = vmatprep.subr.mxu0 0.0
    %9891 = vmatpush2.msra.mxu0 0.0
    %9892 = vmatprep.subr.mxu0 0.0
    %9893 = vmatpush2.msra.mxu0 0.0
    %9894 = vmatprep.subr.mxu0 0.0
    %9895 = vmatpush2.msra.mxu0 0.0
    %9896 = vmatprep.subr.mxu0 0.0
    %9897 = vmatpush2.msra.mxu0 0.0
    %9898 = vmatprep.subr.mxu0 0.0
    %9899 = vmatpush2.msra.mxu0 0.0
    %9900 = vmatprep.subr.mxu0 0.0
    %9901 = vmatpush2.msra.mxu0 0.0
    %9902 = vmatprep.mubr.f32.mxu0 0.0
    %v9903 = vand.u32 %v7651, 4294901760
    %9904 = vmatmul.mubr.f32.gmra.mxu0 %v9903
    %v9905 = vpop.f32.mrf.mxu0
    %v9906 = vadd.f32 %v9763, %v9905
    %v9907 = vpop.f32.mrf.mxu0
    %9908 = vmatprep.mubr.f32.mxu0 0.0
    %v9909 = vand.u32 %v7657, 4294901760
    %9910 = vmatmul.mubr.f32.gmra.mxu0 %v9909
    %v9911 = vpop.f32.mrf.mxu0
    %v9912 = vadd.f32 %v9771, %v9911
    %v9913 = vpop.f32.mrf.mxu0
    %9914 = vmatprep.mubr.f32.mxu0 0.0
    %v9915 = vand.u32 %v7663, 4294901760
    %9916 = vmatmul.mubr.f32.gmra.mxu0 %v9915
    %v9917 = vpop.f32.mrf.mxu0
    %v9918 = vadd.f32 %v9779, %v9917
    %v9919 = vpop.f32.mrf.mxu0
    %9920 = vmatprep.mubr.f32.mxu0 0.0
    %v9921 = vand.u32 %v7669, 4294901760
    %9922 = vmatmul.mubr.f32.gmra.mxu0 %v9921
    %v9923 = vpop.f32.mrf.mxu0
    %v9924 = vadd.f32 %v9787, %v9923
    %v9925 = vpop.f32.mrf.mxu0
    %9926 = vdwg.mxu0
    %9927 = vmatprep.subr.mxu0 0.0
    %v9928 = vand.u32 %v9261, 4294901760
    %9929 = vmatpush1.msra.mxu0 %v9928
    %9930 = vmatprep.subr.mxu0 0.0
    %v9931 = vand.u32 %v9260, 4294901760
    %9932 = vmatpush1.msra.mxu0 %v9931
    %9933 = vmatprep.subr.mxu0 0.0
    %v9934 = vand.u32 %v9259, 4294901760
    %9935 = vmatpush1.msra.mxu0 %v9934
    %9936 = vmatprep.subr.mxu0 0.0
    %v9937 = vand.u32 %v9258, 4294901760
    %9938 = vmatpush1.msra.mxu0 %v9937
    %9939 = vmatprep.subr.mxu0 0.0
    %v9940 = vand.u32 %v9257, 4294901760
    %9941 = vmatpush1.msra.mxu0 %v9940
    %9942 = vmatprep.subr.mxu0 0.0
    %v9943 = vand.u32 %v9256, 4294901760
    %9944 = vmatpush1.msra.mxu0 %v9943
    %9945 = vmatprep.subr.mxu0 0.0
    %v9946 = vand.u32 %v9255, 4294901760
    %9947 = vmatpush1.msra.mxu0 %v9946
    %9948 = vmatprep.subr.mxu0 0.0
    %v9949 = vand.u32 %v9254, 4294901760
    %9950 = vmatpush1.msra.mxu0 %v9949
    %9951 = vmatprep.subr.mxu0 0.0
    %v9952 = vand.u32 %v9253, 4294901760
    %9953 = vmatpush1.msra.mxu0 %v9952
    %9954 = vmatprep.subr.mxu0 0.0
    %v9955 = vand.u32 %v9252, 4294901760
    %9956 = vmatpush1.msra.mxu0 %v9955
    %9957 = vmatprep.subr.mxu0 0.0
    %v9958 = vand.u32 %v9251, 4294901760
    %9959 = vmatpush1.msra.mxu0 %v9958
    %9960 = vmatprep.subr.mxu0 0.0
    %v9961 = vand.u32 %v9250, 4294901760
    %9962 = vmatpush1.msra.mxu0 %v9961
    %9963 = vmatprep.subr.mxu0 0.0
    %v9964 = vand.u32 %v9249, 4294901760
    %9965 = vmatpush1.msra.mxu0 %v9964
    %9966 = vmatprep.subr.mxu0 0.0
    %v9967 = vand.u32 %v9248, 4294901760
    %9968 = vmatpush1.msra.mxu0 %v9967
    %9969 = vmatprep.subr.mxu0 0.0
    %v9970 = vand.u32 %v9247, 4294901760
    %9971 = vmatpush1.msra.mxu0 %v9970
    %9972 = vmatprep.subr.mxu0 0.0
    %v9973 = vand.u32 %v9246, 4294901760
    %9974 = vmatpush1.msra.mxu0 %v9973
    %9975 = vmatprep.subr.mxu0 0.0
    %9976 = vmatpush2.msra.mxu0 0.0
    %9977 = vmatprep.subr.mxu0 0.0
    %9978 = vmatpush2.msra.mxu0 0.0
    %9979 = vmatprep.subr.mxu0 0.0
    %9980 = vmatpush2.msra.mxu0 0.0
    %9981 = vmatprep.subr.mxu0 0.0
    %9982 = vmatpush2.msra.mxu0 0.0
    %9983 = vmatprep.subr.mxu0 0.0
    %9984 = vmatpush2.msra.mxu0 0.0
    %9985 = vmatprep.subr.mxu0 0.0
    %9986 = vmatpush2.msra.mxu0 0.0
    %9987 = vmatprep.subr.mxu0 0.0
    %9988 = vmatpush2.msra.mxu0 0.0
    %9989 = vmatprep.subr.mxu0 0.0
    %9990 = vmatpush2.msra.mxu0 0.0
    %9991 = vmatprep.subr.mxu0 0.0
    %9992 = vmatpush2.msra.mxu0 0.0
    %9993 = vmatprep.subr.mxu0 0.0
    %9994 = vmatpush2.msra.mxu0 0.0
    %9995 = vmatprep.subr.mxu0 0.0
    %9996 = vmatpush2.msra.mxu0 0.0
    %9997 = vmatprep.subr.mxu0 0.0
    %9998 = vmatpush2.msra.mxu0 0.0
    %9999 = vmatprep.subr.mxu0 0.0
    %10000 = vmatpush2.msra.mxu0 0.0
    %10001 = vmatprep.subr.mxu0 0.0
    %10002 = vmatpush2.msra.mxu0 0.0
    %10003 = vmatprep.subr.mxu0 0.0
    %10004 = vmatpush2.msra.mxu0 0.0
    %10005 = vmatprep.subr.mxu0 0.0
    %10006 = vmatpush2.msra.mxu0 0.0
    %10007 = vmatprep.mubr.f32.mxu0 0.0
    %v10008 = vand.u32 %v7651, 4294901760
    %10009 = vmatmul.mubr.f32.gmra.mxu0 %v10008
    %v10010 = vpop.f32.mrf.mxu0
    %v10011 = vadd.f32 %v9906, %v10010
    %v10012 = vpop.f32.mrf.mxu0
    %10013 = vmatprep.mubr.f32.mxu0 0.0
    %v10014 = vand.u32 %v7657, 4294901760
    %10015 = vmatmul.mubr.f32.gmra.mxu0 %v10014
    %v10016 = vpop.f32.mrf.mxu0
    %v10017 = vadd.f32 %v9912, %v10016
    %v10018 = vpop.f32.mrf.mxu0
    %10019 = vmatprep.mubr.f32.mxu0 0.0
    %v10020 = vand.u32 %v7663, 4294901760
    %10021 = vmatmul.mubr.f32.gmra.mxu0 %v10020
    %v10022 = vpop.f32.mrf.mxu0
    %v10023 = vadd.f32 %v9918, %v10022
    %v10024 = vpop.f32.mrf.mxu0
    %10025 = vmatprep.mubr.f32.mxu0 0.0
    %v10026 = vand.u32 %v7669, 4294901760
    %10027 = vmatmul.mubr.f32.gmra.mxu0 %v10026
    %v10028 = vpop.f32.mrf.mxu0
    %v10029 = vadd.f32 %v9924, %v10028
    %v10030 = vpop.f32.mrf.mxu0
    %10031 = vdwg.mxu0
    %v10032 = vadd.f32 %v9224, %v10011
    %v10033 = vadd.f32 %v9230, %v10017
    %v10034 = vadd.f32 %v9236, %v10023
    %v10035 = vadd.f32 %v9242, %v10029
    %v10036 = vld [vmem:[%s6] sm:$0x1]
    %v10038 = vlaneseq
    %v10039 = vshrl.u32 %v10038, 7
    %v10040 = vsub.s32 0, %v10039
    %v10041 = vrot.slane %v10036, %v10040
    %v10043 = vadd.f32 %v10032, %v10041
    %v10044 = vadd.f32 %v10033, %v10041
    %v10045 = vadd.f32 %v10034, %v10041
    %v10046 = vadd.f32 %v10035, %v10041
    %v10047 = vadd.f32 %v10043, %v101
    %v10048 = vadd.f32 %v10044, %v102
    %v10049 = vadd.f32 %v10045, %v103
    %v10050 = vadd.f32 %v10046, %v104
    %v10051 = vmax.f32 %v10047, 0.0
    %v10052 = vmax.f32 %v10048, 0.0
    %v10053 = vmax.f32 %v10049, 0.0
    %v10054 = vmax.f32 %v10050, 0.0
    %10055 = vst [vmem:[#allocation11] sm:$0xff] %v10051
    %10056 = vst [vmem:[#allocation11 + $0x8] sm:$0xff] %v10052
    %10057 = vst [vmem:[#allocation11 + $0x10] sm:$0xff] %v10053
    %10058 = vst [vmem:[#allocation11 + $0x18] sm:$0xff] %v10054
    // Predicated region
    $region58: #{tpu_custom_call.1} parent=1 // pred_check
      _
    $region59: #{tpu_custom_call.1} parent=1 // pred_check_branch
      %10060 = sbr.rel (0) target = $region61
    $region60: #{tpu_custom_call.1} parent=1 // pred_region
      %s10062 = ssub.s32 512, 512
      %10063 = vsyncadd [#allocation4], %s10062
      %s10064 = sshll.u32 [#allocation11], 4
      %s10065 = int_to_ptr.vmem [resolvable:$true] %s10064
      %10070 = dma.vmem_to_hbm [thread:$0]  %s10065, 512, %s9, [#allocation4], 128, 128, 8
    $region61: #{tpu_custom_call.1} parent=1 // pred_fallthru
      _
    // Predicated region
    $region62: #{tpu_custom_call.1} parent=1 // pred_check
      _
    $region63: #{tpu_custom_call.1} parent=1 // pred_check_branch
      %10072 = sbr.rel (0) target = $region65
    $region64: #{tpu_custom_call.1} parent=1 // pred_region
      %10073 = dma.done [#allocation4], 512
    $region65: #{tpu_custom_call.1} parent=1 // pred_fallthru
      _
    %10074 = vsyncpa [#allocation3], 1
    %10075 = vsyncpa [#allocation6], 1
    %10076 = vsyncpa [#allocation9], 1
    %10077 = vsyncpa [#allocation4], 1

</llo_original>
